<compile_context>
chip_gen: v5e
topology: v5e:2x2
jax: 0.10.0
libtpu: 0.0.40
codegen_flags: <defaults>
</compile_context>

<pallas_src>
import functools

import jax
import jax.numpy as jnp
from jax.experimental import pallas as pl
from jax.experimental.pallas import tpu as pltpu


# ----------------------------- Pallas kernels ------------------------------

def _conv_act_kernel(x_ref, w_ref, b_ref, o_ref):
    # x: [tm, K] bf16, w: [K, Cout] bf16, b: [1, Cout] f32 -> o: [tm, Cout] bf16
    y = jnp.dot(x_ref[...], w_ref[...], preferred_element_type=jnp.float32)
    y = y + b_ref[...]
    o_ref[...] = jnp.where(y >= 0, y, 0.2 * y).astype(o_ref.dtype)


def _conv_act_bn_kernel(x_ref, w_ref, b_ref, g_ref, be_ref, o_ref, acc_ref, *, eps):
    # grid = (K_blocks,); accumulate over the K (reduction) axis.
    k = pl.program_id(0)

    @pl.when(k == 0)
    def _init():
        acc_ref[...] = jnp.zeros_like(acc_ref)

    acc_ref[...] += jnp.dot(x_ref[...], w_ref[...],
                            preferred_element_type=jnp.float32)

    @pl.when(k == pl.num_programs(0) - 1)
    def _finalize():
        y = acc_ref[...] + b_ref[...]
        y = jnp.where(y >= 0, y, 0.2 * y)
        # Training-mode BatchNorm (biased variance), single-pass stats.
        mean = jnp.mean(y, axis=0, keepdims=True)
        var = jnp.mean(y * y, axis=0, keepdims=True) - mean * mean
        inv = jax.lax.rsqrt(var + eps)
        o_ref[...] = ((y - mean) * inv * g_ref[...] + be_ref[...]).astype(o_ref.dtype)


def _conv_act_bn_head_kernel(x_ref, w_ref, b_ref, g_ref, be_ref,
                             w4_ref, sel_ref, b4_ref, o_ref, acc_ref, *, eps):
    # grid = (K_blocks,). conv3 accumulate; the finalize step runs
    # lrelu -> bn2 -> conv4 (per-image full reduce) -> sigmoid, all in VMEM.
    k = pl.program_id(0)

    @pl.when(k == 0)
    def _init():
        acc_ref[...] = jnp.zeros_like(acc_ref)

    acc_ref[...] += jnp.dot(x_ref[...], w_ref[...],
                            preferred_element_type=jnp.float32)

    @pl.when(k == pl.num_programs(0) - 1)
    def _finalize():
        y = acc_ref[...] + b_ref[...]
        y = jnp.where(y >= 0, y, 0.2 * y)
        mean = jnp.mean(y, axis=0, keepdims=True)
        var = jnp.mean(y * y, axis=0, keepdims=True) - mean * mean
        y = (y - mean) * jax.lax.rsqrt(var + eps) * g_ref[...] + be_ref[...]
        # conv4: 4x4 valid conv with stride 4 == full reduce over the 4x4x512
        # window of each image. Rows of y are ordered (n, h, w); w4_ref is the
        # matching flattened+tiled conv4 weight, sel picks each image's rows.
        prod = y * w4_ref[...]                                         # [M, C] VPU
        per_img = jnp.dot(sel_ref[...], prod,
                          preferred_element_type=jnp.float32)          # [N, C]
        logit = jnp.sum(per_img, axis=1, keepdims=True) + b4_ref[...]  # [N, 1]
        o_ref[...] = jax.nn.sigmoid(logit)


# --------------------------- pallas_call wrappers ---------------------------

def _pick_tk(K, cout, itemsize=2, budget_bytes=2 << 20):
    """Largest tk dividing K (a multiple of 128, or K itself) whose [tk, cout]
    weight block fits the VMEM budget.  Small problems collapse to tk == K."""
    tk = K
    while tk > 128:
        if (tk == K or tk % 128 == 0) and tk * cout * itemsize <= budget_bytes:
            return tk
        tk //= 2
    return tk


def conv1_pallas(patches, w, b):
    M, K = patches.shape
    Cout = w.shape[1]
    # Compute here is tiny; a single full-M block minimizes per-step overhead.
    tm = M if M <= 512 else 512
    assert M % tm == 0
    return pl.pallas_call(
        _conv_act_kernel,
        out_shape=jax.ShapeDtypeStruct((M, Cout), jnp.bfloat16),
        grid=(M // tm,),
        in_specs=[
            pl.BlockSpec((tm, K), lambda i: (i, 0)),
            pl.BlockSpec((K, Cout), lambda i: (0, 0)),
            pl.BlockSpec((1, Cout), lambda i: (0, 0)),
        ],
        out_specs=pl.BlockSpec((tm, Cout), lambda i: (i, 0)),
        compiler_params=pltpu.CompilerParams(dimension_semantics=("parallel",)),
    )(patches, w, b)


def conv_bn_pallas(patches, w, b, g, be, *, eps=1e-5):
    M, K = patches.shape
    Cout = w.shape[1]
    tk = _pick_tk(K, Cout)
    assert K % tk == 0
    return pl.pallas_call(
        functools.partial(_conv_act_bn_kernel, eps=eps),
        out_shape=jax.ShapeDtypeStruct((M, Cout), jnp.bfloat16),
        grid=(K // tk,),
        in_specs=[
            pl.BlockSpec((M, tk), lambda k: (0, k)),
            pl.BlockSpec((tk, Cout), lambda k: (k, 0)),
            pl.BlockSpec((1, Cout), lambda k: (0, 0)),
            pl.BlockSpec((1, Cout), lambda k: (0, 0)),
            pl.BlockSpec((1, Cout), lambda k: (0, 0)),
        ],
        out_specs=pl.BlockSpec((M, Cout), lambda k: (0, 0)),
        scratch_shapes=[pltpu.VMEM((M, Cout), jnp.float32)],
        compiler_params=pltpu.CompilerParams(dimension_semantics=("arbitrary",)),
    )(patches, w, b, g, be)


def conv_bn_head_pallas(patches, w, b, g, be, w4r, sel, b4, *, eps=1e-5):
    M, K = patches.shape
    Cout = w.shape[1]
    N = sel.shape[0]
    tk = _pick_tk(K, Cout)
    assert K % tk == 0
    return pl.pallas_call(
        functools.partial(_conv_act_bn_head_kernel, eps=eps),
        out_shape=jax.ShapeDtypeStruct((N, 1), jnp.float32),
        grid=(K // tk,),
        in_specs=[
            pl.BlockSpec((M, tk), lambda k: (0, k)),
            pl.BlockSpec((tk, Cout), lambda k: (k, 0)),
            pl.BlockSpec((1, Cout), lambda k: (0, 0)),
            pl.BlockSpec((1, Cout), lambda k: (0, 0)),
            pl.BlockSpec((1, Cout), lambda k: (0, 0)),
            pl.BlockSpec((M, Cout), lambda k: (0, 0)),   # tiled flat conv4 weight
            pl.BlockSpec((N, M), lambda k: (0, 0)),      # per-image selection
            pl.BlockSpec((1, 1), lambda k: (0, 0)),      # conv4 bias
        ],
        out_specs=pl.BlockSpec((N, 1), lambda k: (0, 0)),
        scratch_shapes=[pltpu.VMEM((M, Cout), jnp.float32)],
        compiler_params=pltpu.CompilerParams(dimension_semantics=("arbitrary",)),
    )(patches, w, b, g, be, w4r, sel, b4)


# ------------------------------- JAX glue -----------------------------------

def im2col_nhwc(x, k, stride, pad):
    """x: [N,H,W,C] -> patches [N*Ho*Wo, k*k*C], minor axis ordered (kh,kw,C)."""
    if pad > 0:
        x = jnp.pad(x, ((0, 0), (pad, pad), (pad, pad), (0, 0)))
    N, H, W, C = x.shape
    Ho = (H - k) // stride + 1
    Wo = (W - k) // stride + 1
    cols = []
    for i in range(k):
        for j in range(k):
            cols.append(x[:, i:i + Ho * stride:stride, j:j + Wo * stride:stride, :])
    p = jnp.stack(cols, axis=3)                      # [N, Ho, Wo, k*k, C]
    return p.reshape(N * Ho * Wo, k * k * C), (N, Ho, Wo)


def init_params(key):
    """PyTorch-layout f32 parameters (used by the reference and prepare_params)."""
    ks = jax.random.split(key, 8)

    def conv_w(k, cout, cin, ksz):
        return (0.02 * jax.random.normal(k, (cout, cin, ksz, ksz))).astype(jnp.float32)

    return {
        "w1": conv_w(ks[0], 128, 3, 4),   "b1": jnp.zeros((128,), jnp.float32),
        "w2": conv_w(ks[1], 256, 128, 4), "b2": jnp.zeros((256,), jnp.float32),
        "w3": conv_w(ks[2], 512, 256, 4), "b3": jnp.zeros((512,), jnp.float32),
        "w4": conv_w(ks[3], 1, 512, 4),   "b4": jnp.zeros((1,), jnp.float32),
        "g1": 1.0 + 0.1 * jax.random.normal(ks[4], (256,), jnp.float32),
        "be1": 0.1 * jax.random.normal(ks[5], (256,), jnp.float32),
        "g2": 1.0 + 0.1 * jax.random.normal(ks[6], (512,), jnp.float32),
        "be2": 0.1 * jax.random.normal(ks[7], (512,), jnp.float32),
    }


def prepare_params(p, batch):
    """One-time weight prep: [K,Cout] bf16 matmul weights, flattened conv4 head."""
    def wt(w):  # (Cout, Cin, kh, kw) -> (kh*kw*Cin, Cout), matching im2col order
        cout, cin, kh, kw = w.shape
        return jnp.transpose(w, (2, 3, 1, 0)).reshape(kh * kw * cin, cout)

    hw = 16  # 4x4 spatial window consumed by conv4 (conv3 output is 4x4)
    w4 = p["w4"]                                             # (1, 512, 4, 4)
    w4_flat = jnp.transpose(w4[0], (1, 2, 0)).reshape(hw, w4.shape[1])  # (16, 512)
    sel = (jnp.arange(batch * hw)[None, :] // hw
           == jnp.arange(batch)[:, None]).astype(jnp.float32)           # (N, N*16)
    return {
        "w1": wt(p["w1"]).astype(jnp.bfloat16), "b1": p["b1"].reshape(1, -1),
        "w2": wt(p["w2"]).astype(jnp.bfloat16), "b2": p["b2"].reshape(1, -1),
        "g1": p["g1"].reshape(1, -1), "be1": p["be1"].reshape(1, -1),
        "w3": wt(p["w3"]).astype(jnp.bfloat16), "b3": p["b3"].reshape(1, -1),
        "g2": p["g2"].reshape(1, -1), "be2": p["be2"].reshape(1, -1),
        "w4r": jnp.tile(w4_flat, (batch, 1)).astype(jnp.float32),        # (N*16, 512)
        "sel": sel,
        "b4": p["b4"].reshape(1, 1),
    }


def discriminator_forward(p, x):
    """x: NCHW f32 -> (N, 1, 1, 1) f32 sigmoid output."""
    N = x.shape[0]
    h = jnp.transpose(x, (0, 2, 3, 1)).astype(jnp.bfloat16)   # NHWC bf16, once

    # stage 1: conv1 + leaky_relu
    pat, (N, Ho, Wo) = im2col_nhwc(h, 4, 2, 1)
    h = conv1_pallas(pat, p["w1"], p["b1"]).reshape(N, Ho, Wo, -1)

    # stage 2: conv2 + leaky_relu + bn1
    pat, (N, Ho, Wo) = im2col_nhwc(h, 4, 2, 1)
    h = conv_bn_pallas(pat, p["w2"], p["b2"], p["g1"], p["be1"])
    h = h.reshape(N, Ho, Wo, -1)

    # stage 3: conv3 + leaky_relu + bn2 + conv4 + sigmoid (fully fused head)
    pat, _ = im2col_nhwc(h, 4, 2, 1)
    out = conv_bn_head_pallas(pat, p["w3"], p["b3"], p["g2"], p["be2"],
                              p["w4r"], p["sel"], p["b4"])
    return out.reshape(N, 1, 1, 1)


# -------------------------- pure-JAX reference ------------------------------

def _ref_forward(p, x):
    """Reference with identical precision policy (bf16 matmul inputs, f32 acc)."""
    def conv(h, w, b, s, pad):
        y = jax.lax.conv_general_dilated(
            h.astype(jnp.bfloat16), w.astype(jnp.bfloat16),
            window_strides=(s, s), padding=[(pad, pad), (pad, pad)],
            dimension_numbers=("NCHW", "OIHW", "NCHW"),
            preferred_element_type=jnp.float32)
        return y + b.reshape(1, -1, 1, 1)

    def lrelu(v):
        return jnp.where(v >= 0, v, 0.2 * v)

    def bn(v, g, be, eps=1e-5):
        m = jnp.mean(v, axis=(0, 2, 3), keepdims=True)
        var = jnp.mean(v * v, axis=(0, 2, 3), keepdims=True) - m * m
        return (v - m) * jax.lax.rsqrt(var + eps) * g.reshape(1, -1, 1, 1) \
            + be.reshape(1, -1, 1, 1)

    h = lrelu(conv(x, p["w1"], p["b1"], 2, 1)).astype(jnp.bfloat16)
    h = bn(lrelu(conv(h, p["w2"], p["b2"], 2, 1)), p["g1"], p["be1"]).astype(jnp.bfloat16)
    h = bn(lrelu(conv(h, p["w3"], p["b3"], 2, 1)), p["g2"], p["be2"])     # f32
    y = jax.lax.conv_general_dilated(
        h, p["w4"], (4, 4), [(0, 0), (0, 0)],
        dimension_numbers=("NCHW", "OIHW", "NCHW"),
        preferred_element_type=jnp.float32)
    return jax.nn.sigmoid(y + p["b4"].reshape(1, -1, 1, 1))


# --------------------------------- main --------------------------------------

if __name__ == "__main__":
    key = jax.random.PRNGKey(0)
    pkey, xkey = jax.random.split(key)
    raw = init_params(pkey)

    # DCGAN discriminator expects 3-channel square images; 32x32 is the smallest
    # size for which the stride chain (2,2,2,4) reaches 1x1.
    x = jax.random.normal(xkey, (2, 3, 32, 32), dtype=jnp.float32)

    prepped = prepare_params(raw, batch=x.shape[0])
    out = jax.jit(discriminator_forward)(prepped, x)
    out = jax.block_until_ready(out)

    ref = jax.block_until_ready(_ref_forward(raw, x))
    assert out.shape == (2, 1, 1, 1), out.shape
    assert jnp.allclose(out, ref, atol=1e-3), (out, ref)

    print("KERNEL_OK")
</pallas_src>

<mosaic_0001>
module attributes {stable_mosaic.version = 11 : i64} {
  func.func @_conv_act_kernel(%arg0: i32, %arg1: memref<512x48xbf16, #tpu.memory_space<vmem>>, %arg2: memref<48x128xbf16, #tpu.memory_space<vmem>>, %arg3: memref<1x128xf32, #tpu.memory_space<vmem>>, %arg4: memref<512x128xbf16, #tpu.memory_space<vmem>>) attributes {dimension_semantics = [#tpu.dimension_semantics<parallel>], iteration_bounds = array<i64: 1>, scalar_prefetch = 0 : i64, scratch_operands = 0 : i64, tpu.core_type = #tpu.core_type<tc>, window_params = [{transform_indices = @transform_0, window_bounds = array<i64: 512, 48>}, {pipeline_mode = #tpu.pipeline_mode<synchronous>, transform_indices = @transform_1, window_bounds = array<i64: 48, 128>}, {pipeline_mode = #tpu.pipeline_mode<synchronous>, transform_indices = @transform_2, window_bounds = array<i64: 1, 128>}, {transform_indices = @transform_3, window_bounds = array<i64: 512, 128>}]} {
    %c0 = arith.constant 0 : index
    %c0_0 = arith.constant 0 : index
    %0 = vector.load %arg1[%c0, %c0_0] : memref<512x48xbf16, #tpu.memory_space<vmem>>, vector<512x48xbf16>
    %c0_1 = arith.constant 0 : index
    %c0_2 = arith.constant 0 : index
    %1 = vector.load %arg2[%c0_1, %c0_2] : memref<48x128xbf16, #tpu.memory_space<vmem>>, vector<48x128xbf16>
    %cst = arith.constant dense<0.000000e+00> : vector<512x128xf32>
    %2 = tpu.matmul %0, %1, %cst {dimension_numbers = #tpu.dot_dimension_numbers<[1], [0], [0], [1], [0, 0, 1, 1], [], []>} : vector<512x48xbf16>, vector<48x128xbf16>, vector<512x128xf32> -> vector<512x128xf32>
    %c0_3 = arith.constant 0 : index
    %c0_4 = arith.constant 0 : index
    %3 = vector.load %arg3[%c0_3, %c0_4] : memref<1x128xf32, #tpu.memory_space<vmem>>, vector<1x128xf32>
    %4 = vector.broadcast %3 : vector<1x128xf32> to vector<512x128xf32>
    %5 = arith.addf %2, %4 : vector<512x128xf32>
    %cst_5 = arith.constant 0.000000e+00 : f32
    %6 = vector.broadcast %cst_5 : f32 to vector<512x128xf32>
    %7 = arith.cmpf oge, %5, %6 : vector<512x128xf32>
    %cst_6 = arith.constant 2.000000e-01 : f32
    %8 = vector.broadcast %cst_6 : f32 to vector<512x128xf32>
    %9 = arith.mulf %8, %5 : vector<512x128xf32>
    %10 = arith.select %7, %5, %9 : vector<512x128xi1>, vector<512x128xf32>
    %11 = arith.truncf %10 : vector<512x128xf32> to vector<512x128xbf16>
    %c0_7 = arith.constant 0 : index
    %c0_8 = arith.constant 0 : index
    %12 = vector.load %arg4[%c0_7, %c0_8] : memref<512x128xbf16, #tpu.memory_space<vmem>>, vector<512x128xbf16>
    tpu.vector_store %arg4[%c0_7, %c0_8], %11 {strides = array<i32>} : memref<512x128xbf16, #tpu.memory_space<vmem>>, vector<512x128xbf16>,
    return
  }
  func.func @transform_0(%arg0: i32) -> (i32, i32) {
    %c0_i32 = arith.constant 0 : i32
    %c0_i32_0 = arith.constant 0 : i32
    return %arg0, %c0_i32 : i32, i32
  }
  func.func @transform_1(%arg0: i32) -> (i32, i32) {
    %c0_i32 = arith.constant 0 : i32
    %c0_i32_0 = arith.constant 0 : i32
    %c0_i32_1 = arith.constant 0 : i32
    return %c0_i32, %c0_i32_0 : i32, i32
  }
  func.func @transform_2(%arg0: i32) -> (i32, i32) {
    %c0_i32 = arith.constant 0 : i32
    %c0_i32_0 = arith.constant 0 : i32
    %c0_i32_1 = arith.constant 0 : i32
    return %c0_i32, %c0_i32_0 : i32, i32
  }
  func.func @transform_3(%arg0: i32) -> (i32, i32) {
    %c0_i32 = arith.constant 0 : i32
    %c0_i32_0 = arith.constant 0 : i32
    return %arg0, %c0_i32 : i32, i32
  }
}

module attributes {stable_mosaic.version = 11 : i64} {
  func.func @_conv_act_bn_kernel(%arg0: i32, %arg1: memref<128x2048xbf16, #tpu.memory_space<vmem>>, %arg2: memref<2048x256xbf16, #tpu.memory_space<vmem>>, %arg3: memref<1x256xf32, #tpu.memory_space<vmem>>, %arg4: memref<1x256xf32, #tpu.memory_space<vmem>>, %arg5: memref<1x256xf32, #tpu.memory_space<vmem>>, %arg6: memref<128x256xbf16, #tpu.memory_space<vmem>>, %arg7: memref<128x256xf32, #tpu.memory_space<vmem>>) attributes {dimension_semantics = [#tpu.dimension_semantics<arbitrary>], iteration_bounds = array<i64: 1>, scalar_prefetch = 0 : i64, scratch_operands = 1 : i64, tpu.core_type = #tpu.core_type<tc>, window_params = [{transform_indices = @transform_0, window_bounds = array<i64: 128, 2048>}, {transform_indices = @transform_1, window_bounds = array<i64: 2048, 256>}, {pipeline_mode = #tpu.pipeline_mode<synchronous>, transform_indices = @transform_2, window_bounds = array<i64: 1, 256>}, {pipeline_mode = #tpu.pipeline_mode<synchronous>, transform_indices = @transform_3, window_bounds = array<i64: 1, 256>}, {pipeline_mode = #tpu.pipeline_mode<synchronous>, transform_indices = @transform_4, window_bounds = array<i64: 1, 256>}, {pipeline_mode = #tpu.pipeline_mode<synchronous>, transform_indices = @transform_5, window_bounds = array<i64: 128, 256>}]} {
    %c0_i32 = arith.constant 0 : i32
    %0 = arith.cmpi eq, %arg0, %c0_i32 : i32
    %1 = arith.extui %0 : i1 to i32
    %c0_i32_0 = arith.constant 0 : i32
    %2 = arith.cmpi ne, %1, %c0_i32_0 : i32
    scf.if %2 {
      %cst_10 = arith.constant 0.000000e+00 : f32
      %12 = vector.broadcast %cst_10 : f32 to vector<128x256xf32>
      %c0_11 = arith.constant 0 : index
      %c0_12 = arith.constant 0 : index
      %13 = vector.load %arg7[%c0_11, %c0_12] : memref<128x256xf32, #tpu.memory_space<vmem>>, vector<128x256xf32>
      tpu.vector_store %arg7[%c0_11, %c0_12], %12 {strides = array<i32>} : memref<128x256xf32, #tpu.memory_space<vmem>>, vector<128x256xf32>,
    } else {
    }
    %c0 = arith.constant 0 : index
    %c0_1 = arith.constant 0 : index
    %3 = vector.load %arg7[%c0, %c0_1] : memref<128x256xf32, #tpu.memory_space<vmem>>, vector<128x256xf32>
    %c0_2 = arith.constant 0 : index
    %c0_3 = arith.constant 0 : index
    %4 = vector.load %arg1[%c0_2, %c0_3] : memref<128x2048xbf16, #tpu.memory_space<vmem>>, vector<128x2048xbf16>
    %c0_4 = arith.constant 0 : index
    %c0_5 = arith.constant 0 : index
    %5 = vector.load %arg2[%c0_4, %c0_5] : memref<2048x256xbf16, #tpu.memory_space<vmem>>, vector<2048x256xbf16>
    %cst = arith.constant dense<0.000000e+00> : vector<128x256xf32>
    %6 = tpu.matmul %4, %5, %cst {dimension_numbers = #tpu.dot_dimension_numbers<[1], [0], [0], [1], [0, 0, 1, 1], [], []>} : vector<128x2048xbf16>, vector<2048x256xbf16>, vector<128x256xf32> -> vector<128x256xf32>
    %7 = arith.addf %3, %6 : vector<128x256xf32>
    %c0_6 = arith.constant 0 : index
    %c0_7 = arith.constant 0 : index
    %8 = vector.load %arg7[%c0_6, %c0_7] : memref<128x256xf32, #tpu.memory_space<vmem>>, vector<128x256xf32>
    tpu.vector_store %arg7[%c0_6, %c0_7], %7 {strides = array<i32>} : memref<128x256xf32, #tpu.memory_space<vmem>>, vector<128x256xf32>,
    %c0_i32_8 = arith.constant 0 : i32
    %9 = arith.cmpi eq, %arg0, %c0_i32_8 : i32
    %10 = arith.extui %9 : i1 to i32
    %c0_i32_9 = arith.constant 0 : i32
    %11 = arith.cmpi ne, %10, %c0_i32_9 : i32
    scf.if %11 {
      %c0_10 = arith.constant 0 : index
      %c0_11 = arith.constant 0 : index
      %12 = vector.load %arg7[%c0_10, %c0_11] : memref<128x256xf32, #tpu.memory_space<vmem>>, vector<128x256xf32>
      %c0_12 = arith.constant 0 : index
      %c0_13 = arith.constant 0 : index
      %13 = vector.load %arg3[%c0_12, %c0_13] : memref<1x256xf32, #tpu.memory_space<vmem>>, vector<1x256xf32>
      %14 = vector.broadcast %13 : vector<1x256xf32> to vector<128x256xf32>
      %15 = arith.addf %12, %14 : vector<128x256xf32>
      %cst_14 = arith.constant 0.000000e+00 : f32
      %16 = vector.broadcast %cst_14 : f32 to vector<128x256xf32>
      %17 = arith.cmpf oge, %15, %16 : vector<128x256xf32>
      %cst_15 = arith.constant 2.000000e-01 : f32
      %18 = vector.broadcast %cst_15 : f32 to vector<128x256xf32>
      %19 = arith.mulf %18, %15 : vector<128x256xf32>
      %20 = arith.select %17, %15, %19 : vector<128x256xi1>, vector<128x256xf32>
      %cst_16 = arith.constant dense<0.000000e+00> : vector<256xf32>
      %21 = vector.multi_reduction <add>, %20, %cst_16 [0] : vector<128x256xf32> to vector<256xf32>
      %22 = vector.shape_cast %21 : vector<256xf32> to vector<1x256xf32>
      %cst_17 = arith.constant 1.280000e+02 : f32
      %23 = vector.broadcast %cst_17 : f32 to vector<1x256xf32>
      %24 = arith.divf %22, %23 : vector<1x256xf32>
      %25 = arith.mulf %20, %20 : vector<128x256xf32>
      %cst_18 = arith.constant dense<0.000000e+00> : vector<256xf32>
      %26 = vector.multi_reduction <add>, %25, %cst_18 [0] : vector<128x256xf32> to vector<256xf32>
      %27 = vector.shape_cast %26 : vector<256xf32> to vector<1x256xf32>
      %cst_19 = arith.constant 1.280000e+02 : f32
      %28 = vector.broadcast %cst_19 : f32 to vector<1x256xf32>
      %29 = arith.divf %27, %28 : vector<1x256xf32>
      %30 = arith.mulf %24, %24 : vector<1x256xf32>
      %31 = arith.subf %29, %30 : vector<1x256xf32>
      %cst_20 = arith.constant 9.99999974E-6 : f32
      %32 = vector.broadcast %cst_20 : f32 to vector<1x256xf32>
      %33 = arith.addf %31, %32 : vector<1x256xf32>
      %34 = math.rsqrt %33 : vector<1x256xf32>
      %35 = vector.broadcast %24 : vector<1x256xf32> to vector<128x256xf32>
      %36 = arith.subf %20, %35 : vector<128x256xf32>
      %37 = vector.broadcast %34 : vector<1x256xf32> to vector<128x256xf32>
      %38 = arith.mulf %36, %37 : vector<128x256xf32>
      %c0_21 = arith.constant 0 : index
      %c0_22 = arith.constant 0 : index
      %39 = vector.load %arg4[%c0_21, %c0_22] : memref<1x256xf32, #tpu.memory_space<vmem>>, vector<1x256xf32>
      %40 = vector.broadcast %39 : vector<1x256xf32> to vector<128x256xf32>
      %41 = arith.mulf %38, %40 : vector<128x256xf32>
      %c0_23 = arith.constant 0 : index
      %c0_24 = arith.constant 0 : index
      %42 = vector.load %arg5[%c0_23, %c0_24] : memref<1x256xf32, #tpu.memory_space<vmem>>, vector<1x256xf32>
      %43 = vector.broadcast %42 : vector<1x256xf32> to vector<128x256xf32>
      %44 = arith.addf %41, %43 : vector<128x256xf32>
      %45 = arith.truncf %44 : vector<128x256xf32> to vector<128x256xbf16>
      %c0_25 = arith.constant 0 : index
      %c0_26 = arith.constant 0 : index
      %46 = vector.load %arg6[%c0_25, %c0_26] : memref<128x256xbf16, #tpu.memory_space<vmem>>, vector<128x256xbf16>
      tpu.vector_store %arg6[%c0_25, %c0_26], %45 {strides = array<i32>} : memref<128x256xbf16, #tpu.memory_space<vmem>>, vector<128x256xbf16>,
    } else {
    }
    return
  }
  func.func @transform_0(%arg0: i32) -> (i32, i32) {
    %c0_i32 = arith.constant 0 : i32
    %c0_i32_0 = arith.constant 0 : i32
    return %c0_i32, %arg0 : i32, i32
  }
  func.func @transform_1(%arg0: i32) -> (i32, i32) {
    %c0_i32 = arith.constant 0 : i32
    %c0_i32_0 = arith.constant 0 : i32
    return %arg0, %c0_i32 : i32, i32
  }
  func.func @transform_2(%arg0: i32) -> (i32, i32) {
    %c0_i32 = arith.constant 0 : i32
    %c0_i32_0 = arith.constant 0 : i32
    %c0_i32_1 = arith.constant 0 : i32
    return %c0_i32, %c0_i32_0 : i32, i32
  }
  func.func @transform_3(%arg0: i32) -> (i32, i32) {
    %c0_i32 = arith.constant 0 : i32
    %c0_i32_0 = arith.constant 0 : i32
    %c0_i32_1 = arith.constant 0 : i32
    return %c0_i32, %c0_i32_0 : i32, i32
  }
  func.func @transform_4(%arg0: i32) -> (i32, i32) {
    %c0_i32 = arith.constant 0 : i32
    %c0_i32_0 = arith.constant 0 : i32
    %c0_i32_1 = arith.constant 0 : i32
    return %c0_i32, %c0_i32_0 : i32, i32
  }
  func.func @transform_5(%arg0: i32) -> (i32, i32) {
    %c0_i32 = arith.constant 0 : i32
    %c0_i32_0 = arith.constant 0 : i32
    %c0_i32_1 = arith.constant 0 : i32
    return %c0_i32, %c0_i32_0 : i32, i32
  }
}

module attributes {stable_mosaic.version = 11 : i64} {
  func.func @_conv_act_bn_head_kernel(%arg0: i32, %arg1: memref<32x2048xbf16, #tpu.memory_space<vmem>>, %arg2: memref<2048x512xbf16, #tpu.memory_space<vmem>>, %arg3: memref<1x512xf32, #tpu.memory_space<vmem>>, %arg4: memref<1x512xf32, #tpu.memory_space<vmem>>, %arg5: memref<1x512xf32, #tpu.memory_space<vmem>>, %arg6: memref<32x512xf32, #tpu.memory_space<vmem>>, %arg7: memref<2x32xf32, #tpu.memory_space<vmem>>, %arg8: memref<1x1xf32, #tpu.memory_space<vmem>>, %arg9: memref<2x1xf32, #tpu.memory_space<vmem>>, %arg10: memref<32x512xf32, #tpu.memory_space<vmem>>) attributes {dimension_semantics = [#tpu.dimension_semantics<arbitrary>], iteration_bounds = array<i64: 2>, scalar_prefetch = 0 : i64, scratch_operands = 1 : i64, tpu.core_type = #tpu.core_type<tc>, window_params = [{transform_indices = @transform_0, window_bounds = array<i64: 32, 2048>}, {transform_indices = @transform_1, window_bounds = array<i64: 2048, 512>}, {pipeline_mode = #tpu.pipeline_mode<synchronous>, transform_indices = @transform_2, window_bounds = array<i64: 1, 512>}, {pipeline_mode = #tpu.pipeline_mode<synchronous>, transform_indices = @transform_3, window_bounds = array<i64: 1, 512>}, {pipeline_mode = #tpu.pipeline_mode<synchronous>, transform_indices = @transform_4, window_bounds = array<i64: 1, 512>}, {pipeline_mode = #tpu.pipeline_mode<synchronous>, transform_indices = @transform_5, window_bounds = array<i64: 32, 512>}, {pipeline_mode = #tpu.pipeline_mode<synchronous>, transform_indices = @transform_6, window_bounds = array<i64: 2, 32>}, {pipeline_mode = #tpu.pipeline_mode<synchronous>, transform_indices = @transform_7, window_bounds = array<i64: 1, 1>}, {pipeline_mode = #tpu.pipeline_mode<synchronous>, transform_indices = @transform_8, window_bounds = array<i64: 2, 1>}]} {
    %c0_i32 = arith.constant 0 : i32
    %0 = arith.cmpi eq, %arg0, %c0_i32 : i32
    %1 = arith.extui %0 : i1 to i32
    %c0_i32_0 = arith.constant 0 : i32
    %2 = arith.cmpi ne, %1, %c0_i32_0 : i32
    scf.if %2 {
      %cst_9 = arith.constant 0.000000e+00 : f32
      %12 = vector.broadcast %cst_9 : f32 to vector<32x512xf32>
      %c0_10 = arith.constant 0 : index
      %c0_11 = arith.constant 0 : index
      %13 = vector.load %arg10[%c0_10, %c0_11] : memref<32x512xf32, #tpu.memory_space<vmem>>, vector<32x512xf32>
      tpu.vector_store %arg10[%c0_10, %c0_11], %12 {strides = array<i32>} : memref<32x512xf32, #tpu.memory_space<vmem>>, vector<32x512xf32>,
    } else {
    }
    %c0 = arith.constant 0 : index
    %c0_1 = arith.constant 0 : index
    %3 = vector.load %arg10[%c0, %c0_1] : memref<32x512xf32, #tpu.memory_space<vmem>>, vector<32x512xf32>
    %c0_2 = arith.constant 0 : index
    %c0_3 = arith.constant 0 : index
    %4 = vector.load %arg1[%c0_2, %c0_3] : memref<32x2048xbf16, #tpu.memory_space<vmem>>, vector<32x2048xbf16>
    %c0_4 = arith.constant 0 : index
    %c0_5 = arith.constant 0 : index
    %5 = vector.load %arg2[%c0_4, %c0_5] : memref<2048x512xbf16, #tpu.memory_space<vmem>>, vector<2048x512xbf16>
    %cst = arith.constant dense<0.000000e+00> : vector<32x512xf32>
    %6 = tpu.matmul %4, %5, %cst {dimension_numbers = #tpu.dot_dimension_numbers<[1], [0], [0], [1], [0, 0, 1, 1], [], []>} : vector<32x2048xbf16>, vector<2048x512xbf16>, vector<32x512xf32> -> vector<32x512xf32>
    %7 = arith.addf %3, %6 : vector<32x512xf32>
    %c0_6 = arith.constant 0 : index
    %c0_7 = arith.constant 0 : index
    %8 = vector.load %arg10[%c0_6, %c0_7] : memref<32x512xf32, #tpu.memory_space<vmem>>, vector<32x512xf32>
    tpu.vector_store %arg10[%c0_6, %c0_7], %7 {strides = array<i32>} : memref<32x512xf32, #tpu.memory_space<vmem>>, vector<32x512xf32>,
    %c1_i32 = arith.constant 1 : i32
    %9 = arith.cmpi eq, %arg0, %c1_i32 : i32
    %10 = arith.extui %9 : i1 to i32
    %c0_i32_8 = arith.constant 0 : i32
    %11 = arith.cmpi ne, %10, %c0_i32_8 : i32
    scf.if %11 {
      %c0_9 = arith.constant 0 : index
      %c0_10 = arith.constant 0 : index
      %12 = vector.load %arg10[%c0_9, %c0_10] : memref<32x512xf32, #tpu.memory_space<vmem>>, vector<32x512xf32>
      %c0_11 = arith.constant 0 : index
      %c0_12 = arith.constant 0 : index
      %13 = vector.load %arg3[%c0_11, %c0_12] : memref<1x512xf32, #tpu.memory_space<vmem>>, vector<1x512xf32>
      %14 = vector.broadcast %13 : vector<1x512xf32> to vector<32x512xf32>
      %15 = arith.addf %12, %14 : vector<32x512xf32>
      %cst_13 = arith.constant 0.000000e+00 : f32
      %16 = vector.broadcast %cst_13 : f32 to vector<32x512xf32>
      %17 = arith.cmpf oge, %15, %16 : vector<32x512xf32>
      %cst_14 = arith.constant 2.000000e-01 : f32
      %18 = vector.broadcast %cst_14 : f32 to vector<32x512xf32>
      %19 = arith.mulf %18, %15 : vector<32x512xf32>
      %20 = arith.select %17, %15, %19 : vector<32x512xi1>, vector<32x512xf32>
      %cst_15 = arith.constant dense<0.000000e+00> : vector<512xf32>
      %21 = vector.multi_reduction <add>, %20, %cst_15 [0] : vector<32x512xf32> to vector<512xf32>
      %22 = vector.shape_cast %21 : vector<512xf32> to vector<1x512xf32>
      %cst_16 = arith.constant 3.200000e+01 : f32
      %23 = vector.broadcast %cst_16 : f32 to vector<1x512xf32>
      %24 = arith.divf %22, %23 : vector<1x512xf32>
      %25 = arith.mulf %20, %20 : vector<32x512xf32>
      %cst_17 = arith.constant dense<0.000000e+00> : vector<512xf32>
      %26 = vector.multi_reduction <add>, %25, %cst_17 [0] : vector<32x512xf32> to vector<512xf32>
      %27 = vector.shape_cast %26 : vector<512xf32> to vector<1x512xf32>
      %cst_18 = arith.constant 3.200000e+01 : f32
      %28 = vector.broadcast %cst_18 : f32 to vector<1x512xf32>
      %29 = arith.divf %27, %28 : vector<1x512xf32>
      %30 = arith.mulf %24, %24 : vector<1x512xf32>
      %31 = arith.subf %29, %30 : vector<1x512xf32>
      %32 = vector.broadcast %24 : vector<1x512xf32> to vector<32x512xf32>
      %33 = arith.subf %20, %32 : vector<32x512xf32>
      %cst_19 = arith.constant 9.99999974E-6 : f32
      %34 = vector.broadcast %cst_19 : f32 to vector<1x512xf32>
      %35 = arith.addf %31, %34 : vector<1x512xf32>
      %36 = math.rsqrt %35 : vector<1x512xf32>
      %37 = vector.broadcast %36 : vector<1x512xf32> to vector<32x512xf32>
      %38 = arith.mulf %33, %37 : vector<32x512xf32>
      %c0_20 = arith.constant 0 : index
      %c0_21 = arith.constant 0 : index
      %39 = vector.load %arg4[%c0_20, %c0_21] : memref<1x512xf32, #tpu.memory_space<vmem>>, vector<1x512xf32>
      %40 = vector.broadcast %39 : vector<1x512xf32> to vector<32x512xf32>
      %41 = arith.mulf %38, %40 : vector<32x512xf32>
      %c0_22 = arith.constant 0 : index
      %c0_23 = arith.constant 0 : index
      %42 = vector.load %arg5[%c0_22, %c0_23] : memref<1x512xf32, #tpu.memory_space<vmem>>, vector<1x512xf32>
      %43 = vector.broadcast %42 : vector<1x512xf32> to vector<32x512xf32>
      %44 = arith.addf %41, %43 : vector<32x512xf32>
      %c0_24 = arith.constant 0 : index
      %c0_25 = arith.constant 0 : index
      %45 = vector.load %arg6[%c0_24, %c0_25] : memref<32x512xf32, #tpu.memory_space<vmem>>, vector<32x512xf32>
      %46 = arith.mulf %44, %45 : vector<32x512xf32>
      %c0_26 = arith.constant 0 : index
      %c0_27 = arith.constant 0 : index
      %47 = vector.load %arg7[%c0_26, %c0_27] : memref<2x32xf32, #tpu.memory_space<vmem>>, vector<2x32xf32>
      %cst_28 = arith.constant dense<0.000000e+00> : vector<2x512xf32>
      %48 = tpu.matmul %47, %46, %cst_28 {dimension_numbers = #tpu.dot_dimension_numbers<[1], [0], [0], [1], [0, 0, 1, 1], [], []>} : vector<2x32xf32>, vector<32x512xf32>, vector<2x512xf32> -> vector<2x512xf32>
      %cst_29 = arith.constant dense<0.000000e+00> : vector<2xf32>
      %49 = vector.multi_reduction <add>, %48, %cst_29 [1] : vector<2x512xf32> to vector<2xf32>
      %50 = vector.shape_cast %49 : vector<2xf32> to vector<2x1xf32>
      %c0_30 = arith.constant 0 : index
      %c0_31 = arith.constant 0 : index
      %51 = vector.load %arg8[%c0_30, %c0_31] : memref<1x1xf32, #tpu.memory_space<vmem>>, vector<1x1xf32>
      %52 = vector.broadcast %51 : vector<1x1xf32> to vector<2x1xf32>
      %53 = arith.addf %50, %52 : vector<2x1xf32>
      %54 = arith.negf %53 : vector<2x1xf32>
      %55 = math.exp %54 : vector<2x1xf32>
      %cst_32 = arith.constant 1.000000e+00 : f32
      %56 = vector.broadcast %cst_32 : f32 to vector<2x1xf32>
      %57 = arith.addf %56, %55 : vector<2x1xf32>
      %58 = arith.divf %56, %57 : vector<2x1xf32>
      %c0_33 = arith.constant 0 : index
      %c0_34 = arith.constant 0 : index
      %59 = vector.load %arg9[%c0_33, %c0_34] : memref<2x1xf32, #tpu.memory_space<vmem>>, vector<2x1xf32>
      tpu.vector_store %arg9[%c0_33, %c0_34], %58 {strides = array<i32>} : memref<2x1xf32, #tpu.memory_space<vmem>>, vector<2x1xf32>,
    } else {
    }
    return
  }
  func.func @transform_0(%arg0: i32) -> (i32, i32) {
    %c0_i32 = arith.constant 0 : i32
    %c0_i32_0 = arith.constant 0 : i32
    return %c0_i32, %arg0 : i32, i32
  }
  func.func @transform_1(%arg0: i32) -> (i32, i32) {
    %c0_i32 = arith.constant 0 : i32
    %c0_i32_0 = arith.constant 0 : i32
    return %arg0, %c0_i32 : i32, i32
  }
  func.func @transform_2(%arg0: i32) -> (i32, i32) {
    %c0_i32 = arith.constant 0 : i32
    %c0_i32_0 = arith.constant 0 : i32
    %c0_i32_1 = arith.constant 0 : i32
    return %c0_i32, %c0_i32_0 : i32, i32
  }
  func.func @transform_3(%arg0: i32) -> (i32, i32) {
    %c0_i32 = arith.constant 0 : i32
    %c0_i32_0 = arith.constant 0 : i32
    %c0_i32_1 = arith.constant 0 : i32
    return %c0_i32, %c0_i32_0 : i32, i32
  }
  func.func @transform_4(%arg0: i32) -> (i32, i32) {
    %c0_i32 = arith.constant 0 : i32
    %c0_i32_0 = arith.constant 0 : i32
    %c0_i32_1 = arith.constant 0 : i32
    return %c0_i32, %c0_i32_0 : i32, i32
  }
  func.func @transform_5(%arg0: i32) -> (i32, i32) {
    %c0_i32 = arith.constant 0 : i32
    %c0_i32_0 = arith.constant 0 : i32
    %c0_i32_1 = arith.constant 0 : i32
    return %c0_i32, %c0_i32_0 : i32, i32
  }
  func.func @transform_6(%arg0: i32) -> (i32, i32) {
    %c0_i32 = arith.constant 0 : i32
    %c0_i32_0 = arith.constant 0 : i32
    %c0_i32_1 = arith.constant 0 : i32
    return %c0_i32, %c0_i32_0 : i32, i32
  }
  func.func @transform_7(%arg0: i32) -> (i32, i32) {
    %c0_i32 = arith.constant 0 : i32
    %c0_i32_0 = arith.constant 0 : i32
    %c0_i32_1 = arith.constant 0 : i32
    return %c0_i32, %c0_i32_0 : i32, i32
  }
  func.func @transform_8(%arg0: i32) -> (i32, i32) {
    %c0_i32 = arith.constant 0 : i32
    %c0_i32_0 = arith.constant 0 : i32
    %c0_i32_1 = arith.constant 0 : i32
    return %c0_i32, %c0_i32_0 : i32, i32
  }
}

</mosaic_0001>

<llo_original>
// kernel: discriminator_forward.3
$region0: #{discriminator_forward.3}
  #allocation0 [shape = 'u32[]', space=smem, size = 0x4, offset = 0x4, fixed_abs, tag = 'smem constant byte address 0x4 - core index']
  #allocation1 [shape = 'u32[72,128]{1,0:T(1,128)}', space=vmem, size = 0x9000, scoped, tag = 'internal scratch']
  %s0 = inlined_call_operand.vmem [shape: bf16[512,48], index: 0, kind: input, shape index: {}]
  %s1 = inlined_call_operand.hbm [shape: bf16[48,128], index: 1, kind: input, shape index: {}]
  %s2 = inlined_call_operand.hbm [shape: f32[1,128], index: 2, kind: input, shape index: {}]
  %s3 = inlined_call_operand.vmem [shape: bf16[512,128], index: 3, kind: output, shape index: {}]
  %s4 = sld [smem:[#allocation0]]
  $region30: #{discriminator_forward.3} parent=0
    _
  %s6 = ssub.s32 1, %s4
  %s7 = scalar_select 0, %s6, %s4
  $region1: #{discriminator_forward.3} parent=0
    #allocation2 [shape = 'u8[12288]{0}', space=vmem, size = 0x3000, scoped, tag = 'input window, operand 1, single buffered']
    #allocation3 [shape = 's32[1]{0}', space=sflag, size = 0x4, scoped, tag = 'scoped memory for discriminator_forward.3']
    #allocation4 [shape = 'u8[512]{0}', space=vmem, size = 0x400, scoped, tag = 'input window, operand 2, single buffered']
    #allocation5 [shape = 's32[1]{0}', space=sflag, size = 0x4, scoped, tag = 'scoped memory for discriminator_forward.3']
    %8 = vsyncpa [#allocation3], 0
    %9 = vsyncpa [#allocation5], 0
    // Predicated region
    $region2: #{discriminator_forward.3} parent=1 // pred_check
      _
    $region3: #{discriminator_forward.3} parent=1 // pred_check_branch
      %11 = sbr.rel (0) target = $region5
    $region4: #{discriminator_forward.3} parent=1 // pred_region
      _
    $region5: #{discriminator_forward.3} parent=1 // pred_fallthru
      _
    // Predicated region
    $region6: #{discriminator_forward.3} parent=1 // pred_check
      _
    $region7: #{discriminator_forward.3} parent=1 // pred_check_branch
      %13 = sbr.rel (0) target = $region9
    $region8: #{discriminator_forward.3} parent=1 // pred_region
      %15 = vsyncadd [#allocation3], 0
      %s16 = sshll.u32 %s1, 4
      %s17 = int_to_ptr.hbm [resolvable:$true] %s16
      %s18 = sshll.u32 [#allocation2], 4
      %s19 = int_to_ptr.vmem [resolvable:$true] %s18
      %24 = dma.hbm_to_vmem [thread:$0]  %s17, 384, %s19, [#allocation3], 64, 64, 4
    $region9: #{discriminator_forward.3} parent=1 // pred_fallthru
      _
    // Predicated region
    $region10: #{discriminator_forward.3} parent=1 // pred_check
      _
    $region11: #{discriminator_forward.3} parent=1 // pred_check_branch
      %26 = sbr.rel (0) target = $region13
    $region12: #{discriminator_forward.3} parent=1 // pred_region
      %28 = vsyncadd [#allocation5], 0
      %s30 = sshll.u32 %s2, 4
      %s31 = int_to_ptr.hbm [resolvable:$true] %s30
      %s32 = sshll.u32 [#allocation4], 4
      %s33 = int_to_ptr.vmem [resolvable:$true] %s32
      %35 = dma.hbm_to_vmem [thread:$0]  %s31, 16, %s33, [#allocation5]
    $region13: #{discriminator_forward.3} parent=1 // pred_fallthru
      _
    // Predicated region
    $region14: #{discriminator_forward.3} parent=1 // pred_check
      _
    $region15: #{discriminator_forward.3} parent=1 // pred_check_branch
      %37 = sbr.rel (0) target = $region17
    $region16: #{discriminator_forward.3} parent=1 // pred_region
      %39 = dma.done [#allocation3], 384
    $region17: #{discriminator_forward.3} parent=1 // pred_fallthru
      _
    // Predicated region
    $region18: #{discriminator_forward.3} parent=1 // pred_check
      _
    $region19: #{discriminator_forward.3} parent=1 // pred_check_branch
      %41 = sbr.rel (0) target = $region21
    $region20: #{discriminator_forward.3} parent=1 // pred_region
      %43 = dma.done [#allocation5], 16
    $region21: #{discriminator_forward.3} parent=1 // pred_fallthru
      _
    %v45 = vld [vmem:[%s0] sm:$0xf]
    %v46 = vld [vmem:[%s0 + $0x4] sm:$0xf]
    %v47 = vld [vmem:[%s0 + $0x8] sm:$0xf]
    %v48 = vld [vmem:[%s0 + $0xc] sm:$0xf]
    %v49 = vld [vmem:[%s0 + $0x10] sm:$0xf]
    %v50 = vld [vmem:[%s0 + $0x14] sm:$0xf]
    %v51 = vld [vmem:[%s0 + $0x18] sm:$0xf]
    %v52 = vld [vmem:[%s0 + $0x1c] sm:$0xf]
    %v53 = vld [vmem:[%s0 + $0x20] sm:$0xf]
    %v54 = vld [vmem:[%s0 + $0x24] sm:$0xf]
    %v55 = vld [vmem:[%s0 + $0x28] sm:$0xf]
    %v56 = vld [vmem:[%s0 + $0x2c] sm:$0xf]
    %v57 = vld [vmem:[%s0 + $0x30] sm:$0xf]
    %v58 = vld [vmem:[%s0 + $0x34] sm:$0xf]
    %v59 = vld [vmem:[%s0 + $0x38] sm:$0xf]
    %v60 = vld [vmem:[%s0 + $0x3c] sm:$0xf]
    %v61 = vld [vmem:[%s0 + $0x40] sm:$0xf]
    %v62 = vld [vmem:[%s0 + $0x44] sm:$0xf]
    %v63 = vld [vmem:[%s0 + $0x48] sm:$0xf]
    %v64 = vld [vmem:[%s0 + $0x4c] sm:$0xf]
    %v65 = vld [vmem:[%s0 + $0x50] sm:$0xf]
    %v66 = vld [vmem:[%s0 + $0x54] sm:$0xf]
    %v67 = vld [vmem:[%s0 + $0x58] sm:$0xf]
    %v68 = vld [vmem:[%s0 + $0x5c] sm:$0xf]
    %v69 = vld [vmem:[%s0 + $0x60] sm:$0xf]
    %v70 = vld [vmem:[%s0 + $0x64] sm:$0xf]
    %v71 = vld [vmem:[%s0 + $0x68] sm:$0xf]
    %v72 = vld [vmem:[%s0 + $0x6c] sm:$0xf]
    %v73 = vld [vmem:[%s0 + $0x70] sm:$0xf]
    %v74 = vld [vmem:[%s0 + $0x74] sm:$0xf]
    %v75 = vld [vmem:[%s0 + $0x78] sm:$0xf]
    %v76 = vld [vmem:[%s0 + $0x7c] sm:$0xf]
    %v77 = vld [vmem:[%s0 + $0x80] sm:$0xf]
    %v78 = vld [vmem:[%s0 + $0x84] sm:$0xf]
    %v79 = vld [vmem:[%s0 + $0x88] sm:$0xf]
    %v80 = vld [vmem:[%s0 + $0x8c] sm:$0xf]
    %v81 = vld [vmem:[%s0 + $0x90] sm:$0xf]
    %v82 = vld [vmem:[%s0 + $0x94] sm:$0xf]
    %v83 = vld [vmem:[%s0 + $0x98] sm:$0xf]
    %v84 = vld [vmem:[%s0 + $0x9c] sm:$0xf]
    %v85 = vld [vmem:[%s0 + $0xa0] sm:$0xf]
    %v86 = vld [vmem:[%s0 + $0xa4] sm:$0xf]
    %v87 = vld [vmem:[%s0 + $0xa8] sm:$0xf]
    %v88 = vld [vmem:[%s0 + $0xac] sm:$0xf]
    %v89 = vld [vmem:[%s0 + $0xb0] sm:$0xf]
    %v90 = vld [vmem:[%s0 + $0xb4] sm:$0xf]
    %v91 = vld [vmem:[%s0 + $0xb8] sm:$0xf]
    %v92 = vld [vmem:[%s0 + $0xbc] sm:$0xf]
    %v93 = vld [vmem:[%s0 + $0xc0] sm:$0xf]
    %v94 = vld [vmem:[%s0 + $0xc4] sm:$0xf]
    %v95 = vld [vmem:[%s0 + $0xc8] sm:$0xf]
    %v96 = vld [vmem:[%s0 + $0xcc] sm:$0xf]
    %v97 = vld [vmem:[%s0 + $0xd0] sm:$0xf]
    %v98 = vld [vmem:[%s0 + $0xd4] sm:$0xf]
    %v99 = vld [vmem:[%s0 + $0xd8] sm:$0xf]
    %v100 = vld [vmem:[%s0 + $0xdc] sm:$0xf]
    %v101 = vld [vmem:[%s0 + $0xe0] sm:$0xf]
    %v102 = vld [vmem:[%s0 + $0xe4] sm:$0xf]
    %v103 = vld [vmem:[%s0 + $0xe8] sm:$0xf]
    %v104 = vld [vmem:[%s0 + $0xec] sm:$0xf]
    %v105 = vld [vmem:[%s0 + $0xf0] sm:$0xf]
    %v106 = vld [vmem:[%s0 + $0xf4] sm:$0xf]
    %v107 = vld [vmem:[%s0 + $0xf8] sm:$0xf]
    %v108 = vld [vmem:[%s0 + $0xfc] sm:$0xf]
    %v109 = vld [vmem:[#allocation2] sm:$0xf]
    %v110 = vld [vmem:[#allocation2 + $0x4] sm:$0xf]
    %v111 = vld [vmem:[#allocation2 + $0x8] sm:$0xf]
    %v112 = vld [vmem:[#allocation2 + $0xc] sm:$0xf]
    %v113 = vld [vmem:[#allocation2 + $0x10] sm:$0xf]
    %v114 = vld [vmem:[#allocation2 + $0x14] sm:$0xf]
    %v115 = vld [vmem:[#allocation4] sm:$0x1]
    %v117 = vperm.slane %v115, 0
    %v183 = vunpack.c.l.b16 %v45
    %v184 = vunpack.c.l.b16 %v46
    %v185 = vunpack.c.l.b16 %v47
    %v186 = vunpack.c.l.b16 %v48
    %v187 = vunpack.c.l.b16 %v49
    %v188 = vunpack.c.l.b16 %v50
    %v189 = vunpack.c.l.b16 %v51
    %v190 = vunpack.c.l.b16 %v52
    %v191 = vunpack.c.l.b16 %v53
    %v192 = vunpack.c.l.b16 %v54
    %v193 = vunpack.c.l.b16 %v55
    %v194 = vunpack.c.l.b16 %v56
    %v195 = vunpack.c.l.b16 %v57
    %v196 = vunpack.c.l.b16 %v58
    %v197 = vunpack.c.l.b16 %v59
    %v198 = vunpack.c.l.b16 %v60
    %v199 = vunpack.c.l.b16 %v61
    %v200 = vunpack.c.l.b16 %v62
    %v201 = vunpack.c.l.b16 %v63
    %v202 = vunpack.c.l.b16 %v64
    %v203 = vunpack.c.l.b16 %v65
    %v204 = vunpack.c.l.b16 %v66
    %v205 = vunpack.c.l.b16 %v67
    %v206 = vunpack.c.l.b16 %v68
    %v207 = vunpack.c.l.b16 %v69
    %v208 = vunpack.c.l.b16 %v70
    %v209 = vunpack.c.l.b16 %v71
    %v210 = vunpack.c.l.b16 %v72
    %v211 = vunpack.c.l.b16 %v73
    %v212 = vunpack.c.l.b16 %v74
    %v213 = vunpack.c.l.b16 %v75
    %v214 = vunpack.c.l.b16 %v76
    %v215 = vunpack.c.l.b16 %v77
    %v216 = vunpack.c.l.b16 %v78
    %v217 = vunpack.c.l.b16 %v79
    %v218 = vunpack.c.l.b16 %v80
    %v219 = vunpack.c.l.b16 %v81
    %v220 = vunpack.c.l.b16 %v82
    %v221 = vunpack.c.l.b16 %v83
    %v222 = vunpack.c.l.b16 %v84
    %v223 = vunpack.c.l.b16 %v85
    %v224 = vunpack.c.l.b16 %v86
    %v225 = vunpack.c.l.b16 %v87
    %v226 = vunpack.c.l.b16 %v88
    %v227 = vunpack.c.l.b16 %v89
    %v228 = vunpack.c.l.b16 %v90
    %v229 = vunpack.c.l.b16 %v91
    %v230 = vunpack.c.l.b16 %v92
    %v231 = vunpack.c.l.b16 %v93
    %v232 = vunpack.c.l.b16 %v94
    %v233 = vunpack.c.l.b16 %v95
    %v234 = vunpack.c.l.b16 %v96
    %v235 = vunpack.c.l.b16 %v97
    %v236 = vunpack.c.l.b16 %v98
    %v237 = vunpack.c.l.b16 %v99
    %v238 = vunpack.c.l.b16 %v100
    %v239 = vunpack.c.l.b16 %v101
    %v240 = vunpack.c.l.b16 %v102
    %v241 = vunpack.c.l.b16 %v103
    %v242 = vunpack.c.l.b16 %v104
    %v243 = vunpack.c.l.b16 %v105
    %v244 = vunpack.c.l.b16 %v106
    %v245 = vunpack.c.l.b16 %v107
    %v246 = vunpack.c.l.b16 %v108
    %v247 = vpack.c.b16 %v184, %v183
    %v248 = vpack.c.b16 %v186, %v185
    %v249 = vpack.c.b16 %v188, %v187
    %v250 = vpack.c.b16 %v190, %v189
    %v251 = vpack.c.b16 %v192, %v191
    %v252 = vpack.c.b16 %v194, %v193
    %v253 = vpack.c.b16 %v196, %v195
    %v254 = vpack.c.b16 %v198, %v197
    %v255 = vpack.c.b16 %v200, %v199
    %v256 = vpack.c.b16 %v202, %v201
    %v257 = vpack.c.b16 %v204, %v203
    %v258 = vpack.c.b16 %v206, %v205
    %v259 = vpack.c.b16 %v208, %v207
    %v260 = vpack.c.b16 %v210, %v209
    %v261 = vpack.c.b16 %v212, %v211
    %v262 = vpack.c.b16 %v214, %v213
    %v263 = vpack.c.b16 %v216, %v215
    %v264 = vpack.c.b16 %v218, %v217
    %v265 = vpack.c.b16 %v220, %v219
    %v266 = vpack.c.b16 %v222, %v221
    %v267 = vpack.c.b16 %v224, %v223
    %v268 = vpack.c.b16 %v226, %v225
    %v269 = vpack.c.b16 %v228, %v227
    %v270 = vpack.c.b16 %v230, %v229
    %v271 = vpack.c.b16 %v232, %v231
    %v272 = vpack.c.b16 %v234, %v233
    %v273 = vpack.c.b16 %v236, %v235
    %v274 = vpack.c.b16 %v238, %v237
    %v275 = vpack.c.b16 %v240, %v239
    %v276 = vpack.c.b16 %v242, %v241
    %v277 = vpack.c.b16 %v244, %v243
    %v278 = vpack.c.b16 %v246, %v245
    %v285 = vunpack.c.l.b16 %v109
    %v286 = vunpack.c.l.b16 %v110
    %v287 = vunpack.c.l.b16 %v111
    %v288 = vunpack.c.l.b16 %v112
    %v289 = vunpack.c.l.b16 %v113
    %v290 = vunpack.c.l.b16 %v114
    %v291 = vpack.c.b16 %v286, %v285
    %v292 = vpack.c.b16 %v288, %v287
    %v293 = vpack.c.b16 %v290, %v289
    %vm297 = vcmask 392192
    %v299 = vsel %vm297, %v247, 0
    %v302 = vsel %vm297, %v248, 0
    %v305 = vsel %vm297, %v249, 0
    %v308 = vsel %vm297, %v250, 0
    %v311 = vsel %vm297, %v251, 0
    %v314 = vsel %vm297, %v252, 0
    %v317 = vsel %vm297, %v253, 0
    %v320 = vsel %vm297, %v254, 0
    %v323 = vsel %vm297, %v255, 0
    %v326 = vsel %vm297, %v256, 0
    %v329 = vsel %vm297, %v257, 0
    %v332 = vsel %vm297, %v258, 0
    %v335 = vsel %vm297, %v259, 0
    %v338 = vsel %vm297, %v260, 0
    %v341 = vsel %vm297, %v261, 0
    %v344 = vsel %vm297, %v262, 0
    %v347 = vsel %vm297, %v263, 0
    %v350 = vsel %vm297, %v264, 0
    %v353 = vsel %vm297, %v265, 0
    %v356 = vsel %vm297, %v266, 0
    %v359 = vsel %vm297, %v267, 0
    %v362 = vsel %vm297, %v268, 0
    %v365 = vsel %vm297, %v269, 0
    %v368 = vsel %vm297, %v270, 0
    %v371 = vsel %vm297, %v271, 0
    %v374 = vsel %vm297, %v272, 0
    %v377 = vsel %vm297, %v273, 0
    %v380 = vsel %vm297, %v274, 0
    %v383 = vsel %vm297, %v275, 0
    %v386 = vsel %vm297, %v276, 0
    %v389 = vsel %vm297, %v277, 0
    %v392 = vsel %vm297, %v278, 0
    %394 = vmatpush.bf16.msra.mxu0 0
    %395 = vmatpush.bf16.msra.mxu0 0
    %396 = vmatpush.bf16.msra.mxu0 0
    %397 = vmatpush.bf16.msra.mxu0 0
    %398 = vmatpush.bf16.msra.mxu0 0
    %399 = vmatpush.bf16.msra.mxu0 %v293
    %400 = vmatpush.bf16.msra.mxu0 %v292
    %401 = vmatpush.bf16.msra.mxu0 %v291
    %402 = vmatmul.bf16.gmra.mxu0 %v299
    %v403 = vpop.f32.mrf.mxu0
    %v404 = vadd.f32 %v117, %v403
    %v405 = vpop.f32.mrf.mxu0
    %v406 = vadd.f32 %v117, %v405
    %407 = vmatmul.bf16.gmra.mxu0 %v302
    %v408 = vpop.f32.mrf.mxu0
    %v409 = vadd.f32 %v117, %v408
    %v410 = vpop.f32.mrf.mxu0
    %v411 = vadd.f32 %v117, %v410
    %412 = vmatmul.bf16.gmra.mxu0 %v305
    %v413 = vpop.f32.mrf.mxu0
    %v414 = vadd.f32 %v117, %v413
    %v415 = vpop.f32.mrf.mxu0
    %v416 = vadd.f32 %v117, %v415
    %417 = vmatmul.bf16.gmra.mxu0 %v308
    %v418 = vpop.f32.mrf.mxu0
    %v419 = vadd.f32 %v117, %v418
    %v420 = vpop.f32.mrf.mxu0
    %v421 = vadd.f32 %v117, %v420
    %422 = vmatmul.bf16.gmra.mxu0 %v311
    %v423 = vpop.f32.mrf.mxu0
    %v424 = vadd.f32 %v117, %v423
    %v425 = vpop.f32.mrf.mxu0
    %v426 = vadd.f32 %v117, %v425
    %427 = vmatmul.bf16.gmra.mxu0 %v314
    %v428 = vpop.f32.mrf.mxu0
    %v429 = vadd.f32 %v117, %v428
    %v430 = vpop.f32.mrf.mxu0
    %v431 = vadd.f32 %v117, %v430
    %432 = vmatmul.bf16.gmra.mxu0 %v317
    %v433 = vpop.f32.mrf.mxu0
    %v434 = vadd.f32 %v117, %v433
    %v435 = vpop.f32.mrf.mxu0
    %v436 = vadd.f32 %v117, %v435
    %437 = vmatmul.bf16.gmra.mxu0 %v320
    %v438 = vpop.f32.mrf.mxu0
    %v439 = vadd.f32 %v117, %v438
    %v440 = vpop.f32.mrf.mxu0
    %v441 = vadd.f32 %v117, %v440
    %442 = vmatmul.bf16.gmra.mxu0 %v323
    %v443 = vpop.f32.mrf.mxu0
    %v444 = vadd.f32 %v117, %v443
    %v445 = vpop.f32.mrf.mxu0
    %v446 = vadd.f32 %v117, %v445
    %447 = vmatmul.bf16.gmra.mxu0 %v326
    %v448 = vpop.f32.mrf.mxu0
    %v449 = vadd.f32 %v117, %v448
    %v450 = vpop.f32.mrf.mxu0
    %v451 = vadd.f32 %v117, %v450
    %452 = vmatmul.bf16.gmra.mxu0 %v329
    %v453 = vpop.f32.mrf.mxu0
    %v454 = vadd.f32 %v117, %v453
    %v455 = vpop.f32.mrf.mxu0
    %v456 = vadd.f32 %v117, %v455
    %457 = vmatmul.bf16.gmra.mxu0 %v332
    %v458 = vpop.f32.mrf.mxu0
    %v459 = vadd.f32 %v117, %v458
    %v460 = vpop.f32.mrf.mxu0
    %v461 = vadd.f32 %v117, %v460
    %462 = vmatmul.bf16.gmra.mxu0 %v335
    %v463 = vpop.f32.mrf.mxu0
    %v464 = vadd.f32 %v117, %v463
    %v465 = vpop.f32.mrf.mxu0
    %v466 = vadd.f32 %v117, %v465
    %467 = vmatmul.bf16.gmra.mxu0 %v338
    %v468 = vpop.f32.mrf.mxu0
    %v469 = vadd.f32 %v117, %v468
    %v470 = vpop.f32.mrf.mxu0
    %v471 = vadd.f32 %v117, %v470
    %472 = vmatmul.bf16.gmra.mxu0 %v341
    %v473 = vpop.f32.mrf.mxu0
    %v474 = vadd.f32 %v117, %v473
    %v475 = vpop.f32.mrf.mxu0
    %v476 = vadd.f32 %v117, %v475
    %477 = vmatmul.bf16.gmra.mxu0 %v344
    %v478 = vpop.f32.mrf.mxu0
    %v479 = vadd.f32 %v117, %v478
    %v480 = vpop.f32.mrf.mxu0
    %v481 = vadd.f32 %v117, %v480
    %482 = vmatmul.bf16.gmra.mxu0 %v347
    %v483 = vpop.f32.mrf.mxu0
    %v484 = vadd.f32 %v117, %v483
    %v485 = vpop.f32.mrf.mxu0
    %v486 = vadd.f32 %v117, %v485
    %487 = vmatmul.bf16.gmra.mxu0 %v350
    %v488 = vpop.f32.mrf.mxu0
    %v489 = vadd.f32 %v117, %v488
    %v490 = vpop.f32.mrf.mxu0
    %v491 = vadd.f32 %v117, %v490
    %492 = vmatmul.bf16.gmra.mxu0 %v353
    %v493 = vpop.f32.mrf.mxu0
    %v494 = vadd.f32 %v117, %v493
    %v495 = vpop.f32.mrf.mxu0
    %v496 = vadd.f32 %v117, %v495
    %497 = vmatmul.bf16.gmra.mxu0 %v356
    %v498 = vpop.f32.mrf.mxu0
    %v499 = vadd.f32 %v117, %v498
    %v500 = vpop.f32.mrf.mxu0
    %v501 = vadd.f32 %v117, %v500
    %502 = vmatmul.bf16.gmra.mxu0 %v359
    %v503 = vpop.f32.mrf.mxu0
    %v504 = vadd.f32 %v117, %v503
    %v505 = vpop.f32.mrf.mxu0
    %v506 = vadd.f32 %v117, %v505
    %507 = vmatmul.bf16.gmra.mxu0 %v362
    %v508 = vpop.f32.mrf.mxu0
    %v509 = vadd.f32 %v117, %v508
    %v510 = vpop.f32.mrf.mxu0
    %v511 = vadd.f32 %v117, %v510
    %512 = vmatmul.bf16.gmra.mxu0 %v365
    %v513 = vpop.f32.mrf.mxu0
    %v514 = vadd.f32 %v117, %v513
    %v515 = vpop.f32.mrf.mxu0
    %v516 = vadd.f32 %v117, %v515
    %517 = vmatmul.bf16.gmra.mxu0 %v368
    %v518 = vpop.f32.mrf.mxu0
    %v519 = vadd.f32 %v117, %v518
    %v520 = vpop.f32.mrf.mxu0
    %v521 = vadd.f32 %v117, %v520
    %522 = vmatmul.bf16.gmra.mxu0 %v371
    %v523 = vpop.f32.mrf.mxu0
    %v524 = vadd.f32 %v117, %v523
    %v525 = vpop.f32.mrf.mxu0
    %v526 = vadd.f32 %v117, %v525
    %527 = vmatmul.bf16.gmra.mxu0 %v374
    %v528 = vpop.f32.mrf.mxu0
    %v529 = vadd.f32 %v117, %v528
    %v530 = vpop.f32.mrf.mxu0
    %v531 = vadd.f32 %v117, %v530
    %532 = vmatmul.bf16.gmra.mxu0 %v377
    %v533 = vpop.f32.mrf.mxu0
    %v534 = vadd.f32 %v117, %v533
    %v535 = vpop.f32.mrf.mxu0
    %v536 = vadd.f32 %v117, %v535
    %537 = vmatmul.bf16.gmra.mxu0 %v380
    %v538 = vpop.f32.mrf.mxu0
    %v539 = vadd.f32 %v117, %v538
    %v540 = vpop.f32.mrf.mxu0
    %v541 = vadd.f32 %v117, %v540
    %542 = vmatmul.bf16.gmra.mxu0 %v383
    %v543 = vpop.f32.mrf.mxu0
    %v544 = vadd.f32 %v117, %v543
    %v545 = vpop.f32.mrf.mxu0
    %v546 = vadd.f32 %v117, %v545
    %547 = vmatmul.bf16.gmra.mxu0 %v386
    %v548 = vpop.f32.mrf.mxu0
    %v549 = vadd.f32 %v117, %v548
    %v550 = vpop.f32.mrf.mxu0
    %v551 = vadd.f32 %v117, %v550
    %552 = vmatmul.bf16.gmra.mxu0 %v389
    %v553 = vpop.f32.mrf.mxu0
    %v554 = vadd.f32 %v117, %v553
    %v555 = vpop.f32.mrf.mxu0
    %v556 = vadd.f32 %v117, %v555
    %557 = vmatmul.bf16.gmra.mxu0 %v392
    %v558 = vpop.f32.mrf.mxu0
    %v559 = vadd.f32 %v117, %v558
    %v560 = vpop.f32.mrf.mxu0
    %v561 = vadd.f32 %v117, %v560
    %562 = vdwg.mxu0
    %vm563 = vcmp.ge.f32.partialorder %v404, 0.0
    %vm564 = vcmp.ge.f32.partialorder %v406, 0.0
    %vm565 = vcmp.ge.f32.partialorder %v409, 0.0
    %vm566 = vcmp.ge.f32.partialorder %v411, 0.0
    %vm567 = vcmp.ge.f32.partialorder %v414, 0.0
    %vm568 = vcmp.ge.f32.partialorder %v416, 0.0
    %vm569 = vcmp.ge.f32.partialorder %v419, 0.0
    %vm570 = vcmp.ge.f32.partialorder %v421, 0.0
    %vm571 = vcmp.ge.f32.partialorder %v424, 0.0
    %vm572 = vcmp.ge.f32.partialorder %v426, 0.0
    %vm573 = vcmp.ge.f32.partialorder %v429, 0.0
    %vm574 = vcmp.ge.f32.partialorder %v431, 0.0
    %vm575 = vcmp.ge.f32.partialorder %v434, 0.0
    %vm576 = vcmp.ge.f32.partialorder %v436, 0.0
    %vm577 = vcmp.ge.f32.partialorder %v439, 0.0
    %vm578 = vcmp.ge.f32.partialorder %v441, 0.0
    %vm579 = vcmp.ge.f32.partialorder %v444, 0.0
    %vm580 = vcmp.ge.f32.partialorder %v446, 0.0
    %vm581 = vcmp.ge.f32.partialorder %v449, 0.0
    %vm582 = vcmp.ge.f32.partialorder %v451, 0.0
    %vm583 = vcmp.ge.f32.partialorder %v454, 0.0
    %vm584 = vcmp.ge.f32.partialorder %v456, 0.0
    %vm585 = vcmp.ge.f32.partialorder %v459, 0.0
    %vm586 = vcmp.ge.f32.partialorder %v461, 0.0
    %vm587 = vcmp.ge.f32.partialorder %v464, 0.0
    %vm588 = vcmp.ge.f32.partialorder %v466, 0.0
    %vm589 = vcmp.ge.f32.partialorder %v469, 0.0
    %vm590 = vcmp.ge.f32.partialorder %v471, 0.0
    %vm591 = vcmp.ge.f32.partialorder %v474, 0.0
    %vm592 = vcmp.ge.f32.partialorder %v476, 0.0
    %vm593 = vcmp.ge.f32.partialorder %v479, 0.0
    %vm594 = vcmp.ge.f32.partialorder %v481, 0.0
    %vm595 = vcmp.ge.f32.partialorder %v484, 0.0
    %vm596 = vcmp.ge.f32.partialorder %v486, 0.0
    %vm597 = vcmp.ge.f32.partialorder %v489, 0.0
    %vm598 = vcmp.ge.f32.partialorder %v491, 0.0
    %vm599 = vcmp.ge.f32.partialorder %v494, 0.0
    %vm600 = vcmp.ge.f32.partialorder %v496, 0.0
    %vm601 = vcmp.ge.f32.partialorder %v499, 0.0
    %vm602 = vcmp.ge.f32.partialorder %v501, 0.0
    %vm603 = vcmp.ge.f32.partialorder %v504, 0.0
    %vm604 = vcmp.ge.f32.partialorder %v506, 0.0
    %vm605 = vcmp.ge.f32.partialorder %v509, 0.0
    %vm606 = vcmp.ge.f32.partialorder %v511, 0.0
    %vm607 = vcmp.ge.f32.partialorder %v514, 0.0
    %vm608 = vcmp.ge.f32.partialorder %v516, 0.0
    %vm609 = vcmp.ge.f32.partialorder %v519, 0.0
    %vm610 = vcmp.ge.f32.partialorder %v521, 0.0
    %vm611 = vcmp.ge.f32.partialorder %v524, 0.0
    %vm612 = vcmp.ge.f32.partialorder %v526, 0.0
    %vm613 = vcmp.ge.f32.partialorder %v529, 0.0
    %vm614 = vcmp.ge.f32.partialorder %v531, 0.0
    %vm615 = vcmp.ge.f32.partialorder %v534, 0.0
    %vm616 = vcmp.ge.f32.partialorder %v536, 0.0
    %vm617 = vcmp.ge.f32.partialorder %v539, 0.0
    %vm618 = vcmp.ge.f32.partialorder %v541, 0.0
    %vm619 = vcmp.ge.f32.partialorder %v544, 0.0
    %vm620 = vcmp.ge.f32.partialorder %v546, 0.0
    %vm621 = vcmp.ge.f32.partialorder %v549, 0.0
    %vm622 = vcmp.ge.f32.partialorder %v551, 0.0
    %vm623 = vcmp.ge.f32.partialorder %v554, 0.0
    %vm624 = vcmp.ge.f32.partialorder %v556, 0.0
    %vm625 = vcmp.ge.f32.partialorder %v559, 0.0
    %vm626 = vcmp.ge.f32.partialorder %v561, 0.0
    %v627 = vmul.f32 %v404, 0.2
    %v628 = vmul.f32 %v406, 0.2
    %v629 = vmul.f32 %v409, 0.2
    %v630 = vmul.f32 %v411, 0.2
    %v631 = vmul.f32 %v414, 0.2
    %v632 = vmul.f32 %v416, 0.2
    %v633 = vmul.f32 %v419, 0.2
    %v634 = vmul.f32 %v421, 0.2
    %v635 = vmul.f32 %v424, 0.2
    %v636 = vmul.f32 %v426, 0.2
    %v637 = vmul.f32 %v429, 0.2
    %v638 = vmul.f32 %v431, 0.2
    %v639 = vmul.f32 %v434, 0.2
    %v640 = vmul.f32 %v436, 0.2
    %v641 = vmul.f32 %v439, 0.2
    %v642 = vmul.f32 %v441, 0.2
    %v643 = vmul.f32 %v444, 0.2
    %v644 = vmul.f32 %v446, 0.2
    %v645 = vmul.f32 %v449, 0.2
    %v646 = vmul.f32 %v451, 0.2
    %v647 = vmul.f32 %v454, 0.2
    %v648 = vmul.f32 %v456, 0.2
    %v649 = vmul.f32 %v459, 0.2
    %v650 = vmul.f32 %v461, 0.2
    %v651 = vmul.f32 %v464, 0.2
    %v652 = vmul.f32 %v466, 0.2
    %v653 = vmul.f32 %v469, 0.2
    %v654 = vmul.f32 %v471, 0.2
    %v655 = vmul.f32 %v474, 0.2
    %v656 = vmul.f32 %v476, 0.2
    %v657 = vmul.f32 %v479, 0.2
    %v658 = vmul.f32 %v481, 0.2
    %v659 = vmul.f32 %v484, 0.2
    %v660 = vmul.f32 %v486, 0.2
    %v661 = vmul.f32 %v489, 0.2
    %v662 = vmul.f32 %v491, 0.2
    %v663 = vmul.f32 %v494, 0.2
    %v664 = vmul.f32 %v496, 0.2
    %v665 = vmul.f32 %v499, 0.2
    %v666 = vmul.f32 %v501, 0.2
    %v667 = vmul.f32 %v504, 0.2
    %v668 = vmul.f32 %v506, 0.2
    %v669 = vmul.f32 %v509, 0.2
    %v670 = vmul.f32 %v511, 0.2
    %v671 = vmul.f32 %v514, 0.2
    %v672 = vmul.f32 %v516, 0.2
    %v673 = vmul.f32 %v519, 0.2
    %v674 = vmul.f32 %v521, 0.2
    %v675 = vmul.f32 %v524, 0.2
    %v676 = vmul.f32 %v526, 0.2
    %v677 = vmul.f32 %v529, 0.2
    %v678 = vmul.f32 %v531, 0.2
    %v679 = vmul.f32 %v534, 0.2
    %v680 = vmul.f32 %v536, 0.2
    %v681 = vmul.f32 %v539, 0.2
    %v682 = vmul.f32 %v541, 0.2
    %v683 = vmul.f32 %v544, 0.2
    %v684 = vmul.f32 %v546, 0.2
    %v685 = vmul.f32 %v549, 0.2
    %v686 = vmul.f32 %v551, 0.2
    %v687 = vmul.f32 %v554, 0.2
    %v688 = vmul.f32 %v556, 0.2
    %v689 = vmul.f32 %v559, 0.2
    %v690 = vmul.f32 %v561, 0.2
    %v691 = vsel %vm563, %v404, %v627
    %v692 = vsel %vm564, %v406, %v628
    %v693 = vsel %vm565, %v409, %v629
    %v694 = vsel %vm566, %v411, %v630
    %v695 = vsel %vm567, %v414, %v631
    %v696 = vsel %vm568, %v416, %v632
    %v697 = vsel %vm569, %v419, %v633
    %v698 = vsel %vm570, %v421, %v634
    %v699 = vsel %vm571, %v424, %v635
    %v700 = vsel %vm572, %v426, %v636
    %v701 = vsel %vm573, %v429, %v637
    %v702 = vsel %vm574, %v431, %v638
    %v703 = vsel %vm575, %v434, %v639
    %v704 = vsel %vm576, %v436, %v640
    %v705 = vsel %vm577, %v439, %v641
    %v706 = vsel %vm578, %v441, %v642
    %v707 = vsel %vm579, %v444, %v643
    %v708 = vsel %vm580, %v446, %v644
    %v709 = vsel %vm581, %v449, %v645
    %v710 = vsel %vm582, %v451, %v646
    %v711 = vsel %vm583, %v454, %v647
    %v712 = vsel %vm584, %v456, %v648
    %v713 = vsel %vm585, %v459, %v649
    %v714 = vsel %vm586, %v461, %v650
    %v715 = vsel %vm587, %v464, %v651
    %v716 = vsel %vm588, %v466, %v652
    %v717 = vsel %vm589, %v469, %v653
    %v718 = vsel %vm590, %v471, %v654
    %v719 = vsel %vm591, %v474, %v655
    %v720 = vsel %vm592, %v476, %v656
    %v721 = vsel %vm593, %v479, %v657
    %v722 = vsel %vm594, %v481, %v658
    %v723 = vsel %vm595, %v484, %v659
    %v724 = vsel %vm596, %v486, %v660
    %v725 = vsel %vm597, %v489, %v661
    %v726 = vsel %vm598, %v491, %v662
    %v727 = vsel %vm599, %v494, %v663
    %v728 = vsel %vm600, %v496, %v664
    %v729 = vsel %vm601, %v499, %v665
    %v730 = vsel %vm602, %v501, %v666
    %v731 = vsel %vm603, %v504, %v667
    %v732 = vsel %vm604, %v506, %v668
    %v733 = vsel %vm605, %v509, %v669
    %v734 = vsel %vm606, %v511, %v670
    %v735 = vsel %vm607, %v514, %v671
    %v736 = vsel %vm608, %v516, %v672
    %v737 = vsel %vm609, %v519, %v673
    %v738 = vsel %vm610, %v521, %v674
    %v739 = vsel %vm611, %v524, %v675
    %v740 = vsel %vm612, %v526, %v676
    %v741 = vsel %vm613, %v529, %v677
    %v742 = vsel %vm614, %v531, %v678
    %v743 = vsel %vm615, %v534, %v679
    %v744 = vsel %vm616, %v536, %v680
    %v745 = vsel %vm617, %v539, %v681
    %v746 = vsel %vm618, %v541, %v682
    %v747 = vsel %vm619, %v544, %v683
    %v748 = vsel %vm620, %v546, %v684
    %v749 = vsel %vm621, %v549, %v685
    %v750 = vsel %vm622, %v551, %v686
    %v751 = vsel %vm623, %v554, %v687
    %v752 = vsel %vm624, %v556, %v688
    %v753 = vsel %vm625, %v559, %v689
    %v754 = vsel %vm626, %v561, %v690
    %v755 = vpack.c.bf16 %v691, %v691
    %v756 = vpack.c.bf16 %v692, %v692
    %v757 = vpack.c.bf16 %v693, %v693
    %v758 = vpack.c.bf16 %v694, %v694
    %v759 = vpack.c.bf16 %v695, %v695
    %v760 = vpack.c.bf16 %v696, %v696
    %v761 = vpack.c.bf16 %v697, %v697
    %v762 = vpack.c.bf16 %v698, %v698
    %v763 = vpack.c.bf16 %v699, %v699
    %v764 = vpack.c.bf16 %v700, %v700
    %v765 = vpack.c.bf16 %v701, %v701
    %v766 = vpack.c.bf16 %v702, %v702
    %v767 = vpack.c.bf16 %v703, %v703
    %v768 = vpack.c.bf16 %v704, %v704
    %v769 = vpack.c.bf16 %v705, %v705
    %v770 = vpack.c.bf16 %v706, %v706
    %v771 = vpack.c.bf16 %v707, %v707
    %v772 = vpack.c.bf16 %v708, %v708
    %v773 = vpack.c.bf16 %v709, %v709
    %v774 = vpack.c.bf16 %v710, %v710
    %v775 = vpack.c.bf16 %v711, %v711
    %v776 = vpack.c.bf16 %v712, %v712
    %v777 = vpack.c.bf16 %v713, %v713
    %v778 = vpack.c.bf16 %v714, %v714
    %v779 = vpack.c.bf16 %v715, %v715
    %v780 = vpack.c.bf16 %v716, %v716
    %v781 = vpack.c.bf16 %v717, %v717
    %v782 = vpack.c.bf16 %v718, %v718
    %v783 = vpack.c.bf16 %v719, %v719
    %v784 = vpack.c.bf16 %v720, %v720
    %v785 = vpack.c.bf16 %v721, %v721
    %v786 = vpack.c.bf16 %v722, %v722
    %v787 = vpack.c.bf16 %v723, %v723
    %v788 = vpack.c.bf16 %v724, %v724
    %v789 = vpack.c.bf16 %v725, %v725
    %v790 = vpack.c.bf16 %v726, %v726
    %v791 = vpack.c.bf16 %v727, %v727
    %v792 = vpack.c.bf16 %v728, %v728
    %v793 = vpack.c.bf16 %v729, %v729
    %v794 = vpack.c.bf16 %v730, %v730
    %v795 = vpack.c.bf16 %v731, %v731
    %v796 = vpack.c.bf16 %v732, %v732
    %v797 = vpack.c.bf16 %v733, %v733
    %v798 = vpack.c.bf16 %v734, %v734
    %v799 = vpack.c.bf16 %v735, %v735
    %v800 = vpack.c.bf16 %v736, %v736
    %v801 = vpack.c.bf16 %v737, %v737
    %v802 = vpack.c.bf16 %v738, %v738
    %v803 = vpack.c.bf16 %v739, %v739
    %v804 = vpack.c.bf16 %v740, %v740
    %v805 = vpack.c.bf16 %v741, %v741
    %v806 = vpack.c.bf16 %v742, %v742
    %v807 = vpack.c.bf16 %v743, %v743
    %v808 = vpack.c.bf16 %v744, %v744
    %v809 = vpack.c.bf16 %v745, %v745
    %v810 = vpack.c.bf16 %v746, %v746
    %v811 = vpack.c.bf16 %v747, %v747
    %v812 = vpack.c.bf16 %v748, %v748
    %v813 = vpack.c.bf16 %v749, %v749
    %v814 = vpack.c.bf16 %v750, %v750
    %v815 = vpack.c.bf16 %v751, %v751
    %v816 = vpack.c.bf16 %v752, %v752
    %v817 = vpack.c.bf16 %v753, %v753
    %v818 = vpack.c.bf16 %v754, %v754
    %819 = vst [vmem:[%s3] sm:$0xf] %v755
    %820 = vst [vmem:[%s3 + $0x4] sm:$0xf] %v756
    %821 = vst [vmem:[%s3 + $0x8] sm:$0xf] %v757
    %822 = vst [vmem:[%s3 + $0xc] sm:$0xf] %v758
    %823 = vst [vmem:[%s3 + $0x10] sm:$0xf] %v759
    %824 = vst [vmem:[%s3 + $0x14] sm:$0xf] %v760
    %825 = vst [vmem:[%s3 + $0x18] sm:$0xf] %v761
    %826 = vst [vmem:[%s3 + $0x1c] sm:$0xf] %v762
    %827 = vst [vmem:[%s3 + $0x20] sm:$0xf] %v763
    %828 = vst [vmem:[%s3 + $0x24] sm:$0xf] %v764
    %829 = vst [vmem:[%s3 + $0x28] sm:$0xf] %v765
    %830 = vst [vmem:[%s3 + $0x2c] sm:$0xf] %v766
    %831 = vst [vmem:[%s3 + $0x30] sm:$0xf] %v767
    %832 = vst [vmem:[%s3 + $0x34] sm:$0xf] %v768
    %833 = vst [vmem:[%s3 + $0x38] sm:$0xf] %v769
    %834 = vst [vmem:[%s3 + $0x3c] sm:$0xf] %v770
    %835 = vst [vmem:[%s3 + $0x40] sm:$0xf] %v771
    %836 = vst [vmem:[%s3 + $0x44] sm:$0xf] %v772
    %837 = vst [vmem:[%s3 + $0x48] sm:$0xf] %v773
    %838 = vst [vmem:[%s3 + $0x4c] sm:$0xf] %v774
    %839 = vst [vmem:[%s3 + $0x50] sm:$0xf] %v775
    %840 = vst [vmem:[%s3 + $0x54] sm:$0xf] %v776
    %841 = vst [vmem:[%s3 + $0x58] sm:$0xf] %v777
    %842 = vst [vmem:[%s3 + $0x5c] sm:$0xf] %v778
    %843 = vst [vmem:[%s3 + $0x60] sm:$0xf] %v779
    %844 = vst [vmem:[%s3 + $0x64] sm:$0xf] %v780
    %845 = vst [vmem:[%s3 + $0x68] sm:$0xf] %v781
    %846 = vst [vmem:[%s3 + $0x6c] sm:$0xf] %v782
    %847 = vst [vmem:[%s3 + $0x70] sm:$0xf] %v783
    %848 = vst [vmem:[%s3 + $0x74] sm:$0xf] %v784
    %849 = vst [vmem:[%s3 + $0x78] sm:$0xf] %v785
    %850 = vst [vmem:[%s3 + $0x7c] sm:$0xf] %v786
    %851 = vst [vmem:[%s3 + $0x80] sm:$0xf] %v787
    %852 = vst [vmem:[%s3 + $0x84] sm:$0xf] %v788
    %853 = vst [vmem:[%s3 + $0x88] sm:$0xf] %v789
    %854 = vst [vmem:[%s3 + $0x8c] sm:$0xf] %v790
    %855 = vst [vmem:[%s3 + $0x90] sm:$0xf] %v791
    %856 = vst [vmem:[%s3 + $0x94] sm:$0xf] %v792
    %857 = vst [vmem:[%s3 + $0x98] sm:$0xf] %v793
    %858 = vst [vmem:[%s3 + $0x9c] sm:$0xf] %v794
    %859 = vst [vmem:[%s3 + $0xa0] sm:$0xf] %v795
    %860 = vst [vmem:[%s3 + $0xa4] sm:$0xf] %v796
    %861 = vst [vmem:[%s3 + $0xa8] sm:$0xf] %v797
    %862 = vst [vmem:[%s3 + $0xac] sm:$0xf] %v798
    %863 = vst [vmem:[%s3 + $0xb0] sm:$0xf] %v799
    %864 = vst [vmem:[%s3 + $0xb4] sm:$0xf] %v800
    %865 = vst [vmem:[%s3 + $0xb8] sm:$0xf] %v801
    %866 = vst [vmem:[%s3 + $0xbc] sm:$0xf] %v802
    %867 = vst [vmem:[%s3 + $0xc0] sm:$0xf] %v803
    %868 = vst [vmem:[%s3 + $0xc4] sm:$0xf] %v804
    %869 = vst [vmem:[%s3 + $0xc8] sm:$0xf] %v805
    %870 = vst [vmem:[%s3 + $0xcc] sm:$0xf] %v806
    %871 = vst [vmem:[%s3 + $0xd0] sm:$0xf] %v807
    %872 = vst [vmem:[%s3 + $0xd4] sm:$0xf] %v808
    %873 = vst [vmem:[%s3 + $0xd8] sm:$0xf] %v809
    %874 = vst [vmem:[%s3 + $0xdc] sm:$0xf] %v810
    %875 = vst [vmem:[%s3 + $0xe0] sm:$0xf] %v811
    %876 = vst [vmem:[%s3 + $0xe4] sm:$0xf] %v812
    %877 = vst [vmem:[%s3 + $0xe8] sm:$0xf] %v813
    %878 = vst [vmem:[%s3 + $0xec] sm:$0xf] %v814
    %879 = vst [vmem:[%s3 + $0xf0] sm:$0xf] %v815
    %880 = vst [vmem:[%s3 + $0xf4] sm:$0xf] %v816
    %881 = vst [vmem:[%s3 + $0xf8] sm:$0xf] %v817
    %882 = vst [vmem:[%s3 + $0xfc] sm:$0xf] %v818
    // Predicated region
    $region22: #{discriminator_forward.3} parent=1 // pred_check
      _
    $region23: #{discriminator_forward.3} parent=1 // pred_check_branch
      %884 = sbr.rel (0) target = $region25
    $region24: #{discriminator_forward.3} parent=1 // pred_region
      _
    $region25: #{discriminator_forward.3} parent=1 // pred_fallthru
      _
    // Predicated region
    $region26: #{discriminator_forward.3} parent=1 // pred_check
      _
    $region27: #{discriminator_forward.3} parent=1 // pred_check_branch
      %886 = sbr.rel (0) target = $region29
    $region28: #{discriminator_forward.3} parent=1 // pred_region
      _
    $region29: #{discriminator_forward.3} parent=1 // pred_fallthru
      _
    %887 = vsyncpa [#allocation3], 1
    %888 = vsyncpa [#allocation5], 1

// kernel: discriminator_forward.4
$region0: #{discriminator_forward.4}
  #allocation0 [shape = 'u32[]', space=smem, size = 0x4, offset = 0x4, fixed_abs, tag = 'smem constant byte address 0x4 - core index']
  #allocation1 [shape = 'u32[72,128]{1,0:T(1,128)}', space=vmem, size = 0x9000, scoped, tag = 'internal scratch']
  #allocation2 [shape = 'f32[128,256]{1,0:T(8,128)}', space=vmem, size = 0x20000, scoped, tag = 'scratch operand']
  %s0 = inlined_call_operand.vmem [shape: bf16[128,2048], index: 0, kind: input, shape index: {}]
  %s1 = inlined_call_operand.vmem [shape: bf16[2048,256], index: 1, kind: input, shape index: {}]
  %s2 = inlined_call_operand.vmem [shape: f32[1,256], index: 2, kind: input, shape index: {}]
  %s3 = inlined_call_operand.vmem [shape: f32[1,256], index: 3, kind: input, shape index: {}]
  %s4 = inlined_call_operand.vmem [shape: f32[1,256], index: 4, kind: input, shape index: {}]
  %s5 = inlined_call_operand.vmem [shape: bf16[128,256], index: 5, kind: output, shape index: {}]
  %s6 = sld [smem:[#allocation0]]
  $region38: #{discriminator_forward.4} parent=0
    _
  %s8 = ssub.s32 1, %s6
  %s9 = scalar_select 0, %s8, %s6
  // Predicated region
  $region2: #{discriminator_forward.4} parent=0 // pred_check
    _
  $region3: #{discriminator_forward.4} parent=0 // pred_check_branch
    %11 = sbr.rel (0) target = $region5
  $region4: #{discriminator_forward.4} parent=0 // pred_region
    _
  $region5: #{discriminator_forward.4} parent=0 // pred_fallthru
    _
  // Predicated region
  $region6: #{discriminator_forward.4} parent=0 // pred_check
    _
  $region7: #{discriminator_forward.4} parent=0 // pred_check_branch
    %13 = sbr.rel (0) target = $region9
  $region8: #{discriminator_forward.4} parent=0 // pred_region
    _
  $region9: #{discriminator_forward.4} parent=0 // pred_fallthru
    _
  // Predicated region
  $region10: #{discriminator_forward.4} parent=0 // pred_check
    _
  $region11: #{discriminator_forward.4} parent=0 // pred_check_branch
    %15 = sbr.rel (0) target = $region13
  $region12: #{discriminator_forward.4} parent=0 // pred_region
    _
  $region13: #{discriminator_forward.4} parent=0 // pred_fallthru
    _
  // Predicated region
  $region14: #{discriminator_forward.4} parent=0 // pred_check
    _
  $region15: #{discriminator_forward.4} parent=0 // pred_check_branch
    %17 = sbr.rel (0) target = $region17
  $region16: #{discriminator_forward.4} parent=0 // pred_region
    _
  $region17: #{discriminator_forward.4} parent=0 // pred_fallthru
    _
  // Predicated region
  $region18: #{discriminator_forward.4} parent=0 // pred_check
    _
  $region19: #{discriminator_forward.4} parent=0 // pred_check_branch
    %19 = sbr.rel (0) target = $region21
  $region20: #{discriminator_forward.4} parent=0 // pred_region
    _
  $region21: #{discriminator_forward.4} parent=0 // pred_fallthru
    _
  %p20 = scmp.eq.s32.totalorder 0, 0
  // Predicated region
  $region22: #{discriminator_forward.4} parent=0 // pred_check
    %p21 = pneg %p20
  $region23: #{discriminator_forward.4} parent=0 // pred_check_branch
    %23 = sbr.rel (%p21) target = $region25
  $region24: #{discriminator_forward.4} parent=0 // pred_region
    %24 = vst [vmem:[#allocation2] sm:$0xff] 0.0
    %25 = vst [vmem:[#allocation2 + $0x8] sm:$0xff] 0.0
    %26 = vst [vmem:[#allocation2 + $0x10] sm:$0xff] 0.0
    %27 = vst [vmem:[#allocation2 + $0x18] sm:$0xff] 0.0
    %28 = vst [vmem:[#allocation2 + $0x20] sm:$0xff] 0.0
    %29 = vst [vmem:[#allocation2 + $0x28] sm:$0xff] 0.0
    %30 = vst [vmem:[#allocation2 + $0x30] sm:$0xff] 0.0
    %31 = vst [vmem:[#allocation2 + $0x38] sm:$0xff] 0.0
    %32 = vst [vmem:[#allocation2 + $0x40] sm:$0xff] 0.0
    %33 = vst [vmem:[#allocation2 + $0x48] sm:$0xff] 0.0
    %34 = vst [vmem:[#allocation2 + $0x50] sm:$0xff] 0.0
    %35 = vst [vmem:[#allocation2 + $0x58] sm:$0xff] 0.0
    %36 = vst [vmem:[#allocation2 + $0x60] sm:$0xff] 0.0
    %37 = vst [vmem:[#allocation2 + $0x68] sm:$0xff] 0.0
    %38 = vst [vmem:[#allocation2 + $0x70] sm:$0xff] 0.0
    %39 = vst [vmem:[#allocation2 + $0x78] sm:$0xff] 0.0
    %40 = vst [vmem:[#allocation2 + $0x80] sm:$0xff] 0.0
    %41 = vst [vmem:[#allocation2 + $0x88] sm:$0xff] 0.0
    %42 = vst [vmem:[#allocation2 + $0x90] sm:$0xff] 0.0
    %43 = vst [vmem:[#allocation2 + $0x98] sm:$0xff] 0.0
    %44 = vst [vmem:[#allocation2 + $0xa0] sm:$0xff] 0.0
    %45 = vst [vmem:[#allocation2 + $0xa8] sm:$0xff] 0.0
    %46 = vst [vmem:[#allocation2 + $0xb0] sm:$0xff] 0.0
    %47 = vst [vmem:[#allocation2 + $0xb8] sm:$0xff] 0.0
    %48 = vst [vmem:[#allocation2 + $0xc0] sm:$0xff] 0.0
    %49 = vst [vmem:[#allocation2 + $0xc8] sm:$0xff] 0.0
    %50 = vst [vmem:[#allocation2 + $0xd0] sm:$0xff] 0.0
    %51 = vst [vmem:[#allocation2 + $0xd8] sm:$0xff] 0.0
    %52 = vst [vmem:[#allocation2 + $0xe0] sm:$0xff] 0.0
    %53 = vst [vmem:[#allocation2 + $0xe8] sm:$0xff] 0.0
    %54 = vst [vmem:[#allocation2 + $0xf0] sm:$0xff] 0.0
    %55 = vst [vmem:[#allocation2 + $0xf8] sm:$0xff] 0.0
  $region25: #{discriminator_forward.4} parent=0 // pred_fallthru
    _
  %v56 = vld [vmem:[#allocation2] sm:$0xff]
  %v57 = vld [vmem:[#allocation2 + $0x8] sm:$0xff]
  %v58 = vld [vmem:[#allocation2 + $0x10] sm:$0xff]
  %v59 = vld [vmem:[#allocation2 + $0x18] sm:$0xff]
  %v60 = vld [vmem:[#allocation2 + $0x20] sm:$0xff]
  %v61 = vld [vmem:[#allocation2 + $0x28] sm:$0xff]
  %v62 = vld [vmem:[#allocation2 + $0x30] sm:$0xff]
  %v63 = vld [vmem:[#allocation2 + $0x38] sm:$0xff]
  %v64 = vld [vmem:[#allocation2 + $0x40] sm:$0xff]
  %v65 = vld [vmem:[#allocation2 + $0x48] sm:$0xff]
  %v66 = vld [vmem:[#allocation2 + $0x50] sm:$0xff]
  %v67 = vld [vmem:[#allocation2 + $0x58] sm:$0xff]
  %v68 = vld [vmem:[#allocation2 + $0x60] sm:$0xff]
  %v69 = vld [vmem:[#allocation2 + $0x68] sm:$0xff]
  %v70 = vld [vmem:[#allocation2 + $0x70] sm:$0xff]
  %v71 = vld [vmem:[#allocation2 + $0x78] sm:$0xff]
  %v72 = vld [vmem:[#allocation2 + $0x80] sm:$0xff]
  %v73 = vld [vmem:[#allocation2 + $0x88] sm:$0xff]
  %v74 = vld [vmem:[#allocation2 + $0x90] sm:$0xff]
  %v75 = vld [vmem:[#allocation2 + $0x98] sm:$0xff]
  %v76 = vld [vmem:[#allocation2 + $0xa0] sm:$0xff]
  %v77 = vld [vmem:[#allocation2 + $0xa8] sm:$0xff]
  %v78 = vld [vmem:[#allocation2 + $0xb0] sm:$0xff]
  %v79 = vld [vmem:[#allocation2 + $0xb8] sm:$0xff]
  %v80 = vld [vmem:[#allocation2 + $0xc0] sm:$0xff]
  %v81 = vld [vmem:[#allocation2 + $0xc8] sm:$0xff]
  %v82 = vld [vmem:[#allocation2 + $0xd0] sm:$0xff]
  %v83 = vld [vmem:[#allocation2 + $0xd8] sm:$0xff]
  %v84 = vld [vmem:[#allocation2 + $0xe0] sm:$0xff]
  %v85 = vld [vmem:[#allocation2 + $0xe8] sm:$0xff]
  %v86 = vld [vmem:[#allocation2 + $0xf0] sm:$0xff]
  %v87 = vld [vmem:[#allocation2 + $0xf8] sm:$0xff]
  %v88 = vld [vmem:[%s0] sm:$0xff]
  %v89 = vld [vmem:[%s0 + $0x8] sm:$0xff]
  %v90 = vld [vmem:[%s0 + $0x10] sm:$0xff]
  %v91 = vld [vmem:[%s0 + $0x18] sm:$0xff]
  %v92 = vld [vmem:[%s0 + $0x20] sm:$0xff]
  %v93 = vld [vmem:[%s0 + $0x28] sm:$0xff]
  %v94 = vld [vmem:[%s0 + $0x30] sm:$0xff]
  %v95 = vld [vmem:[%s0 + $0x38] sm:$0xff]
  %v96 = vld [vmem:[%s0 + $0x40] sm:$0xff]
  %v97 = vld [vmem:[%s0 + $0x48] sm:$0xff]
  %v98 = vld [vmem:[%s0 + $0x50] sm:$0xff]
  %v99 = vld [vmem:[%s0 + $0x58] sm:$0xff]
  %v100 = vld [vmem:[%s0 + $0x60] sm:$0xff]
  %v101 = vld [vmem:[%s0 + $0x68] sm:$0xff]
  %v102 = vld [vmem:[%s0 + $0x70] sm:$0xff]
  %v103 = vld [vmem:[%s0 + $0x78] sm:$0xff]
  %v104 = vld [vmem:[%s0 + $0x80] sm:$0xff]
  %v105 = vld [vmem:[%s0 + $0x88] sm:$0xff]
  %v106 = vld [vmem:[%s0 + $0x90] sm:$0xff]
  %v107 = vld [vmem:[%s0 + $0x98] sm:$0xff]
  %v108 = vld [vmem:[%s0 + $0xa0] sm:$0xff]
  %v109 = vld [vmem:[%s0 + $0xa8] sm:$0xff]
  %v110 = vld [vmem:[%s0 + $0xb0] sm:$0xff]
  %v111 = vld [vmem:[%s0 + $0xb8] sm:$0xff]
  %v112 = vld [vmem:[%s0 + $0xc0] sm:$0xff]
  %v113 = vld [vmem:[%s0 + $0xc8] sm:$0xff]
  %v114 = vld [vmem:[%s0 + $0xd0] sm:$0xff]
  %v115 = vld [vmem:[%s0 + $0xd8] sm:$0xff]
  %v116 = vld [vmem:[%s0 + $0xe0] sm:$0xff]
  %v117 = vld [vmem:[%s0 + $0xe8] sm:$0xff]
  %v118 = vld [vmem:[%s0 + $0xf0] sm:$0xff]
  %v119 = vld [vmem:[%s0 + $0xf8] sm:$0xff]
  %v120 = vld [vmem:[%s0 + $0x100] sm:$0xff]
  %v121 = vld [vmem:[%s0 + $0x108] sm:$0xff]
  %v122 = vld [vmem:[%s0 + $0x110] sm:$0xff]
  %v123 = vld [vmem:[%s0 + $0x118] sm:$0xff]
  %v124 = vld [vmem:[%s0 + $0x120] sm:$0xff]
  %v125 = vld [vmem:[%s0 + $0x128] sm:$0xff]
  %v126 = vld [vmem:[%s0 + $0x130] sm:$0xff]
  %v127 = vld [vmem:[%s0 + $0x138] sm:$0xff]
  %v128 = vld [vmem:[%s0 + $0x140] sm:$0xff]
  %v129 = vld [vmem:[%s0 + $0x148] sm:$0xff]
  %v130 = vld [vmem:[%s0 + $0x150] sm:$0xff]
  %v131 = vld [vmem:[%s0 + $0x158] sm:$0xff]
  %v132 = vld [vmem:[%s0 + $0x160] sm:$0xff]
  %v133 = vld [vmem:[%s0 + $0x168] sm:$0xff]
  %v134 = vld [vmem:[%s0 + $0x170] sm:$0xff]
  %v135 = vld [vmem:[%s0 + $0x178] sm:$0xff]
  %v136 = vld [vmem:[%s0 + $0x180] sm:$0xff]
  %v137 = vld [vmem:[%s0 + $0x188] sm:$0xff]
  %v138 = vld [vmem:[%s0 + $0x190] sm:$0xff]
  %v139 = vld [vmem:[%s0 + $0x198] sm:$0xff]
  %v140 = vld [vmem:[%s0 + $0x1a0] sm:$0xff]
  %v141 = vld [vmem:[%s0 + $0x1a8] sm:$0xff]
  %v142 = vld [vmem:[%s0 + $0x1b0] sm:$0xff]
  %v143 = vld [vmem:[%s0 + $0x1b8] sm:$0xff]
  %v144 = vld [vmem:[%s0 + $0x1c0] sm:$0xff]
  %v145 = vld [vmem:[%s0 + $0x1c8] sm:$0xff]
  %v146 = vld [vmem:[%s0 + $0x1d0] sm:$0xff]
  %v147 = vld [vmem:[%s0 + $0x1d8] sm:$0xff]
  %v148 = vld [vmem:[%s0 + $0x1e0] sm:$0xff]
  %v149 = vld [vmem:[%s0 + $0x1e8] sm:$0xff]
  %v150 = vld [vmem:[%s0 + $0x1f0] sm:$0xff]
  %v151 = vld [vmem:[%s0 + $0x1f8] sm:$0xff]
  %v152 = vld [vmem:[%s0 + $0x200] sm:$0xff]
  %v153 = vld [vmem:[%s0 + $0x208] sm:$0xff]
  %v154 = vld [vmem:[%s0 + $0x210] sm:$0xff]
  %v155 = vld [vmem:[%s0 + $0x218] sm:$0xff]
  %v156 = vld [vmem:[%s0 + $0x220] sm:$0xff]
  %v157 = vld [vmem:[%s0 + $0x228] sm:$0xff]
  %v158 = vld [vmem:[%s0 + $0x230] sm:$0xff]
  %v159 = vld [vmem:[%s0 + $0x238] sm:$0xff]
  %v160 = vld [vmem:[%s0 + $0x240] sm:$0xff]
  %v161 = vld [vmem:[%s0 + $0x248] sm:$0xff]
  %v162 = vld [vmem:[%s0 + $0x250] sm:$0xff]
  %v163 = vld [vmem:[%s0 + $0x258] sm:$0xff]
  %v164 = vld [vmem:[%s0 + $0x260] sm:$0xff]
  %v165 = vld [vmem:[%s0 + $0x268] sm:$0xff]
  %v166 = vld [vmem:[%s0 + $0x270] sm:$0xff]
  %v167 = vld [vmem:[%s0 + $0x278] sm:$0xff]
  %v168 = vld [vmem:[%s0 + $0x280] sm:$0xff]
  %v169 = vld [vmem:[%s0 + $0x288] sm:$0xff]
  %v170 = vld [vmem:[%s0 + $0x290] sm:$0xff]
  %v171 = vld [vmem:[%s0 + $0x298] sm:$0xff]
  %v172 = vld [vmem:[%s0 + $0x2a0] sm:$0xff]
  %v173 = vld [vmem:[%s0 + $0x2a8] sm:$0xff]
  %v174 = vld [vmem:[%s0 + $0x2b0] sm:$0xff]
  %v175 = vld [vmem:[%s0 + $0x2b8] sm:$0xff]
  %v176 = vld [vmem:[%s0 + $0x2c0] sm:$0xff]
  %v177 = vld [vmem:[%s0 + $0x2c8] sm:$0xff]
  %v178 = vld [vmem:[%s0 + $0x2d0] sm:$0xff]
  %v179 = vld [vmem:[%s0 + $0x2d8] sm:$0xff]
  %v180 = vld [vmem:[%s0 + $0x2e0] sm:$0xff]
  %v181 = vld [vmem:[%s0 + $0x2e8] sm:$0xff]
  %v182 = vld [vmem:[%s0 + $0x2f0] sm:$0xff]
  %v183 = vld [vmem:[%s0 + $0x2f8] sm:$0xff]
  %v184 = vld [vmem:[%s0 + $0x300] sm:$0xff]
  %v185 = vld [vmem:[%s0 + $0x308] sm:$0xff]
  %v186 = vld [vmem:[%s0 + $0x310] sm:$0xff]
  %v187 = vld [vmem:[%s0 + $0x318] sm:$0xff]
  %v188 = vld [vmem:[%s0 + $0x320] sm:$0xff]
  %v189 = vld [vmem:[%s0 + $0x328] sm:$0xff]
  %v190 = vld [vmem:[%s0 + $0x330] sm:$0xff]
  %v191 = vld [vmem:[%s0 + $0x338] sm:$0xff]
  %v192 = vld [vmem:[%s0 + $0x340] sm:$0xff]
  %v193 = vld [vmem:[%s0 + $0x348] sm:$0xff]
  %v194 = vld [vmem:[%s0 + $0x350] sm:$0xff]
  %v195 = vld [vmem:[%s0 + $0x358] sm:$0xff]
  %v196 = vld [vmem:[%s0 + $0x360] sm:$0xff]
  %v197 = vld [vmem:[%s0 + $0x368] sm:$0xff]
  %v198 = vld [vmem:[%s0 + $0x370] sm:$0xff]
  %v199 = vld [vmem:[%s0 + $0x378] sm:$0xff]
  %v200 = vld [vmem:[%s0 + $0x380] sm:$0xff]
  %v201 = vld [vmem:[%s0 + $0x388] sm:$0xff]
  %v202 = vld [vmem:[%s0 + $0x390] sm:$0xff]
  %v203 = vld [vmem:[%s0 + $0x398] sm:$0xff]
  %v204 = vld [vmem:[%s0 + $0x3a0] sm:$0xff]
  %v205 = vld [vmem:[%s0 + $0x3a8] sm:$0xff]
  %v206 = vld [vmem:[%s0 + $0x3b0] sm:$0xff]
  %v207 = vld [vmem:[%s0 + $0x3b8] sm:$0xff]
  %v208 = vld [vmem:[%s0 + $0x3c0] sm:$0xff]
  %v209 = vld [vmem:[%s0 + $0x3c8] sm:$0xff]
  %v210 = vld [vmem:[%s0 + $0x3d0] sm:$0xff]
  %v211 = vld [vmem:[%s0 + $0x3d8] sm:$0xff]
  %v212 = vld [vmem:[%s0 + $0x3e0] sm:$0xff]
  %v213 = vld [vmem:[%s0 + $0x3e8] sm:$0xff]
  %v214 = vld [vmem:[%s0 + $0x3f0] sm:$0xff]
  %v215 = vld [vmem:[%s0 + $0x3f8] sm:$0xff]
  %v216 = vld [vmem:[%s1] sm:$0xff]
  %v217 = vld [vmem:[%s1 + $0x8] sm:$0xff]
  %v218 = vld [vmem:[%s1 + $0x10] sm:$0xff]
  %v219 = vld [vmem:[%s1 + $0x18] sm:$0xff]
  %v220 = vld [vmem:[%s1 + $0x20] sm:$0xff]
  %v221 = vld [vmem:[%s1 + $0x28] sm:$0xff]
  %v222 = vld [vmem:[%s1 + $0x30] sm:$0xff]
  %v223 = vld [vmem:[%s1 + $0x38] sm:$0xff]
  %v224 = vld [vmem:[%s1 + $0x40] sm:$0xff]
  %v225 = vld [vmem:[%s1 + $0x48] sm:$0xff]
  %v226 = vld [vmem:[%s1 + $0x50] sm:$0xff]
  %v227 = vld [vmem:[%s1 + $0x58] sm:$0xff]
  %v228 = vld [vmem:[%s1 + $0x60] sm:$0xff]
  %v229 = vld [vmem:[%s1 + $0x68] sm:$0xff]
  %v230 = vld [vmem:[%s1 + $0x70] sm:$0xff]
  %v231 = vld [vmem:[%s1 + $0x78] sm:$0xff]
  %v232 = vld [vmem:[%s1 + $0x80] sm:$0xff]
  %v233 = vld [vmem:[%s1 + $0x88] sm:$0xff]
  %v234 = vld [vmem:[%s1 + $0x90] sm:$0xff]
  %v235 = vld [vmem:[%s1 + $0x98] sm:$0xff]
  %v236 = vld [vmem:[%s1 + $0xa0] sm:$0xff]
  %v237 = vld [vmem:[%s1 + $0xa8] sm:$0xff]
  %v238 = vld [vmem:[%s1 + $0xb0] sm:$0xff]
  %v239 = vld [vmem:[%s1 + $0xb8] sm:$0xff]
  %v240 = vld [vmem:[%s1 + $0xc0] sm:$0xff]
  %v241 = vld [vmem:[%s1 + $0xc8] sm:$0xff]
  %v242 = vld [vmem:[%s1 + $0xd0] sm:$0xff]
  %v243 = vld [vmem:[%s1 + $0xd8] sm:$0xff]
  %v244 = vld [vmem:[%s1 + $0xe0] sm:$0xff]
  %v245 = vld [vmem:[%s1 + $0xe8] sm:$0xff]
  %v246 = vld [vmem:[%s1 + $0xf0] sm:$0xff]
  %v247 = vld [vmem:[%s1 + $0xf8] sm:$0xff]
  %v248 = vld [vmem:[%s1 + $0x100] sm:$0xff]
  %v249 = vld [vmem:[%s1 + $0x108] sm:$0xff]
  %v250 = vld [vmem:[%s1 + $0x110] sm:$0xff]
  %v251 = vld [vmem:[%s1 + $0x118] sm:$0xff]
  %v252 = vld [vmem:[%s1 + $0x120] sm:$0xff]
  %v253 = vld [vmem:[%s1 + $0x128] sm:$0xff]
  %v254 = vld [vmem:[%s1 + $0x130] sm:$0xff]
  %v255 = vld [vmem:[%s1 + $0x138] sm:$0xff]
  %v256 = vld [vmem:[%s1 + $0x140] sm:$0xff]
  %v257 = vld [vmem:[%s1 + $0x148] sm:$0xff]
  %v258 = vld [vmem:[%s1 + $0x150] sm:$0xff]
  %v259 = vld [vmem:[%s1 + $0x158] sm:$0xff]
  %v260 = vld [vmem:[%s1 + $0x160] sm:$0xff]
  %v261 = vld [vmem:[%s1 + $0x168] sm:$0xff]
  %v262 = vld [vmem:[%s1 + $0x170] sm:$0xff]
  %v263 = vld [vmem:[%s1 + $0x178] sm:$0xff]
  %v264 = vld [vmem:[%s1 + $0x180] sm:$0xff]
  %v265 = vld [vmem:[%s1 + $0x188] sm:$0xff]
  %v266 = vld [vmem:[%s1 + $0x190] sm:$0xff]
  %v267 = vld [vmem:[%s1 + $0x198] sm:$0xff]
  %v268 = vld [vmem:[%s1 + $0x1a0] sm:$0xff]
  %v269 = vld [vmem:[%s1 + $0x1a8] sm:$0xff]
  %v270 = vld [vmem:[%s1 + $0x1b0] sm:$0xff]
  %v271 = vld [vmem:[%s1 + $0x1b8] sm:$0xff]
  %v272 = vld [vmem:[%s1 + $0x1c0] sm:$0xff]
  %v273 = vld [vmem:[%s1 + $0x1c8] sm:$0xff]
  %v274 = vld [vmem:[%s1 + $0x1d0] sm:$0xff]
  %v275 = vld [vmem:[%s1 + $0x1d8] sm:$0xff]
  %v276 = vld [vmem:[%s1 + $0x1e0] sm:$0xff]
  %v277 = vld [vmem:[%s1 + $0x1e8] sm:$0xff]
  %v278 = vld [vmem:[%s1 + $0x1f0] sm:$0xff]
  %v279 = vld [vmem:[%s1 + $0x1f8] sm:$0xff]
  %v280 = vld [vmem:[%s1 + $0x200] sm:$0xff]
  %v281 = vld [vmem:[%s1 + $0x208] sm:$0xff]
  %v282 = vld [vmem:[%s1 + $0x210] sm:$0xff]
  %v283 = vld [vmem:[%s1 + $0x218] sm:$0xff]
  %v284 = vld [vmem:[%s1 + $0x220] sm:$0xff]
  %v285 = vld [vmem:[%s1 + $0x228] sm:$0xff]
  %v286 = vld [vmem:[%s1 + $0x230] sm:$0xff]
  %v287 = vld [vmem:[%s1 + $0x238] sm:$0xff]
  %v288 = vld [vmem:[%s1 + $0x240] sm:$0xff]
  %v289 = vld [vmem:[%s1 + $0x248] sm:$0xff]
  %v290 = vld [vmem:[%s1 + $0x250] sm:$0xff]
  %v291 = vld [vmem:[%s1 + $0x258] sm:$0xff]
  %v292 = vld [vmem:[%s1 + $0x260] sm:$0xff]
  %v293 = vld [vmem:[%s1 + $0x268] sm:$0xff]
  %v294 = vld [vmem:[%s1 + $0x270] sm:$0xff]
  %v295 = vld [vmem:[%s1 + $0x278] sm:$0xff]
  %v296 = vld [vmem:[%s1 + $0x280] sm:$0xff]
  %v297 = vld [vmem:[%s1 + $0x288] sm:$0xff]
  %v298 = vld [vmem:[%s1 + $0x290] sm:$0xff]
  %v299 = vld [vmem:[%s1 + $0x298] sm:$0xff]
  %v300 = vld [vmem:[%s1 + $0x2a0] sm:$0xff]
  %v301 = vld [vmem:[%s1 + $0x2a8] sm:$0xff]
  %v302 = vld [vmem:[%s1 + $0x2b0] sm:$0xff]
  %v303 = vld [vmem:[%s1 + $0x2b8] sm:$0xff]
  %v304 = vld [vmem:[%s1 + $0x2c0] sm:$0xff]
  %v305 = vld [vmem:[%s1 + $0x2c8] sm:$0xff]
  %v306 = vld [vmem:[%s1 + $0x2d0] sm:$0xff]
  %v307 = vld [vmem:[%s1 + $0x2d8] sm:$0xff]
  %v308 = vld [vmem:[%s1 + $0x2e0] sm:$0xff]
  %v309 = vld [vmem:[%s1 + $0x2e8] sm:$0xff]
  %v310 = vld [vmem:[%s1 + $0x2f0] sm:$0xff]
  %v311 = vld [vmem:[%s1 + $0x2f8] sm:$0xff]
  %v312 = vld [vmem:[%s1 + $0x300] sm:$0xff]
  %v313 = vld [vmem:[%s1 + $0x308] sm:$0xff]
  %v314 = vld [vmem:[%s1 + $0x310] sm:$0xff]
  %v315 = vld [vmem:[%s1 + $0x318] sm:$0xff]
  %v316 = vld [vmem:[%s1 + $0x320] sm:$0xff]
  %v317 = vld [vmem:[%s1 + $0x328] sm:$0xff]
  %v318 = vld [vmem:[%s1 + $0x330] sm:$0xff]
  %v319 = vld [vmem:[%s1 + $0x338] sm:$0xff]
  %v320 = vld [vmem:[%s1 + $0x340] sm:$0xff]
  %v321 = vld [vmem:[%s1 + $0x348] sm:$0xff]
  %v322 = vld [vmem:[%s1 + $0x350] sm:$0xff]
  %v323 = vld [vmem:[%s1 + $0x358] sm:$0xff]
  %v324 = vld [vmem:[%s1 + $0x360] sm:$0xff]
  %v325 = vld [vmem:[%s1 + $0x368] sm:$0xff]
  %v326 = vld [vmem:[%s1 + $0x370] sm:$0xff]
  %v327 = vld [vmem:[%s1 + $0x378] sm:$0xff]
  %v328 = vld [vmem:[%s1 + $0x380] sm:$0xff]
  %v329 = vld [vmem:[%s1 + $0x388] sm:$0xff]
  %v330 = vld [vmem:[%s1 + $0x390] sm:$0xff]
  %v331 = vld [vmem:[%s1 + $0x398] sm:$0xff]
  %v332 = vld [vmem:[%s1 + $0x3a0] sm:$0xff]
  %v333 = vld [vmem:[%s1 + $0x3a8] sm:$0xff]
  %v334 = vld [vmem:[%s1 + $0x3b0] sm:$0xff]
  %v335 = vld [vmem:[%s1 + $0x3b8] sm:$0xff]
  %v336 = vld [vmem:[%s1 + $0x3c0] sm:$0xff]
  %v337 = vld [vmem:[%s1 + $0x3c8] sm:$0xff]
  %v338 = vld [vmem:[%s1 + $0x3d0] sm:$0xff]
  %v339 = vld [vmem:[%s1 + $0x3d8] sm:$0xff]
  %v340 = vld [vmem:[%s1 + $0x3e0] sm:$0xff]
  %v341 = vld [vmem:[%s1 + $0x3e8] sm:$0xff]
  %v342 = vld [vmem:[%s1 + $0x3f0] sm:$0xff]
  %v343 = vld [vmem:[%s1 + $0x3f8] sm:$0xff]
  %v344 = vld [vmem:[%s1 + $0x400] sm:$0xff]
  %v345 = vld [vmem:[%s1 + $0x408] sm:$0xff]
  %v346 = vld [vmem:[%s1 + $0x410] sm:$0xff]
  %v347 = vld [vmem:[%s1 + $0x418] sm:$0xff]
  %v348 = vld [vmem:[%s1 + $0x420] sm:$0xff]
  %v349 = vld [vmem:[%s1 + $0x428] sm:$0xff]
  %v350 = vld [vmem:[%s1 + $0x430] sm:$0xff]
  %v351 = vld [vmem:[%s1 + $0x438] sm:$0xff]
  %v352 = vld [vmem:[%s1 + $0x440] sm:$0xff]
  %v353 = vld [vmem:[%s1 + $0x448] sm:$0xff]
  %v354 = vld [vmem:[%s1 + $0x450] sm:$0xff]
  %v355 = vld [vmem:[%s1 + $0x458] sm:$0xff]
  %v356 = vld [vmem:[%s1 + $0x460] sm:$0xff]
  %v357 = vld [vmem:[%s1 + $0x468] sm:$0xff]
  %v358 = vld [vmem:[%s1 + $0x470] sm:$0xff]
  %v359 = vld [vmem:[%s1 + $0x478] sm:$0xff]
  %v360 = vld [vmem:[%s1 + $0x480] sm:$0xff]
  %v361 = vld [vmem:[%s1 + $0x488] sm:$0xff]
  %v362 = vld [vmem:[%s1 + $0x490] sm:$0xff]
  %v363 = vld [vmem:[%s1 + $0x498] sm:$0xff]
  %v364 = vld [vmem:[%s1 + $0x4a0] sm:$0xff]
  %v365 = vld [vmem:[%s1 + $0x4a8] sm:$0xff]
  %v366 = vld [vmem:[%s1 + $0x4b0] sm:$0xff]
  %v367 = vld [vmem:[%s1 + $0x4b8] sm:$0xff]
  %v368 = vld [vmem:[%s1 + $0x4c0] sm:$0xff]
  %v369 = vld [vmem:[%s1 + $0x4c8] sm:$0xff]
  %v370 = vld [vmem:[%s1 + $0x4d0] sm:$0xff]
  %v371 = vld [vmem:[%s1 + $0x4d8] sm:$0xff]
  %v372 = vld [vmem:[%s1 + $0x4e0] sm:$0xff]
  %v373 = vld [vmem:[%s1 + $0x4e8] sm:$0xff]
  %v374 = vld [vmem:[%s1 + $0x4f0] sm:$0xff]
  %v375 = vld [vmem:[%s1 + $0x4f8] sm:$0xff]
  %v376 = vld [vmem:[%s1 + $0x500] sm:$0xff]
  %v377 = vld [vmem:[%s1 + $0x508] sm:$0xff]
  %v378 = vld [vmem:[%s1 + $0x510] sm:$0xff]
  %v379 = vld [vmem:[%s1 + $0x518] sm:$0xff]
  %v380 = vld [vmem:[%s1 + $0x520] sm:$0xff]
  %v381 = vld [vmem:[%s1 + $0x528] sm:$0xff]
  %v382 = vld [vmem:[%s1 + $0x530] sm:$0xff]
  %v383 = vld [vmem:[%s1 + $0x538] sm:$0xff]
  %v384 = vld [vmem:[%s1 + $0x540] sm:$0xff]
  %v385 = vld [vmem:[%s1 + $0x548] sm:$0xff]
  %v386 = vld [vmem:[%s1 + $0x550] sm:$0xff]
  %v387 = vld [vmem:[%s1 + $0x558] sm:$0xff]
  %v388 = vld [vmem:[%s1 + $0x560] sm:$0xff]
  %v389 = vld [vmem:[%s1 + $0x568] sm:$0xff]
  %v390 = vld [vmem:[%s1 + $0x570] sm:$0xff]
  %v391 = vld [vmem:[%s1 + $0x578] sm:$0xff]
  %v392 = vld [vmem:[%s1 + $0x580] sm:$0xff]
  %v393 = vld [vmem:[%s1 + $0x588] sm:$0xff]
  %v394 = vld [vmem:[%s1 + $0x590] sm:$0xff]
  %v395 = vld [vmem:[%s1 + $0x598] sm:$0xff]
  %v396 = vld [vmem:[%s1 + $0x5a0] sm:$0xff]
  %v397 = vld [vmem:[%s1 + $0x5a8] sm:$0xff]
  %v398 = vld [vmem:[%s1 + $0x5b0] sm:$0xff]
  %v399 = vld [vmem:[%s1 + $0x5b8] sm:$0xff]
  %v400 = vld [vmem:[%s1 + $0x5c0] sm:$0xff]
  %v401 = vld [vmem:[%s1 + $0x5c8] sm:$0xff]
  %v402 = vld [vmem:[%s1 + $0x5d0] sm:$0xff]
  %v403 = vld [vmem:[%s1 + $0x5d8] sm:$0xff]
  %v404 = vld [vmem:[%s1 + $0x5e0] sm:$0xff]
  %v405 = vld [vmem:[%s1 + $0x5e8] sm:$0xff]
  %v406 = vld [vmem:[%s1 + $0x5f0] sm:$0xff]
  %v407 = vld [vmem:[%s1 + $0x5f8] sm:$0xff]
  %v408 = vld [vmem:[%s1 + $0x600] sm:$0xff]
  %v409 = vld [vmem:[%s1 + $0x608] sm:$0xff]
  %v410 = vld [vmem:[%s1 + $0x610] sm:$0xff]
  %v411 = vld [vmem:[%s1 + $0x618] sm:$0xff]
  %v412 = vld [vmem:[%s1 + $0x620] sm:$0xff]
  %v413 = vld [vmem:[%s1 + $0x628] sm:$0xff]
  %v414 = vld [vmem:[%s1 + $0x630] sm:$0xff]
  %v415 = vld [vmem:[%s1 + $0x638] sm:$0xff]
  %v416 = vld [vmem:[%s1 + $0x640] sm:$0xff]
  %v417 = vld [vmem:[%s1 + $0x648] sm:$0xff]
  %v418 = vld [vmem:[%s1 + $0x650] sm:$0xff]
  %v419 = vld [vmem:[%s1 + $0x658] sm:$0xff]
  %v420 = vld [vmem:[%s1 + $0x660] sm:$0xff]
  %v421 = vld [vmem:[%s1 + $0x668] sm:$0xff]
  %v422 = vld [vmem:[%s1 + $0x670] sm:$0xff]
  %v423 = vld [vmem:[%s1 + $0x678] sm:$0xff]
  %v424 = vld [vmem:[%s1 + $0x680] sm:$0xff]
  %v425 = vld [vmem:[%s1 + $0x688] sm:$0xff]
  %v426 = vld [vmem:[%s1 + $0x690] sm:$0xff]
  %v427 = vld [vmem:[%s1 + $0x698] sm:$0xff]
  %v428 = vld [vmem:[%s1 + $0x6a0] sm:$0xff]
  %v429 = vld [vmem:[%s1 + $0x6a8] sm:$0xff]
  %v430 = vld [vmem:[%s1 + $0x6b0] sm:$0xff]
  %v431 = vld [vmem:[%s1 + $0x6b8] sm:$0xff]
  %v432 = vld [vmem:[%s1 + $0x6c0] sm:$0xff]
  %v433 = vld [vmem:[%s1 + $0x6c8] sm:$0xff]
  %v434 = vld [vmem:[%s1 + $0x6d0] sm:$0xff]
  %v435 = vld [vmem:[%s1 + $0x6d8] sm:$0xff]
  %v436 = vld [vmem:[%s1 + $0x6e0] sm:$0xff]
  %v437 = vld [vmem:[%s1 + $0x6e8] sm:$0xff]
  %v438 = vld [vmem:[%s1 + $0x6f0] sm:$0xff]
  %v439 = vld [vmem:[%s1 + $0x6f8] sm:$0xff]
  %v440 = vld [vmem:[%s1 + $0x700] sm:$0xff]
  %v441 = vld [vmem:[%s1 + $0x708] sm:$0xff]
  %v442 = vld [vmem:[%s1 + $0x710] sm:$0xff]
  %v443 = vld [vmem:[%s1 + $0x718] sm:$0xff]
  %v444 = vld [vmem:[%s1 + $0x720] sm:$0xff]
  %v445 = vld [vmem:[%s1 + $0x728] sm:$0xff]
  %v446 = vld [vmem:[%s1 + $0x730] sm:$0xff]
  %v447 = vld [vmem:[%s1 + $0x738] sm:$0xff]
  %v448 = vld [vmem:[%s1 + $0x740] sm:$0xff]
  %v449 = vld [vmem:[%s1 + $0x748] sm:$0xff]
  %v450 = vld [vmem:[%s1 + $0x750] sm:$0xff]
  %v451 = vld [vmem:[%s1 + $0x758] sm:$0xff]
  %v452 = vld [vmem:[%s1 + $0x760] sm:$0xff]
  %v453 = vld [vmem:[%s1 + $0x768] sm:$0xff]
  %v454 = vld [vmem:[%s1 + $0x770] sm:$0xff]
  %v455 = vld [vmem:[%s1 + $0x778] sm:$0xff]
  %v456 = vld [vmem:[%s1 + $0x780] sm:$0xff]
  %v457 = vld [vmem:[%s1 + $0x788] sm:$0xff]
  %v458 = vld [vmem:[%s1 + $0x790] sm:$0xff]
  %v459 = vld [vmem:[%s1 + $0x798] sm:$0xff]
  %v460 = vld [vmem:[%s1 + $0x7a0] sm:$0xff]
  %v461 = vld [vmem:[%s1 + $0x7a8] sm:$0xff]
  %v462 = vld [vmem:[%s1 + $0x7b0] sm:$0xff]
  %v463 = vld [vmem:[%s1 + $0x7b8] sm:$0xff]
  %v464 = vld [vmem:[%s1 + $0x7c0] sm:$0xff]
  %v465 = vld [vmem:[%s1 + $0x7c8] sm:$0xff]
  %v466 = vld [vmem:[%s1 + $0x7d0] sm:$0xff]
  %v467 = vld [vmem:[%s1 + $0x7d8] sm:$0xff]
  %v468 = vld [vmem:[%s1 + $0x7e0] sm:$0xff]
  %v469 = vld [vmem:[%s1 + $0x7e8] sm:$0xff]
  %v470 = vld [vmem:[%s1 + $0x7f0] sm:$0xff]
  %v471 = vld [vmem:[%s1 + $0x7f8] sm:$0xff]
  %v600 = vunpack.c.l.b16 %v88
  %v601 = vunpack.c.h.b16 %v88
  %v602 = vunpack.c.l.b16 %v89
  %v603 = vunpack.c.h.b16 %v89
  %v604 = vunpack.c.l.b16 %v90
  %v605 = vunpack.c.h.b16 %v90
  %v606 = vunpack.c.l.b16 %v91
  %v607 = vunpack.c.h.b16 %v91
  %v608 = vunpack.c.l.b16 %v92
  %v609 = vunpack.c.h.b16 %v92
  %v610 = vunpack.c.l.b16 %v93
  %v611 = vunpack.c.h.b16 %v93
  %v612 = vunpack.c.l.b16 %v94
  %v613 = vunpack.c.h.b16 %v94
  %v614 = vunpack.c.l.b16 %v95
  %v615 = vunpack.c.h.b16 %v95
  %v616 = vunpack.c.l.b16 %v96
  %v617 = vunpack.c.h.b16 %v96
  %v618 = vunpack.c.l.b16 %v97
  %v619 = vunpack.c.h.b16 %v97
  %v620 = vunpack.c.l.b16 %v98
  %v621 = vunpack.c.h.b16 %v98
  %v622 = vunpack.c.l.b16 %v99
  %v623 = vunpack.c.h.b16 %v99
  %v624 = vunpack.c.l.b16 %v100
  %v625 = vunpack.c.h.b16 %v100
  %v626 = vunpack.c.l.b16 %v101
  %v627 = vunpack.c.h.b16 %v101
  %v628 = vunpack.c.l.b16 %v102
  %v629 = vunpack.c.h.b16 %v102
  %v630 = vunpack.c.l.b16 %v103
  %v631 = vunpack.c.h.b16 %v103
  %v632 = vunpack.c.l.b16 %v104
  %v633 = vunpack.c.h.b16 %v104
  %v634 = vunpack.c.l.b16 %v105
  %v635 = vunpack.c.h.b16 %v105
  %v636 = vunpack.c.l.b16 %v106
  %v637 = vunpack.c.h.b16 %v106
  %v638 = vunpack.c.l.b16 %v107
  %v639 = vunpack.c.h.b16 %v107
  %v640 = vunpack.c.l.b16 %v108
  %v641 = vunpack.c.h.b16 %v108
  %v642 = vunpack.c.l.b16 %v109
  %v643 = vunpack.c.h.b16 %v109
  %v644 = vunpack.c.l.b16 %v110
  %v645 = vunpack.c.h.b16 %v110
  %v646 = vunpack.c.l.b16 %v111
  %v647 = vunpack.c.h.b16 %v111
  %v648 = vunpack.c.l.b16 %v112
  %v649 = vunpack.c.h.b16 %v112
  %v650 = vunpack.c.l.b16 %v113
  %v651 = vunpack.c.h.b16 %v113
  %v652 = vunpack.c.l.b16 %v114
  %v653 = vunpack.c.h.b16 %v114
  %v654 = vunpack.c.l.b16 %v115
  %v655 = vunpack.c.h.b16 %v115
  %v656 = vunpack.c.l.b16 %v116
  %v657 = vunpack.c.h.b16 %v116
  %v658 = vunpack.c.l.b16 %v117
  %v659 = vunpack.c.h.b16 %v117
  %v660 = vunpack.c.l.b16 %v118
  %v661 = vunpack.c.h.b16 %v118
  %v662 = vunpack.c.l.b16 %v119
  %v663 = vunpack.c.h.b16 %v119
  %v664 = vunpack.c.l.b16 %v120
  %v665 = vunpack.c.h.b16 %v120
  %v666 = vunpack.c.l.b16 %v121
  %v667 = vunpack.c.h.b16 %v121
  %v668 = vunpack.c.l.b16 %v122
  %v669 = vunpack.c.h.b16 %v122
  %v670 = vunpack.c.l.b16 %v123
  %v671 = vunpack.c.h.b16 %v123
  %v672 = vunpack.c.l.b16 %v124
  %v673 = vunpack.c.h.b16 %v124
  %v674 = vunpack.c.l.b16 %v125
  %v675 = vunpack.c.h.b16 %v125
  %v676 = vunpack.c.l.b16 %v126
  %v677 = vunpack.c.h.b16 %v126
  %v678 = vunpack.c.l.b16 %v127
  %v679 = vunpack.c.h.b16 %v127
  %v680 = vunpack.c.l.b16 %v128
  %v681 = vunpack.c.h.b16 %v128
  %v682 = vunpack.c.l.b16 %v129
  %v683 = vunpack.c.h.b16 %v129
  %v684 = vunpack.c.l.b16 %v130
  %v685 = vunpack.c.h.b16 %v130
  %v686 = vunpack.c.l.b16 %v131
  %v687 = vunpack.c.h.b16 %v131
  %v688 = vunpack.c.l.b16 %v132
  %v689 = vunpack.c.h.b16 %v132
  %v690 = vunpack.c.l.b16 %v133
  %v691 = vunpack.c.h.b16 %v133
  %v692 = vunpack.c.l.b16 %v134
  %v693 = vunpack.c.h.b16 %v134
  %v694 = vunpack.c.l.b16 %v135
  %v695 = vunpack.c.h.b16 %v135
  %v696 = vunpack.c.l.b16 %v136
  %v697 = vunpack.c.h.b16 %v136
  %v698 = vunpack.c.l.b16 %v137
  %v699 = vunpack.c.h.b16 %v137
  %v700 = vunpack.c.l.b16 %v138
  %v701 = vunpack.c.h.b16 %v138
  %v702 = vunpack.c.l.b16 %v139
  %v703 = vunpack.c.h.b16 %v139
  %v704 = vunpack.c.l.b16 %v140
  %v705 = vunpack.c.h.b16 %v140
  %v706 = vunpack.c.l.b16 %v141
  %v707 = vunpack.c.h.b16 %v141
  %v708 = vunpack.c.l.b16 %v142
  %v709 = vunpack.c.h.b16 %v142
  %v710 = vunpack.c.l.b16 %v143
  %v711 = vunpack.c.h.b16 %v143
  %v712 = vunpack.c.l.b16 %v144
  %v713 = vunpack.c.h.b16 %v144
  %v714 = vunpack.c.l.b16 %v145
  %v715 = vunpack.c.h.b16 %v145
  %v716 = vunpack.c.l.b16 %v146
  %v717 = vunpack.c.h.b16 %v146
  %v718 = vunpack.c.l.b16 %v147
  %v719 = vunpack.c.h.b16 %v147
  %v720 = vunpack.c.l.b16 %v148
  %v721 = vunpack.c.h.b16 %v148
  %v722 = vunpack.c.l.b16 %v149
  %v723 = vunpack.c.h.b16 %v149
  %v724 = vunpack.c.l.b16 %v150
  %v725 = vunpack.c.h.b16 %v150
  %v726 = vunpack.c.l.b16 %v151
  %v727 = vunpack.c.h.b16 %v151
  %v728 = vunpack.c.l.b16 %v152
  %v729 = vunpack.c.h.b16 %v152
  %v730 = vunpack.c.l.b16 %v153
  %v731 = vunpack.c.h.b16 %v153
  %v732 = vunpack.c.l.b16 %v154
  %v733 = vunpack.c.h.b16 %v154
  %v734 = vunpack.c.l.b16 %v155
  %v735 = vunpack.c.h.b16 %v155
  %v736 = vunpack.c.l.b16 %v156
  %v737 = vunpack.c.h.b16 %v156
  %v738 = vunpack.c.l.b16 %v157
  %v739 = vunpack.c.h.b16 %v157
  %v740 = vunpack.c.l.b16 %v158
  %v741 = vunpack.c.h.b16 %v158
  %v742 = vunpack.c.l.b16 %v159
  %v743 = vunpack.c.h.b16 %v159
  %v744 = vunpack.c.l.b16 %v160
  %v745 = vunpack.c.h.b16 %v160
  %v746 = vunpack.c.l.b16 %v161
  %v747 = vunpack.c.h.b16 %v161
  %v748 = vunpack.c.l.b16 %v162
  %v749 = vunpack.c.h.b16 %v162
  %v750 = vunpack.c.l.b16 %v163
  %v751 = vunpack.c.h.b16 %v163
  %v752 = vunpack.c.l.b16 %v164
  %v753 = vunpack.c.h.b16 %v164
  %v754 = vunpack.c.l.b16 %v165
  %v755 = vunpack.c.h.b16 %v165
  %v756 = vunpack.c.l.b16 %v166
  %v757 = vunpack.c.h.b16 %v166
  %v758 = vunpack.c.l.b16 %v167
  %v759 = vunpack.c.h.b16 %v167
  %v760 = vunpack.c.l.b16 %v168
  %v761 = vunpack.c.h.b16 %v168
  %v762 = vunpack.c.l.b16 %v169
  %v763 = vunpack.c.h.b16 %v169
  %v764 = vunpack.c.l.b16 %v170
  %v765 = vunpack.c.h.b16 %v170
  %v766 = vunpack.c.l.b16 %v171
  %v767 = vunpack.c.h.b16 %v171
  %v768 = vunpack.c.l.b16 %v172
  %v769 = vunpack.c.h.b16 %v172
  %v770 = vunpack.c.l.b16 %v173
  %v771 = vunpack.c.h.b16 %v173
  %v772 = vunpack.c.l.b16 %v174
  %v773 = vunpack.c.h.b16 %v174
  %v774 = vunpack.c.l.b16 %v175
  %v775 = vunpack.c.h.b16 %v175
  %v776 = vunpack.c.l.b16 %v176
  %v777 = vunpack.c.h.b16 %v176
  %v778 = vunpack.c.l.b16 %v177
  %v779 = vunpack.c.h.b16 %v177
  %v780 = vunpack.c.l.b16 %v178
  %v781 = vunpack.c.h.b16 %v178
  %v782 = vunpack.c.l.b16 %v179
  %v783 = vunpack.c.h.b16 %v179
  %v784 = vunpack.c.l.b16 %v180
  %v785 = vunpack.c.h.b16 %v180
  %v786 = vunpack.c.l.b16 %v181
  %v787 = vunpack.c.h.b16 %v181
  %v788 = vunpack.c.l.b16 %v182
  %v789 = vunpack.c.h.b16 %v182
  %v790 = vunpack.c.l.b16 %v183
  %v791 = vunpack.c.h.b16 %v183
  %v792 = vunpack.c.l.b16 %v184
  %v793 = vunpack.c.h.b16 %v184
  %v794 = vunpack.c.l.b16 %v185
  %v795 = vunpack.c.h.b16 %v185
  %v796 = vunpack.c.l.b16 %v186
  %v797 = vunpack.c.h.b16 %v186
  %v798 = vunpack.c.l.b16 %v187
  %v799 = vunpack.c.h.b16 %v187
  %v800 = vunpack.c.l.b16 %v188
  %v801 = vunpack.c.h.b16 %v188
  %v802 = vunpack.c.l.b16 %v189
  %v803 = vunpack.c.h.b16 %v189
  %v804 = vunpack.c.l.b16 %v190
  %v805 = vunpack.c.h.b16 %v190
  %v806 = vunpack.c.l.b16 %v191
  %v807 = vunpack.c.h.b16 %v191
  %v808 = vunpack.c.l.b16 %v192
  %v809 = vunpack.c.h.b16 %v192
  %v810 = vunpack.c.l.b16 %v193
  %v811 = vunpack.c.h.b16 %v193
  %v812 = vunpack.c.l.b16 %v194
  %v813 = vunpack.c.h.b16 %v194
  %v814 = vunpack.c.l.b16 %v195
  %v815 = vunpack.c.h.b16 %v195
  %v816 = vunpack.c.l.b16 %v196
  %v817 = vunpack.c.h.b16 %v196
  %v818 = vunpack.c.l.b16 %v197
  %v819 = vunpack.c.h.b16 %v197
  %v820 = vunpack.c.l.b16 %v198
  %v821 = vunpack.c.h.b16 %v198
  %v822 = vunpack.c.l.b16 %v199
  %v823 = vunpack.c.h.b16 %v199
  %v824 = vunpack.c.l.b16 %v200
  %v825 = vunpack.c.h.b16 %v200
  %v826 = vunpack.c.l.b16 %v201
  %v827 = vunpack.c.h.b16 %v201
  %v828 = vunpack.c.l.b16 %v202
  %v829 = vunpack.c.h.b16 %v202
  %v830 = vunpack.c.l.b16 %v203
  %v831 = vunpack.c.h.b16 %v203
  %v832 = vunpack.c.l.b16 %v204
  %v833 = vunpack.c.h.b16 %v204
  %v834 = vunpack.c.l.b16 %v205
  %v835 = vunpack.c.h.b16 %v205
  %v836 = vunpack.c.l.b16 %v206
  %v837 = vunpack.c.h.b16 %v206
  %v838 = vunpack.c.l.b16 %v207
  %v839 = vunpack.c.h.b16 %v207
  %v840 = vunpack.c.l.b16 %v208
  %v841 = vunpack.c.h.b16 %v208
  %v842 = vunpack.c.l.b16 %v209
  %v843 = vunpack.c.h.b16 %v209
  %v844 = vunpack.c.l.b16 %v210
  %v845 = vunpack.c.h.b16 %v210
  %v846 = vunpack.c.l.b16 %v211
  %v847 = vunpack.c.h.b16 %v211
  %v848 = vunpack.c.l.b16 %v212
  %v849 = vunpack.c.h.b16 %v212
  %v850 = vunpack.c.l.b16 %v213
  %v851 = vunpack.c.h.b16 %v213
  %v852 = vunpack.c.l.b16 %v214
  %v853 = vunpack.c.h.b16 %v214
  %v854 = vunpack.c.l.b16 %v215
  %v855 = vunpack.c.h.b16 %v215
  %v856 = vpack.c.b16 %v616, %v600
  %v857 = vpack.c.b16 %v617, %v601
  %v858 = vpack.c.b16 %v618, %v602
  %v859 = vpack.c.b16 %v619, %v603
  %v860 = vpack.c.b16 %v620, %v604
  %v861 = vpack.c.b16 %v621, %v605
  %v862 = vpack.c.b16 %v622, %v606
  %v863 = vpack.c.b16 %v623, %v607
  %v864 = vpack.c.b16 %v624, %v608
  %v865 = vpack.c.b16 %v625, %v609
  %v866 = vpack.c.b16 %v626, %v610
  %v867 = vpack.c.b16 %v627, %v611
  %v868 = vpack.c.b16 %v628, %v612
  %v869 = vpack.c.b16 %v629, %v613
  %v870 = vpack.c.b16 %v630, %v614
  %v871 = vpack.c.b16 %v631, %v615
  %v872 = vpack.c.b16 %v648, %v632
  %v873 = vpack.c.b16 %v649, %v633
  %v874 = vpack.c.b16 %v650, %v634
  %v875 = vpack.c.b16 %v651, %v635
  %v876 = vpack.c.b16 %v652, %v636
  %v877 = vpack.c.b16 %v653, %v637
  %v878 = vpack.c.b16 %v654, %v638
  %v879 = vpack.c.b16 %v655, %v639
  %v880 = vpack.c.b16 %v656, %v640
  %v881 = vpack.c.b16 %v657, %v641
  %v882 = vpack.c.b16 %v658, %v642
  %v883 = vpack.c.b16 %v659, %v643
  %v884 = vpack.c.b16 %v660, %v644
  %v885 = vpack.c.b16 %v661, %v645
  %v886 = vpack.c.b16 %v662, %v646
  %v887 = vpack.c.b16 %v663, %v647
  %v888 = vpack.c.b16 %v680, %v664
  %v889 = vpack.c.b16 %v681, %v665
  %v890 = vpack.c.b16 %v682, %v666
  %v891 = vpack.c.b16 %v683, %v667
  %v892 = vpack.c.b16 %v684, %v668
  %v893 = vpack.c.b16 %v685, %v669
  %v894 = vpack.c.b16 %v686, %v670
  %v895 = vpack.c.b16 %v687, %v671
  %v896 = vpack.c.b16 %v688, %v672
  %v897 = vpack.c.b16 %v689, %v673
  %v898 = vpack.c.b16 %v690, %v674
  %v899 = vpack.c.b16 %v691, %v675
  %v900 = vpack.c.b16 %v692, %v676
  %v901 = vpack.c.b16 %v693, %v677
  %v902 = vpack.c.b16 %v694, %v678
  %v903 = vpack.c.b16 %v695, %v679
  %v904 = vpack.c.b16 %v712, %v696
  %v905 = vpack.c.b16 %v713, %v697
  %v906 = vpack.c.b16 %v714, %v698
  %v907 = vpack.c.b16 %v715, %v699
  %v908 = vpack.c.b16 %v716, %v700
  %v909 = vpack.c.b16 %v717, %v701
  %v910 = vpack.c.b16 %v718, %v702
  %v911 = vpack.c.b16 %v719, %v703
  %v912 = vpack.c.b16 %v720, %v704
  %v913 = vpack.c.b16 %v721, %v705
  %v914 = vpack.c.b16 %v722, %v706
  %v915 = vpack.c.b16 %v723, %v707
  %v916 = vpack.c.b16 %v724, %v708
  %v917 = vpack.c.b16 %v725, %v709
  %v918 = vpack.c.b16 %v726, %v710
  %v919 = vpack.c.b16 %v727, %v711
  %v920 = vpack.c.b16 %v744, %v728
  %v921 = vpack.c.b16 %v745, %v729
  %v922 = vpack.c.b16 %v746, %v730
  %v923 = vpack.c.b16 %v747, %v731
  %v924 = vpack.c.b16 %v748, %v732
  %v925 = vpack.c.b16 %v749, %v733
  %v926 = vpack.c.b16 %v750, %v734
  %v927 = vpack.c.b16 %v751, %v735
  %v928 = vpack.c.b16 %v752, %v736
  %v929 = vpack.c.b16 %v753, %v737
  %v930 = vpack.c.b16 %v754, %v738
  %v931 = vpack.c.b16 %v755, %v739
  %v932 = vpack.c.b16 %v756, %v740
  %v933 = vpack.c.b16 %v757, %v741
  %v934 = vpack.c.b16 %v758, %v742
  %v935 = vpack.c.b16 %v759, %v743
  %v936 = vpack.c.b16 %v776, %v760
  %v937 = vpack.c.b16 %v777, %v761
  %v938 = vpack.c.b16 %v778, %v762
  %v939 = vpack.c.b16 %v779, %v763
  %v940 = vpack.c.b16 %v780, %v764
  %v941 = vpack.c.b16 %v781, %v765
  %v942 = vpack.c.b16 %v782, %v766
  %v943 = vpack.c.b16 %v783, %v767
  %v944 = vpack.c.b16 %v784, %v768
  %v945 = vpack.c.b16 %v785, %v769
  %v946 = vpack.c.b16 %v786, %v770
  %v947 = vpack.c.b16 %v787, %v771
  %v948 = vpack.c.b16 %v788, %v772
  %v949 = vpack.c.b16 %v789, %v773
  %v950 = vpack.c.b16 %v790, %v774
  %v951 = vpack.c.b16 %v791, %v775
  %v952 = vpack.c.b16 %v808, %v792
  %v953 = vpack.c.b16 %v809, %v793
  %v954 = vpack.c.b16 %v810, %v794
  %v955 = vpack.c.b16 %v811, %v795
  %v956 = vpack.c.b16 %v812, %v796
  %v957 = vpack.c.b16 %v813, %v797
  %v958 = vpack.c.b16 %v814, %v798
  %v959 = vpack.c.b16 %v815, %v799
  %v960 = vpack.c.b16 %v816, %v800
  %v961 = vpack.c.b16 %v817, %v801
  %v962 = vpack.c.b16 %v818, %v802
  %v963 = vpack.c.b16 %v819, %v803
  %v964 = vpack.c.b16 %v820, %v804
  %v965 = vpack.c.b16 %v821, %v805
  %v966 = vpack.c.b16 %v822, %v806
  %v967 = vpack.c.b16 %v823, %v807
  %v968 = vpack.c.b16 %v840, %v824
  %v969 = vpack.c.b16 %v841, %v825
  %v970 = vpack.c.b16 %v842, %v826
  %v971 = vpack.c.b16 %v843, %v827
  %v972 = vpack.c.b16 %v844, %v828
  %v973 = vpack.c.b16 %v845, %v829
  %v974 = vpack.c.b16 %v846, %v830
  %v975 = vpack.c.b16 %v847, %v831
  %v976 = vpack.c.b16 %v848, %v832
  %v977 = vpack.c.b16 %v849, %v833
  %v978 = vpack.c.b16 %v850, %v834
  %v979 = vpack.c.b16 %v851, %v835
  %v980 = vpack.c.b16 %v852, %v836
  %v981 = vpack.c.b16 %v853, %v837
  %v982 = vpack.c.b16 %v854, %v838
  %v983 = vpack.c.b16 %v855, %v839
  %v1368 = vunpack.c.l.b16 %v216
  %v1369 = vunpack.c.h.b16 %v216
  %v1370 = vunpack.c.l.b16 %v217
  %v1371 = vunpack.c.h.b16 %v217
  %v1372 = vunpack.c.l.b16 %v218
  %v1373 = vunpack.c.h.b16 %v218
  %v1374 = vunpack.c.l.b16 %v219
  %v1375 = vunpack.c.h.b16 %v219
  %v1376 = vunpack.c.l.b16 %v220
  %v1377 = vunpack.c.h.b16 %v220
  %v1378 = vunpack.c.l.b16 %v221
  %v1379 = vunpack.c.h.b16 %v221
  %v1380 = vunpack.c.l.b16 %v222
  %v1381 = vunpack.c.h.b16 %v222
  %v1382 = vunpack.c.l.b16 %v223
  %v1383 = vunpack.c.h.b16 %v223
  %v1384 = vunpack.c.l.b16 %v224
  %v1385 = vunpack.c.h.b16 %v224
  %v1386 = vunpack.c.l.b16 %v225
  %v1387 = vunpack.c.h.b16 %v225
  %v1388 = vunpack.c.l.b16 %v226
  %v1389 = vunpack.c.h.b16 %v226
  %v1390 = vunpack.c.l.b16 %v227
  %v1391 = vunpack.c.h.b16 %v227
  %v1392 = vunpack.c.l.b16 %v228
  %v1393 = vunpack.c.h.b16 %v228
  %v1394 = vunpack.c.l.b16 %v229
  %v1395 = vunpack.c.h.b16 %v229
  %v1396 = vunpack.c.l.b16 %v230
  %v1397 = vunpack.c.h.b16 %v230
  %v1398 = vunpack.c.l.b16 %v231
  %v1399 = vunpack.c.h.b16 %v231
  %v1400 = vunpack.c.l.b16 %v232
  %v1401 = vunpack.c.h.b16 %v232
  %v1402 = vunpack.c.l.b16 %v233
  %v1403 = vunpack.c.h.b16 %v233
  %v1404 = vunpack.c.l.b16 %v234
  %v1405 = vunpack.c.h.b16 %v234
  %v1406 = vunpack.c.l.b16 %v235
  %v1407 = vunpack.c.h.b16 %v235
  %v1408 = vunpack.c.l.b16 %v236
  %v1409 = vunpack.c.h.b16 %v236
  %v1410 = vunpack.c.l.b16 %v237
  %v1411 = vunpack.c.h.b16 %v237
  %v1412 = vunpack.c.l.b16 %v238
  %v1413 = vunpack.c.h.b16 %v238
  %v1414 = vunpack.c.l.b16 %v239
  %v1415 = vunpack.c.h.b16 %v239
  %v1416 = vunpack.c.l.b16 %v240
  %v1417 = vunpack.c.h.b16 %v240
  %v1418 = vunpack.c.l.b16 %v241
  %v1419 = vunpack.c.h.b16 %v241
  %v1420 = vunpack.c.l.b16 %v242
  %v1421 = vunpack.c.h.b16 %v242
  %v1422 = vunpack.c.l.b16 %v243
  %v1423 = vunpack.c.h.b16 %v243
  %v1424 = vunpack.c.l.b16 %v244
  %v1425 = vunpack.c.h.b16 %v244
  %v1426 = vunpack.c.l.b16 %v245
  %v1427 = vunpack.c.h.b16 %v245
  %v1428 = vunpack.c.l.b16 %v246
  %v1429 = vunpack.c.h.b16 %v246
  %v1430 = vunpack.c.l.b16 %v247
  %v1431 = vunpack.c.h.b16 %v247
  %v1432 = vunpack.c.l.b16 %v248
  %v1433 = vunpack.c.h.b16 %v248
  %v1434 = vunpack.c.l.b16 %v249
  %v1435 = vunpack.c.h.b16 %v249
  %v1436 = vunpack.c.l.b16 %v250
  %v1437 = vunpack.c.h.b16 %v250
  %v1438 = vunpack.c.l.b16 %v251
  %v1439 = vunpack.c.h.b16 %v251
  %v1440 = vunpack.c.l.b16 %v252
  %v1441 = vunpack.c.h.b16 %v252
  %v1442 = vunpack.c.l.b16 %v253
  %v1443 = vunpack.c.h.b16 %v253
  %v1444 = vunpack.c.l.b16 %v254
  %v1445 = vunpack.c.h.b16 %v254
  %v1446 = vunpack.c.l.b16 %v255
  %v1447 = vunpack.c.h.b16 %v255
  %v1448 = vunpack.c.l.b16 %v256
  %v1449 = vunpack.c.h.b16 %v256
  %v1450 = vunpack.c.l.b16 %v257
  %v1451 = vunpack.c.h.b16 %v257
  %v1452 = vunpack.c.l.b16 %v258
  %v1453 = vunpack.c.h.b16 %v258
  %v1454 = vunpack.c.l.b16 %v259
  %v1455 = vunpack.c.h.b16 %v259
  %v1456 = vunpack.c.l.b16 %v260
  %v1457 = vunpack.c.h.b16 %v260
  %v1458 = vunpack.c.l.b16 %v261
  %v1459 = vunpack.c.h.b16 %v261
  %v1460 = vunpack.c.l.b16 %v262
  %v1461 = vunpack.c.h.b16 %v262
  %v1462 = vunpack.c.l.b16 %v263
  %v1463 = vunpack.c.h.b16 %v263
  %v1464 = vunpack.c.l.b16 %v264
  %v1465 = vunpack.c.h.b16 %v264
  %v1466 = vunpack.c.l.b16 %v265
  %v1467 = vunpack.c.h.b16 %v265
  %v1468 = vunpack.c.l.b16 %v266
  %v1469 = vunpack.c.h.b16 %v266
  %v1470 = vunpack.c.l.b16 %v267
  %v1471 = vunpack.c.h.b16 %v267
  %v1472 = vunpack.c.l.b16 %v268
  %v1473 = vunpack.c.h.b16 %v268
  %v1474 = vunpack.c.l.b16 %v269
  %v1475 = vunpack.c.h.b16 %v269
  %v1476 = vunpack.c.l.b16 %v270
  %v1477 = vunpack.c.h.b16 %v270
  %v1478 = vunpack.c.l.b16 %v271
  %v1479 = vunpack.c.h.b16 %v271
  %v1480 = vunpack.c.l.b16 %v272
  %v1481 = vunpack.c.h.b16 %v272
  %v1482 = vunpack.c.l.b16 %v273
  %v1483 = vunpack.c.h.b16 %v273
  %v1484 = vunpack.c.l.b16 %v274
  %v1485 = vunpack.c.h.b16 %v274
  %v1486 = vunpack.c.l.b16 %v275
  %v1487 = vunpack.c.h.b16 %v275
  %v1488 = vunpack.c.l.b16 %v276
  %v1489 = vunpack.c.h.b16 %v276
  %v1490 = vunpack.c.l.b16 %v277
  %v1491 = vunpack.c.h.b16 %v277
  %v1492 = vunpack.c.l.b16 %v278
  %v1493 = vunpack.c.h.b16 %v278
  %v1494 = vunpack.c.l.b16 %v279
  %v1495 = vunpack.c.h.b16 %v279
  %v1496 = vunpack.c.l.b16 %v280
  %v1497 = vunpack.c.h.b16 %v280
  %v1498 = vunpack.c.l.b16 %v281
  %v1499 = vunpack.c.h.b16 %v281
  %v1500 = vunpack.c.l.b16 %v282
  %v1501 = vunpack.c.h.b16 %v282
  %v1502 = vunpack.c.l.b16 %v283
  %v1503 = vunpack.c.h.b16 %v283
  %v1504 = vunpack.c.l.b16 %v284
  %v1505 = vunpack.c.h.b16 %v284
  %v1506 = vunpack.c.l.b16 %v285
  %v1507 = vunpack.c.h.b16 %v285
  %v1508 = vunpack.c.l.b16 %v286
  %v1509 = vunpack.c.h.b16 %v286
  %v1510 = vunpack.c.l.b16 %v287
  %v1511 = vunpack.c.h.b16 %v287
  %v1512 = vunpack.c.l.b16 %v288
  %v1513 = vunpack.c.h.b16 %v288
  %v1514 = vunpack.c.l.b16 %v289
  %v1515 = vunpack.c.h.b16 %v289
  %v1516 = vunpack.c.l.b16 %v290
  %v1517 = vunpack.c.h.b16 %v290
  %v1518 = vunpack.c.l.b16 %v291
  %v1519 = vunpack.c.h.b16 %v291
  %v1520 = vunpack.c.l.b16 %v292
  %v1521 = vunpack.c.h.b16 %v292
  %v1522 = vunpack.c.l.b16 %v293
  %v1523 = vunpack.c.h.b16 %v293
  %v1524 = vunpack.c.l.b16 %v294
  %v1525 = vunpack.c.h.b16 %v294
  %v1526 = vunpack.c.l.b16 %v295
  %v1527 = vunpack.c.h.b16 %v295
  %v1528 = vunpack.c.l.b16 %v296
  %v1529 = vunpack.c.h.b16 %v296
  %v1530 = vunpack.c.l.b16 %v297
  %v1531 = vunpack.c.h.b16 %v297
  %v1532 = vunpack.c.l.b16 %v298
  %v1533 = vunpack.c.h.b16 %v298
  %v1534 = vunpack.c.l.b16 %v299
  %v1535 = vunpack.c.h.b16 %v299
  %v1536 = vunpack.c.l.b16 %v300
  %v1537 = vunpack.c.h.b16 %v300
  %v1538 = vunpack.c.l.b16 %v301
  %v1539 = vunpack.c.h.b16 %v301
  %v1540 = vunpack.c.l.b16 %v302
  %v1541 = vunpack.c.h.b16 %v302
  %v1542 = vunpack.c.l.b16 %v303
  %v1543 = vunpack.c.h.b16 %v303
  %v1544 = vunpack.c.l.b16 %v304
  %v1545 = vunpack.c.h.b16 %v304
  %v1546 = vunpack.c.l.b16 %v305
  %v1547 = vunpack.c.h.b16 %v305
  %v1548 = vunpack.c.l.b16 %v306
  %v1549 = vunpack.c.h.b16 %v306
  %v1550 = vunpack.c.l.b16 %v307
  %v1551 = vunpack.c.h.b16 %v307
  %v1552 = vunpack.c.l.b16 %v308
  %v1553 = vunpack.c.h.b16 %v308
  %v1554 = vunpack.c.l.b16 %v309
  %v1555 = vunpack.c.h.b16 %v309
  %v1556 = vunpack.c.l.b16 %v310
  %v1557 = vunpack.c.h.b16 %v310
  %v1558 = vunpack.c.l.b16 %v311
  %v1559 = vunpack.c.h.b16 %v311
  %v1560 = vunpack.c.l.b16 %v312
  %v1561 = vunpack.c.h.b16 %v312
  %v1562 = vunpack.c.l.b16 %v313
  %v1563 = vunpack.c.h.b16 %v313
  %v1564 = vunpack.c.l.b16 %v314
  %v1565 = vunpack.c.h.b16 %v314
  %v1566 = vunpack.c.l.b16 %v315
  %v1567 = vunpack.c.h.b16 %v315
  %v1568 = vunpack.c.l.b16 %v316
  %v1569 = vunpack.c.h.b16 %v316
  %v1570 = vunpack.c.l.b16 %v317
  %v1571 = vunpack.c.h.b16 %v317
  %v1572 = vunpack.c.l.b16 %v318
  %v1573 = vunpack.c.h.b16 %v318
  %v1574 = vunpack.c.l.b16 %v319
  %v1575 = vunpack.c.h.b16 %v319
  %v1576 = vunpack.c.l.b16 %v320
  %v1577 = vunpack.c.h.b16 %v320
  %v1578 = vunpack.c.l.b16 %v321
  %v1579 = vunpack.c.h.b16 %v321
  %v1580 = vunpack.c.l.b16 %v322
  %v1581 = vunpack.c.h.b16 %v322
  %v1582 = vunpack.c.l.b16 %v323
  %v1583 = vunpack.c.h.b16 %v323
  %v1584 = vunpack.c.l.b16 %v324
  %v1585 = vunpack.c.h.b16 %v324
  %v1586 = vunpack.c.l.b16 %v325
  %v1587 = vunpack.c.h.b16 %v325
  %v1588 = vunpack.c.l.b16 %v326
  %v1589 = vunpack.c.h.b16 %v326
  %v1590 = vunpack.c.l.b16 %v327
  %v1591 = vunpack.c.h.b16 %v327
  %v1592 = vunpack.c.l.b16 %v328
  %v1593 = vunpack.c.h.b16 %v328
  %v1594 = vunpack.c.l.b16 %v329
  %v1595 = vunpack.c.h.b16 %v329
  %v1596 = vunpack.c.l.b16 %v330
  %v1597 = vunpack.c.h.b16 %v330
  %v1598 = vunpack.c.l.b16 %v331
  %v1599 = vunpack.c.h.b16 %v331
  %v1600 = vunpack.c.l.b16 %v332
  %v1601 = vunpack.c.h.b16 %v332
  %v1602 = vunpack.c.l.b16 %v333
  %v1603 = vunpack.c.h.b16 %v333
  %v1604 = vunpack.c.l.b16 %v334
  %v1605 = vunpack.c.h.b16 %v334
  %v1606 = vunpack.c.l.b16 %v335
  %v1607 = vunpack.c.h.b16 %v335
  %v1608 = vunpack.c.l.b16 %v336
  %v1609 = vunpack.c.h.b16 %v336
  %v1610 = vunpack.c.l.b16 %v337
  %v1611 = vunpack.c.h.b16 %v337
  %v1612 = vunpack.c.l.b16 %v338
  %v1613 = vunpack.c.h.b16 %v338
  %v1614 = vunpack.c.l.b16 %v339
  %v1615 = vunpack.c.h.b16 %v339
  %v1616 = vunpack.c.l.b16 %v340
  %v1617 = vunpack.c.h.b16 %v340
  %v1618 = vunpack.c.l.b16 %v341
  %v1619 = vunpack.c.h.b16 %v341
  %v1620 = vunpack.c.l.b16 %v342
  %v1621 = vunpack.c.h.b16 %v342
  %v1622 = vunpack.c.l.b16 %v343
  %v1623 = vunpack.c.h.b16 %v343
  %v1624 = vunpack.c.l.b16 %v344
  %v1625 = vunpack.c.h.b16 %v344
  %v1626 = vunpack.c.l.b16 %v345
  %v1627 = vunpack.c.h.b16 %v345
  %v1628 = vunpack.c.l.b16 %v346
  %v1629 = vunpack.c.h.b16 %v346
  %v1630 = vunpack.c.l.b16 %v347
  %v1631 = vunpack.c.h.b16 %v347
  %v1632 = vunpack.c.l.b16 %v348
  %v1633 = vunpack.c.h.b16 %v348
  %v1634 = vunpack.c.l.b16 %v349
  %v1635 = vunpack.c.h.b16 %v349
  %v1636 = vunpack.c.l.b16 %v350
  %v1637 = vunpack.c.h.b16 %v350
  %v1638 = vunpack.c.l.b16 %v351
  %v1639 = vunpack.c.h.b16 %v351
  %v1640 = vunpack.c.l.b16 %v352
  %v1641 = vunpack.c.h.b16 %v352
  %v1642 = vunpack.c.l.b16 %v353
  %v1643 = vunpack.c.h.b16 %v353
  %v1644 = vunpack.c.l.b16 %v354
  %v1645 = vunpack.c.h.b16 %v354
  %v1646 = vunpack.c.l.b16 %v355
  %v1647 = vunpack.c.h.b16 %v355
  %v1648 = vunpack.c.l.b16 %v356
  %v1649 = vunpack.c.h.b16 %v356
  %v1650 = vunpack.c.l.b16 %v357
  %v1651 = vunpack.c.h.b16 %v357
  %v1652 = vunpack.c.l.b16 %v358
  %v1653 = vunpack.c.h.b16 %v358
  %v1654 = vunpack.c.l.b16 %v359
  %v1655 = vunpack.c.h.b16 %v359
  %v1656 = vunpack.c.l.b16 %v360
  %v1657 = vunpack.c.h.b16 %v360
  %v1658 = vunpack.c.l.b16 %v361
  %v1659 = vunpack.c.h.b16 %v361
  %v1660 = vunpack.c.l.b16 %v362
  %v1661 = vunpack.c.h.b16 %v362
  %v1662 = vunpack.c.l.b16 %v363
  %v1663 = vunpack.c.h.b16 %v363
  %v1664 = vunpack.c.l.b16 %v364
  %v1665 = vunpack.c.h.b16 %v364
  %v1666 = vunpack.c.l.b16 %v365
  %v1667 = vunpack.c.h.b16 %v365
  %v1668 = vunpack.c.l.b16 %v366
  %v1669 = vunpack.c.h.b16 %v366
  %v1670 = vunpack.c.l.b16 %v367
  %v1671 = vunpack.c.h.b16 %v367
  %v1672 = vunpack.c.l.b16 %v368
  %v1673 = vunpack.c.h.b16 %v368
  %v1674 = vunpack.c.l.b16 %v369
  %v1675 = vunpack.c.h.b16 %v369
  %v1676 = vunpack.c.l.b16 %v370
  %v1677 = vunpack.c.h.b16 %v370
  %v1678 = vunpack.c.l.b16 %v371
  %v1679 = vunpack.c.h.b16 %v371
  %v1680 = vunpack.c.l.b16 %v372
  %v1681 = vunpack.c.h.b16 %v372
  %v1682 = vunpack.c.l.b16 %v373
  %v1683 = vunpack.c.h.b16 %v373
  %v1684 = vunpack.c.l.b16 %v374
  %v1685 = vunpack.c.h.b16 %v374
  %v1686 = vunpack.c.l.b16 %v375
  %v1687 = vunpack.c.h.b16 %v375
  %v1688 = vunpack.c.l.b16 %v376
  %v1689 = vunpack.c.h.b16 %v376
  %v1690 = vunpack.c.l.b16 %v377
  %v1691 = vunpack.c.h.b16 %v377
  %v1692 = vunpack.c.l.b16 %v378
  %v1693 = vunpack.c.h.b16 %v378
  %v1694 = vunpack.c.l.b16 %v379
  %v1695 = vunpack.c.h.b16 %v379
  %v1696 = vunpack.c.l.b16 %v380
  %v1697 = vunpack.c.h.b16 %v380
  %v1698 = vunpack.c.l.b16 %v381
  %v1699 = vunpack.c.h.b16 %v381
  %v1700 = vunpack.c.l.b16 %v382
  %v1701 = vunpack.c.h.b16 %v382
  %v1702 = vunpack.c.l.b16 %v383
  %v1703 = vunpack.c.h.b16 %v383
  %v1704 = vunpack.c.l.b16 %v384
  %v1705 = vunpack.c.h.b16 %v384
  %v1706 = vunpack.c.l.b16 %v385
  %v1707 = vunpack.c.h.b16 %v385
  %v1708 = vunpack.c.l.b16 %v386
  %v1709 = vunpack.c.h.b16 %v386
  %v1710 = vunpack.c.l.b16 %v387
  %v1711 = vunpack.c.h.b16 %v387
  %v1712 = vunpack.c.l.b16 %v388
  %v1713 = vunpack.c.h.b16 %v388
  %v1714 = vunpack.c.l.b16 %v389
  %v1715 = vunpack.c.h.b16 %v389
  %v1716 = vunpack.c.l.b16 %v390
  %v1717 = vunpack.c.h.b16 %v390
  %v1718 = vunpack.c.l.b16 %v391
  %v1719 = vunpack.c.h.b16 %v391
  %v1720 = vunpack.c.l.b16 %v392
  %v1721 = vunpack.c.h.b16 %v392
  %v1722 = vunpack.c.l.b16 %v393
  %v1723 = vunpack.c.h.b16 %v393
  %v1724 = vunpack.c.l.b16 %v394
  %v1725 = vunpack.c.h.b16 %v394
  %v1726 = vunpack.c.l.b16 %v395
  %v1727 = vunpack.c.h.b16 %v395
  %v1728 = vunpack.c.l.b16 %v396
  %v1729 = vunpack.c.h.b16 %v396
  %v1730 = vunpack.c.l.b16 %v397
  %v1731 = vunpack.c.h.b16 %v397
  %v1732 = vunpack.c.l.b16 %v398
  %v1733 = vunpack.c.h.b16 %v398
  %v1734 = vunpack.c.l.b16 %v399
  %v1735 = vunpack.c.h.b16 %v399
  %v1736 = vunpack.c.l.b16 %v400
  %v1737 = vunpack.c.h.b16 %v400
  %v1738 = vunpack.c.l.b16 %v401
  %v1739 = vunpack.c.h.b16 %v401
  %v1740 = vunpack.c.l.b16 %v402
  %v1741 = vunpack.c.h.b16 %v402
  %v1742 = vunpack.c.l.b16 %v403
  %v1743 = vunpack.c.h.b16 %v403
  %v1744 = vunpack.c.l.b16 %v404
  %v1745 = vunpack.c.h.b16 %v404
  %v1746 = vunpack.c.l.b16 %v405
  %v1747 = vunpack.c.h.b16 %v405
  %v1748 = vunpack.c.l.b16 %v406
  %v1749 = vunpack.c.h.b16 %v406
  %v1750 = vunpack.c.l.b16 %v407
  %v1751 = vunpack.c.h.b16 %v407
  %v1752 = vunpack.c.l.b16 %v408
  %v1753 = vunpack.c.h.b16 %v408
  %v1754 = vunpack.c.l.b16 %v409
  %v1755 = vunpack.c.h.b16 %v409
  %v1756 = vunpack.c.l.b16 %v410
  %v1757 = vunpack.c.h.b16 %v410
  %v1758 = vunpack.c.l.b16 %v411
  %v1759 = vunpack.c.h.b16 %v411
  %v1760 = vunpack.c.l.b16 %v412
  %v1761 = vunpack.c.h.b16 %v412
  %v1762 = vunpack.c.l.b16 %v413
  %v1763 = vunpack.c.h.b16 %v413
  %v1764 = vunpack.c.l.b16 %v414
  %v1765 = vunpack.c.h.b16 %v414
  %v1766 = vunpack.c.l.b16 %v415
  %v1767 = vunpack.c.h.b16 %v415
  %v1768 = vunpack.c.l.b16 %v416
  %v1769 = vunpack.c.h.b16 %v416
  %v1770 = vunpack.c.l.b16 %v417
  %v1771 = vunpack.c.h.b16 %v417
  %v1772 = vunpack.c.l.b16 %v418
  %v1773 = vunpack.c.h.b16 %v418
  %v1774 = vunpack.c.l.b16 %v419
  %v1775 = vunpack.c.h.b16 %v419
  %v1776 = vunpack.c.l.b16 %v420
  %v1777 = vunpack.c.h.b16 %v420
  %v1778 = vunpack.c.l.b16 %v421
  %v1779 = vunpack.c.h.b16 %v421
  %v1780 = vunpack.c.l.b16 %v422
  %v1781 = vunpack.c.h.b16 %v422
  %v1782 = vunpack.c.l.b16 %v423
  %v1783 = vunpack.c.h.b16 %v423
  %v1784 = vunpack.c.l.b16 %v424
  %v1785 = vunpack.c.h.b16 %v424
  %v1786 = vunpack.c.l.b16 %v425
  %v1787 = vunpack.c.h.b16 %v425
  %v1788 = vunpack.c.l.b16 %v426
  %v1789 = vunpack.c.h.b16 %v426
  %v1790 = vunpack.c.l.b16 %v427
  %v1791 = vunpack.c.h.b16 %v427
  %v1792 = vunpack.c.l.b16 %v428
  %v1793 = vunpack.c.h.b16 %v428
  %v1794 = vunpack.c.l.b16 %v429
  %v1795 = vunpack.c.h.b16 %v429
  %v1796 = vunpack.c.l.b16 %v430
  %v1797 = vunpack.c.h.b16 %v430
  %v1798 = vunpack.c.l.b16 %v431
  %v1799 = vunpack.c.h.b16 %v431
  %v1800 = vunpack.c.l.b16 %v432
  %v1801 = vunpack.c.h.b16 %v432
  %v1802 = vunpack.c.l.b16 %v433
  %v1803 = vunpack.c.h.b16 %v433
  %v1804 = vunpack.c.l.b16 %v434
  %v1805 = vunpack.c.h.b16 %v434
  %v1806 = vunpack.c.l.b16 %v435
  %v1807 = vunpack.c.h.b16 %v435
  %v1808 = vunpack.c.l.b16 %v436
  %v1809 = vunpack.c.h.b16 %v436
  %v1810 = vunpack.c.l.b16 %v437
  %v1811 = vunpack.c.h.b16 %v437
  %v1812 = vunpack.c.l.b16 %v438
  %v1813 = vunpack.c.h.b16 %v438
  %v1814 = vunpack.c.l.b16 %v439
  %v1815 = vunpack.c.h.b16 %v439
  %v1816 = vunpack.c.l.b16 %v440
  %v1817 = vunpack.c.h.b16 %v440
  %v1818 = vunpack.c.l.b16 %v441
  %v1819 = vunpack.c.h.b16 %v441
  %v1820 = vunpack.c.l.b16 %v442
  %v1821 = vunpack.c.h.b16 %v442
  %v1822 = vunpack.c.l.b16 %v443
  %v1823 = vunpack.c.h.b16 %v443
  %v1824 = vunpack.c.l.b16 %v444
  %v1825 = vunpack.c.h.b16 %v444
  %v1826 = vunpack.c.l.b16 %v445
  %v1827 = vunpack.c.h.b16 %v445
  %v1828 = vunpack.c.l.b16 %v446
  %v1829 = vunpack.c.h.b16 %v446
  %v1830 = vunpack.c.l.b16 %v447
  %v1831 = vunpack.c.h.b16 %v447
  %v1832 = vunpack.c.l.b16 %v448
  %v1833 = vunpack.c.h.b16 %v448
  %v1834 = vunpack.c.l.b16 %v449
  %v1835 = vunpack.c.h.b16 %v449
  %v1836 = vunpack.c.l.b16 %v450
  %v1837 = vunpack.c.h.b16 %v450
  %v1838 = vunpack.c.l.b16 %v451
  %v1839 = vunpack.c.h.b16 %v451
  %v1840 = vunpack.c.l.b16 %v452
  %v1841 = vunpack.c.h.b16 %v452
  %v1842 = vunpack.c.l.b16 %v453
  %v1843 = vunpack.c.h.b16 %v453
  %v1844 = vunpack.c.l.b16 %v454
  %v1845 = vunpack.c.h.b16 %v454
  %v1846 = vunpack.c.l.b16 %v455
  %v1847 = vunpack.c.h.b16 %v455
  %v1848 = vunpack.c.l.b16 %v456
  %v1849 = vunpack.c.h.b16 %v456
  %v1850 = vunpack.c.l.b16 %v457
  %v1851 = vunpack.c.h.b16 %v457
  %v1852 = vunpack.c.l.b16 %v458
  %v1853 = vunpack.c.h.b16 %v458
  %v1854 = vunpack.c.l.b16 %v459
  %v1855 = vunpack.c.h.b16 %v459
  %v1856 = vunpack.c.l.b16 %v460
  %v1857 = vunpack.c.h.b16 %v460
  %v1858 = vunpack.c.l.b16 %v461
  %v1859 = vunpack.c.h.b16 %v461
  %v1860 = vunpack.c.l.b16 %v462
  %v1861 = vunpack.c.h.b16 %v462
  %v1862 = vunpack.c.l.b16 %v463
  %v1863 = vunpack.c.h.b16 %v463
  %v1864 = vunpack.c.l.b16 %v464
  %v1865 = vunpack.c.h.b16 %v464
  %v1866 = vunpack.c.l.b16 %v465
  %v1867 = vunpack.c.h.b16 %v465
  %v1868 = vunpack.c.l.b16 %v466
  %v1869 = vunpack.c.h.b16 %v466
  %v1870 = vunpack.c.l.b16 %v467
  %v1871 = vunpack.c.h.b16 %v467
  %v1872 = vunpack.c.l.b16 %v468
  %v1873 = vunpack.c.h.b16 %v468
  %v1874 = vunpack.c.l.b16 %v469
  %v1875 = vunpack.c.h.b16 %v469
  %v1876 = vunpack.c.l.b16 %v470
  %v1877 = vunpack.c.h.b16 %v470
  %v1878 = vunpack.c.l.b16 %v471
  %v1879 = vunpack.c.h.b16 %v471
  %v1880 = vpack.c.b16 %v1370, %v1368
  %v1881 = vpack.c.b16 %v1371, %v1369
  %v1882 = vpack.c.b16 %v1374, %v1372
  %v1883 = vpack.c.b16 %v1375, %v1373
  %v1884 = vpack.c.b16 %v1378, %v1376
  %v1885 = vpack.c.b16 %v1379, %v1377
  %v1886 = vpack.c.b16 %v1382, %v1380
  %v1887 = vpack.c.b16 %v1383, %v1381
  %v1888 = vpack.c.b16 %v1386, %v1384
  %v1889 = vpack.c.b16 %v1387, %v1385
  %v1890 = vpack.c.b16 %v1390, %v1388
  %v1891 = vpack.c.b16 %v1391, %v1389
  %v1892 = vpack.c.b16 %v1394, %v1392
  %v1893 = vpack.c.b16 %v1395, %v1393
  %v1894 = vpack.c.b16 %v1398, %v1396
  %v1895 = vpack.c.b16 %v1399, %v1397
  %v1896 = vpack.c.b16 %v1402, %v1400
  %v1897 = vpack.c.b16 %v1403, %v1401
  %v1898 = vpack.c.b16 %v1406, %v1404
  %v1899 = vpack.c.b16 %v1407, %v1405
  %v1900 = vpack.c.b16 %v1410, %v1408
  %v1901 = vpack.c.b16 %v1411, %v1409
  %v1902 = vpack.c.b16 %v1414, %v1412
  %v1903 = vpack.c.b16 %v1415, %v1413
  %v1904 = vpack.c.b16 %v1418, %v1416
  %v1905 = vpack.c.b16 %v1419, %v1417
  %v1906 = vpack.c.b16 %v1422, %v1420
  %v1907 = vpack.c.b16 %v1423, %v1421
  %v1908 = vpack.c.b16 %v1426, %v1424
  %v1909 = vpack.c.b16 %v1427, %v1425
  %v1910 = vpack.c.b16 %v1430, %v1428
  %v1911 = vpack.c.b16 %v1431, %v1429
  %v1912 = vpack.c.b16 %v1434, %v1432
  %v1913 = vpack.c.b16 %v1435, %v1433
  %v1914 = vpack.c.b16 %v1438, %v1436
  %v1915 = vpack.c.b16 %v1439, %v1437
  %v1916 = vpack.c.b16 %v1442, %v1440
  %v1917 = vpack.c.b16 %v1443, %v1441
  %v1918 = vpack.c.b16 %v1446, %v1444
  %v1919 = vpack.c.b16 %v1447, %v1445
  %v1920 = vpack.c.b16 %v1450, %v1448
  %v1921 = vpack.c.b16 %v1451, %v1449
  %v1922 = vpack.c.b16 %v1454, %v1452
  %v1923 = vpack.c.b16 %v1455, %v1453
  %v1924 = vpack.c.b16 %v1458, %v1456
  %v1925 = vpack.c.b16 %v1459, %v1457
  %v1926 = vpack.c.b16 %v1462, %v1460
  %v1927 = vpack.c.b16 %v1463, %v1461
  %v1928 = vpack.c.b16 %v1466, %v1464
  %v1929 = vpack.c.b16 %v1467, %v1465
  %v1930 = vpack.c.b16 %v1470, %v1468
  %v1931 = vpack.c.b16 %v1471, %v1469
  %v1932 = vpack.c.b16 %v1474, %v1472
  %v1933 = vpack.c.b16 %v1475, %v1473
  %v1934 = vpack.c.b16 %v1478, %v1476
  %v1935 = vpack.c.b16 %v1479, %v1477
  %v1936 = vpack.c.b16 %v1482, %v1480
  %v1937 = vpack.c.b16 %v1483, %v1481
  %v1938 = vpack.c.b16 %v1486, %v1484
  %v1939 = vpack.c.b16 %v1487, %v1485
  %v1940 = vpack.c.b16 %v1490, %v1488
  %v1941 = vpack.c.b16 %v1491, %v1489
  %v1942 = vpack.c.b16 %v1494, %v1492
  %v1943 = vpack.c.b16 %v1495, %v1493
  %v1944 = vpack.c.b16 %v1498, %v1496
  %v1945 = vpack.c.b16 %v1499, %v1497
  %v1946 = vpack.c.b16 %v1502, %v1500
  %v1947 = vpack.c.b16 %v1503, %v1501
  %v1948 = vpack.c.b16 %v1506, %v1504
  %v1949 = vpack.c.b16 %v1507, %v1505
  %v1950 = vpack.c.b16 %v1510, %v1508
  %v1951 = vpack.c.b16 %v1511, %v1509
  %v1952 = vpack.c.b16 %v1514, %v1512
  %v1953 = vpack.c.b16 %v1515, %v1513
  %v1954 = vpack.c.b16 %v1518, %v1516
  %v1955 = vpack.c.b16 %v1519, %v1517
  %v1956 = vpack.c.b16 %v1522, %v1520
  %v1957 = vpack.c.b16 %v1523, %v1521
  %v1958 = vpack.c.b16 %v1526, %v1524
  %v1959 = vpack.c.b16 %v1527, %v1525
  %v1960 = vpack.c.b16 %v1530, %v1528
  %v1961 = vpack.c.b16 %v1531, %v1529
  %v1962 = vpack.c.b16 %v1534, %v1532
  %v1963 = vpack.c.b16 %v1535, %v1533
  %v1964 = vpack.c.b16 %v1538, %v1536
  %v1965 = vpack.c.b16 %v1539, %v1537
  %v1966 = vpack.c.b16 %v1542, %v1540
  %v1967 = vpack.c.b16 %v1543, %v1541
  %v1968 = vpack.c.b16 %v1546, %v1544
  %v1969 = vpack.c.b16 %v1547, %v1545
  %v1970 = vpack.c.b16 %v1550, %v1548
  %v1971 = vpack.c.b16 %v1551, %v1549
  %v1972 = vpack.c.b16 %v1554, %v1552
  %v1973 = vpack.c.b16 %v1555, %v1553
  %v1974 = vpack.c.b16 %v1558, %v1556
  %v1975 = vpack.c.b16 %v1559, %v1557
  %v1976 = vpack.c.b16 %v1562, %v1560
  %v1977 = vpack.c.b16 %v1563, %v1561
  %v1978 = vpack.c.b16 %v1566, %v1564
  %v1979 = vpack.c.b16 %v1567, %v1565
  %v1980 = vpack.c.b16 %v1570, %v1568
  %v1981 = vpack.c.b16 %v1571, %v1569
  %v1982 = vpack.c.b16 %v1574, %v1572
  %v1983 = vpack.c.b16 %v1575, %v1573
  %v1984 = vpack.c.b16 %v1578, %v1576
  %v1985 = vpack.c.b16 %v1579, %v1577
  %v1986 = vpack.c.b16 %v1582, %v1580
  %v1987 = vpack.c.b16 %v1583, %v1581
  %v1988 = vpack.c.b16 %v1586, %v1584
  %v1989 = vpack.c.b16 %v1587, %v1585
  %v1990 = vpack.c.b16 %v1590, %v1588
  %v1991 = vpack.c.b16 %v1591, %v1589
  %v1992 = vpack.c.b16 %v1594, %v1592
  %v1993 = vpack.c.b16 %v1595, %v1593
  %v1994 = vpack.c.b16 %v1598, %v1596
  %v1995 = vpack.c.b16 %v1599, %v1597
  %v1996 = vpack.c.b16 %v1602, %v1600
  %v1997 = vpack.c.b16 %v1603, %v1601
  %v1998 = vpack.c.b16 %v1606, %v1604
  %v1999 = vpack.c.b16 %v1607, %v1605
  %v2000 = vpack.c.b16 %v1610, %v1608
  %v2001 = vpack.c.b16 %v1611, %v1609
  %v2002 = vpack.c.b16 %v1614, %v1612
  %v2003 = vpack.c.b16 %v1615, %v1613
  %v2004 = vpack.c.b16 %v1618, %v1616
  %v2005 = vpack.c.b16 %v1619, %v1617
  %v2006 = vpack.c.b16 %v1622, %v1620
  %v2007 = vpack.c.b16 %v1623, %v1621
  %v2008 = vpack.c.b16 %v1626, %v1624
  %v2009 = vpack.c.b16 %v1627, %v1625
  %v2010 = vpack.c.b16 %v1630, %v1628
  %v2011 = vpack.c.b16 %v1631, %v1629
  %v2012 = vpack.c.b16 %v1634, %v1632
  %v2013 = vpack.c.b16 %v1635, %v1633
  %v2014 = vpack.c.b16 %v1638, %v1636
  %v2015 = vpack.c.b16 %v1639, %v1637
  %v2016 = vpack.c.b16 %v1642, %v1640
  %v2017 = vpack.c.b16 %v1643, %v1641
  %v2018 = vpack.c.b16 %v1646, %v1644
  %v2019 = vpack.c.b16 %v1647, %v1645
  %v2020 = vpack.c.b16 %v1650, %v1648
  %v2021 = vpack.c.b16 %v1651, %v1649
  %v2022 = vpack.c.b16 %v1654, %v1652
  %v2023 = vpack.c.b16 %v1655, %v1653
  %v2024 = vpack.c.b16 %v1658, %v1656
  %v2025 = vpack.c.b16 %v1659, %v1657
  %v2026 = vpack.c.b16 %v1662, %v1660
  %v2027 = vpack.c.b16 %v1663, %v1661
  %v2028 = vpack.c.b16 %v1666, %v1664
  %v2029 = vpack.c.b16 %v1667, %v1665
  %v2030 = vpack.c.b16 %v1670, %v1668
  %v2031 = vpack.c.b16 %v1671, %v1669
  %v2032 = vpack.c.b16 %v1674, %v1672
  %v2033 = vpack.c.b16 %v1675, %v1673
  %v2034 = vpack.c.b16 %v1678, %v1676
  %v2035 = vpack.c.b16 %v1679, %v1677
  %v2036 = vpack.c.b16 %v1682, %v1680
  %v2037 = vpack.c.b16 %v1683, %v1681
  %v2038 = vpack.c.b16 %v1686, %v1684
  %v2039 = vpack.c.b16 %v1687, %v1685
  %v2040 = vpack.c.b16 %v1690, %v1688
  %v2041 = vpack.c.b16 %v1691, %v1689
  %v2042 = vpack.c.b16 %v1694, %v1692
  %v2043 = vpack.c.b16 %v1695, %v1693
  %v2044 = vpack.c.b16 %v1698, %v1696
  %v2045 = vpack.c.b16 %v1699, %v1697
  %v2046 = vpack.c.b16 %v1702, %v1700
  %v2047 = vpack.c.b16 %v1703, %v1701
  %v2048 = vpack.c.b16 %v1706, %v1704
  %v2049 = vpack.c.b16 %v1707, %v1705
  %v2050 = vpack.c.b16 %v1710, %v1708
  %v2051 = vpack.c.b16 %v1711, %v1709
  %v2052 = vpack.c.b16 %v1714, %v1712
  %v2053 = vpack.c.b16 %v1715, %v1713
  %v2054 = vpack.c.b16 %v1718, %v1716
  %v2055 = vpack.c.b16 %v1719, %v1717
  %v2056 = vpack.c.b16 %v1722, %v1720
  %v2057 = vpack.c.b16 %v1723, %v1721
  %v2058 = vpack.c.b16 %v1726, %v1724
  %v2059 = vpack.c.b16 %v1727, %v1725
  %v2060 = vpack.c.b16 %v1730, %v1728
  %v2061 = vpack.c.b16 %v1731, %v1729
  %v2062 = vpack.c.b16 %v1734, %v1732
  %v2063 = vpack.c.b16 %v1735, %v1733
  %v2064 = vpack.c.b16 %v1738, %v1736
  %v2065 = vpack.c.b16 %v1739, %v1737
  %v2066 = vpack.c.b16 %v1742, %v1740
  %v2067 = vpack.c.b16 %v1743, %v1741
  %v2068 = vpack.c.b16 %v1746, %v1744
  %v2069 = vpack.c.b16 %v1747, %v1745
  %v2070 = vpack.c.b16 %v1750, %v1748
  %v2071 = vpack.c.b16 %v1751, %v1749
  %v2072 = vpack.c.b16 %v1754, %v1752
  %v2073 = vpack.c.b16 %v1755, %v1753
  %v2074 = vpack.c.b16 %v1758, %v1756
  %v2075 = vpack.c.b16 %v1759, %v1757
  %v2076 = vpack.c.b16 %v1762, %v1760
  %v2077 = vpack.c.b16 %v1763, %v1761
  %v2078 = vpack.c.b16 %v1766, %v1764
  %v2079 = vpack.c.b16 %v1767, %v1765
  %v2080 = vpack.c.b16 %v1770, %v1768
  %v2081 = vpack.c.b16 %v1771, %v1769
  %v2082 = vpack.c.b16 %v1774, %v1772
  %v2083 = vpack.c.b16 %v1775, %v1773
  %v2084 = vpack.c.b16 %v1778, %v1776
  %v2085 = vpack.c.b16 %v1779, %v1777
  %v2086 = vpack.c.b16 %v1782, %v1780
  %v2087 = vpack.c.b16 %v1783, %v1781
  %v2088 = vpack.c.b16 %v1786, %v1784
  %v2089 = vpack.c.b16 %v1787, %v1785
  %v2090 = vpack.c.b16 %v1790, %v1788
  %v2091 = vpack.c.b16 %v1791, %v1789
  %v2092 = vpack.c.b16 %v1794, %v1792
  %v2093 = vpack.c.b16 %v1795, %v1793
  %v2094 = vpack.c.b16 %v1798, %v1796
  %v2095 = vpack.c.b16 %v1799, %v1797
  %v2096 = vpack.c.b16 %v1802, %v1800
  %v2097 = vpack.c.b16 %v1803, %v1801
  %v2098 = vpack.c.b16 %v1806, %v1804
  %v2099 = vpack.c.b16 %v1807, %v1805
  %v2100 = vpack.c.b16 %v1810, %v1808
  %v2101 = vpack.c.b16 %v1811, %v1809
  %v2102 = vpack.c.b16 %v1814, %v1812
  %v2103 = vpack.c.b16 %v1815, %v1813
  %v2104 = vpack.c.b16 %v1818, %v1816
  %v2105 = vpack.c.b16 %v1819, %v1817
  %v2106 = vpack.c.b16 %v1822, %v1820
  %v2107 = vpack.c.b16 %v1823, %v1821
  %v2108 = vpack.c.b16 %v1826, %v1824
  %v2109 = vpack.c.b16 %v1827, %v1825
  %v2110 = vpack.c.b16 %v1830, %v1828
  %v2111 = vpack.c.b16 %v1831, %v1829
  %v2112 = vpack.c.b16 %v1834, %v1832
  %v2113 = vpack.c.b16 %v1835, %v1833
  %v2114 = vpack.c.b16 %v1838, %v1836
  %v2115 = vpack.c.b16 %v1839, %v1837
  %v2116 = vpack.c.b16 %v1842, %v1840
  %v2117 = vpack.c.b16 %v1843, %v1841
  %v2118 = vpack.c.b16 %v1846, %v1844
  %v2119 = vpack.c.b16 %v1847, %v1845
  %v2120 = vpack.c.b16 %v1850, %v1848
  %v2121 = vpack.c.b16 %v1851, %v1849
  %v2122 = vpack.c.b16 %v1854, %v1852
  %v2123 = vpack.c.b16 %v1855, %v1853
  %v2124 = vpack.c.b16 %v1858, %v1856
  %v2125 = vpack.c.b16 %v1859, %v1857
  %v2126 = vpack.c.b16 %v1862, %v1860
  %v2127 = vpack.c.b16 %v1863, %v1861
  %v2128 = vpack.c.b16 %v1866, %v1864
  %v2129 = vpack.c.b16 %v1867, %v1865
  %v2130 = vpack.c.b16 %v1870, %v1868
  %v2131 = vpack.c.b16 %v1871, %v1869
  %v2132 = vpack.c.b16 %v1874, %v1872
  %v2133 = vpack.c.b16 %v1875, %v1873
  %v2134 = vpack.c.b16 %v1878, %v1876
  %v2135 = vpack.c.b16 %v1879, %v1877
  %2392 = vmatpush.bf16.msra.mxu0 %v1894
  %2393 = vmatpush.bf16.msra.mxu0 %v1892
  %2394 = vmatpush.bf16.msra.mxu0 %v1890
  %2395 = vmatpush.bf16.msra.mxu0 %v1888
  %2396 = vmatpush.bf16.msra.mxu0 %v1886
  %2397 = vmatpush.bf16.msra.mxu0 %v1884
  %2398 = vmatpush.bf16.msra.mxu0 %v1882
  %2399 = vmatpush.bf16.msra.mxu0 %v1880
  %2400 = vmatmul.bf16.gmra.mxu0 %v856
  %v2401 = vpop.f32.mrf.mxu0
  %v2402 = vadd.f32 0.0, %v2401
  %v2403 = vpop.f32.mrf.mxu0
  %v2404 = vadd.f32 0.0, %v2403
  %2405 = vmatmul.bf16.gmra.mxu0 %v872
  %v2406 = vpop.f32.mrf.mxu0
  %v2407 = vadd.f32 0.0, %v2406
  %v2408 = vpop.f32.mrf.mxu0
  %v2409 = vadd.f32 0.0, %v2408
  %2410 = vmatmul.bf16.gmra.mxu0 %v888
  %v2411 = vpop.f32.mrf.mxu0
  %v2412 = vadd.f32 0.0, %v2411
  %v2413 = vpop.f32.mrf.mxu0
  %v2414 = vadd.f32 0.0, %v2413
  %2415 = vmatmul.bf16.gmra.mxu0 %v904
  %v2416 = vpop.f32.mrf.mxu0
  %v2417 = vadd.f32 0.0, %v2416
  %v2418 = vpop.f32.mrf.mxu0
  %v2419 = vadd.f32 0.0, %v2418
  %2420 = vmatmul.bf16.gmra.mxu0 %v920
  %v2421 = vpop.f32.mrf.mxu0
  %v2422 = vadd.f32 0.0, %v2421
  %v2423 = vpop.f32.mrf.mxu0
  %v2424 = vadd.f32 0.0, %v2423
  %2425 = vmatmul.bf16.gmra.mxu0 %v936
  %v2426 = vpop.f32.mrf.mxu0
  %v2427 = vadd.f32 0.0, %v2426
  %v2428 = vpop.f32.mrf.mxu0
  %v2429 = vadd.f32 0.0, %v2428
  %2430 = vmatmul.bf16.gmra.mxu0 %v952
  %v2431 = vpop.f32.mrf.mxu0
  %v2432 = vadd.f32 0.0, %v2431
  %v2433 = vpop.f32.mrf.mxu0
  %v2434 = vadd.f32 0.0, %v2433
  %2435 = vmatmul.bf16.gmra.mxu0 %v968
  %v2436 = vpop.f32.mrf.mxu0
  %v2437 = vadd.f32 0.0, %v2436
  %v2438 = vpop.f32.mrf.mxu0
  %v2439 = vadd.f32 0.0, %v2438
  %2440 = vdwg.mxu0
  %2441 = vmatpush.bf16.msra.mxu0 %v1910
  %2442 = vmatpush.bf16.msra.mxu0 %v1908
  %2443 = vmatpush.bf16.msra.mxu0 %v1906
  %2444 = vmatpush.bf16.msra.mxu0 %v1904
  %2445 = vmatpush.bf16.msra.mxu0 %v1902
  %2446 = vmatpush.bf16.msra.mxu0 %v1900
  %2447 = vmatpush.bf16.msra.mxu0 %v1898
  %2448 = vmatpush.bf16.msra.mxu0 %v1896
  %2449 = vmatmul.bf16.gmra.mxu0 %v857
  %v2450 = vpop.f32.mrf.mxu0
  %v2451 = vadd.f32 %v2402, %v2450
  %v2452 = vpop.f32.mrf.mxu0
  %v2453 = vadd.f32 %v2404, %v2452
  %2454 = vmatmul.bf16.gmra.mxu0 %v873
  %v2455 = vpop.f32.mrf.mxu0
  %v2456 = vadd.f32 %v2407, %v2455
  %v2457 = vpop.f32.mrf.mxu0
  %v2458 = vadd.f32 %v2409, %v2457
  %2459 = vmatmul.bf16.gmra.mxu0 %v889
  %v2460 = vpop.f32.mrf.mxu0
  %v2461 = vadd.f32 %v2412, %v2460
  %v2462 = vpop.f32.mrf.mxu0
  %v2463 = vadd.f32 %v2414, %v2462
  %2464 = vmatmul.bf16.gmra.mxu0 %v905
  %v2465 = vpop.f32.mrf.mxu0
  %v2466 = vadd.f32 %v2417, %v2465
  %v2467 = vpop.f32.mrf.mxu0
  %v2468 = vadd.f32 %v2419, %v2467
  %2469 = vmatmul.bf16.gmra.mxu0 %v921
  %v2470 = vpop.f32.mrf.mxu0
  %v2471 = vadd.f32 %v2422, %v2470
  %v2472 = vpop.f32.mrf.mxu0
  %v2473 = vadd.f32 %v2424, %v2472
  %2474 = vmatmul.bf16.gmra.mxu0 %v937
  %v2475 = vpop.f32.mrf.mxu0
  %v2476 = vadd.f32 %v2427, %v2475
  %v2477 = vpop.f32.mrf.mxu0
  %v2478 = vadd.f32 %v2429, %v2477
  %2479 = vmatmul.bf16.gmra.mxu0 %v953
  %v2480 = vpop.f32.mrf.mxu0
  %v2481 = vadd.f32 %v2432, %v2480
  %v2482 = vpop.f32.mrf.mxu0
  %v2483 = vadd.f32 %v2434, %v2482
  %2484 = vmatmul.bf16.gmra.mxu0 %v969
  %v2485 = vpop.f32.mrf.mxu0
  %v2486 = vadd.f32 %v2437, %v2485
  %v2487 = vpop.f32.mrf.mxu0
  %v2488 = vadd.f32 %v2439, %v2487
  %2489 = vdwg.mxu0
  %2490 = vmatpush.bf16.msra.mxu0 %v1926
  %2491 = vmatpush.bf16.msra.mxu0 %v1924
  %2492 = vmatpush.bf16.msra.mxu0 %v1922
  %2493 = vmatpush.bf16.msra.mxu0 %v1920
  %2494 = vmatpush.bf16.msra.mxu0 %v1918
  %2495 = vmatpush.bf16.msra.mxu0 %v1916
  %2496 = vmatpush.bf16.msra.mxu0 %v1914
  %2497 = vmatpush.bf16.msra.mxu0 %v1912
  %2498 = vmatmul.bf16.gmra.mxu0 %v858
  %v2499 = vpop.f32.mrf.mxu0
  %v2500 = vadd.f32 %v2451, %v2499
  %v2501 = vpop.f32.mrf.mxu0
  %v2502 = vadd.f32 %v2453, %v2501
  %2503 = vmatmul.bf16.gmra.mxu0 %v874
  %v2504 = vpop.f32.mrf.mxu0
  %v2505 = vadd.f32 %v2456, %v2504
  %v2506 = vpop.f32.mrf.mxu0
  %v2507 = vadd.f32 %v2458, %v2506
  %2508 = vmatmul.bf16.gmra.mxu0 %v890
  %v2509 = vpop.f32.mrf.mxu0
  %v2510 = vadd.f32 %v2461, %v2509
  %v2511 = vpop.f32.mrf.mxu0
  %v2512 = vadd.f32 %v2463, %v2511
  %2513 = vmatmul.bf16.gmra.mxu0 %v906
  %v2514 = vpop.f32.mrf.mxu0
  %v2515 = vadd.f32 %v2466, %v2514
  %v2516 = vpop.f32.mrf.mxu0
  %v2517 = vadd.f32 %v2468, %v2516
  %2518 = vmatmul.bf16.gmra.mxu0 %v922
  %v2519 = vpop.f32.mrf.mxu0
  %v2520 = vadd.f32 %v2471, %v2519
  %v2521 = vpop.f32.mrf.mxu0
  %v2522 = vadd.f32 %v2473, %v2521
  %2523 = vmatmul.bf16.gmra.mxu0 %v938
  %v2524 = vpop.f32.mrf.mxu0
  %v2525 = vadd.f32 %v2476, %v2524
  %v2526 = vpop.f32.mrf.mxu0
  %v2527 = vadd.f32 %v2478, %v2526
  %2528 = vmatmul.bf16.gmra.mxu0 %v954
  %v2529 = vpop.f32.mrf.mxu0
  %v2530 = vadd.f32 %v2481, %v2529
  %v2531 = vpop.f32.mrf.mxu0
  %v2532 = vadd.f32 %v2483, %v2531
  %2533 = vmatmul.bf16.gmra.mxu0 %v970
  %v2534 = vpop.f32.mrf.mxu0
  %v2535 = vadd.f32 %v2486, %v2534
  %v2536 = vpop.f32.mrf.mxu0
  %v2537 = vadd.f32 %v2488, %v2536
  %2538 = vdwg.mxu0
  %2539 = vmatpush.bf16.msra.mxu0 %v1942
  %2540 = vmatpush.bf16.msra.mxu0 %v1940
  %2541 = vmatpush.bf16.msra.mxu0 %v1938
  %2542 = vmatpush.bf16.msra.mxu0 %v1936
  %2543 = vmatpush.bf16.msra.mxu0 %v1934
  %2544 = vmatpush.bf16.msra.mxu0 %v1932
  %2545 = vmatpush.bf16.msra.mxu0 %v1930
  %2546 = vmatpush.bf16.msra.mxu0 %v1928
  %2547 = vmatmul.bf16.gmra.mxu0 %v859
  %v2548 = vpop.f32.mrf.mxu0
  %v2549 = vadd.f32 %v2500, %v2548
  %v2550 = vpop.f32.mrf.mxu0
  %v2551 = vadd.f32 %v2502, %v2550
  %2552 = vmatmul.bf16.gmra.mxu0 %v875
  %v2553 = vpop.f32.mrf.mxu0
  %v2554 = vadd.f32 %v2505, %v2553
  %v2555 = vpop.f32.mrf.mxu0
  %v2556 = vadd.f32 %v2507, %v2555
  %2557 = vmatmul.bf16.gmra.mxu0 %v891
  %v2558 = vpop.f32.mrf.mxu0
  %v2559 = vadd.f32 %v2510, %v2558
  %v2560 = vpop.f32.mrf.mxu0
  %v2561 = vadd.f32 %v2512, %v2560
  %2562 = vmatmul.bf16.gmra.mxu0 %v907
  %v2563 = vpop.f32.mrf.mxu0
  %v2564 = vadd.f32 %v2515, %v2563
  %v2565 = vpop.f32.mrf.mxu0
  %v2566 = vadd.f32 %v2517, %v2565
  %2567 = vmatmul.bf16.gmra.mxu0 %v923
  %v2568 = vpop.f32.mrf.mxu0
  %v2569 = vadd.f32 %v2520, %v2568
  %v2570 = vpop.f32.mrf.mxu0
  %v2571 = vadd.f32 %v2522, %v2570
  %2572 = vmatmul.bf16.gmra.mxu0 %v939
  %v2573 = vpop.f32.mrf.mxu0
  %v2574 = vadd.f32 %v2525, %v2573
  %v2575 = vpop.f32.mrf.mxu0
  %v2576 = vadd.f32 %v2527, %v2575
  %2577 = vmatmul.bf16.gmra.mxu0 %v955
  %v2578 = vpop.f32.mrf.mxu0
  %v2579 = vadd.f32 %v2530, %v2578
  %v2580 = vpop.f32.mrf.mxu0
  %v2581 = vadd.f32 %v2532, %v2580
  %2582 = vmatmul.bf16.gmra.mxu0 %v971
  %v2583 = vpop.f32.mrf.mxu0
  %v2584 = vadd.f32 %v2535, %v2583
  %v2585 = vpop.f32.mrf.mxu0
  %v2586 = vadd.f32 %v2537, %v2585
  %2587 = vdwg.mxu0
  %2588 = vmatpush.bf16.msra.mxu0 %v1958
  %2589 = vmatpush.bf16.msra.mxu0 %v1956
  %2590 = vmatpush.bf16.msra.mxu0 %v1954
  %2591 = vmatpush.bf16.msra.mxu0 %v1952
  %2592 = vmatpush.bf16.msra.mxu0 %v1950
  %2593 = vmatpush.bf16.msra.mxu0 %v1948
  %2594 = vmatpush.bf16.msra.mxu0 %v1946
  %2595 = vmatpush.bf16.msra.mxu0 %v1944
  %2596 = vmatmul.bf16.gmra.mxu0 %v860
  %v2597 = vpop.f32.mrf.mxu0
  %v2598 = vadd.f32 %v2549, %v2597
  %v2599 = vpop.f32.mrf.mxu0
  %v2600 = vadd.f32 %v2551, %v2599
  %2601 = vmatmul.bf16.gmra.mxu0 %v876
  %v2602 = vpop.f32.mrf.mxu0
  %v2603 = vadd.f32 %v2554, %v2602
  %v2604 = vpop.f32.mrf.mxu0
  %v2605 = vadd.f32 %v2556, %v2604
  %2606 = vmatmul.bf16.gmra.mxu0 %v892
  %v2607 = vpop.f32.mrf.mxu0
  %v2608 = vadd.f32 %v2559, %v2607
  %v2609 = vpop.f32.mrf.mxu0
  %v2610 = vadd.f32 %v2561, %v2609
  %2611 = vmatmul.bf16.gmra.mxu0 %v908
  %v2612 = vpop.f32.mrf.mxu0
  %v2613 = vadd.f32 %v2564, %v2612
  %v2614 = vpop.f32.mrf.mxu0
  %v2615 = vadd.f32 %v2566, %v2614
  %2616 = vmatmul.bf16.gmra.mxu0 %v924
  %v2617 = vpop.f32.mrf.mxu0
  %v2618 = vadd.f32 %v2569, %v2617
  %v2619 = vpop.f32.mrf.mxu0
  %v2620 = vadd.f32 %v2571, %v2619
  %2621 = vmatmul.bf16.gmra.mxu0 %v940
  %v2622 = vpop.f32.mrf.mxu0
  %v2623 = vadd.f32 %v2574, %v2622
  %v2624 = vpop.f32.mrf.mxu0
  %v2625 = vadd.f32 %v2576, %v2624
  %2626 = vmatmul.bf16.gmra.mxu0 %v956
  %v2627 = vpop.f32.mrf.mxu0
  %v2628 = vadd.f32 %v2579, %v2627
  %v2629 = vpop.f32.mrf.mxu0
  %v2630 = vadd.f32 %v2581, %v2629
  %2631 = vmatmul.bf16.gmra.mxu0 %v972
  %v2632 = vpop.f32.mrf.mxu0
  %v2633 = vadd.f32 %v2584, %v2632
  %v2634 = vpop.f32.mrf.mxu0
  %v2635 = vadd.f32 %v2586, %v2634
  %2636 = vdwg.mxu0
  %2637 = vmatpush.bf16.msra.mxu0 %v1974
  %2638 = vmatpush.bf16.msra.mxu0 %v1972
  %2639 = vmatpush.bf16.msra.mxu0 %v1970
  %2640 = vmatpush.bf16.msra.mxu0 %v1968
  %2641 = vmatpush.bf16.msra.mxu0 %v1966
  %2642 = vmatpush.bf16.msra.mxu0 %v1964
  %2643 = vmatpush.bf16.msra.mxu0 %v1962
  %2644 = vmatpush.bf16.msra.mxu0 %v1960
  %2645 = vmatmul.bf16.gmra.mxu0 %v861
  %v2646 = vpop.f32.mrf.mxu0
  %v2647 = vadd.f32 %v2598, %v2646
  %v2648 = vpop.f32.mrf.mxu0
  %v2649 = vadd.f32 %v2600, %v2648
  %2650 = vmatmul.bf16.gmra.mxu0 %v877
  %v2651 = vpop.f32.mrf.mxu0
  %v2652 = vadd.f32 %v2603, %v2651
  %v2653 = vpop.f32.mrf.mxu0
  %v2654 = vadd.f32 %v2605, %v2653
  %2655 = vmatmul.bf16.gmra.mxu0 %v893
  %v2656 = vpop.f32.mrf.mxu0
  %v2657 = vadd.f32 %v2608, %v2656
  %v2658 = vpop.f32.mrf.mxu0
  %v2659 = vadd.f32 %v2610, %v2658
  %2660 = vmatmul.bf16.gmra.mxu0 %v909
  %v2661 = vpop.f32.mrf.mxu0
  %v2662 = vadd.f32 %v2613, %v2661
  %v2663 = vpop.f32.mrf.mxu0
  %v2664 = vadd.f32 %v2615, %v2663
  %2665 = vmatmul.bf16.gmra.mxu0 %v925
  %v2666 = vpop.f32.mrf.mxu0
  %v2667 = vadd.f32 %v2618, %v2666
  %v2668 = vpop.f32.mrf.mxu0
  %v2669 = vadd.f32 %v2620, %v2668
  %2670 = vmatmul.bf16.gmra.mxu0 %v941
  %v2671 = vpop.f32.mrf.mxu0
  %v2672 = vadd.f32 %v2623, %v2671
  %v2673 = vpop.f32.mrf.mxu0
  %v2674 = vadd.f32 %v2625, %v2673
  %2675 = vmatmul.bf16.gmra.mxu0 %v957
  %v2676 = vpop.f32.mrf.mxu0
  %v2677 = vadd.f32 %v2628, %v2676
  %v2678 = vpop.f32.mrf.mxu0
  %v2679 = vadd.f32 %v2630, %v2678
  %2680 = vmatmul.bf16.gmra.mxu0 %v973
  %v2681 = vpop.f32.mrf.mxu0
  %v2682 = vadd.f32 %v2633, %v2681
  %v2683 = vpop.f32.mrf.mxu0
  %v2684 = vadd.f32 %v2635, %v2683
  %2685 = vdwg.mxu0
  %2686 = vmatpush.bf16.msra.mxu0 %v1990
  %2687 = vmatpush.bf16.msra.mxu0 %v1988
  %2688 = vmatpush.bf16.msra.mxu0 %v1986
  %2689 = vmatpush.bf16.msra.mxu0 %v1984
  %2690 = vmatpush.bf16.msra.mxu0 %v1982
  %2691 = vmatpush.bf16.msra.mxu0 %v1980
  %2692 = vmatpush.bf16.msra.mxu0 %v1978
  %2693 = vmatpush.bf16.msra.mxu0 %v1976
  %2694 = vmatmul.bf16.gmra.mxu0 %v862
  %v2695 = vpop.f32.mrf.mxu0
  %v2696 = vadd.f32 %v2647, %v2695
  %v2697 = vpop.f32.mrf.mxu0
  %v2698 = vadd.f32 %v2649, %v2697
  %2699 = vmatmul.bf16.gmra.mxu0 %v878
  %v2700 = vpop.f32.mrf.mxu0
  %v2701 = vadd.f32 %v2652, %v2700
  %v2702 = vpop.f32.mrf.mxu0
  %v2703 = vadd.f32 %v2654, %v2702
  %2704 = vmatmul.bf16.gmra.mxu0 %v894
  %v2705 = vpop.f32.mrf.mxu0
  %v2706 = vadd.f32 %v2657, %v2705
  %v2707 = vpop.f32.mrf.mxu0
  %v2708 = vadd.f32 %v2659, %v2707
  %2709 = vmatmul.bf16.gmra.mxu0 %v910
  %v2710 = vpop.f32.mrf.mxu0
  %v2711 = vadd.f32 %v2662, %v2710
  %v2712 = vpop.f32.mrf.mxu0
  %v2713 = vadd.f32 %v2664, %v2712
  %2714 = vmatmul.bf16.gmra.mxu0 %v926
  %v2715 = vpop.f32.mrf.mxu0
  %v2716 = vadd.f32 %v2667, %v2715
  %v2717 = vpop.f32.mrf.mxu0
  %v2718 = vadd.f32 %v2669, %v2717
  %2719 = vmatmul.bf16.gmra.mxu0 %v942
  %v2720 = vpop.f32.mrf.mxu0
  %v2721 = vadd.f32 %v2672, %v2720
  %v2722 = vpop.f32.mrf.mxu0
  %v2723 = vadd.f32 %v2674, %v2722
  %2724 = vmatmul.bf16.gmra.mxu0 %v958
  %v2725 = vpop.f32.mrf.mxu0
  %v2726 = vadd.f32 %v2677, %v2725
  %v2727 = vpop.f32.mrf.mxu0
  %v2728 = vadd.f32 %v2679, %v2727
  %2729 = vmatmul.bf16.gmra.mxu0 %v974
  %v2730 = vpop.f32.mrf.mxu0
  %v2731 = vadd.f32 %v2682, %v2730
  %v2732 = vpop.f32.mrf.mxu0
  %v2733 = vadd.f32 %v2684, %v2732
  %2734 = vdwg.mxu0
  %2735 = vmatpush.bf16.msra.mxu0 %v2006
  %2736 = vmatpush.bf16.msra.mxu0 %v2004
  %2737 = vmatpush.bf16.msra.mxu0 %v2002
  %2738 = vmatpush.bf16.msra.mxu0 %v2000
  %2739 = vmatpush.bf16.msra.mxu0 %v1998
  %2740 = vmatpush.bf16.msra.mxu0 %v1996
  %2741 = vmatpush.bf16.msra.mxu0 %v1994
  %2742 = vmatpush.bf16.msra.mxu0 %v1992
  %2743 = vmatmul.bf16.gmra.mxu0 %v863
  %v2744 = vpop.f32.mrf.mxu0
  %v2745 = vadd.f32 %v2696, %v2744
  %v2746 = vpop.f32.mrf.mxu0
  %v2747 = vadd.f32 %v2698, %v2746
  %2748 = vmatmul.bf16.gmra.mxu0 %v879
  %v2749 = vpop.f32.mrf.mxu0
  %v2750 = vadd.f32 %v2701, %v2749
  %v2751 = vpop.f32.mrf.mxu0
  %v2752 = vadd.f32 %v2703, %v2751
  %2753 = vmatmul.bf16.gmra.mxu0 %v895
  %v2754 = vpop.f32.mrf.mxu0
  %v2755 = vadd.f32 %v2706, %v2754
  %v2756 = vpop.f32.mrf.mxu0
  %v2757 = vadd.f32 %v2708, %v2756
  %2758 = vmatmul.bf16.gmra.mxu0 %v911
  %v2759 = vpop.f32.mrf.mxu0
  %v2760 = vadd.f32 %v2711, %v2759
  %v2761 = vpop.f32.mrf.mxu0
  %v2762 = vadd.f32 %v2713, %v2761
  %2763 = vmatmul.bf16.gmra.mxu0 %v927
  %v2764 = vpop.f32.mrf.mxu0
  %v2765 = vadd.f32 %v2716, %v2764
  %v2766 = vpop.f32.mrf.mxu0
  %v2767 = vadd.f32 %v2718, %v2766
  %2768 = vmatmul.bf16.gmra.mxu0 %v943
  %v2769 = vpop.f32.mrf.mxu0
  %v2770 = vadd.f32 %v2721, %v2769
  %v2771 = vpop.f32.mrf.mxu0
  %v2772 = vadd.f32 %v2723, %v2771
  %2773 = vmatmul.bf16.gmra.mxu0 %v959
  %v2774 = vpop.f32.mrf.mxu0
  %v2775 = vadd.f32 %v2726, %v2774
  %v2776 = vpop.f32.mrf.mxu0
  %v2777 = vadd.f32 %v2728, %v2776
  %2778 = vmatmul.bf16.gmra.mxu0 %v975
  %v2779 = vpop.f32.mrf.mxu0
  %v2780 = vadd.f32 %v2731, %v2779
  %v2781 = vpop.f32.mrf.mxu0
  %v2782 = vadd.f32 %v2733, %v2781
  %2783 = vdwg.mxu0
  %2784 = vmatpush.bf16.msra.mxu0 %v2022
  %2785 = vmatpush.bf16.msra.mxu0 %v2020
  %2786 = vmatpush.bf16.msra.mxu0 %v2018
  %2787 = vmatpush.bf16.msra.mxu0 %v2016
  %2788 = vmatpush.bf16.msra.mxu0 %v2014
  %2789 = vmatpush.bf16.msra.mxu0 %v2012
  %2790 = vmatpush.bf16.msra.mxu0 %v2010
  %2791 = vmatpush.bf16.msra.mxu0 %v2008
  %2792 = vmatmul.bf16.gmra.mxu0 %v864
  %v2793 = vpop.f32.mrf.mxu0
  %v2794 = vadd.f32 %v2745, %v2793
  %v2795 = vpop.f32.mrf.mxu0
  %v2796 = vadd.f32 %v2747, %v2795
  %2797 = vmatmul.bf16.gmra.mxu0 %v880
  %v2798 = vpop.f32.mrf.mxu0
  %v2799 = vadd.f32 %v2750, %v2798
  %v2800 = vpop.f32.mrf.mxu0
  %v2801 = vadd.f32 %v2752, %v2800
  %2802 = vmatmul.bf16.gmra.mxu0 %v896
  %v2803 = vpop.f32.mrf.mxu0
  %v2804 = vadd.f32 %v2755, %v2803
  %v2805 = vpop.f32.mrf.mxu0
  %v2806 = vadd.f32 %v2757, %v2805
  %2807 = vmatmul.bf16.gmra.mxu0 %v912
  %v2808 = vpop.f32.mrf.mxu0
  %v2809 = vadd.f32 %v2760, %v2808
  %v2810 = vpop.f32.mrf.mxu0
  %v2811 = vadd.f32 %v2762, %v2810
  %2812 = vmatmul.bf16.gmra.mxu0 %v928
  %v2813 = vpop.f32.mrf.mxu0
  %v2814 = vadd.f32 %v2765, %v2813
  %v2815 = vpop.f32.mrf.mxu0
  %v2816 = vadd.f32 %v2767, %v2815
  %2817 = vmatmul.bf16.gmra.mxu0 %v944
  %v2818 = vpop.f32.mrf.mxu0
  %v2819 = vadd.f32 %v2770, %v2818
  %v2820 = vpop.f32.mrf.mxu0
  %v2821 = vadd.f32 %v2772, %v2820
  %2822 = vmatmul.bf16.gmra.mxu0 %v960
  %v2823 = vpop.f32.mrf.mxu0
  %v2824 = vadd.f32 %v2775, %v2823
  %v2825 = vpop.f32.mrf.mxu0
  %v2826 = vadd.f32 %v2777, %v2825
  %2827 = vmatmul.bf16.gmra.mxu0 %v976
  %v2828 = vpop.f32.mrf.mxu0
  %v2829 = vadd.f32 %v2780, %v2828
  %v2830 = vpop.f32.mrf.mxu0
  %v2831 = vadd.f32 %v2782, %v2830
  %2832 = vdwg.mxu0
  %2833 = vmatpush.bf16.msra.mxu0 %v2038
  %2834 = vmatpush.bf16.msra.mxu0 %v2036
  %2835 = vmatpush.bf16.msra.mxu0 %v2034
  %2836 = vmatpush.bf16.msra.mxu0 %v2032
  %2837 = vmatpush.bf16.msra.mxu0 %v2030
  %2838 = vmatpush.bf16.msra.mxu0 %v2028
  %2839 = vmatpush.bf16.msra.mxu0 %v2026
  %2840 = vmatpush.bf16.msra.mxu0 %v2024
  %2841 = vmatmul.bf16.gmra.mxu0 %v865
  %v2842 = vpop.f32.mrf.mxu0
  %v2843 = vadd.f32 %v2794, %v2842
  %v2844 = vpop.f32.mrf.mxu0
  %v2845 = vadd.f32 %v2796, %v2844
  %2846 = vmatmul.bf16.gmra.mxu0 %v881
  %v2847 = vpop.f32.mrf.mxu0
  %v2848 = vadd.f32 %v2799, %v2847
  %v2849 = vpop.f32.mrf.mxu0
  %v2850 = vadd.f32 %v2801, %v2849
  %2851 = vmatmul.bf16.gmra.mxu0 %v897
  %v2852 = vpop.f32.mrf.mxu0
  %v2853 = vadd.f32 %v2804, %v2852
  %v2854 = vpop.f32.mrf.mxu0
  %v2855 = vadd.f32 %v2806, %v2854
  %2856 = vmatmul.bf16.gmra.mxu0 %v913
  %v2857 = vpop.f32.mrf.mxu0
  %v2858 = vadd.f32 %v2809, %v2857
  %v2859 = vpop.f32.mrf.mxu0
  %v2860 = vadd.f32 %v2811, %v2859
  %2861 = vmatmul.bf16.gmra.mxu0 %v929
  %v2862 = vpop.f32.mrf.mxu0
  %v2863 = vadd.f32 %v2814, %v2862
  %v2864 = vpop.f32.mrf.mxu0
  %v2865 = vadd.f32 %v2816, %v2864
  %2866 = vmatmul.bf16.gmra.mxu0 %v945
  %v2867 = vpop.f32.mrf.mxu0
  %v2868 = vadd.f32 %v2819, %v2867
  %v2869 = vpop.f32.mrf.mxu0
  %v2870 = vadd.f32 %v2821, %v2869
  %2871 = vmatmul.bf16.gmra.mxu0 %v961
  %v2872 = vpop.f32.mrf.mxu0
  %v2873 = vadd.f32 %v2824, %v2872
  %v2874 = vpop.f32.mrf.mxu0
  %v2875 = vadd.f32 %v2826, %v2874
  %2876 = vmatmul.bf16.gmra.mxu0 %v977
  %v2877 = vpop.f32.mrf.mxu0
  %v2878 = vadd.f32 %v2829, %v2877
  %v2879 = vpop.f32.mrf.mxu0
  %v2880 = vadd.f32 %v2831, %v2879
  %2881 = vdwg.mxu0
  %2882 = vmatpush.bf16.msra.mxu0 %v2054
  %2883 = vmatpush.bf16.msra.mxu0 %v2052
  %2884 = vmatpush.bf16.msra.mxu0 %v2050
  %2885 = vmatpush.bf16.msra.mxu0 %v2048
  %2886 = vmatpush.bf16.msra.mxu0 %v2046
  %2887 = vmatpush.bf16.msra.mxu0 %v2044
  %2888 = vmatpush.bf16.msra.mxu0 %v2042
  %2889 = vmatpush.bf16.msra.mxu0 %v2040
  %2890 = vmatmul.bf16.gmra.mxu0 %v866
  %v2891 = vpop.f32.mrf.mxu0
  %v2892 = vadd.f32 %v2843, %v2891
  %v2893 = vpop.f32.mrf.mxu0
  %v2894 = vadd.f32 %v2845, %v2893
  %2895 = vmatmul.bf16.gmra.mxu0 %v882
  %v2896 = vpop.f32.mrf.mxu0
  %v2897 = vadd.f32 %v2848, %v2896
  %v2898 = vpop.f32.mrf.mxu0
  %v2899 = vadd.f32 %v2850, %v2898
  %2900 = vmatmul.bf16.gmra.mxu0 %v898
  %v2901 = vpop.f32.mrf.mxu0
  %v2902 = vadd.f32 %v2853, %v2901
  %v2903 = vpop.f32.mrf.mxu0
  %v2904 = vadd.f32 %v2855, %v2903
  %2905 = vmatmul.bf16.gmra.mxu0 %v914
  %v2906 = vpop.f32.mrf.mxu0
  %v2907 = vadd.f32 %v2858, %v2906
  %v2908 = vpop.f32.mrf.mxu0
  %v2909 = vadd.f32 %v2860, %v2908
  %2910 = vmatmul.bf16.gmra.mxu0 %v930
  %v2911 = vpop.f32.mrf.mxu0
  %v2912 = vadd.f32 %v2863, %v2911
  %v2913 = vpop.f32.mrf.mxu0
  %v2914 = vadd.f32 %v2865, %v2913
  %2915 = vmatmul.bf16.gmra.mxu0 %v946
  %v2916 = vpop.f32.mrf.mxu0
  %v2917 = vadd.f32 %v2868, %v2916
  %v2918 = vpop.f32.mrf.mxu0
  %v2919 = vadd.f32 %v2870, %v2918
  %2920 = vmatmul.bf16.gmra.mxu0 %v962
  %v2921 = vpop.f32.mrf.mxu0
  %v2922 = vadd.f32 %v2873, %v2921
  %v2923 = vpop.f32.mrf.mxu0
  %v2924 = vadd.f32 %v2875, %v2923
  %2925 = vmatmul.bf16.gmra.mxu0 %v978
  %v2926 = vpop.f32.mrf.mxu0
  %v2927 = vadd.f32 %v2878, %v2926
  %v2928 = vpop.f32.mrf.mxu0
  %v2929 = vadd.f32 %v2880, %v2928
  %2930 = vdwg.mxu0
  %2931 = vmatpush.bf16.msra.mxu0 %v2070
  %2932 = vmatpush.bf16.msra.mxu0 %v2068
  %2933 = vmatpush.bf16.msra.mxu0 %v2066
  %2934 = vmatpush.bf16.msra.mxu0 %v2064
  %2935 = vmatpush.bf16.msra.mxu0 %v2062
  %2936 = vmatpush.bf16.msra.mxu0 %v2060
  %2937 = vmatpush.bf16.msra.mxu0 %v2058
  %2938 = vmatpush.bf16.msra.mxu0 %v2056
  %2939 = vmatmul.bf16.gmra.mxu0 %v867
  %v2940 = vpop.f32.mrf.mxu0
  %v2941 = vadd.f32 %v2892, %v2940
  %v2942 = vpop.f32.mrf.mxu0
  %v2943 = vadd.f32 %v2894, %v2942
  %2944 = vmatmul.bf16.gmra.mxu0 %v883
  %v2945 = vpop.f32.mrf.mxu0
  %v2946 = vadd.f32 %v2897, %v2945
  %v2947 = vpop.f32.mrf.mxu0
  %v2948 = vadd.f32 %v2899, %v2947
  %2949 = vmatmul.bf16.gmra.mxu0 %v899
  %v2950 = vpop.f32.mrf.mxu0
  %v2951 = vadd.f32 %v2902, %v2950
  %v2952 = vpop.f32.mrf.mxu0
  %v2953 = vadd.f32 %v2904, %v2952
  %2954 = vmatmul.bf16.gmra.mxu0 %v915
  %v2955 = vpop.f32.mrf.mxu0
  %v2956 = vadd.f32 %v2907, %v2955
  %v2957 = vpop.f32.mrf.mxu0
  %v2958 = vadd.f32 %v2909, %v2957
  %2959 = vmatmul.bf16.gmra.mxu0 %v931
  %v2960 = vpop.f32.mrf.mxu0
  %v2961 = vadd.f32 %v2912, %v2960
  %v2962 = vpop.f32.mrf.mxu0
  %v2963 = vadd.f32 %v2914, %v2962
  %2964 = vmatmul.bf16.gmra.mxu0 %v947
  %v2965 = vpop.f32.mrf.mxu0
  %v2966 = vadd.f32 %v2917, %v2965
  %v2967 = vpop.f32.mrf.mxu0
  %v2968 = vadd.f32 %v2919, %v2967
  %2969 = vmatmul.bf16.gmra.mxu0 %v963
  %v2970 = vpop.f32.mrf.mxu0
  %v2971 = vadd.f32 %v2922, %v2970
  %v2972 = vpop.f32.mrf.mxu0
  %v2973 = vadd.f32 %v2924, %v2972
  %2974 = vmatmul.bf16.gmra.mxu0 %v979
  %v2975 = vpop.f32.mrf.mxu0
  %v2976 = vadd.f32 %v2927, %v2975
  %v2977 = vpop.f32.mrf.mxu0
  %v2978 = vadd.f32 %v2929, %v2977
  %2979 = vdwg.mxu0
  %2980 = vmatpush.bf16.msra.mxu0 %v2086
  %2981 = vmatpush.bf16.msra.mxu0 %v2084
  %2982 = vmatpush.bf16.msra.mxu0 %v2082
  %2983 = vmatpush.bf16.msra.mxu0 %v2080
  %2984 = vmatpush.bf16.msra.mxu0 %v2078
  %2985 = vmatpush.bf16.msra.mxu0 %v2076
  %2986 = vmatpush.bf16.msra.mxu0 %v2074
  %2987 = vmatpush.bf16.msra.mxu0 %v2072
  %2988 = vmatmul.bf16.gmra.mxu0 %v868
  %v2989 = vpop.f32.mrf.mxu0
  %v2990 = vadd.f32 %v2941, %v2989
  %v2991 = vpop.f32.mrf.mxu0
  %v2992 = vadd.f32 %v2943, %v2991
  %2993 = vmatmul.bf16.gmra.mxu0 %v884
  %v2994 = vpop.f32.mrf.mxu0
  %v2995 = vadd.f32 %v2946, %v2994
  %v2996 = vpop.f32.mrf.mxu0
  %v2997 = vadd.f32 %v2948, %v2996
  %2998 = vmatmul.bf16.gmra.mxu0 %v900
  %v2999 = vpop.f32.mrf.mxu0
  %v3000 = vadd.f32 %v2951, %v2999
  %v3001 = vpop.f32.mrf.mxu0
  %v3002 = vadd.f32 %v2953, %v3001
  %3003 = vmatmul.bf16.gmra.mxu0 %v916
  %v3004 = vpop.f32.mrf.mxu0
  %v3005 = vadd.f32 %v2956, %v3004
  %v3006 = vpop.f32.mrf.mxu0
  %v3007 = vadd.f32 %v2958, %v3006
  %3008 = vmatmul.bf16.gmra.mxu0 %v932
  %v3009 = vpop.f32.mrf.mxu0
  %v3010 = vadd.f32 %v2961, %v3009
  %v3011 = vpop.f32.mrf.mxu0
  %v3012 = vadd.f32 %v2963, %v3011
  %3013 = vmatmul.bf16.gmra.mxu0 %v948
  %v3014 = vpop.f32.mrf.mxu0
  %v3015 = vadd.f32 %v2966, %v3014
  %v3016 = vpop.f32.mrf.mxu0
  %v3017 = vadd.f32 %v2968, %v3016
  %3018 = vmatmul.bf16.gmra.mxu0 %v964
  %v3019 = vpop.f32.mrf.mxu0
  %v3020 = vadd.f32 %v2971, %v3019
  %v3021 = vpop.f32.mrf.mxu0
  %v3022 = vadd.f32 %v2973, %v3021
  %3023 = vmatmul.bf16.gmra.mxu0 %v980
  %v3024 = vpop.f32.mrf.mxu0
  %v3025 = vadd.f32 %v2976, %v3024
  %v3026 = vpop.f32.mrf.mxu0
  %v3027 = vadd.f32 %v2978, %v3026
  %3028 = vdwg.mxu0
  %3029 = vmatpush.bf16.msra.mxu0 %v2102
  %3030 = vmatpush.bf16.msra.mxu0 %v2100
  %3031 = vmatpush.bf16.msra.mxu0 %v2098
  %3032 = vmatpush.bf16.msra.mxu0 %v2096
  %3033 = vmatpush.bf16.msra.mxu0 %v2094
  %3034 = vmatpush.bf16.msra.mxu0 %v2092
  %3035 = vmatpush.bf16.msra.mxu0 %v2090
  %3036 = vmatpush.bf16.msra.mxu0 %v2088
  %3037 = vmatmul.bf16.gmra.mxu0 %v869
  %v3038 = vpop.f32.mrf.mxu0
  %v3039 = vadd.f32 %v2990, %v3038
  %v3040 = vpop.f32.mrf.mxu0
  %v3041 = vadd.f32 %v2992, %v3040
  %3042 = vmatmul.bf16.gmra.mxu0 %v885
  %v3043 = vpop.f32.mrf.mxu0
  %v3044 = vadd.f32 %v2995, %v3043
  %v3045 = vpop.f32.mrf.mxu0
  %v3046 = vadd.f32 %v2997, %v3045
  %3047 = vmatmul.bf16.gmra.mxu0 %v901
  %v3048 = vpop.f32.mrf.mxu0
  %v3049 = vadd.f32 %v3000, %v3048
  %v3050 = vpop.f32.mrf.mxu0
  %v3051 = vadd.f32 %v3002, %v3050
  %3052 = vmatmul.bf16.gmra.mxu0 %v917
  %v3053 = vpop.f32.mrf.mxu0
  %v3054 = vadd.f32 %v3005, %v3053
  %v3055 = vpop.f32.mrf.mxu0
  %v3056 = vadd.f32 %v3007, %v3055
  %3057 = vmatmul.bf16.gmra.mxu0 %v933
  %v3058 = vpop.f32.mrf.mxu0
  %v3059 = vadd.f32 %v3010, %v3058
  %v3060 = vpop.f32.mrf.mxu0
  %v3061 = vadd.f32 %v3012, %v3060
  %3062 = vmatmul.bf16.gmra.mxu0 %v949
  %v3063 = vpop.f32.mrf.mxu0
  %v3064 = vadd.f32 %v3015, %v3063
  %v3065 = vpop.f32.mrf.mxu0
  %v3066 = vadd.f32 %v3017, %v3065
  %3067 = vmatmul.bf16.gmra.mxu0 %v965
  %v3068 = vpop.f32.mrf.mxu0
  %v3069 = vadd.f32 %v3020, %v3068
  %v3070 = vpop.f32.mrf.mxu0
  %v3071 = vadd.f32 %v3022, %v3070
  %3072 = vmatmul.bf16.gmra.mxu0 %v981
  %v3073 = vpop.f32.mrf.mxu0
  %v3074 = vadd.f32 %v3025, %v3073
  %v3075 = vpop.f32.mrf.mxu0
  %v3076 = vadd.f32 %v3027, %v3075
  %3077 = vdwg.mxu0
  %3078 = vmatpush.bf16.msra.mxu0 %v2118
  %3079 = vmatpush.bf16.msra.mxu0 %v2116
  %3080 = vmatpush.bf16.msra.mxu0 %v2114
  %3081 = vmatpush.bf16.msra.mxu0 %v2112
  %3082 = vmatpush.bf16.msra.mxu0 %v2110
  %3083 = vmatpush.bf16.msra.mxu0 %v2108
  %3084 = vmatpush.bf16.msra.mxu0 %v2106
  %3085 = vmatpush.bf16.msra.mxu0 %v2104
  %3086 = vmatmul.bf16.gmra.mxu0 %v870
  %v3087 = vpop.f32.mrf.mxu0
  %v3088 = vadd.f32 %v3039, %v3087
  %v3089 = vpop.f32.mrf.mxu0
  %v3090 = vadd.f32 %v3041, %v3089
  %3091 = vmatmul.bf16.gmra.mxu0 %v886
  %v3092 = vpop.f32.mrf.mxu0
  %v3093 = vadd.f32 %v3044, %v3092
  %v3094 = vpop.f32.mrf.mxu0
  %v3095 = vadd.f32 %v3046, %v3094
  %3096 = vmatmul.bf16.gmra.mxu0 %v902
  %v3097 = vpop.f32.mrf.mxu0
  %v3098 = vadd.f32 %v3049, %v3097
  %v3099 = vpop.f32.mrf.mxu0
  %v3100 = vadd.f32 %v3051, %v3099
  %3101 = vmatmul.bf16.gmra.mxu0 %v918
  %v3102 = vpop.f32.mrf.mxu0
  %v3103 = vadd.f32 %v3054, %v3102
  %v3104 = vpop.f32.mrf.mxu0
  %v3105 = vadd.f32 %v3056, %v3104
  %3106 = vmatmul.bf16.gmra.mxu0 %v934
  %v3107 = vpop.f32.mrf.mxu0
  %v3108 = vadd.f32 %v3059, %v3107
  %v3109 = vpop.f32.mrf.mxu0
  %v3110 = vadd.f32 %v3061, %v3109
  %3111 = vmatmul.bf16.gmra.mxu0 %v950
  %v3112 = vpop.f32.mrf.mxu0
  %v3113 = vadd.f32 %v3064, %v3112
  %v3114 = vpop.f32.mrf.mxu0
  %v3115 = vadd.f32 %v3066, %v3114
  %3116 = vmatmul.bf16.gmra.mxu0 %v966
  %v3117 = vpop.f32.mrf.mxu0
  %v3118 = vadd.f32 %v3069, %v3117
  %v3119 = vpop.f32.mrf.mxu0
  %v3120 = vadd.f32 %v3071, %v3119
  %3121 = vmatmul.bf16.gmra.mxu0 %v982
  %v3122 = vpop.f32.mrf.mxu0
  %v3123 = vadd.f32 %v3074, %v3122
  %v3124 = vpop.f32.mrf.mxu0
  %v3125 = vadd.f32 %v3076, %v3124
  %3126 = vdwg.mxu0
  %3127 = vmatpush.bf16.msra.mxu0 %v2134
  %3128 = vmatpush.bf16.msra.mxu0 %v2132
  %3129 = vmatpush.bf16.msra.mxu0 %v2130
  %3130 = vmatpush.bf16.msra.mxu0 %v2128
  %3131 = vmatpush.bf16.msra.mxu0 %v2126
  %3132 = vmatpush.bf16.msra.mxu0 %v2124
  %3133 = vmatpush.bf16.msra.mxu0 %v2122
  %3134 = vmatpush.bf16.msra.mxu0 %v2120
  %3135 = vmatmul.bf16.gmra.mxu0 %v871
  %v3136 = vpop.f32.mrf.mxu0
  %v3137 = vadd.f32 %v3088, %v3136
  %v3138 = vpop.f32.mrf.mxu0
  %v3139 = vadd.f32 %v3090, %v3138
  %3140 = vmatmul.bf16.gmra.mxu0 %v887
  %v3141 = vpop.f32.mrf.mxu0
  %v3142 = vadd.f32 %v3093, %v3141
  %v3143 = vpop.f32.mrf.mxu0
  %v3144 = vadd.f32 %v3095, %v3143
  %3145 = vmatmul.bf16.gmra.mxu0 %v903
  %v3146 = vpop.f32.mrf.mxu0
  %v3147 = vadd.f32 %v3098, %v3146
  %v3148 = vpop.f32.mrf.mxu0
  %v3149 = vadd.f32 %v3100, %v3148
  %3150 = vmatmul.bf16.gmra.mxu0 %v919
  %v3151 = vpop.f32.mrf.mxu0
  %v3152 = vadd.f32 %v3103, %v3151
  %v3153 = vpop.f32.mrf.mxu0
  %v3154 = vadd.f32 %v3105, %v3153
  %3155 = vmatmul.bf16.gmra.mxu0 %v935
  %v3156 = vpop.f32.mrf.mxu0
  %v3157 = vadd.f32 %v3108, %v3156
  %v3158 = vpop.f32.mrf.mxu0
  %v3159 = vadd.f32 %v3110, %v3158
  %3160 = vmatmul.bf16.gmra.mxu0 %v951
  %v3161 = vpop.f32.mrf.mxu0
  %v3162 = vadd.f32 %v3113, %v3161
  %v3163 = vpop.f32.mrf.mxu0
  %v3164 = vadd.f32 %v3115, %v3163
  %3165 = vmatmul.bf16.gmra.mxu0 %v967
  %v3166 = vpop.f32.mrf.mxu0
  %v3167 = vadd.f32 %v3118, %v3166
  %v3168 = vpop.f32.mrf.mxu0
  %v3169 = vadd.f32 %v3120, %v3168
  %3170 = vmatmul.bf16.gmra.mxu0 %v983
  %v3171 = vpop.f32.mrf.mxu0
  %v3172 = vadd.f32 %v3123, %v3171
  %v3173 = vpop.f32.mrf.mxu0
  %v3174 = vadd.f32 %v3125, %v3173
  %3175 = vdwg.mxu0
  %3176 = vmatpush.bf16.msra.mxu0 %v1895
  %3177 = vmatpush.bf16.msra.mxu0 %v1893
  %3178 = vmatpush.bf16.msra.mxu0 %v1891
  %3179 = vmatpush.bf16.msra.mxu0 %v1889
  %3180 = vmatpush.bf16.msra.mxu0 %v1887
  %3181 = vmatpush.bf16.msra.mxu0 %v1885
  %3182 = vmatpush.bf16.msra.mxu0 %v1883
  %3183 = vmatpush.bf16.msra.mxu0 %v1881
  %3184 = vmatmul.bf16.gmra.mxu0 %v856
  %v3185 = vpop.f32.mrf.mxu0
  %v3186 = vadd.f32 0.0, %v3185
  %v3187 = vpop.f32.mrf.mxu0
  %v3188 = vadd.f32 0.0, %v3187
  %3189 = vmatmul.bf16.gmra.mxu0 %v872
  %v3190 = vpop.f32.mrf.mxu0
  %v3191 = vadd.f32 0.0, %v3190
  %v3192 = vpop.f32.mrf.mxu0
  %v3193 = vadd.f32 0.0, %v3192
  %3194 = vmatmul.bf16.gmra.mxu0 %v888
  %v3195 = vpop.f32.mrf.mxu0
  %v3196 = vadd.f32 0.0, %v3195
  %v3197 = vpop.f32.mrf.mxu0
  %v3198 = vadd.f32 0.0, %v3197
  %3199 = vmatmul.bf16.gmra.mxu0 %v904
  %v3200 = vpop.f32.mrf.mxu0
  %v3201 = vadd.f32 0.0, %v3200
  %v3202 = vpop.f32.mrf.mxu0
  %v3203 = vadd.f32 0.0, %v3202
  %3204 = vmatmul.bf16.gmra.mxu0 %v920
  %v3205 = vpop.f32.mrf.mxu0
  %v3206 = vadd.f32 0.0, %v3205
  %v3207 = vpop.f32.mrf.mxu0
  %v3208 = vadd.f32 0.0, %v3207
  %3209 = vmatmul.bf16.gmra.mxu0 %v936
  %v3210 = vpop.f32.mrf.mxu0
  %v3211 = vadd.f32 0.0, %v3210
  %v3212 = vpop.f32.mrf.mxu0
  %v3213 = vadd.f32 0.0, %v3212
  %3214 = vmatmul.bf16.gmra.mxu0 %v952
  %v3215 = vpop.f32.mrf.mxu0
  %v3216 = vadd.f32 0.0, %v3215
  %v3217 = vpop.f32.mrf.mxu0
  %v3218 = vadd.f32 0.0, %v3217
  %3219 = vmatmul.bf16.gmra.mxu0 %v968
  %v3220 = vpop.f32.mrf.mxu0
  %v3221 = vadd.f32 0.0, %v3220
  %v3222 = vpop.f32.mrf.mxu0
  %v3223 = vadd.f32 0.0, %v3222
  %3224 = vdwg.mxu0
  %3225 = vmatpush.bf16.msra.mxu0 %v1911
  %3226 = vmatpush.bf16.msra.mxu0 %v1909
  %3227 = vmatpush.bf16.msra.mxu0 %v1907
  %3228 = vmatpush.bf16.msra.mxu0 %v1905
  %3229 = vmatpush.bf16.msra.mxu0 %v1903
  %3230 = vmatpush.bf16.msra.mxu0 %v1901
  %3231 = vmatpush.bf16.msra.mxu0 %v1899
  %3232 = vmatpush.bf16.msra.mxu0 %v1897
  %3233 = vmatmul.bf16.gmra.mxu0 %v857
  %v3234 = vpop.f32.mrf.mxu0
  %v3235 = vadd.f32 %v3186, %v3234
  %v3236 = vpop.f32.mrf.mxu0
  %v3237 = vadd.f32 %v3188, %v3236
  %3238 = vmatmul.bf16.gmra.mxu0 %v873
  %v3239 = vpop.f32.mrf.mxu0
  %v3240 = vadd.f32 %v3191, %v3239
  %v3241 = vpop.f32.mrf.mxu0
  %v3242 = vadd.f32 %v3193, %v3241
  %3243 = vmatmul.bf16.gmra.mxu0 %v889
  %v3244 = vpop.f32.mrf.mxu0
  %v3245 = vadd.f32 %v3196, %v3244
  %v3246 = vpop.f32.mrf.mxu0
  %v3247 = vadd.f32 %v3198, %v3246
  %3248 = vmatmul.bf16.gmra.mxu0 %v905
  %v3249 = vpop.f32.mrf.mxu0
  %v3250 = vadd.f32 %v3201, %v3249
  %v3251 = vpop.f32.mrf.mxu0
  %v3252 = vadd.f32 %v3203, %v3251
  %3253 = vmatmul.bf16.gmra.mxu0 %v921
  %v3254 = vpop.f32.mrf.mxu0
  %v3255 = vadd.f32 %v3206, %v3254
  %v3256 = vpop.f32.mrf.mxu0
  %v3257 = vadd.f32 %v3208, %v3256
  %3258 = vmatmul.bf16.gmra.mxu0 %v937
  %v3259 = vpop.f32.mrf.mxu0
  %v3260 = vadd.f32 %v3211, %v3259
  %v3261 = vpop.f32.mrf.mxu0
  %v3262 = vadd.f32 %v3213, %v3261
  %3263 = vmatmul.bf16.gmra.mxu0 %v953
  %v3264 = vpop.f32.mrf.mxu0
  %v3265 = vadd.f32 %v3216, %v3264
  %v3266 = vpop.f32.mrf.mxu0
  %v3267 = vadd.f32 %v3218, %v3266
  %3268 = vmatmul.bf16.gmra.mxu0 %v969
  %v3269 = vpop.f32.mrf.mxu0
  %v3270 = vadd.f32 %v3221, %v3269
  %v3271 = vpop.f32.mrf.mxu0
  %v3272 = vadd.f32 %v3223, %v3271
  %3273 = vdwg.mxu0
  %3274 = vmatpush.bf16.msra.mxu0 %v1927
  %3275 = vmatpush.bf16.msra.mxu0 %v1925
  %3276 = vmatpush.bf16.msra.mxu0 %v1923
  %3277 = vmatpush.bf16.msra.mxu0 %v1921
  %3278 = vmatpush.bf16.msra.mxu0 %v1919
  %3279 = vmatpush.bf16.msra.mxu0 %v1917
  %3280 = vmatpush.bf16.msra.mxu0 %v1915
  %3281 = vmatpush.bf16.msra.mxu0 %v1913
  %3282 = vmatmul.bf16.gmra.mxu0 %v858
  %v3283 = vpop.f32.mrf.mxu0
  %v3284 = vadd.f32 %v3235, %v3283
  %v3285 = vpop.f32.mrf.mxu0
  %v3286 = vadd.f32 %v3237, %v3285
  %3287 = vmatmul.bf16.gmra.mxu0 %v874
  %v3288 = vpop.f32.mrf.mxu0
  %v3289 = vadd.f32 %v3240, %v3288
  %v3290 = vpop.f32.mrf.mxu0
  %v3291 = vadd.f32 %v3242, %v3290
  %3292 = vmatmul.bf16.gmra.mxu0 %v890
  %v3293 = vpop.f32.mrf.mxu0
  %v3294 = vadd.f32 %v3245, %v3293
  %v3295 = vpop.f32.mrf.mxu0
  %v3296 = vadd.f32 %v3247, %v3295
  %3297 = vmatmul.bf16.gmra.mxu0 %v906
  %v3298 = vpop.f32.mrf.mxu0
  %v3299 = vadd.f32 %v3250, %v3298
  %v3300 = vpop.f32.mrf.mxu0
  %v3301 = vadd.f32 %v3252, %v3300
  %3302 = vmatmul.bf16.gmra.mxu0 %v922
  %v3303 = vpop.f32.mrf.mxu0
  %v3304 = vadd.f32 %v3255, %v3303
  %v3305 = vpop.f32.mrf.mxu0
  %v3306 = vadd.f32 %v3257, %v3305
  %3307 = vmatmul.bf16.gmra.mxu0 %v938
  %v3308 = vpop.f32.mrf.mxu0
  %v3309 = vadd.f32 %v3260, %v3308
  %v3310 = vpop.f32.mrf.mxu0
  %v3311 = vadd.f32 %v3262, %v3310
  %3312 = vmatmul.bf16.gmra.mxu0 %v954
  %v3313 = vpop.f32.mrf.mxu0
  %v3314 = vadd.f32 %v3265, %v3313
  %v3315 = vpop.f32.mrf.mxu0
  %v3316 = vadd.f32 %v3267, %v3315
  %3317 = vmatmul.bf16.gmra.mxu0 %v970
  %v3318 = vpop.f32.mrf.mxu0
  %v3319 = vadd.f32 %v3270, %v3318
  %v3320 = vpop.f32.mrf.mxu0
  %v3321 = vadd.f32 %v3272, %v3320
  %3322 = vdwg.mxu0
  %3323 = vmatpush.bf16.msra.mxu0 %v1943
  %3324 = vmatpush.bf16.msra.mxu0 %v1941
  %3325 = vmatpush.bf16.msra.mxu0 %v1939
  %3326 = vmatpush.bf16.msra.mxu0 %v1937
  %3327 = vmatpush.bf16.msra.mxu0 %v1935
  %3328 = vmatpush.bf16.msra.mxu0 %v1933
  %3329 = vmatpush.bf16.msra.mxu0 %v1931
  %3330 = vmatpush.bf16.msra.mxu0 %v1929
  %3331 = vmatmul.bf16.gmra.mxu0 %v859
  %v3332 = vpop.f32.mrf.mxu0
  %v3333 = vadd.f32 %v3284, %v3332
  %v3334 = vpop.f32.mrf.mxu0
  %v3335 = vadd.f32 %v3286, %v3334
  %3336 = vmatmul.bf16.gmra.mxu0 %v875
  %v3337 = vpop.f32.mrf.mxu0
  %v3338 = vadd.f32 %v3289, %v3337
  %v3339 = vpop.f32.mrf.mxu0
  %v3340 = vadd.f32 %v3291, %v3339
  %3341 = vmatmul.bf16.gmra.mxu0 %v891
  %v3342 = vpop.f32.mrf.mxu0
  %v3343 = vadd.f32 %v3294, %v3342
  %v3344 = vpop.f32.mrf.mxu0
  %v3345 = vadd.f32 %v3296, %v3344
  %3346 = vmatmul.bf16.gmra.mxu0 %v907
  %v3347 = vpop.f32.mrf.mxu0
  %v3348 = vadd.f32 %v3299, %v3347
  %v3349 = vpop.f32.mrf.mxu0
  %v3350 = vadd.f32 %v3301, %v3349
  %3351 = vmatmul.bf16.gmra.mxu0 %v923
  %v3352 = vpop.f32.mrf.mxu0
  %v3353 = vadd.f32 %v3304, %v3352
  %v3354 = vpop.f32.mrf.mxu0
  %v3355 = vadd.f32 %v3306, %v3354
  %3356 = vmatmul.bf16.gmra.mxu0 %v939
  %v3357 = vpop.f32.mrf.mxu0
  %v3358 = vadd.f32 %v3309, %v3357
  %v3359 = vpop.f32.mrf.mxu0
  %v3360 = vadd.f32 %v3311, %v3359
  %3361 = vmatmul.bf16.gmra.mxu0 %v955
  %v3362 = vpop.f32.mrf.mxu0
  %v3363 = vadd.f32 %v3314, %v3362
  %v3364 = vpop.f32.mrf.mxu0
  %v3365 = vadd.f32 %v3316, %v3364
  %3366 = vmatmul.bf16.gmra.mxu0 %v971
  %v3367 = vpop.f32.mrf.mxu0
  %v3368 = vadd.f32 %v3319, %v3367
  %v3369 = vpop.f32.mrf.mxu0
  %v3370 = vadd.f32 %v3321, %v3369
  %3371 = vdwg.mxu0
  %3372 = vmatpush.bf16.msra.mxu0 %v1959
  %3373 = vmatpush.bf16.msra.mxu0 %v1957
  %3374 = vmatpush.bf16.msra.mxu0 %v1955
  %3375 = vmatpush.bf16.msra.mxu0 %v1953
  %3376 = vmatpush.bf16.msra.mxu0 %v1951
  %3377 = vmatpush.bf16.msra.mxu0 %v1949
  %3378 = vmatpush.bf16.msra.mxu0 %v1947
  %3379 = vmatpush.bf16.msra.mxu0 %v1945
  %3380 = vmatmul.bf16.gmra.mxu0 %v860
  %v3381 = vpop.f32.mrf.mxu0
  %v3382 = vadd.f32 %v3333, %v3381
  %v3383 = vpop.f32.mrf.mxu0
  %v3384 = vadd.f32 %v3335, %v3383
  %3385 = vmatmul.bf16.gmra.mxu0 %v876
  %v3386 = vpop.f32.mrf.mxu0
  %v3387 = vadd.f32 %v3338, %v3386
  %v3388 = vpop.f32.mrf.mxu0
  %v3389 = vadd.f32 %v3340, %v3388
  %3390 = vmatmul.bf16.gmra.mxu0 %v892
  %v3391 = vpop.f32.mrf.mxu0
  %v3392 = vadd.f32 %v3343, %v3391
  %v3393 = vpop.f32.mrf.mxu0
  %v3394 = vadd.f32 %v3345, %v3393
  %3395 = vmatmul.bf16.gmra.mxu0 %v908
  %v3396 = vpop.f32.mrf.mxu0
  %v3397 = vadd.f32 %v3348, %v3396
  %v3398 = vpop.f32.mrf.mxu0
  %v3399 = vadd.f32 %v3350, %v3398
  %3400 = vmatmul.bf16.gmra.mxu0 %v924
  %v3401 = vpop.f32.mrf.mxu0
  %v3402 = vadd.f32 %v3353, %v3401
  %v3403 = vpop.f32.mrf.mxu0
  %v3404 = vadd.f32 %v3355, %v3403
  %3405 = vmatmul.bf16.gmra.mxu0 %v940
  %v3406 = vpop.f32.mrf.mxu0
  %v3407 = vadd.f32 %v3358, %v3406
  %v3408 = vpop.f32.mrf.mxu0
  %v3409 = vadd.f32 %v3360, %v3408
  %3410 = vmatmul.bf16.gmra.mxu0 %v956
  %v3411 = vpop.f32.mrf.mxu0
  %v3412 = vadd.f32 %v3363, %v3411
  %v3413 = vpop.f32.mrf.mxu0
  %v3414 = vadd.f32 %v3365, %v3413
  %3415 = vmatmul.bf16.gmra.mxu0 %v972
  %v3416 = vpop.f32.mrf.mxu0
  %v3417 = vadd.f32 %v3368, %v3416
  %v3418 = vpop.f32.mrf.mxu0
  %v3419 = vadd.f32 %v3370, %v3418
  %3420 = vdwg.mxu0
  %3421 = vmatpush.bf16.msra.mxu0 %v1975
  %3422 = vmatpush.bf16.msra.mxu0 %v1973
  %3423 = vmatpush.bf16.msra.mxu0 %v1971
  %3424 = vmatpush.bf16.msra.mxu0 %v1969
  %3425 = vmatpush.bf16.msra.mxu0 %v1967
  %3426 = vmatpush.bf16.msra.mxu0 %v1965
  %3427 = vmatpush.bf16.msra.mxu0 %v1963
  %3428 = vmatpush.bf16.msra.mxu0 %v1961
  %3429 = vmatmul.bf16.gmra.mxu0 %v861
  %v3430 = vpop.f32.mrf.mxu0
  %v3431 = vadd.f32 %v3382, %v3430
  %v3432 = vpop.f32.mrf.mxu0
  %v3433 = vadd.f32 %v3384, %v3432
  %3434 = vmatmul.bf16.gmra.mxu0 %v877
  %v3435 = vpop.f32.mrf.mxu0
  %v3436 = vadd.f32 %v3387, %v3435
  %v3437 = vpop.f32.mrf.mxu0
  %v3438 = vadd.f32 %v3389, %v3437
  %3439 = vmatmul.bf16.gmra.mxu0 %v893
  %v3440 = vpop.f32.mrf.mxu0
  %v3441 = vadd.f32 %v3392, %v3440
  %v3442 = vpop.f32.mrf.mxu0
  %v3443 = vadd.f32 %v3394, %v3442
  %3444 = vmatmul.bf16.gmra.mxu0 %v909
  %v3445 = vpop.f32.mrf.mxu0
  %v3446 = vadd.f32 %v3397, %v3445
  %v3447 = vpop.f32.mrf.mxu0
  %v3448 = vadd.f32 %v3399, %v3447
  %3449 = vmatmul.bf16.gmra.mxu0 %v925
  %v3450 = vpop.f32.mrf.mxu0
  %v3451 = vadd.f32 %v3402, %v3450
  %v3452 = vpop.f32.mrf.mxu0
  %v3453 = vadd.f32 %v3404, %v3452
  %3454 = vmatmul.bf16.gmra.mxu0 %v941
  %v3455 = vpop.f32.mrf.mxu0
  %v3456 = vadd.f32 %v3407, %v3455
  %v3457 = vpop.f32.mrf.mxu0
  %v3458 = vadd.f32 %v3409, %v3457
  %3459 = vmatmul.bf16.gmra.mxu0 %v957
  %v3460 = vpop.f32.mrf.mxu0
  %v3461 = vadd.f32 %v3412, %v3460
  %v3462 = vpop.f32.mrf.mxu0
  %v3463 = vadd.f32 %v3414, %v3462
  %3464 = vmatmul.bf16.gmra.mxu0 %v973
  %v3465 = vpop.f32.mrf.mxu0
  %v3466 = vadd.f32 %v3417, %v3465
  %v3467 = vpop.f32.mrf.mxu0
  %v3468 = vadd.f32 %v3419, %v3467
  %3469 = vdwg.mxu0
  %3470 = vmatpush.bf16.msra.mxu0 %v1991
  %3471 = vmatpush.bf16.msra.mxu0 %v1989
  %3472 = vmatpush.bf16.msra.mxu0 %v1987
  %3473 = vmatpush.bf16.msra.mxu0 %v1985
  %3474 = vmatpush.bf16.msra.mxu0 %v1983
  %3475 = vmatpush.bf16.msra.mxu0 %v1981
  %3476 = vmatpush.bf16.msra.mxu0 %v1979
  %3477 = vmatpush.bf16.msra.mxu0 %v1977
  %3478 = vmatmul.bf16.gmra.mxu0 %v862
  %v3479 = vpop.f32.mrf.mxu0
  %v3480 = vadd.f32 %v3431, %v3479
  %v3481 = vpop.f32.mrf.mxu0
  %v3482 = vadd.f32 %v3433, %v3481
  %3483 = vmatmul.bf16.gmra.mxu0 %v878
  %v3484 = vpop.f32.mrf.mxu0
  %v3485 = vadd.f32 %v3436, %v3484
  %v3486 = vpop.f32.mrf.mxu0
  %v3487 = vadd.f32 %v3438, %v3486
  %3488 = vmatmul.bf16.gmra.mxu0 %v894
  %v3489 = vpop.f32.mrf.mxu0
  %v3490 = vadd.f32 %v3441, %v3489
  %v3491 = vpop.f32.mrf.mxu0
  %v3492 = vadd.f32 %v3443, %v3491
  %3493 = vmatmul.bf16.gmra.mxu0 %v910
  %v3494 = vpop.f32.mrf.mxu0
  %v3495 = vadd.f32 %v3446, %v3494
  %v3496 = vpop.f32.mrf.mxu0
  %v3497 = vadd.f32 %v3448, %v3496
  %3498 = vmatmul.bf16.gmra.mxu0 %v926
  %v3499 = vpop.f32.mrf.mxu0
  %v3500 = vadd.f32 %v3451, %v3499
  %v3501 = vpop.f32.mrf.mxu0
  %v3502 = vadd.f32 %v3453, %v3501
  %3503 = vmatmul.bf16.gmra.mxu0 %v942
  %v3504 = vpop.f32.mrf.mxu0
  %v3505 = vadd.f32 %v3456, %v3504
  %v3506 = vpop.f32.mrf.mxu0
  %v3507 = vadd.f32 %v3458, %v3506
  %3508 = vmatmul.bf16.gmra.mxu0 %v958
  %v3509 = vpop.f32.mrf.mxu0
  %v3510 = vadd.f32 %v3461, %v3509
  %v3511 = vpop.f32.mrf.mxu0
  %v3512 = vadd.f32 %v3463, %v3511
  %3513 = vmatmul.bf16.gmra.mxu0 %v974
  %v3514 = vpop.f32.mrf.mxu0
  %v3515 = vadd.f32 %v3466, %v3514
  %v3516 = vpop.f32.mrf.mxu0
  %v3517 = vadd.f32 %v3468, %v3516
  %3518 = vdwg.mxu0
  %3519 = vmatpush.bf16.msra.mxu0 %v2007
  %3520 = vmatpush.bf16.msra.mxu0 %v2005
  %3521 = vmatpush.bf16.msra.mxu0 %v2003
  %3522 = vmatpush.bf16.msra.mxu0 %v2001
  %3523 = vmatpush.bf16.msra.mxu0 %v1999
  %3524 = vmatpush.bf16.msra.mxu0 %v1997
  %3525 = vmatpush.bf16.msra.mxu0 %v1995
  %3526 = vmatpush.bf16.msra.mxu0 %v1993
  %3527 = vmatmul.bf16.gmra.mxu0 %v863
  %v3528 = vpop.f32.mrf.mxu0
  %v3529 = vadd.f32 %v3480, %v3528
  %v3530 = vpop.f32.mrf.mxu0
  %v3531 = vadd.f32 %v3482, %v3530
  %3532 = vmatmul.bf16.gmra.mxu0 %v879
  %v3533 = vpop.f32.mrf.mxu0
  %v3534 = vadd.f32 %v3485, %v3533
  %v3535 = vpop.f32.mrf.mxu0
  %v3536 = vadd.f32 %v3487, %v3535
  %3537 = vmatmul.bf16.gmra.mxu0 %v895
  %v3538 = vpop.f32.mrf.mxu0
  %v3539 = vadd.f32 %v3490, %v3538
  %v3540 = vpop.f32.mrf.mxu0
  %v3541 = vadd.f32 %v3492, %v3540
  %3542 = vmatmul.bf16.gmra.mxu0 %v911
  %v3543 = vpop.f32.mrf.mxu0
  %v3544 = vadd.f32 %v3495, %v3543
  %v3545 = vpop.f32.mrf.mxu0
  %v3546 = vadd.f32 %v3497, %v3545
  %3547 = vmatmul.bf16.gmra.mxu0 %v927
  %v3548 = vpop.f32.mrf.mxu0
  %v3549 = vadd.f32 %v3500, %v3548
  %v3550 = vpop.f32.mrf.mxu0
  %v3551 = vadd.f32 %v3502, %v3550
  %3552 = vmatmul.bf16.gmra.mxu0 %v943
  %v3553 = vpop.f32.mrf.mxu0
  %v3554 = vadd.f32 %v3505, %v3553
  %v3555 = vpop.f32.mrf.mxu0
  %v3556 = vadd.f32 %v3507, %v3555
  %3557 = vmatmul.bf16.gmra.mxu0 %v959
  %v3558 = vpop.f32.mrf.mxu0
  %v3559 = vadd.f32 %v3510, %v3558
  %v3560 = vpop.f32.mrf.mxu0
  %v3561 = vadd.f32 %v3512, %v3560
  %3562 = vmatmul.bf16.gmra.mxu0 %v975
  %v3563 = vpop.f32.mrf.mxu0
  %v3564 = vadd.f32 %v3515, %v3563
  %v3565 = vpop.f32.mrf.mxu0
  %v3566 = vadd.f32 %v3517, %v3565
  %3567 = vdwg.mxu0
  %3568 = vmatpush.bf16.msra.mxu0 %v2023
  %3569 = vmatpush.bf16.msra.mxu0 %v2021
  %3570 = vmatpush.bf16.msra.mxu0 %v2019
  %3571 = vmatpush.bf16.msra.mxu0 %v2017
  %3572 = vmatpush.bf16.msra.mxu0 %v2015
  %3573 = vmatpush.bf16.msra.mxu0 %v2013
  %3574 = vmatpush.bf16.msra.mxu0 %v2011
  %3575 = vmatpush.bf16.msra.mxu0 %v2009
  %3576 = vmatmul.bf16.gmra.mxu0 %v864
  %v3577 = vpop.f32.mrf.mxu0
  %v3578 = vadd.f32 %v3529, %v3577
  %v3579 = vpop.f32.mrf.mxu0
  %v3580 = vadd.f32 %v3531, %v3579
  %3581 = vmatmul.bf16.gmra.mxu0 %v880
  %v3582 = vpop.f32.mrf.mxu0
  %v3583 = vadd.f32 %v3534, %v3582
  %v3584 = vpop.f32.mrf.mxu0
  %v3585 = vadd.f32 %v3536, %v3584
  %3586 = vmatmul.bf16.gmra.mxu0 %v896
  %v3587 = vpop.f32.mrf.mxu0
  %v3588 = vadd.f32 %v3539, %v3587
  %v3589 = vpop.f32.mrf.mxu0
  %v3590 = vadd.f32 %v3541, %v3589
  %3591 = vmatmul.bf16.gmra.mxu0 %v912
  %v3592 = vpop.f32.mrf.mxu0
  %v3593 = vadd.f32 %v3544, %v3592
  %v3594 = vpop.f32.mrf.mxu0
  %v3595 = vadd.f32 %v3546, %v3594
  %3596 = vmatmul.bf16.gmra.mxu0 %v928
  %v3597 = vpop.f32.mrf.mxu0
  %v3598 = vadd.f32 %v3549, %v3597
  %v3599 = vpop.f32.mrf.mxu0
  %v3600 = vadd.f32 %v3551, %v3599
  %3601 = vmatmul.bf16.gmra.mxu0 %v944
  %v3602 = vpop.f32.mrf.mxu0
  %v3603 = vadd.f32 %v3554, %v3602
  %v3604 = vpop.f32.mrf.mxu0
  %v3605 = vadd.f32 %v3556, %v3604
  %3606 = vmatmul.bf16.gmra.mxu0 %v960
  %v3607 = vpop.f32.mrf.mxu0
  %v3608 = vadd.f32 %v3559, %v3607
  %v3609 = vpop.f32.mrf.mxu0
  %v3610 = vadd.f32 %v3561, %v3609
  %3611 = vmatmul.bf16.gmra.mxu0 %v976
  %v3612 = vpop.f32.mrf.mxu0
  %v3613 = vadd.f32 %v3564, %v3612
  %v3614 = vpop.f32.mrf.mxu0
  %v3615 = vadd.f32 %v3566, %v3614
  %3616 = vdwg.mxu0
  %3617 = vmatpush.bf16.msra.mxu0 %v2039
  %3618 = vmatpush.bf16.msra.mxu0 %v2037
  %3619 = vmatpush.bf16.msra.mxu0 %v2035
  %3620 = vmatpush.bf16.msra.mxu0 %v2033
  %3621 = vmatpush.bf16.msra.mxu0 %v2031
  %3622 = vmatpush.bf16.msra.mxu0 %v2029
  %3623 = vmatpush.bf16.msra.mxu0 %v2027
  %3624 = vmatpush.bf16.msra.mxu0 %v2025
  %3625 = vmatmul.bf16.gmra.mxu0 %v865
  %v3626 = vpop.f32.mrf.mxu0
  %v3627 = vadd.f32 %v3578, %v3626
  %v3628 = vpop.f32.mrf.mxu0
  %v3629 = vadd.f32 %v3580, %v3628
  %3630 = vmatmul.bf16.gmra.mxu0 %v881
  %v3631 = vpop.f32.mrf.mxu0
  %v3632 = vadd.f32 %v3583, %v3631
  %v3633 = vpop.f32.mrf.mxu0
  %v3634 = vadd.f32 %v3585, %v3633
  %3635 = vmatmul.bf16.gmra.mxu0 %v897
  %v3636 = vpop.f32.mrf.mxu0
  %v3637 = vadd.f32 %v3588, %v3636
  %v3638 = vpop.f32.mrf.mxu0
  %v3639 = vadd.f32 %v3590, %v3638
  %3640 = vmatmul.bf16.gmra.mxu0 %v913
  %v3641 = vpop.f32.mrf.mxu0
  %v3642 = vadd.f32 %v3593, %v3641
  %v3643 = vpop.f32.mrf.mxu0
  %v3644 = vadd.f32 %v3595, %v3643
  %3645 = vmatmul.bf16.gmra.mxu0 %v929
  %v3646 = vpop.f32.mrf.mxu0
  %v3647 = vadd.f32 %v3598, %v3646
  %v3648 = vpop.f32.mrf.mxu0
  %v3649 = vadd.f32 %v3600, %v3648
  %3650 = vmatmul.bf16.gmra.mxu0 %v945
  %v3651 = vpop.f32.mrf.mxu0
  %v3652 = vadd.f32 %v3603, %v3651
  %v3653 = vpop.f32.mrf.mxu0
  %v3654 = vadd.f32 %v3605, %v3653
  %3655 = vmatmul.bf16.gmra.mxu0 %v961
  %v3656 = vpop.f32.mrf.mxu0
  %v3657 = vadd.f32 %v3608, %v3656
  %v3658 = vpop.f32.mrf.mxu0
  %v3659 = vadd.f32 %v3610, %v3658
  %3660 = vmatmul.bf16.gmra.mxu0 %v977
  %v3661 = vpop.f32.mrf.mxu0
  %v3662 = vadd.f32 %v3613, %v3661
  %v3663 = vpop.f32.mrf.mxu0
  %v3664 = vadd.f32 %v3615, %v3663
  %3665 = vdwg.mxu0
  %3666 = vmatpush.bf16.msra.mxu0 %v2055
  %3667 = vmatpush.bf16.msra.mxu0 %v2053
  %3668 = vmatpush.bf16.msra.mxu0 %v2051
  %3669 = vmatpush.bf16.msra.mxu0 %v2049
  %3670 = vmatpush.bf16.msra.mxu0 %v2047
  %3671 = vmatpush.bf16.msra.mxu0 %v2045
  %3672 = vmatpush.bf16.msra.mxu0 %v2043
  %3673 = vmatpush.bf16.msra.mxu0 %v2041
  %3674 = vmatmul.bf16.gmra.mxu0 %v866
  %v3675 = vpop.f32.mrf.mxu0
  %v3676 = vadd.f32 %v3627, %v3675
  %v3677 = vpop.f32.mrf.mxu0
  %v3678 = vadd.f32 %v3629, %v3677
  %3679 = vmatmul.bf16.gmra.mxu0 %v882
  %v3680 = vpop.f32.mrf.mxu0
  %v3681 = vadd.f32 %v3632, %v3680
  %v3682 = vpop.f32.mrf.mxu0
  %v3683 = vadd.f32 %v3634, %v3682
  %3684 = vmatmul.bf16.gmra.mxu0 %v898
  %v3685 = vpop.f32.mrf.mxu0
  %v3686 = vadd.f32 %v3637, %v3685
  %v3687 = vpop.f32.mrf.mxu0
  %v3688 = vadd.f32 %v3639, %v3687
  %3689 = vmatmul.bf16.gmra.mxu0 %v914
  %v3690 = vpop.f32.mrf.mxu0
  %v3691 = vadd.f32 %v3642, %v3690
  %v3692 = vpop.f32.mrf.mxu0
  %v3693 = vadd.f32 %v3644, %v3692
  %3694 = vmatmul.bf16.gmra.mxu0 %v930
  %v3695 = vpop.f32.mrf.mxu0
  %v3696 = vadd.f32 %v3647, %v3695
  %v3697 = vpop.f32.mrf.mxu0
  %v3698 = vadd.f32 %v3649, %v3697
  %3699 = vmatmul.bf16.gmra.mxu0 %v946
  %v3700 = vpop.f32.mrf.mxu0
  %v3701 = vadd.f32 %v3652, %v3700
  %v3702 = vpop.f32.mrf.mxu0
  %v3703 = vadd.f32 %v3654, %v3702
  %3704 = vmatmul.bf16.gmra.mxu0 %v962
  %v3705 = vpop.f32.mrf.mxu0
  %v3706 = vadd.f32 %v3657, %v3705
  %v3707 = vpop.f32.mrf.mxu0
  %v3708 = vadd.f32 %v3659, %v3707
  %3709 = vmatmul.bf16.gmra.mxu0 %v978
  %v3710 = vpop.f32.mrf.mxu0
  %v3711 = vadd.f32 %v3662, %v3710
  %v3712 = vpop.f32.mrf.mxu0
  %v3713 = vadd.f32 %v3664, %v3712
  %3714 = vdwg.mxu0
  %3715 = vmatpush.bf16.msra.mxu0 %v2071
  %3716 = vmatpush.bf16.msra.mxu0 %v2069
  %3717 = vmatpush.bf16.msra.mxu0 %v2067
  %3718 = vmatpush.bf16.msra.mxu0 %v2065
  %3719 = vmatpush.bf16.msra.mxu0 %v2063
  %3720 = vmatpush.bf16.msra.mxu0 %v2061
  %3721 = vmatpush.bf16.msra.mxu0 %v2059
  %3722 = vmatpush.bf16.msra.mxu0 %v2057
  %3723 = vmatmul.bf16.gmra.mxu0 %v867
  %v3724 = vpop.f32.mrf.mxu0
  %v3725 = vadd.f32 %v3676, %v3724
  %v3726 = vpop.f32.mrf.mxu0
  %v3727 = vadd.f32 %v3678, %v3726
  %3728 = vmatmul.bf16.gmra.mxu0 %v883
  %v3729 = vpop.f32.mrf.mxu0
  %v3730 = vadd.f32 %v3681, %v3729
  %v3731 = vpop.f32.mrf.mxu0
  %v3732 = vadd.f32 %v3683, %v3731
  %3733 = vmatmul.bf16.gmra.mxu0 %v899
  %v3734 = vpop.f32.mrf.mxu0
  %v3735 = vadd.f32 %v3686, %v3734
  %v3736 = vpop.f32.mrf.mxu0
  %v3737 = vadd.f32 %v3688, %v3736
  %3738 = vmatmul.bf16.gmra.mxu0 %v915
  %v3739 = vpop.f32.mrf.mxu0
  %v3740 = vadd.f32 %v3691, %v3739
  %v3741 = vpop.f32.mrf.mxu0
  %v3742 = vadd.f32 %v3693, %v3741
  %3743 = vmatmul.bf16.gmra.mxu0 %v931
  %v3744 = vpop.f32.mrf.mxu0
  %v3745 = vadd.f32 %v3696, %v3744
  %v3746 = vpop.f32.mrf.mxu0
  %v3747 = vadd.f32 %v3698, %v3746
  %3748 = vmatmul.bf16.gmra.mxu0 %v947
  %v3749 = vpop.f32.mrf.mxu0
  %v3750 = vadd.f32 %v3701, %v3749
  %v3751 = vpop.f32.mrf.mxu0
  %v3752 = vadd.f32 %v3703, %v3751
  %3753 = vmatmul.bf16.gmra.mxu0 %v963
  %v3754 = vpop.f32.mrf.mxu0
  %v3755 = vadd.f32 %v3706, %v3754
  %v3756 = vpop.f32.mrf.mxu0
  %v3757 = vadd.f32 %v3708, %v3756
  %3758 = vmatmul.bf16.gmra.mxu0 %v979
  %v3759 = vpop.f32.mrf.mxu0
  %v3760 = vadd.f32 %v3711, %v3759
  %v3761 = vpop.f32.mrf.mxu0
  %v3762 = vadd.f32 %v3713, %v3761
  %3763 = vdwg.mxu0
  %3764 = vmatpush.bf16.msra.mxu0 %v2087
  %3765 = vmatpush.bf16.msra.mxu0 %v2085
  %3766 = vmatpush.bf16.msra.mxu0 %v2083
  %3767 = vmatpush.bf16.msra.mxu0 %v2081
  %3768 = vmatpush.bf16.msra.mxu0 %v2079
  %3769 = vmatpush.bf16.msra.mxu0 %v2077
  %3770 = vmatpush.bf16.msra.mxu0 %v2075
  %3771 = vmatpush.bf16.msra.mxu0 %v2073
  %3772 = vmatmul.bf16.gmra.mxu0 %v868
  %v3773 = vpop.f32.mrf.mxu0
  %v3774 = vadd.f32 %v3725, %v3773
  %v3775 = vpop.f32.mrf.mxu0
  %v3776 = vadd.f32 %v3727, %v3775
  %3777 = vmatmul.bf16.gmra.mxu0 %v884
  %v3778 = vpop.f32.mrf.mxu0
  %v3779 = vadd.f32 %v3730, %v3778
  %v3780 = vpop.f32.mrf.mxu0
  %v3781 = vadd.f32 %v3732, %v3780
  %3782 = vmatmul.bf16.gmra.mxu0 %v900
  %v3783 = vpop.f32.mrf.mxu0
  %v3784 = vadd.f32 %v3735, %v3783
  %v3785 = vpop.f32.mrf.mxu0
  %v3786 = vadd.f32 %v3737, %v3785
  %3787 = vmatmul.bf16.gmra.mxu0 %v916
  %v3788 = vpop.f32.mrf.mxu0
  %v3789 = vadd.f32 %v3740, %v3788
  %v3790 = vpop.f32.mrf.mxu0
  %v3791 = vadd.f32 %v3742, %v3790
  %3792 = vmatmul.bf16.gmra.mxu0 %v932
  %v3793 = vpop.f32.mrf.mxu0
  %v3794 = vadd.f32 %v3745, %v3793
  %v3795 = vpop.f32.mrf.mxu0
  %v3796 = vadd.f32 %v3747, %v3795
  %3797 = vmatmul.bf16.gmra.mxu0 %v948
  %v3798 = vpop.f32.mrf.mxu0
  %v3799 = vadd.f32 %v3750, %v3798
  %v3800 = vpop.f32.mrf.mxu0
  %v3801 = vadd.f32 %v3752, %v3800
  %3802 = vmatmul.bf16.gmra.mxu0 %v964
  %v3803 = vpop.f32.mrf.mxu0
  %v3804 = vadd.f32 %v3755, %v3803
  %v3805 = vpop.f32.mrf.mxu0
  %v3806 = vadd.f32 %v3757, %v3805
  %3807 = vmatmul.bf16.gmra.mxu0 %v980
  %v3808 = vpop.f32.mrf.mxu0
  %v3809 = vadd.f32 %v3760, %v3808
  %v3810 = vpop.f32.mrf.mxu0
  %v3811 = vadd.f32 %v3762, %v3810
  %3812 = vdwg.mxu0
  %3813 = vmatpush.bf16.msra.mxu0 %v2103
  %3814 = vmatpush.bf16.msra.mxu0 %v2101
  %3815 = vmatpush.bf16.msra.mxu0 %v2099
  %3816 = vmatpush.bf16.msra.mxu0 %v2097
  %3817 = vmatpush.bf16.msra.mxu0 %v2095
  %3818 = vmatpush.bf16.msra.mxu0 %v2093
  %3819 = vmatpush.bf16.msra.mxu0 %v2091
  %3820 = vmatpush.bf16.msra.mxu0 %v2089
  %3821 = vmatmul.bf16.gmra.mxu0 %v869
  %v3822 = vpop.f32.mrf.mxu0
  %v3823 = vadd.f32 %v3774, %v3822
  %v3824 = vpop.f32.mrf.mxu0
  %v3825 = vadd.f32 %v3776, %v3824
  %3826 = vmatmul.bf16.gmra.mxu0 %v885
  %v3827 = vpop.f32.mrf.mxu0
  %v3828 = vadd.f32 %v3779, %v3827
  %v3829 = vpop.f32.mrf.mxu0
  %v3830 = vadd.f32 %v3781, %v3829
  %3831 = vmatmul.bf16.gmra.mxu0 %v901
  %v3832 = vpop.f32.mrf.mxu0
  %v3833 = vadd.f32 %v3784, %v3832
  %v3834 = vpop.f32.mrf.mxu0
  %v3835 = vadd.f32 %v3786, %v3834
  %3836 = vmatmul.bf16.gmra.mxu0 %v917
  %v3837 = vpop.f32.mrf.mxu0
  %v3838 = vadd.f32 %v3789, %v3837
  %v3839 = vpop.f32.mrf.mxu0
  %v3840 = vadd.f32 %v3791, %v3839
  %3841 = vmatmul.bf16.gmra.mxu0 %v933
  %v3842 = vpop.f32.mrf.mxu0
  %v3843 = vadd.f32 %v3794, %v3842
  %v3844 = vpop.f32.mrf.mxu0
  %v3845 = vadd.f32 %v3796, %v3844
  %3846 = vmatmul.bf16.gmra.mxu0 %v949
  %v3847 = vpop.f32.mrf.mxu0
  %v3848 = vadd.f32 %v3799, %v3847
  %v3849 = vpop.f32.mrf.mxu0
  %v3850 = vadd.f32 %v3801, %v3849
  %3851 = vmatmul.bf16.gmra.mxu0 %v965
  %v3852 = vpop.f32.mrf.mxu0
  %v3853 = vadd.f32 %v3804, %v3852
  %v3854 = vpop.f32.mrf.mxu0
  %v3855 = vadd.f32 %v3806, %v3854
  %3856 = vmatmul.bf16.gmra.mxu0 %v981
  %v3857 = vpop.f32.mrf.mxu0
  %v3858 = vadd.f32 %v3809, %v3857
  %v3859 = vpop.f32.mrf.mxu0
  %v3860 = vadd.f32 %v3811, %v3859
  %3861 = vdwg.mxu0
  %3862 = vmatpush.bf16.msra.mxu0 %v2119
  %3863 = vmatpush.bf16.msra.mxu0 %v2117
  %3864 = vmatpush.bf16.msra.mxu0 %v2115
  %3865 = vmatpush.bf16.msra.mxu0 %v2113
  %3866 = vmatpush.bf16.msra.mxu0 %v2111
  %3867 = vmatpush.bf16.msra.mxu0 %v2109
  %3868 = vmatpush.bf16.msra.mxu0 %v2107
  %3869 = vmatpush.bf16.msra.mxu0 %v2105
  %3870 = vmatmul.bf16.gmra.mxu0 %v870
  %v3871 = vpop.f32.mrf.mxu0
  %v3872 = vadd.f32 %v3823, %v3871
  %v3873 = vpop.f32.mrf.mxu0
  %v3874 = vadd.f32 %v3825, %v3873
  %3875 = vmatmul.bf16.gmra.mxu0 %v886
  %v3876 = vpop.f32.mrf.mxu0
  %v3877 = vadd.f32 %v3828, %v3876
  %v3878 = vpop.f32.mrf.mxu0
  %v3879 = vadd.f32 %v3830, %v3878
  %3880 = vmatmul.bf16.gmra.mxu0 %v902
  %v3881 = vpop.f32.mrf.mxu0
  %v3882 = vadd.f32 %v3833, %v3881
  %v3883 = vpop.f32.mrf.mxu0
  %v3884 = vadd.f32 %v3835, %v3883
  %3885 = vmatmul.bf16.gmra.mxu0 %v918
  %v3886 = vpop.f32.mrf.mxu0
  %v3887 = vadd.f32 %v3838, %v3886
  %v3888 = vpop.f32.mrf.mxu0
  %v3889 = vadd.f32 %v3840, %v3888
  %3890 = vmatmul.bf16.gmra.mxu0 %v934
  %v3891 = vpop.f32.mrf.mxu0
  %v3892 = vadd.f32 %v3843, %v3891
  %v3893 = vpop.f32.mrf.mxu0
  %v3894 = vadd.f32 %v3845, %v3893
  %3895 = vmatmul.bf16.gmra.mxu0 %v950
  %v3896 = vpop.f32.mrf.mxu0
  %v3897 = vadd.f32 %v3848, %v3896
  %v3898 = vpop.f32.mrf.mxu0
  %v3899 = vadd.f32 %v3850, %v3898
  %3900 = vmatmul.bf16.gmra.mxu0 %v966
  %v3901 = vpop.f32.mrf.mxu0
  %v3902 = vadd.f32 %v3853, %v3901
  %v3903 = vpop.f32.mrf.mxu0
  %v3904 = vadd.f32 %v3855, %v3903
  %3905 = vmatmul.bf16.gmra.mxu0 %v982
  %v3906 = vpop.f32.mrf.mxu0
  %v3907 = vadd.f32 %v3858, %v3906
  %v3908 = vpop.f32.mrf.mxu0
  %v3909 = vadd.f32 %v3860, %v3908
  %3910 = vdwg.mxu0
  %3911 = vmatpush.bf16.msra.mxu0 %v2135
  %3912 = vmatpush.bf16.msra.mxu0 %v2133
  %3913 = vmatpush.bf16.msra.mxu0 %v2131
  %3914 = vmatpush.bf16.msra.mxu0 %v2129
  %3915 = vmatpush.bf16.msra.mxu0 %v2127
  %3916 = vmatpush.bf16.msra.mxu0 %v2125
  %3917 = vmatpush.bf16.msra.mxu0 %v2123
  %3918 = vmatpush.bf16.msra.mxu0 %v2121
  %3919 = vmatmul.bf16.gmra.mxu0 %v871
  %v3920 = vpop.f32.mrf.mxu0
  %v3921 = vadd.f32 %v3872, %v3920
  %v3922 = vpop.f32.mrf.mxu0
  %v3923 = vadd.f32 %v3874, %v3922
  %3924 = vmatmul.bf16.gmra.mxu0 %v887
  %v3925 = vpop.f32.mrf.mxu0
  %v3926 = vadd.f32 %v3877, %v3925
  %v3927 = vpop.f32.mrf.mxu0
  %v3928 = vadd.f32 %v3879, %v3927
  %3929 = vmatmul.bf16.gmra.mxu0 %v903
  %v3930 = vpop.f32.mrf.mxu0
  %v3931 = vadd.f32 %v3882, %v3930
  %v3932 = vpop.f32.mrf.mxu0
  %v3933 = vadd.f32 %v3884, %v3932
  %3934 = vmatmul.bf16.gmra.mxu0 %v919
  %v3935 = vpop.f32.mrf.mxu0
  %v3936 = vadd.f32 %v3887, %v3935
  %v3937 = vpop.f32.mrf.mxu0
  %v3938 = vadd.f32 %v3889, %v3937
  %3939 = vmatmul.bf16.gmra.mxu0 %v935
  %v3940 = vpop.f32.mrf.mxu0
  %v3941 = vadd.f32 %v3892, %v3940
  %v3942 = vpop.f32.mrf.mxu0
  %v3943 = vadd.f32 %v3894, %v3942
  %3944 = vmatmul.bf16.gmra.mxu0 %v951
  %v3945 = vpop.f32.mrf.mxu0
  %v3946 = vadd.f32 %v3897, %v3945
  %v3947 = vpop.f32.mrf.mxu0
  %v3948 = vadd.f32 %v3899, %v3947
  %3949 = vmatmul.bf16.gmra.mxu0 %v967
  %v3950 = vpop.f32.mrf.mxu0
  %v3951 = vadd.f32 %v3902, %v3950
  %v3952 = vpop.f32.mrf.mxu0
  %v3953 = vadd.f32 %v3904, %v3952
  %3954 = vmatmul.bf16.gmra.mxu0 %v983
  %v3955 = vpop.f32.mrf.mxu0
  %v3956 = vadd.f32 %v3907, %v3955
  %v3957 = vpop.f32.mrf.mxu0
  %v3958 = vadd.f32 %v3909, %v3957
  %3959 = vdwg.mxu0
  %v3960 = vadd.f32 %v56, %v3137
  %v3961 = vadd.f32 %v57, %v3921
  %v3962 = vadd.f32 %v58, %v3139
  %v3963 = vadd.f32 %v59, %v3923
  %v3964 = vadd.f32 %v60, %v3142
  %v3965 = vadd.f32 %v61, %v3926
  %v3966 = vadd.f32 %v62, %v3144
  %v3967 = vadd.f32 %v63, %v3928
  %v3968 = vadd.f32 %v64, %v3147
  %v3969 = vadd.f32 %v65, %v3931
  %v3970 = vadd.f32 %v66, %v3149
  %v3971 = vadd.f32 %v67, %v3933
  %v3972 = vadd.f32 %v68, %v3152
  %v3973 = vadd.f32 %v69, %v3936
  %v3974 = vadd.f32 %v70, %v3154
  %v3975 = vadd.f32 %v71, %v3938
  %v3976 = vadd.f32 %v72, %v3157
  %v3977 = vadd.f32 %v73, %v3941
  %v3978 = vadd.f32 %v74, %v3159
  %v3979 = vadd.f32 %v75, %v3943
  %v3980 = vadd.f32 %v76, %v3162
  %v3981 = vadd.f32 %v77, %v3946
  %v3982 = vadd.f32 %v78, %v3164
  %v3983 = vadd.f32 %v79, %v3948
  %v3984 = vadd.f32 %v80, %v3167
  %v3985 = vadd.f32 %v81, %v3951
  %v3986 = vadd.f32 %v82, %v3169
  %v3987 = vadd.f32 %v83, %v3953
  %v3988 = vadd.f32 %v84, %v3172
  %v3989 = vadd.f32 %v85, %v3956
  %v3990 = vadd.f32 %v86, %v3174
  %v3991 = vadd.f32 %v87, %v3958
  %3992 = vst [vmem:[#allocation2] sm:$0xff] %v3960
  %3993 = vst [vmem:[#allocation2 + $0x8] sm:$0xff] %v3961
  %3994 = vst [vmem:[#allocation2 + $0x10] sm:$0xff] %v3962
  %3995 = vst [vmem:[#allocation2 + $0x18] sm:$0xff] %v3963
  %3996 = vst [vmem:[#allocation2 + $0x20] sm:$0xff] %v3964
  %3997 = vst [vmem:[#allocation2 + $0x28] sm:$0xff] %v3965
  %3998 = vst [vmem:[#allocation2 + $0x30] sm:$0xff] %v3966
  %3999 = vst [vmem:[#allocation2 + $0x38] sm:$0xff] %v3967
  %4000 = vst [vmem:[#allocation2 + $0x40] sm:$0xff] %v3968
  %4001 = vst [vmem:[#allocation2 + $0x48] sm:$0xff] %v3969
  %4002 = vst [vmem:[#allocation2 + $0x50] sm:$0xff] %v3970
  %4003 = vst [vmem:[#allocation2 + $0x58] sm:$0xff] %v3971
  %4004 = vst [vmem:[#allocation2 + $0x60] sm:$0xff] %v3972
  %4005 = vst [vmem:[#allocation2 + $0x68] sm:$0xff] %v3973
  %4006 = vst [vmem:[#allocation2 + $0x70] sm:$0xff] %v3974
  %4007 = vst [vmem:[#allocation2 + $0x78] sm:$0xff] %v3975
  %4008 = vst [vmem:[#allocation2 + $0x80] sm:$0xff] %v3976
  %4009 = vst [vmem:[#allocation2 + $0x88] sm:$0xff] %v3977
  %4010 = vst [vmem:[#allocation2 + $0x90] sm:$0xff] %v3978
  %4011 = vst [vmem:[#allocation2 + $0x98] sm:$0xff] %v3979
  %4012 = vst [vmem:[#allocation2 + $0xa0] sm:$0xff] %v3980
  %4013 = vst [vmem:[#allocation2 + $0xa8] sm:$0xff] %v3981
  %4014 = vst [vmem:[#allocation2 + $0xb0] sm:$0xff] %v3982
  %4015 = vst [vmem:[#allocation2 + $0xb8] sm:$0xff] %v3983
  %4016 = vst [vmem:[#allocation2 + $0xc0] sm:$0xff] %v3984
  %4017 = vst [vmem:[#allocation2 + $0xc8] sm:$0xff] %v3985
  %4018 = vst [vmem:[#allocation2 + $0xd0] sm:$0xff] %v3986
  %4019 = vst [vmem:[#allocation2 + $0xd8] sm:$0xff] %v3987
  %4020 = vst [vmem:[#allocation2 + $0xe0] sm:$0xff] %v3988
  %4021 = vst [vmem:[#allocation2 + $0xe8] sm:$0xff] %v3989
  %4022 = vst [vmem:[#allocation2 + $0xf0] sm:$0xff] %v3990
  %4023 = vst [vmem:[#allocation2 + $0xf8] sm:$0xff] %v3991
  // Predicated region
  $region26: #{discriminator_forward.4} parent=0 // pred_check
    %p4024 = pneg %p20
  $region27: #{discriminator_forward.4} parent=0 // pred_check_branch
    %4026 = sbr.rel (%p4024) target = $region29
  $region28: #{discriminator_forward.4} parent=0 // pred_region
    %v4027 = vld [vmem:[#allocation2] sm:$0xff]
    %v4028 = vld [vmem:[#allocation2 + $0x8] sm:$0xff]
    %v4029 = vld [vmem:[#allocation2 + $0x10] sm:$0xff]
    %v4030 = vld [vmem:[#allocation2 + $0x18] sm:$0xff]
    %v4031 = vld [vmem:[#allocation2 + $0x20] sm:$0xff]
    %v4032 = vld [vmem:[#allocation2 + $0x28] sm:$0xff]
    %v4033 = vld [vmem:[#allocation2 + $0x30] sm:$0xff]
    %v4034 = vld [vmem:[#allocation2 + $0x38] sm:$0xff]
    %v4035 = vld [vmem:[#allocation2 + $0x40] sm:$0xff]
    %v4036 = vld [vmem:[#allocation2 + $0x48] sm:$0xff]
    %v4037 = vld [vmem:[#allocation2 + $0x50] sm:$0xff]
    %v4038 = vld [vmem:[#allocation2 + $0x58] sm:$0xff]
    %v4039 = vld [vmem:[#allocation2 + $0x60] sm:$0xff]
    %v4040 = vld [vmem:[#allocation2 + $0x68] sm:$0xff]
    %v4041 = vld [vmem:[#allocation2 + $0x70] sm:$0xff]
    %v4042 = vld [vmem:[#allocation2 + $0x78] sm:$0xff]
    %v4043 = vld [vmem:[#allocation2 + $0x80] sm:$0xff]
    %v4044 = vld [vmem:[#allocation2 + $0x88] sm:$0xff]
    %v4045 = vld [vmem:[#allocation2 + $0x90] sm:$0xff]
    %v4046 = vld [vmem:[#allocation2 + $0x98] sm:$0xff]
    %v4047 = vld [vmem:[#allocation2 + $0xa0] sm:$0xff]
    %v4048 = vld [vmem:[#allocation2 + $0xa8] sm:$0xff]
    %v4049 = vld [vmem:[#allocation2 + $0xb0] sm:$0xff]
    %v4050 = vld [vmem:[#allocation2 + $0xb8] sm:$0xff]
    %v4051 = vld [vmem:[#allocation2 + $0xc0] sm:$0xff]
    %v4052 = vld [vmem:[#allocation2 + $0xc8] sm:$0xff]
    %v4053 = vld [vmem:[#allocation2 + $0xd0] sm:$0xff]
    %v4054 = vld [vmem:[#allocation2 + $0xd8] sm:$0xff]
    %v4055 = vld [vmem:[#allocation2 + $0xe0] sm:$0xff]
    %v4056 = vld [vmem:[#allocation2 + $0xe8] sm:$0xff]
    %v4057 = vld [vmem:[#allocation2 + $0xf0] sm:$0xff]
    %v4058 = vld [vmem:[#allocation2 + $0xf8] sm:$0xff]
    %v4059 = vld [vmem:[%s2] sm:$0x3]
    %v4061 = vperm.slane %v4059, 0
    %v4062 = vperm.slane %v4059, 1
    %v4065 = vadd.f32 %v4027, %v4061
    %v4066 = vadd.f32 %v4028, %v4062
    %v4067 = vadd.f32 %v4029, %v4061
    %v4068 = vadd.f32 %v4030, %v4062
    %v4069 = vadd.f32 %v4031, %v4061
    %v4070 = vadd.f32 %v4032, %v4062
    %v4071 = vadd.f32 %v4033, %v4061
    %v4072 = vadd.f32 %v4034, %v4062
    %v4073 = vadd.f32 %v4035, %v4061
    %v4074 = vadd.f32 %v4036, %v4062
    %v4075 = vadd.f32 %v4037, %v4061
    %v4076 = vadd.f32 %v4038, %v4062
    %v4077 = vadd.f32 %v4039, %v4061
    %v4078 = vadd.f32 %v4040, %v4062
    %v4079 = vadd.f32 %v4041, %v4061
    %v4080 = vadd.f32 %v4042, %v4062
    %v4081 = vadd.f32 %v4043, %v4061
    %v4082 = vadd.f32 %v4044, %v4062
    %v4083 = vadd.f32 %v4045, %v4061
    %v4084 = vadd.f32 %v4046, %v4062
    %v4085 = vadd.f32 %v4047, %v4061
    %v4086 = vadd.f32 %v4048, %v4062
    %v4087 = vadd.f32 %v4049, %v4061
    %v4088 = vadd.f32 %v4050, %v4062
    %v4089 = vadd.f32 %v4051, %v4061
    %v4090 = vadd.f32 %v4052, %v4062
    %v4091 = vadd.f32 %v4053, %v4061
    %v4092 = vadd.f32 %v4054, %v4062
    %v4093 = vadd.f32 %v4055, %v4061
    %v4094 = vadd.f32 %v4056, %v4062
    %v4095 = vadd.f32 %v4057, %v4061
    %v4096 = vadd.f32 %v4058, %v4062
    %vm4097 = vcmp.ge.f32.partialorder %v4065, 0.0
    %vm4098 = vcmp.ge.f32.partialorder %v4066, 0.0
    %vm4099 = vcmp.ge.f32.partialorder %v4067, 0.0
    %vm4100 = vcmp.ge.f32.partialorder %v4068, 0.0
    %vm4101 = vcmp.ge.f32.partialorder %v4069, 0.0
    %vm4102 = vcmp.ge.f32.partialorder %v4070, 0.0
    %vm4103 = vcmp.ge.f32.partialorder %v4071, 0.0
    %vm4104 = vcmp.ge.f32.partialorder %v4072, 0.0
    %vm4105 = vcmp.ge.f32.partialorder %v4073, 0.0
    %vm4106 = vcmp.ge.f32.partialorder %v4074, 0.0
    %vm4107 = vcmp.ge.f32.partialorder %v4075, 0.0
    %vm4108 = vcmp.ge.f32.partialorder %v4076, 0.0
    %vm4109 = vcmp.ge.f32.partialorder %v4077, 0.0
    %vm4110 = vcmp.ge.f32.partialorder %v4078, 0.0
    %vm4111 = vcmp.ge.f32.partialorder %v4079, 0.0
    %vm4112 = vcmp.ge.f32.partialorder %v4080, 0.0
    %vm4113 = vcmp.ge.f32.partialorder %v4081, 0.0
    %vm4114 = vcmp.ge.f32.partialorder %v4082, 0.0
    %vm4115 = vcmp.ge.f32.partialorder %v4083, 0.0
    %vm4116 = vcmp.ge.f32.partialorder %v4084, 0.0
    %vm4117 = vcmp.ge.f32.partialorder %v4085, 0.0
    %vm4118 = vcmp.ge.f32.partialorder %v4086, 0.0
    %vm4119 = vcmp.ge.f32.partialorder %v4087, 0.0
    %vm4120 = vcmp.ge.f32.partialorder %v4088, 0.0
    %vm4121 = vcmp.ge.f32.partialorder %v4089, 0.0
    %vm4122 = vcmp.ge.f32.partialorder %v4090, 0.0
    %vm4123 = vcmp.ge.f32.partialorder %v4091, 0.0
    %vm4124 = vcmp.ge.f32.partialorder %v4092, 0.0
    %vm4125 = vcmp.ge.f32.partialorder %v4093, 0.0
    %vm4126 = vcmp.ge.f32.partialorder %v4094, 0.0
    %vm4127 = vcmp.ge.f32.partialorder %v4095, 0.0
    %vm4128 = vcmp.ge.f32.partialorder %v4096, 0.0
    %v4129 = vmul.f32 %v4065, 0.2
    %v4130 = vmul.f32 %v4066, 0.2
    %v4131 = vmul.f32 %v4067, 0.2
    %v4132 = vmul.f32 %v4068, 0.2
    %v4133 = vmul.f32 %v4069, 0.2
    %v4134 = vmul.f32 %v4070, 0.2
    %v4135 = vmul.f32 %v4071, 0.2
    %v4136 = vmul.f32 %v4072, 0.2
    %v4137 = vmul.f32 %v4073, 0.2
    %v4138 = vmul.f32 %v4074, 0.2
    %v4139 = vmul.f32 %v4075, 0.2
    %v4140 = vmul.f32 %v4076, 0.2
    %v4141 = vmul.f32 %v4077, 0.2
    %v4142 = vmul.f32 %v4078, 0.2
    %v4143 = vmul.f32 %v4079, 0.2
    %v4144 = vmul.f32 %v4080, 0.2
    %v4145 = vmul.f32 %v4081, 0.2
    %v4146 = vmul.f32 %v4082, 0.2
    %v4147 = vmul.f32 %v4083, 0.2
    %v4148 = vmul.f32 %v4084, 0.2
    %v4149 = vmul.f32 %v4085, 0.2
    %v4150 = vmul.f32 %v4086, 0.2
    %v4151 = vmul.f32 %v4087, 0.2
    %v4152 = vmul.f32 %v4088, 0.2
    %v4153 = vmul.f32 %v4089, 0.2
    %v4154 = vmul.f32 %v4090, 0.2
    %v4155 = vmul.f32 %v4091, 0.2
    %v4156 = vmul.f32 %v4092, 0.2
    %v4157 = vmul.f32 %v4093, 0.2
    %v4158 = vmul.f32 %v4094, 0.2
    %v4159 = vmul.f32 %v4095, 0.2
    %v4160 = vmul.f32 %v4096, 0.2
    %v4161 = vsel %vm4097, %v4065, %v4129
    %v4162 = vsel %vm4098, %v4066, %v4130
    %v4163 = vsel %vm4099, %v4067, %v4131
    %v4164 = vsel %vm4100, %v4068, %v4132
    %v4165 = vsel %vm4101, %v4069, %v4133
    %v4166 = vsel %vm4102, %v4070, %v4134
    %v4167 = vsel %vm4103, %v4071, %v4135
    %v4168 = vsel %vm4104, %v4072, %v4136
    %v4169 = vsel %vm4105, %v4073, %v4137
    %v4170 = vsel %vm4106, %v4074, %v4138
    %v4171 = vsel %vm4107, %v4075, %v4139
    %v4172 = vsel %vm4108, %v4076, %v4140
    %v4173 = vsel %vm4109, %v4077, %v4141
    %v4174 = vsel %vm4110, %v4078, %v4142
    %v4175 = vsel %vm4111, %v4079, %v4143
    %v4176 = vsel %vm4112, %v4080, %v4144
    %v4177 = vsel %vm4113, %v4081, %v4145
    %v4178 = vsel %vm4114, %v4082, %v4146
    %v4179 = vsel %vm4115, %v4083, %v4147
    %v4180 = vsel %vm4116, %v4084, %v4148
    %v4181 = vsel %vm4117, %v4085, %v4149
    %v4182 = vsel %vm4118, %v4086, %v4150
    %v4183 = vsel %vm4119, %v4087, %v4151
    %v4184 = vsel %vm4120, %v4088, %v4152
    %v4185 = vsel %vm4121, %v4089, %v4153
    %v4186 = vsel %vm4122, %v4090, %v4154
    %v4187 = vsel %vm4123, %v4091, %v4155
    %v4188 = vsel %vm4124, %v4092, %v4156
    %v4189 = vsel %vm4125, %v4093, %v4157
    %v4190 = vsel %vm4126, %v4094, %v4158
    %v4191 = vsel %vm4127, %v4095, %v4159
    %v4192 = vsel %vm4128, %v4096, %v4160
    %v4193 = vadd.f32 %v4161, %v4163
    %v4194 = vadd.f32 %v4193, %v4165
    %v4195 = vadd.f32 %v4194, %v4167
    %v4196 = vadd.f32 %v4195, %v4169
    %v4197 = vadd.f32 %v4196, %v4171
    %v4198 = vadd.f32 %v4197, %v4173
    %v4199 = vadd.f32 %v4198, %v4175
    %v4200 = vadd.f32 %v4199, %v4177
    %v4201 = vadd.f32 %v4200, %v4179
    %v4202 = vadd.f32 %v4201, %v4181
    %v4203 = vadd.f32 %v4202, %v4183
    %v4204 = vadd.f32 %v4203, %v4185
    %v4205 = vadd.f32 %v4204, %v4187
    %v4206 = vadd.f32 %v4205, %v4189
    %v4207 = vadd.f32 %v4206, %v4191
    %v4208 = vrot.slane %v4207, 4
    %v4209 = vadd.f32 %v4207, %v4208
    %v4210 = vrot.slane %v4209, 2
    %v4211 = vadd.f32 %v4209, %v4210
    %v4212 = vrot.slane %v4211, 1
    %v4213 = vadd.f32 %v4211, %v4212
    %v4214 = vadd.f32 %v4162, %v4164
    %v4215 = vadd.f32 %v4214, %v4166
    %v4216 = vadd.f32 %v4215, %v4168
    %v4217 = vadd.f32 %v4216, %v4170
    %v4218 = vadd.f32 %v4217, %v4172
    %v4219 = vadd.f32 %v4218, %v4174
    %v4220 = vadd.f32 %v4219, %v4176
    %v4221 = vadd.f32 %v4220, %v4178
    %v4222 = vadd.f32 %v4221, %v4180
    %v4223 = vadd.f32 %v4222, %v4182
    %v4224 = vadd.f32 %v4223, %v4184
    %v4225 = vadd.f32 %v4224, %v4186
    %v4226 = vadd.f32 %v4225, %v4188
    %v4227 = vadd.f32 %v4226, %v4190
    %v4228 = vadd.f32 %v4227, %v4192
    %v4229 = vrot.slane %v4228, 4
    %v4230 = vadd.f32 %v4228, %v4229
    %v4231 = vrot.slane %v4230, 2
    %v4232 = vadd.f32 %v4230, %v4231
    %v4233 = vrot.slane %v4232, 1
    %v4234 = vadd.f32 %v4232, %v4233
    %v4235 = vrcp.pop 128.0
    %v4236 = vmul.f32 128.0, %v4235
    %v4237 = vsub.f32 1.0, %v4236
    %v4238 = vmul.f32 %v4235, %v4237
    %v4239 = vadd.f32 %v4235, %v4238
    %vm4240 = vweird.f32 %v4235
    %v4241 = vsel %vm4240, %v4235, %v4239
    %v4242 = vmul.f32 %v4213, %v4241
    %v4243 = vmul.f32 %v4234, %v4241
    %v4244 = vmul.f32 %v4161, %v4161
    %v4245 = vmul.f32 %v4162, %v4162
    %v4246 = vmul.f32 %v4163, %v4163
    %v4247 = vmul.f32 %v4164, %v4164
    %v4248 = vmul.f32 %v4165, %v4165
    %v4249 = vmul.f32 %v4166, %v4166
    %v4250 = vmul.f32 %v4167, %v4167
    %v4251 = vmul.f32 %v4168, %v4168
    %v4252 = vmul.f32 %v4169, %v4169
    %v4253 = vmul.f32 %v4170, %v4170
    %v4254 = vmul.f32 %v4171, %v4171
    %v4255 = vmul.f32 %v4172, %v4172
    %v4256 = vmul.f32 %v4173, %v4173
    %v4257 = vmul.f32 %v4174, %v4174
    %v4258 = vmul.f32 %v4175, %v4175
    %v4259 = vmul.f32 %v4176, %v4176
    %v4260 = vmul.f32 %v4177, %v4177
    %v4261 = vmul.f32 %v4178, %v4178
    %v4262 = vmul.f32 %v4179, %v4179
    %v4263 = vmul.f32 %v4180, %v4180
    %v4264 = vmul.f32 %v4181, %v4181
    %v4265 = vmul.f32 %v4182, %v4182
    %v4266 = vmul.f32 %v4183, %v4183
    %v4267 = vmul.f32 %v4184, %v4184
    %v4268 = vmul.f32 %v4185, %v4185
    %v4269 = vmul.f32 %v4186, %v4186
    %v4270 = vmul.f32 %v4187, %v4187
    %v4271 = vmul.f32 %v4188, %v4188
    %v4272 = vmul.f32 %v4189, %v4189
    %v4273 = vmul.f32 %v4190, %v4190
    %v4274 = vmul.f32 %v4191, %v4191
    %v4275 = vmul.f32 %v4192, %v4192
    %v4276 = vadd.f32 %v4244, %v4246
    %v4277 = vadd.f32 %v4276, %v4248
    %v4278 = vadd.f32 %v4277, %v4250
    %v4279 = vadd.f32 %v4278, %v4252
    %v4280 = vadd.f32 %v4279, %v4254
    %v4281 = vadd.f32 %v4280, %v4256
    %v4282 = vadd.f32 %v4281, %v4258
    %v4283 = vadd.f32 %v4282, %v4260
    %v4284 = vadd.f32 %v4283, %v4262
    %v4285 = vadd.f32 %v4284, %v4264
    %v4286 = vadd.f32 %v4285, %v4266
    %v4287 = vadd.f32 %v4286, %v4268
    %v4288 = vadd.f32 %v4287, %v4270
    %v4289 = vadd.f32 %v4288, %v4272
    %v4290 = vadd.f32 %v4289, %v4274
    %v4291 = vrot.slane %v4290, 4
    %v4292 = vadd.f32 %v4290, %v4291
    %v4293 = vrot.slane %v4292, 2
    %v4294 = vadd.f32 %v4292, %v4293
    %v4295 = vrot.slane %v4294, 1
    %v4296 = vadd.f32 %v4294, %v4295
    %v4297 = vadd.f32 %v4245, %v4247
    %v4298 = vadd.f32 %v4297, %v4249
    %v4299 = vadd.f32 %v4298, %v4251
    %v4300 = vadd.f32 %v4299, %v4253
    %v4301 = vadd.f32 %v4300, %v4255
    %v4302 = vadd.f32 %v4301, %v4257
    %v4303 = vadd.f32 %v4302, %v4259
    %v4304 = vadd.f32 %v4303, %v4261
    %v4305 = vadd.f32 %v4304, %v4263
    %v4306 = vadd.f32 %v4305, %v4265
    %v4307 = vadd.f32 %v4306, %v4267
    %v4308 = vadd.f32 %v4307, %v4269
    %v4309 = vadd.f32 %v4308, %v4271
    %v4310 = vadd.f32 %v4309, %v4273
    %v4311 = vadd.f32 %v4310, %v4275
    %v4312 = vrot.slane %v4311, 4
    %v4313 = vadd.f32 %v4311, %v4312
    %v4314 = vrot.slane %v4313, 2
    %v4315 = vadd.f32 %v4313, %v4314
    %v4316 = vrot.slane %v4315, 1
    %v4317 = vadd.f32 %v4315, %v4316
    %v4318 = vmul.f32 %v4296, %v4241
    %v4319 = vmul.f32 %v4317, %v4241
    %v4320 = vmul.f32 %v4242, %v4242
    %v4321 = vmul.f32 %v4243, %v4243
    %v4322 = vsub.f32 %v4318, %v4320
    %v4323 = vsub.f32 %v4319, %v4321
    %v4324 = vadd.f32 %v4322, 1e-05
    %v4325 = vadd.f32 %v4323, 1e-05
    %v4326 = vrsqrt.pop %v4324
    %v4327 = vmul.f32 %v4326, %v4324
    %v4328 = vmul.f32 %v4327, %v4326
    %v4329 = vmul.f32 0.5, %v4328
    %v4330 = vsub.f32 1.5, %v4329
    %v4331 = vmul.f32 %v4326, %v4330
    %vm4332 = vweird.f32 %v4324
    %vm4333 = vweird.f32 %v4326
    %vm4334 = vmor %vm4332, %vm4333
    %v4335 = vsel %vm4334, %v4326, %v4331
    %v4336 = vrsqrt.pop %v4325
    %v4337 = vmul.f32 %v4336, %v4325
    %v4338 = vmul.f32 %v4337, %v4336
    %v4339 = vmul.f32 0.5, %v4338
    %v4340 = vsub.f32 1.5, %v4339
    %v4341 = vmul.f32 %v4336, %v4340
    %vm4342 = vweird.f32 %v4325
    %vm4343 = vweird.f32 %v4336
    %vm4344 = vmor %vm4342, %vm4343
    %v4345 = vsel %vm4344, %v4336, %v4341
    %v4346 = vsub.f32 %v4161, %v4242
    %v4347 = vsub.f32 %v4162, %v4243
    %v4348 = vsub.f32 %v4163, %v4242
    %v4349 = vsub.f32 %v4164, %v4243
    %v4350 = vsub.f32 %v4165, %v4242
    %v4351 = vsub.f32 %v4166, %v4243
    %v4352 = vsub.f32 %v4167, %v4242
    %v4353 = vsub.f32 %v4168, %v4243
    %v4354 = vsub.f32 %v4169, %v4242
    %v4355 = vsub.f32 %v4170, %v4243
    %v4356 = vsub.f32 %v4171, %v4242
    %v4357 = vsub.f32 %v4172, %v4243
    %v4358 = vsub.f32 %v4173, %v4242
    %v4359 = vsub.f32 %v4174, %v4243
    %v4360 = vsub.f32 %v4175, %v4242
    %v4361 = vsub.f32 %v4176, %v4243
    %v4362 = vsub.f32 %v4177, %v4242
    %v4363 = vsub.f32 %v4178, %v4243
    %v4364 = vsub.f32 %v4179, %v4242
    %v4365 = vsub.f32 %v4180, %v4243
    %v4366 = vsub.f32 %v4181, %v4242
    %v4367 = vsub.f32 %v4182, %v4243
    %v4368 = vsub.f32 %v4183, %v4242
    %v4369 = vsub.f32 %v4184, %v4243
    %v4370 = vsub.f32 %v4185, %v4242
    %v4371 = vsub.f32 %v4186, %v4243
    %v4372 = vsub.f32 %v4187, %v4242
    %v4373 = vsub.f32 %v4188, %v4243
    %v4374 = vsub.f32 %v4189, %v4242
    %v4375 = vsub.f32 %v4190, %v4243
    %v4376 = vsub.f32 %v4191, %v4242
    %v4377 = vsub.f32 %v4192, %v4243
    %v4378 = vmul.f32 %v4346, %v4335
    %v4379 = vmul.f32 %v4347, %v4345
    %v4380 = vmul.f32 %v4348, %v4335
    %v4381 = vmul.f32 %v4349, %v4345
    %v4382 = vmul.f32 %v4350, %v4335
    %v4383 = vmul.f32 %v4351, %v4345
    %v4384 = vmul.f32 %v4352, %v4335
    %v4385 = vmul.f32 %v4353, %v4345
    %v4386 = vmul.f32 %v4354, %v4335
    %v4387 = vmul.f32 %v4355, %v4345
    %v4388 = vmul.f32 %v4356, %v4335
    %v4389 = vmul.f32 %v4357, %v4345
    %v4390 = vmul.f32 %v4358, %v4335
    %v4391 = vmul.f32 %v4359, %v4345
    %v4392 = vmul.f32 %v4360, %v4335
    %v4393 = vmul.f32 %v4361, %v4345
    %v4394 = vmul.f32 %v4362, %v4335
    %v4395 = vmul.f32 %v4363, %v4345
    %v4396 = vmul.f32 %v4364, %v4335
    %v4397 = vmul.f32 %v4365, %v4345
    %v4398 = vmul.f32 %v4366, %v4335
    %v4399 = vmul.f32 %v4367, %v4345
    %v4400 = vmul.f32 %v4368, %v4335
    %v4401 = vmul.f32 %v4369, %v4345
    %v4402 = vmul.f32 %v4370, %v4335
    %v4403 = vmul.f32 %v4371, %v4345
    %v4404 = vmul.f32 %v4372, %v4335
    %v4405 = vmul.f32 %v4373, %v4345
    %v4406 = vmul.f32 %v4374, %v4335
    %v4407 = vmul.f32 %v4375, %v4345
    %v4408 = vmul.f32 %v4376, %v4335
    %v4409 = vmul.f32 %v4377, %v4345
    %v4410 = vld [vmem:[%s3] sm:$0x3]
    %v4412 = vperm.slane %v4410, 0
    %v4413 = vperm.slane %v4410, 1
    %v4416 = vmul.f32 %v4378, %v4412
    %v4417 = vmul.f32 %v4379, %v4413
    %v4418 = vmul.f32 %v4380, %v4412
    %v4419 = vmul.f32 %v4381, %v4413
    %v4420 = vmul.f32 %v4382, %v4412
    %v4421 = vmul.f32 %v4383, %v4413
    %v4422 = vmul.f32 %v4384, %v4412
    %v4423 = vmul.f32 %v4385, %v4413
    %v4424 = vmul.f32 %v4386, %v4412
    %v4425 = vmul.f32 %v4387, %v4413
    %v4426 = vmul.f32 %v4388, %v4412
    %v4427 = vmul.f32 %v4389, %v4413
    %v4428 = vmul.f32 %v4390, %v4412
    %v4429 = vmul.f32 %v4391, %v4413
    %v4430 = vmul.f32 %v4392, %v4412
    %v4431 = vmul.f32 %v4393, %v4413
    %v4432 = vmul.f32 %v4394, %v4412
    %v4433 = vmul.f32 %v4395, %v4413
    %v4434 = vmul.f32 %v4396, %v4412
    %v4435 = vmul.f32 %v4397, %v4413
    %v4436 = vmul.f32 %v4398, %v4412
    %v4437 = vmul.f32 %v4399, %v4413
    %v4438 = vmul.f32 %v4400, %v4412
    %v4439 = vmul.f32 %v4401, %v4413
    %v4440 = vmul.f32 %v4402, %v4412
    %v4441 = vmul.f32 %v4403, %v4413
    %v4442 = vmul.f32 %v4404, %v4412
    %v4443 = vmul.f32 %v4405, %v4413
    %v4444 = vmul.f32 %v4406, %v4412
    %v4445 = vmul.f32 %v4407, %v4413
    %v4446 = vmul.f32 %v4408, %v4412
    %v4447 = vmul.f32 %v4409, %v4413
    %v4448 = vld [vmem:[%s4] sm:$0x3]
    %v4450 = vperm.slane %v4448, 0
    %v4451 = vperm.slane %v4448, 1
    %v4454 = vadd.f32 %v4416, %v4450
    %v4455 = vadd.f32 %v4417, %v4451
    %v4456 = vadd.f32 %v4418, %v4450
    %v4457 = vadd.f32 %v4419, %v4451
    %v4458 = vadd.f32 %v4420, %v4450
    %v4459 = vadd.f32 %v4421, %v4451
    %v4460 = vadd.f32 %v4422, %v4450
    %v4461 = vadd.f32 %v4423, %v4451
    %v4462 = vadd.f32 %v4424, %v4450
    %v4463 = vadd.f32 %v4425, %v4451
    %v4464 = vadd.f32 %v4426, %v4450
    %v4465 = vadd.f32 %v4427, %v4451
    %v4466 = vadd.f32 %v4428, %v4450
    %v4467 = vadd.f32 %v4429, %v4451
    %v4468 = vadd.f32 %v4430, %v4450
    %v4469 = vadd.f32 %v4431, %v4451
    %v4470 = vadd.f32 %v4432, %v4450
    %v4471 = vadd.f32 %v4433, %v4451
    %v4472 = vadd.f32 %v4434, %v4450
    %v4473 = vadd.f32 %v4435, %v4451
    %v4474 = vadd.f32 %v4436, %v4450
    %v4475 = vadd.f32 %v4437, %v4451
    %v4476 = vadd.f32 %v4438, %v4450
    %v4477 = vadd.f32 %v4439, %v4451
    %v4478 = vadd.f32 %v4440, %v4450
    %v4479 = vadd.f32 %v4441, %v4451
    %v4480 = vadd.f32 %v4442, %v4450
    %v4481 = vadd.f32 %v4443, %v4451
    %v4482 = vadd.f32 %v4444, %v4450
    %v4483 = vadd.f32 %v4445, %v4451
    %v4484 = vadd.f32 %v4446, %v4450
    %v4485 = vadd.f32 %v4447, %v4451
    %v4486 = vpack.c.bf16 %v4455, %v4454
    %v4487 = vpack.c.bf16 %v4457, %v4456
    %v4488 = vpack.c.bf16 %v4459, %v4458
    %v4489 = vpack.c.bf16 %v4461, %v4460
    %v4490 = vpack.c.bf16 %v4463, %v4462
    %v4491 = vpack.c.bf16 %v4465, %v4464
    %v4492 = vpack.c.bf16 %v4467, %v4466
    %v4493 = vpack.c.bf16 %v4469, %v4468
    %v4494 = vpack.c.bf16 %v4471, %v4470
    %v4495 = vpack.c.bf16 %v4473, %v4472
    %v4496 = vpack.c.bf16 %v4475, %v4474
    %v4497 = vpack.c.bf16 %v4477, %v4476
    %v4498 = vpack.c.bf16 %v4479, %v4478
    %v4499 = vpack.c.bf16 %v4481, %v4480
    %v4500 = vpack.c.bf16 %v4483, %v4482
    %v4501 = vpack.c.bf16 %v4485, %v4484
    %4502 = vst [vmem:[%s5] sm:$0xff] %v4486
    %4503 = vst [vmem:[%s5 + $0x8] sm:$0xff] %v4487
    %4504 = vst [vmem:[%s5 + $0x10] sm:$0xff] %v4488
    %4505 = vst [vmem:[%s5 + $0x18] sm:$0xff] %v4489
    %4506 = vst [vmem:[%s5 + $0x20] sm:$0xff] %v4490
    %4507 = vst [vmem:[%s5 + $0x28] sm:$0xff] %v4491
    %4508 = vst [vmem:[%s5 + $0x30] sm:$0xff] %v4492
    %4509 = vst [vmem:[%s5 + $0x38] sm:$0xff] %v4493
    %4510 = vst [vmem:[%s5 + $0x40] sm:$0xff] %v4494
    %4511 = vst [vmem:[%s5 + $0x48] sm:$0xff] %v4495
    %4512 = vst [vmem:[%s5 + $0x50] sm:$0xff] %v4496
    %4513 = vst [vmem:[%s5 + $0x58] sm:$0xff] %v4497
    %4514 = vst [vmem:[%s5 + $0x60] sm:$0xff] %v4498
    %4515 = vst [vmem:[%s5 + $0x68] sm:$0xff] %v4499
    %4516 = vst [vmem:[%s5 + $0x70] sm:$0xff] %v4500
    %4517 = vst [vmem:[%s5 + $0x78] sm:$0xff] %v4501
  $region29: #{discriminator_forward.4} parent=0 // pred_fallthru
    _
  // Predicated region
  $region30: #{discriminator_forward.4} parent=0 // pred_check
    _
  $region31: #{discriminator_forward.4} parent=0 // pred_check_branch
    %4519 = sbr.rel (0) target = $region33
  $region32: #{discriminator_forward.4} parent=0 // pred_region
    _
  $region33: #{discriminator_forward.4} parent=0 // pred_fallthru
    _
  // Predicated region
  $region34: #{discriminator_forward.4} parent=0 // pred_check
    _
  $region35: #{discriminator_forward.4} parent=0 // pred_check_branch
    %4521 = sbr.rel (0) target = $region37
  $region36: #{discriminator_forward.4} parent=0 // pred_region
    _
  $region37: #{discriminator_forward.4} parent=0 // pred_fallthru
    _

// kernel: discriminator_forward.5
$region0: #{discriminator_forward.5}
  #allocation0 [shape = 'u32[]', space=smem, size = 0x4, offset = 0x4, fixed_abs, tag = 'smem constant byte address 0x4 - core index']
  #allocation1 [shape = 'u32[72,128]{1,0:T(1,128)}', space=vmem, size = 0x9000, scoped, tag = 'internal scratch']
  #allocation2 [shape = 'f32[32,512]{1,0:T(8,128)}', space=vmem, size = 0x10000, scoped, tag = 'scratch operand']
  #allocation3 [shape = 'f32[1,1]{1,0:T(1,128)S(1)}', space=vmem, size = 0x200, scoped, tag = 'scoped memory for discriminator_forward.5']
  %s0 = inlined_call_operand.vmem [shape: bf16[32,4096], index: 0, kind: input, shape index: {}]
  %s1 = inlined_call_operand.vmem [shape: bf16[4096,512], index: 1, kind: input, shape index: {}]
  %s2 = inlined_call_operand.vmem [shape: f32[1,512], index: 2, kind: input, shape index: {}]
  %s3 = inlined_call_operand.vmem [shape: f32[1,512], index: 3, kind: input, shape index: {}]
  %s4 = inlined_call_operand.vmem [shape: f32[1,512], index: 4, kind: input, shape index: {}]
  %s5 = inlined_call_operand.vmem [shape: f32[32,512], index: 5, kind: input, shape index: {}]
  %s6 = inlined_call_operand.vmem [shape: f32[2,32], index: 6, kind: input, shape index: {}]
  %s7 = inlined_call_operand.<no memory space> [shape: f32[1,1], index: 7, kind: input, shape index: {}]
  %s8 = inlined_call_operand.vmem [shape: f32[2,1], index: 8, kind: output, shape index: {}]
  %s9 = sld [smem:[#allocation0]]
  $region96: #{discriminator_forward.5} parent=0
    _
  %s11 = ssub.s32 1, %s9
  %s12 = scalar_select 0, %s11, %s9
  %v13 = vstv %s7
  %14 = vst [vmem:[#allocation3] sm:$0x1] %v13
  $region1: #{discriminator_forward.5} parent=0
    #allocation4 [shape = 'u8[262144]{0}', space=vmem, size = 0x40000, scoped, tag = 'input window, operand 0']
    loop: start=0, step=1, limit=4
    $region2: #{discriminator_forward.5} parent=1 // loop_pre_header
      _
    $region3: #{discriminator_forward.5} parent=1 // loop_header
      %s16 = sphi 0, %s20
      %p17 = scmp.ge.s32.totalorder %s16, 4
      %s26 = sphi 0, %s28
      %s29 = sphi 0, %s26
      %s30 = sphi 0, %s29
      %s46 = sphi 0, %s30
      %s52 = sphi 0, %s54
      %s55 = sphi 0, %s52
      %s56 = sphi 0, %s55
      %s72 = sphi 0, %s56
      %s76 = sphi 0, %s76
      %s78 = sphi 0, %s76
      %s79 = sphi 0, %s78
      %s93 = sphi 0, %s79
      %s97 = sphi 0, %s97
      %s99 = sphi 0, %s97
      %s100 = sphi 0, %s99
      %s114 = sphi 0, %s100
      %s118 = sphi 0, %s118
      %s120 = sphi 0, %s118
      %s121 = sphi 0, %s120
      %s135 = sphi 0, %s121
      %s139 = sphi 0, %s139
      %s141 = sphi 0, %s139
      %s142 = sphi 0, %s141
      %s156 = sphi 0, %s142
      %s160 = sphi 0, %s160
      %s162 = sphi 0, %s160
      %s163 = sphi 0, %s162
      %s177 = sphi 0, %s163
      %s181 = sphi 0, %s181
      %s183 = sphi 0, %s181
      %s184 = sphi 0, %s183
      %s198 = sphi 0, %s184
      %s202 = sphi 0, %s202
      %s204 = sphi 0, %s202
      %s205 = sphi 0, %s204
      %s219 = sphi 0, %s205
    $region4: #{discriminator_forward.5} parent=1 // loop_header_branch
      %19 = sbr.rel (%p17) target = $region8
    $region5: #{discriminator_forward.5} parent=1 // loop_body
      %s21 = ssub.s32 %s16, 1
      %s22 = ssub.s32 %s16, 2
      %s23 = sadd.s32 %s16, 1
      %s24 = ssub.s32 %s16, %s23
      %p25 = scmp.eq.s32.totalorder %s24, 0
      %s27 = sadd.s32 %s26, 1
      %s28 = scalar_select %p25, %s26, %s27
      %p31 = pneg %p25
      %p32 = scmp.eq.s32.totalorder %s16, 1
      %p33 = por %p31, %p32
      %p34 = scmp.ne.s32.totalorder %s26, %s29
      %p35 = scmp.eq.s32.totalorder %s16, 0
      %p36 = por %p34, %p35
      %p37 = scmp.ne.s32.totalorder %s26, %s29
      %p38 = scmp.eq.s32.totalorder %s21, 1
      %p39 = por %p37, %p38
      %p40 = scmp.ne.s32.totalorder %s29, %s30
      %p41 = scmp.eq.s32.totalorder %s21, 0
      %p42 = por %p40, %p41
      %p43 = scmp.ne.s32.totalorder %s29, %s30
      %p44 = scmp.eq.s32.totalorder %s22, 1
      %p45 = por %p43, %p44
      %p47 = scmp.ne.s32.totalorder %s30, %s46
      %p48 = scmp.eq.s32.totalorder %s22, 0
      %p49 = por %p47, %p48
      %s50 = ssub.s32 %s16, %s23
      %p51 = scmp.eq.s32.totalorder %s50, 0
      %s53 = sadd.s32 %s52, 1
      %s54 = scalar_select %p51, %s52, %s53
      %p57 = pneg %p51
      %p58 = scmp.eq.s32.totalorder %s16, 1
      %p59 = por %p57, %p58
      %p60 = scmp.ne.s32.totalorder %s52, %s55
      %p61 = scmp.eq.s32.totalorder %s16, 0
      %p62 = por %p60, %p61
      %p63 = scmp.ne.s32.totalorder %s52, %s55
      %p64 = scmp.eq.s32.totalorder %s21, 1
      %p65 = por %p63, %p64
      %p66 = scmp.ne.s32.totalorder %s55, %s56
      %p67 = scmp.eq.s32.totalorder %s21, 0
      %p68 = por %p66, %p67
      %p69 = scmp.ne.s32.totalorder %s55, %s56
      %p70 = scmp.eq.s32.totalorder %s22, 1
      %p71 = por %p69, %p70
      %p73 = scmp.ne.s32.totalorder %s56, %s72
      %p74 = scmp.eq.s32.totalorder %s22, 0
      %p75 = por %p73, %p74
      %s77 = sadd.s32 %s76, 1
      %p80 = scmp.eq.s32.totalorder %s16, 1
      %p81 = scmp.ne.s32.totalorder %s76, %s78
      %p82 = scmp.eq.s32.totalorder %s16, 0
      %p83 = por %p81, %p82
      %p84 = scmp.ne.s32.totalorder %s76, %s78
      %p85 = scmp.eq.s32.totalorder %s21, 1
      %p86 = por %p84, %p85
      %p87 = scmp.ne.s32.totalorder %s78, %s79
      %p88 = scmp.eq.s32.totalorder %s21, 0
      %p89 = por %p87, %p88
      %p90 = scmp.ne.s32.totalorder %s78, %s79
      %p91 = scmp.eq.s32.totalorder %s22, 1
      %p92 = por %p90, %p91
      %p94 = scmp.ne.s32.totalorder %s79, %s93
      %p95 = scmp.eq.s32.totalorder %s22, 0
      %p96 = por %p94, %p95
      %s98 = sadd.s32 %s97, 1
      %p101 = scmp.eq.s32.totalorder %s16, 1
      %p102 = scmp.ne.s32.totalorder %s97, %s99
      %p103 = scmp.eq.s32.totalorder %s16, 0
      %p104 = por %p102, %p103
      %p105 = scmp.ne.s32.totalorder %s97, %s99
      %p106 = scmp.eq.s32.totalorder %s21, 1
      %p107 = por %p105, %p106
      %p108 = scmp.ne.s32.totalorder %s99, %s100
      %p109 = scmp.eq.s32.totalorder %s21, 0
      %p110 = por %p108, %p109
      %p111 = scmp.ne.s32.totalorder %s99, %s100
      %p112 = scmp.eq.s32.totalorder %s22, 1
      %p113 = por %p111, %p112
      %p115 = scmp.ne.s32.totalorder %s100, %s114
      %p116 = scmp.eq.s32.totalorder %s22, 0
      %p117 = por %p115, %p116
      %s119 = sadd.s32 %s118, 1
      %p122 = scmp.eq.s32.totalorder %s16, 1
      %p123 = scmp.ne.s32.totalorder %s118, %s120
      %p124 = scmp.eq.s32.totalorder %s16, 0
      %p125 = por %p123, %p124
      %p126 = scmp.ne.s32.totalorder %s118, %s120
      %p127 = scmp.eq.s32.totalorder %s21, 1
      %p128 = por %p126, %p127
      %p129 = scmp.ne.s32.totalorder %s120, %s121
      %p130 = scmp.eq.s32.totalorder %s21, 0
      %p131 = por %p129, %p130
      %p132 = scmp.ne.s32.totalorder %s120, %s121
      %p133 = scmp.eq.s32.totalorder %s22, 1
      %p134 = por %p132, %p133
      %p136 = scmp.ne.s32.totalorder %s121, %s135
      %p137 = scmp.eq.s32.totalorder %s22, 0
      %p138 = por %p136, %p137
      %s140 = sadd.s32 %s139, 1
      %p143 = scmp.eq.s32.totalorder %s16, 1
      %p144 = scmp.ne.s32.totalorder %s139, %s141
      %p145 = scmp.eq.s32.totalorder %s16, 0
      %p146 = por %p144, %p145
      %p147 = scmp.ne.s32.totalorder %s139, %s141
      %p148 = scmp.eq.s32.totalorder %s21, 1
      %p149 = por %p147, %p148
      %p150 = scmp.ne.s32.totalorder %s141, %s142
      %p151 = scmp.eq.s32.totalorder %s21, 0
      %p152 = por %p150, %p151
      %p153 = scmp.ne.s32.totalorder %s141, %s142
      %p154 = scmp.eq.s32.totalorder %s22, 1
      %p155 = por %p153, %p154
      %p157 = scmp.ne.s32.totalorder %s142, %s156
      %p158 = scmp.eq.s32.totalorder %s22, 0
      %p159 = por %p157, %p158
      %s161 = sadd.s32 %s160, 1
      %p164 = scmp.eq.s32.totalorder %s16, 1
      %p165 = scmp.ne.s32.totalorder %s160, %s162
      %p166 = scmp.eq.s32.totalorder %s16, 0
      %p167 = por %p165, %p166
      %p168 = scmp.ne.s32.totalorder %s160, %s162
      %p169 = scmp.eq.s32.totalorder %s21, 1
      %p170 = por %p168, %p169
      %p171 = scmp.ne.s32.totalorder %s162, %s163
      %p172 = scmp.eq.s32.totalorder %s21, 0
      %p173 = por %p171, %p172
      %p174 = scmp.ne.s32.totalorder %s162, %s163
      %p175 = scmp.eq.s32.totalorder %s22, 1
      %p176 = por %p174, %p175
      %p178 = scmp.ne.s32.totalorder %s163, %s177
      %p179 = scmp.eq.s32.totalorder %s22, 0
      %p180 = por %p178, %p179
      %s182 = sadd.s32 %s181, 1
      %p185 = scmp.eq.s32.totalorder %s16, 1
      %p186 = scmp.ne.s32.totalorder %s181, %s183
      %p187 = scmp.eq.s32.totalorder %s16, 0
      %p188 = por %p186, %p187
      %p189 = scmp.ne.s32.totalorder %s181, %s183
      %p190 = scmp.eq.s32.totalorder %s21, 1
      %p191 = por %p189, %p190
      %p192 = scmp.ne.s32.totalorder %s183, %s184
      %p193 = scmp.eq.s32.totalorder %s21, 0
      %p194 = por %p192, %p193
      %p195 = scmp.ne.s32.totalorder %s183, %s184
      %p196 = scmp.eq.s32.totalorder %s22, 1
      %p197 = por %p195, %p196
      %p199 = scmp.ne.s32.totalorder %s184, %s198
      %p200 = scmp.eq.s32.totalorder %s22, 0
      %p201 = por %p199, %p200
      %s203 = sadd.s32 %s202, 1
      %p206 = scmp.eq.s32.totalorder %s16, 1
      %p207 = scmp.ne.s32.totalorder %s202, %s204
      %p208 = scmp.eq.s32.totalorder %s16, 0
      %p209 = por %p207, %p208
      %p210 = scmp.ne.s32.totalorder %s202, %s204
      %p211 = scmp.eq.s32.totalorder %s21, 1
      %p212 = por %p210, %p211
      %p213 = scmp.ne.s32.totalorder %s204, %s205
      %p214 = scmp.eq.s32.totalorder %s21, 0
      %p215 = por %p213, %p214
      %p216 = scmp.ne.s32.totalorder %s204, %s205
      %p217 = scmp.eq.s32.totalorder %s22, 1
      %p218 = por %p216, %p217
      %p220 = scmp.ne.s32.totalorder %s205, %s219
      %p221 = scmp.eq.s32.totalorder %s22, 0
      %p222 = por %p220, %p221
      %p223 = scmp.le.s32.totalorder 1, %s16
      %p224 = scmp.lt.s32.totalorder %s16, 3
      %p225 = pnand %p223, %p224
      %p226 = pneg %p225
      // Predicated region
      $region9: #{discriminator_forward.5} parent=5 // pred_check
        _
      $region10: #{discriminator_forward.5} parent=5 // pred_check_branch
        %228 = sbr.rel (%p225) target = $region12
      $region11: #{discriminator_forward.5} parent=5 // pred_region
        %s229 = ssub.s32 %s16, 1
        // Predicated region
        $region13: #{discriminator_forward.5} parent=11 // pred_check
          %p230 = pneg %p89
        $region14: #{discriminator_forward.5} parent=11 // pred_check_branch
          %232 = sbr.rel (%p230) target = $region16
        $region15: #{discriminator_forward.5} parent=11 // pred_region
          _
        $region16: #{discriminator_forward.5} parent=11 // pred_fallthru
          _
        // Predicated region
        $region17: #{discriminator_forward.5} parent=11 // pred_check
          %p233 = pneg %p110
        $region18: #{discriminator_forward.5} parent=11 // pred_check_branch
          %235 = sbr.rel (%p233) target = $region20
        $region19: #{discriminator_forward.5} parent=11 // pred_region
          _
        $region20: #{discriminator_forward.5} parent=11 // pred_fallthru
          _
        // Predicated region
        $region21: #{discriminator_forward.5} parent=11 // pred_check
          %p236 = pneg %p131
        $region22: #{discriminator_forward.5} parent=11 // pred_check_branch
          %238 = sbr.rel (%p236) target = $region24
        $region23: #{discriminator_forward.5} parent=11 // pred_region
          _
        $region24: #{discriminator_forward.5} parent=11 // pred_fallthru
          _
        // Predicated region
        $region25: #{discriminator_forward.5} parent=11 // pred_check
          %p239 = pneg %p152
        $region26: #{discriminator_forward.5} parent=11 // pred_check_branch
          %241 = sbr.rel (%p239) target = $region28
        $region27: #{discriminator_forward.5} parent=11 // pred_region
          _
        $region28: #{discriminator_forward.5} parent=11 // pred_fallthru
          _
        // Predicated region
        $region29: #{discriminator_forward.5} parent=11 // pred_check
          %p242 = pneg %p173
        $region30: #{discriminator_forward.5} parent=11 // pred_check_branch
          %244 = sbr.rel (%p242) target = $region32
        $region31: #{discriminator_forward.5} parent=11 // pred_region
          _
        $region32: #{discriminator_forward.5} parent=11 // pred_fallthru
          _
        // Predicated region
        $region33: #{discriminator_forward.5} parent=11 // pred_check
          %p245 = pneg %p194
        $region34: #{discriminator_forward.5} parent=11 // pred_check_branch
          %247 = sbr.rel (%p245) target = $region36
        $region35: #{discriminator_forward.5} parent=11 // pred_region
          _
        $region36: #{discriminator_forward.5} parent=11 // pred_fallthru
          _
      $region12: #{discriminator_forward.5} parent=5 // pred_fallthru
        _
      %p248 = scmp.lt.s32.totalorder %s16, 2
      // Predicated region
      $region37: #{discriminator_forward.5} parent=5 // pred_check
        %p249 = pneg %p248
      $region38: #{discriminator_forward.5} parent=5 // pred_check_branch
        %251 = sbr.rel (%p249) target = $region40
      $region39: #{discriminator_forward.5} parent=5 // pred_region
        // Predicated region
        $region41: #{discriminator_forward.5} parent=39 // pred_check
          %p252 = pneg %p36
        $region42: #{discriminator_forward.5} parent=39 // pred_check_branch
          %254 = sbr.rel (%p252) target = $region44
        $region43: #{discriminator_forward.5} parent=39 // pred_region
          %s255 = sand.u32 %s26, 1
          %s256 = sand.u32 %s26, 1
          %s257 = smul.addr %s256, 256
          %s258 = scalar_lea.vmem [#allocation4], %s257
          %s259 = smul.u32 16, %s16
          %s260 = smul.addr %s259, 4
          %s261 = scalar_lea.vmem %s0, %s260
          // Predicated region
          $region45: #{discriminator_forward.5} parent=43 // pred_check
            _
          $region46: #{discriminator_forward.5} parent=43 // pred_check_branch
            %263 = sbr.rel (0) target = $region48
          $region47: #{discriminator_forward.5} parent=43 // pred_region
            // Predicated region
            $region49: #{discriminator_forward.5} parent=47 // pred_check
              _
            $region50: #{discriminator_forward.5} parent=47 // pred_check_branch
              %265 = sbr.rel (0) target = $region52
            $region51: #{discriminator_forward.5} parent=47 // pred_region
              loop: start=0, step=1, limit=1
              $region53: #{discriminator_forward.5} parent=51 // loop_pre_header
                _
              $region54: #{discriminator_forward.5} parent=51 // loop_header
                %s267 = sphi 0, %s271
                %p268 = scmp.ge.s32.totalorder %s267, 1
                %s272 = sphi %s261, %s261
                %s273 = sphi %s258, %s258
              $region55: #{discriminator_forward.5} parent=51 // loop_header_branch
                %270 = sbr.rel (%p268) target = $region59
              $region56: #{discriminator_forward.5} parent=51 // loop_body
                %v274 = vld [vmem:[%s272] sm:$0xff]
                %275 = vst [vmem:[%s273] sm:$0xff] %v274
                %v276 = vld [vmem:[%s272 + $0x8] sm:$0xff]
                %277 = vst [vmem:[%s273 + $0x8] sm:$0xff] %v276
                %v278 = vld [vmem:[%s272 + $0x10] sm:$0xff]
                %279 = vst [vmem:[%s273 + $0x10] sm:$0xff] %v278
                %v280 = vld [vmem:[%s272 + $0x18] sm:$0xff]
                %281 = vst [vmem:[%s273 + $0x18] sm:$0xff] %v280
                %v282 = vld [vmem:[%s272 + $0x20] sm:$0xff]
                %283 = vst [vmem:[%s273 + $0x20] sm:$0xff] %v282
                %v284 = vld [vmem:[%s272 + $0x28] sm:$0xff]
                %285 = vst [vmem:[%s273 + $0x28] sm:$0xff] %v284
                %v286 = vld [vmem:[%s272 + $0x30] sm:$0xff]
                %287 = vst [vmem:[%s273 + $0x30] sm:$0xff] %v286
                %v288 = vld [vmem:[%s272 + $0x38] sm:$0xff]
                %289 = vst [vmem:[%s273 + $0x38] sm:$0xff] %v288
                %v290 = vld [vmem:[%s272 + $0x80] sm:$0xff]
                %291 = vst [vmem:[%s273 + $0x40] sm:$0xff] %v290
                %v292 = vld [vmem:[%s272 + $0x88] sm:$0xff]
                %293 = vst [vmem:[%s273 + $0x48] sm:$0xff] %v292
                %v294 = vld [vmem:[%s272 + $0x90] sm:$0xff]
                %295 = vst [vmem:[%s273 + $0x50] sm:$0xff] %v294
                %v296 = vld [vmem:[%s272 + $0x98] sm:$0xff]
                %297 = vst [vmem:[%s273 + $0x58] sm:$0xff] %v296
                %v298 = vld [vmem:[%s272 + $0xa0] sm:$0xff]
                %299 = vst [vmem:[%s273 + $0x60] sm:$0xff] %v298
                %v300 = vld [vmem:[%s272 + $0xa8] sm:$0xff]
                %301 = vst [vmem:[%s273 + $0x68] sm:$0xff] %v300
                %v302 = vld [vmem:[%s272 + $0xb0] sm:$0xff]
                %303 = vst [vmem:[%s273 + $0x70] sm:$0xff] %v302
                %v304 = vld [vmem:[%s272 + $0xb8] sm:$0xff]
                %305 = vst [vmem:[%s273 + $0x78] sm:$0xff] %v304
                %v306 = vld [vmem:[%s272 + $0x100] sm:$0xff]
                %307 = vst [vmem:[%s273 + $0x80] sm:$0xff] %v306
                %v308 = vld [vmem:[%s272 + $0x108] sm:$0xff]
                %309 = vst [vmem:[%s273 + $0x88] sm:$0xff] %v308
                %v310 = vld [vmem:[%s272 + $0x110] sm:$0xff]
                %311 = vst [vmem:[%s273 + $0x90] sm:$0xff] %v310
                %v312 = vld [vmem:[%s272 + $0x118] sm:$0xff]
                %313 = vst [vmem:[%s273 + $0x98] sm:$0xff] %v312
                %v314 = vld [vmem:[%s272 + $0x120] sm:$0xff]
                %315 = vst [vmem:[%s273 + $0xa0] sm:$0xff] %v314
                %v316 = vld [vmem:[%s272 + $0x128] sm:$0xff]
                %317 = vst [vmem:[%s273 + $0xa8] sm:$0xff] %v316
                %v318 = vld [vmem:[%s272 + $0x130] sm:$0xff]
                %319 = vst [vmem:[%s273 + $0xb0] sm:$0xff] %v318
                %v320 = vld [vmem:[%s272 + $0x138] sm:$0xff]
                %321 = vst [vmem:[%s273 + $0xb8] sm:$0xff] %v320
                %v322 = vld [vmem:[%s272 + $0x180] sm:$0xff]
                %323 = vst [vmem:[%s273 + $0xc0] sm:$0xff] %v322
                %v324 = vld [vmem:[%s272 + $0x188] sm:$0xff]
                %325 = vst [vmem:[%s273 + $0xc8] sm:$0xff] %v324
                %v326 = vld [vmem:[%s272 + $0x190] sm:$0xff]
                %327 = vst [vmem:[%s273 + $0xd0] sm:$0xff] %v326
                %v328 = vld [vmem:[%s272 + $0x198] sm:$0xff]
                %329 = vst [vmem:[%s273 + $0xd8] sm:$0xff] %v328
                %v330 = vld [vmem:[%s272 + $0x1a0] sm:$0xff]
                %331 = vst [vmem:[%s273 + $0xe0] sm:$0xff] %v330
                %v332 = vld [vmem:[%s272 + $0x1a8] sm:$0xff]
                %333 = vst [vmem:[%s273 + $0xe8] sm:$0xff] %v332
                %v334 = vld [vmem:[%s272 + $0x1b0] sm:$0xff]
                %335 = vst [vmem:[%s273 + $0xf0] sm:$0xff] %v334
                %v336 = vld [vmem:[%s272 + $0x1b8] sm:$0xff]
                %337 = vst [vmem:[%s273 + $0xf8] sm:$0xff] %v336
              $region57: #{discriminator_forward.5} parent=51 // loop_footer
                %s271 = sadd.s32 1, %s267
              $region58: #{discriminator_forward.5} parent=51 // loop_footer_branch
                %266 = sbr.rel target = $region54
              $region59: #{discriminator_forward.5} parent=51 // loop_exit
                _
            $region52: #{discriminator_forward.5} parent=47 // pred_fallthru
              _
            // Predicated region
            $region60: #{discriminator_forward.5} parent=47 // pred_check
              _
            $region61: #{discriminator_forward.5} parent=47 // pred_check_branch
              %339 = sbr.rel target = $region63
            $region62: #{discriminator_forward.5} parent=47 // pred_region
              _
            $region63: #{discriminator_forward.5} parent=47 // pred_fallthru
              _
          $region48: #{discriminator_forward.5} parent=43 // pred_fallthru
            _
          %340 = vnop
        $region44: #{discriminator_forward.5} parent=39 // pred_fallthru
          _
        // Predicated region
        $region64: #{discriminator_forward.5} parent=39 // pred_check
          %p341 = pneg %p62
        $region65: #{discriminator_forward.5} parent=39 // pred_check_branch
          %343 = sbr.rel (%p341) target = $region67
        $region66: #{discriminator_forward.5} parent=39 // pred_region
          %s344 = smul.u32 256, %s16
          %p345 = scmp.lt.s32.totalorder %s344, 511
          %s346 = scalar_select %p345, %s344, 511
          %s347 = smul.addr %s346, 4
          %s348 = smul.addr %s347, 4
          %s349 = scalar_lea.vmem %s1, %s348
          %s350 = smul.u32 256, %s16
        $region67: #{discriminator_forward.5} parent=39 // pred_fallthru
          _
      $region40: #{discriminator_forward.5} parent=5 // pred_fallthru
        _
      %p351 = scmp.le.s32.totalorder 1, %s16
      %p352 = scmp.lt.s32.totalorder %s16, 3
      %p353 = pnand %p351, %p352
      %p354 = pneg %p353
      // Predicated region
      $region68: #{discriminator_forward.5} parent=5 // pred_check
        _
      $region69: #{discriminator_forward.5} parent=5 // pred_check_branch
        %356 = sbr.rel (%p353) target = $region71
      $region70: #{discriminator_forward.5} parent=5 // pred_region
        %s357 = ssub.s32 %s16, 1
        %s358 = sand.u32 %s29, 1
        %s359 = sand.u32 %s29, 1
        %s360 = smul.addr %s359, 256
        %s361 = scalar_lea.vmem [#allocation4], %s360
        // Predicated region
        $region72: #{discriminator_forward.5} parent=70 // pred_check
          %p362 = pneg %p42
        $region73: #{discriminator_forward.5} parent=70 // pred_check_branch
          %364 = sbr.rel (%p362) target = $region75
        $region74: #{discriminator_forward.5} parent=70 // pred_region
          _
        $region75: #{discriminator_forward.5} parent=70 // pred_fallthru
          _
        %s365 = sand.u32 %s29, 1
        %s366 = sand.u32 %s29, 1
        %s367 = smul.addr %s366, 256
        %s368 = scalar_lea.vmem [#allocation4], %s367
        %p369 = pneg %p42
        %p370 = pneg %p39
        %s371 = smul.u32 256, %s21
        %p372 = scmp.lt.s32.totalorder %s371, 511
        %s373 = scalar_select %p372, %s371, 511
        %s374 = smul.addr %s373, 4
        %s375 = smul.addr %s374, 4
        %s376 = scalar_lea.vmem %s1, %s375
        %p377 = pneg %p68
        %p378 = pneg %p65
        %p379 = pneg %p89
        %p380 = pneg %p86
        %p381 = pneg %p110
        %p382 = pneg %p107
        %p383 = pneg %p131
        %p384 = pneg %p128
        %p385 = pneg %p152
        %p386 = pneg %p149
        %p387 = pneg %p173
        %p388 = pneg %p170
        %p389 = pneg %p194
        %p390 = pneg %p191
        %p391 = pneg %p215
        %p392 = pneg %p212
        %s393 = smul.u32 16, %s21
        %s394 = smul.u32 256, %s21
        %p395 = scmp.lt.s32.totalorder %s394, 511
        %s396 = scalar_select %p395, %s394, 511
        %s397 = smul.addr %s396, 4
        %s398 = smul.addr %s397, 4
        %s399 = scalar_lea.vmem %s1, %s398
        %s400 = smul.u32 256, %s21
        %p401 = scmp.eq.s32.totalorder %s21, 0
        // Predicated region
        $region76: #{discriminator_forward.5} parent=70 // pred_check
          %p402 = pneg %p401
        $region77: #{discriminator_forward.5} parent=70 // pred_check_branch
          %404 = sbr.rel (%p402) target = $region79
        $region78: #{discriminator_forward.5} parent=70 // pred_region
          %405 = vst [vmem:[#allocation2] sm:$0xff] 0.0
          %406 = vst [vmem:[#allocation2 + $0x8] sm:$0xff] 0.0
          %407 = vst [vmem:[#allocation2 + $0x10] sm:$0xff] 0.0
          %408 = vst [vmem:[#allocation2 + $0x18] sm:$0xff] 0.0
          %409 = vst [vmem:[#allocation2 + $0x20] sm:$0xff] 0.0
          %410 = vst [vmem:[#allocation2 + $0x28] sm:$0xff] 0.0
          %411 = vst [vmem:[#allocation2 + $0x30] sm:$0xff] 0.0
          %412 = vst [vmem:[#allocation2 + $0x38] sm:$0xff] 0.0
          %413 = vst [vmem:[#allocation2 + $0x40] sm:$0xff] 0.0
          %414 = vst [vmem:[#allocation2 + $0x48] sm:$0xff] 0.0
          %415 = vst [vmem:[#allocation2 + $0x50] sm:$0xff] 0.0
          %416 = vst [vmem:[#allocation2 + $0x58] sm:$0xff] 0.0
          %417 = vst [vmem:[#allocation2 + $0x60] sm:$0xff] 0.0
          %418 = vst [vmem:[#allocation2 + $0x68] sm:$0xff] 0.0
          %419 = vst [vmem:[#allocation2 + $0x70] sm:$0xff] 0.0
          %420 = vst [vmem:[#allocation2 + $0x78] sm:$0xff] 0.0
        $region79: #{discriminator_forward.5} parent=70 // pred_fallthru
          _
        %v421 = vld [vmem:[#allocation2] sm:$0xff]
        %v422 = vld [vmem:[#allocation2 + $0x8] sm:$0xff]
        %v423 = vld [vmem:[#allocation2 + $0x10] sm:$0xff]
        %v424 = vld [vmem:[#allocation2 + $0x18] sm:$0xff]
        %v425 = vld [vmem:[#allocation2 + $0x20] sm:$0xff]
        %v426 = vld [vmem:[#allocation2 + $0x28] sm:$0xff]
        %v427 = vld [vmem:[#allocation2 + $0x30] sm:$0xff]
        %v428 = vld [vmem:[#allocation2 + $0x38] sm:$0xff]
        %v429 = vld [vmem:[#allocation2 + $0x40] sm:$0xff]
        %v430 = vld [vmem:[#allocation2 + $0x48] sm:$0xff]
        %v431 = vld [vmem:[#allocation2 + $0x50] sm:$0xff]
        %v432 = vld [vmem:[#allocation2 + $0x58] sm:$0xff]
        %v433 = vld [vmem:[#allocation2 + $0x60] sm:$0xff]
        %v434 = vld [vmem:[#allocation2 + $0x68] sm:$0xff]
        %v435 = vld [vmem:[#allocation2 + $0x70] sm:$0xff]
        %v436 = vld [vmem:[#allocation2 + $0x78] sm:$0xff]
        %v437 = vld [vmem:[%s361] sm:$0xff]
        %v438 = vld [vmem:[%s361 + $0x8] sm:$0xff]
        %v439 = vld [vmem:[%s361 + $0x10] sm:$0xff]
        %v440 = vld [vmem:[%s361 + $0x18] sm:$0xff]
        %v441 = vld [vmem:[%s361 + $0x20] sm:$0xff]
        %v442 = vld [vmem:[%s361 + $0x28] sm:$0xff]
        %v443 = vld [vmem:[%s361 + $0x30] sm:$0xff]
        %v444 = vld [vmem:[%s361 + $0x38] sm:$0xff]
        %v445 = vld [vmem:[%s361 + $0x40] sm:$0xff]
        %v446 = vld [vmem:[%s361 + $0x48] sm:$0xff]
        %v447 = vld [vmem:[%s361 + $0x50] sm:$0xff]
        %v448 = vld [vmem:[%s361 + $0x58] sm:$0xff]
        %v449 = vld [vmem:[%s361 + $0x60] sm:$0xff]
        %v450 = vld [vmem:[%s361 + $0x68] sm:$0xff]
        %v451 = vld [vmem:[%s361 + $0x70] sm:$0xff]
        %v452 = vld [vmem:[%s361 + $0x78] sm:$0xff]
        %v453 = vld [vmem:[%s361 + $0x80] sm:$0xff]
        %v454 = vld [vmem:[%s361 + $0x88] sm:$0xff]
        %v455 = vld [vmem:[%s361 + $0x90] sm:$0xff]
        %v456 = vld [vmem:[%s361 + $0x98] sm:$0xff]
        %v457 = vld [vmem:[%s361 + $0xa0] sm:$0xff]
        %v458 = vld [vmem:[%s361 + $0xa8] sm:$0xff]
        %v459 = vld [vmem:[%s361 + $0xb0] sm:$0xff]
        %v460 = vld [vmem:[%s361 + $0xb8] sm:$0xff]
        %v461 = vld [vmem:[%s361 + $0xc0] sm:$0xff]
        %v462 = vld [vmem:[%s361 + $0xc8] sm:$0xff]
        %v463 = vld [vmem:[%s361 + $0xd0] sm:$0xff]
        %v464 = vld [vmem:[%s361 + $0xd8] sm:$0xff]
        %v465 = vld [vmem:[%s361 + $0xe0] sm:$0xff]
        %v466 = vld [vmem:[%s361 + $0xe8] sm:$0xff]
        %v467 = vld [vmem:[%s361 + $0xf0] sm:$0xff]
        %v468 = vld [vmem:[%s361 + $0xf8] sm:$0xff]
        %v469 = vld [vmem:[%s399] sm:$0xff]
        %v470 = vld [vmem:[%s399 + $0x8] sm:$0xff]
        %v471 = vld [vmem:[%s399 + $0x10] sm:$0xff]
        %v472 = vld [vmem:[%s399 + $0x18] sm:$0xff]
        %v473 = vld [vmem:[%s399 + $0x20] sm:$0xff]
        %v474 = vld [vmem:[%s399 + $0x28] sm:$0xff]
        %v475 = vld [vmem:[%s399 + $0x30] sm:$0xff]
        %v476 = vld [vmem:[%s399 + $0x38] sm:$0xff]
        %v477 = vld [vmem:[%s399 + $0x40] sm:$0xff]
        %v478 = vld [vmem:[%s399 + $0x48] sm:$0xff]
        %v479 = vld [vmem:[%s399 + $0x50] sm:$0xff]
        %v480 = vld [vmem:[%s399 + $0x58] sm:$0xff]
        %v481 = vld [vmem:[%s399 + $0x60] sm:$0xff]
        %v482 = vld [vmem:[%s399 + $0x68] sm:$0xff]
        %v483 = vld [vmem:[%s399 + $0x70] sm:$0xff]
        %v484 = vld [vmem:[%s399 + $0x78] sm:$0xff]
        %v485 = vld [vmem:[%s399 + $0x80] sm:$0xff]
        %v486 = vld [vmem:[%s399 + $0x88] sm:$0xff]
        %v487 = vld [vmem:[%s399 + $0x90] sm:$0xff]
        %v488 = vld [vmem:[%s399 + $0x98] sm:$0xff]
        %v489 = vld [vmem:[%s399 + $0xa0] sm:$0xff]
        %v490 = vld [vmem:[%s399 + $0xa8] sm:$0xff]
        %v491 = vld [vmem:[%s399 + $0xb0] sm:$0xff]
        %v492 = vld [vmem:[%s399 + $0xb8] sm:$0xff]
        %v493 = vld [vmem:[%s399 + $0xc0] sm:$0xff]
        %v494 = vld [vmem:[%s399 + $0xc8] sm:$0xff]
        %v495 = vld [vmem:[%s399 + $0xd0] sm:$0xff]
        %v496 = vld [vmem:[%s399 + $0xd8] sm:$0xff]
        %v497 = vld [vmem:[%s399 + $0xe0] sm:$0xff]
        %v498 = vld [vmem:[%s399 + $0xe8] sm:$0xff]
        %v499 = vld [vmem:[%s399 + $0xf0] sm:$0xff]
        %v500 = vld [vmem:[%s399 + $0xf8] sm:$0xff]
        %v501 = vld [vmem:[%s399 + $0x100] sm:$0xff]
        %v502 = vld [vmem:[%s399 + $0x108] sm:$0xff]
        %v503 = vld [vmem:[%s399 + $0x110] sm:$0xff]
        %v504 = vld [vmem:[%s399 + $0x118] sm:$0xff]
        %v505 = vld [vmem:[%s399 + $0x120] sm:$0xff]
        %v506 = vld [vmem:[%s399 + $0x128] sm:$0xff]
        %v507 = vld [vmem:[%s399 + $0x130] sm:$0xff]
        %v508 = vld [vmem:[%s399 + $0x138] sm:$0xff]
        %v509 = vld [vmem:[%s399 + $0x140] sm:$0xff]
        %v510 = vld [vmem:[%s399 + $0x148] sm:$0xff]
        %v511 = vld [vmem:[%s399 + $0x150] sm:$0xff]
        %v512 = vld [vmem:[%s399 + $0x158] sm:$0xff]
        %v513 = vld [vmem:[%s399 + $0x160] sm:$0xff]
        %v514 = vld [vmem:[%s399 + $0x168] sm:$0xff]
        %v515 = vld [vmem:[%s399 + $0x170] sm:$0xff]
        %v516 = vld [vmem:[%s399 + $0x178] sm:$0xff]
        %v517 = vld [vmem:[%s399 + $0x180] sm:$0xff]
        %v518 = vld [vmem:[%s399 + $0x188] sm:$0xff]
        %v519 = vld [vmem:[%s399 + $0x190] sm:$0xff]
        %v520 = vld [vmem:[%s399 + $0x198] sm:$0xff]
        %v521 = vld [vmem:[%s399 + $0x1a0] sm:$0xff]
        %v522 = vld [vmem:[%s399 + $0x1a8] sm:$0xff]
        %v523 = vld [vmem:[%s399 + $0x1b0] sm:$0xff]
        %v524 = vld [vmem:[%s399 + $0x1b8] sm:$0xff]
        %v525 = vld [vmem:[%s399 + $0x1c0] sm:$0xff]
        %v526 = vld [vmem:[%s399 + $0x1c8] sm:$0xff]
        %v527 = vld [vmem:[%s399 + $0x1d0] sm:$0xff]
        %v528 = vld [vmem:[%s399 + $0x1d8] sm:$0xff]
        %v529 = vld [vmem:[%s399 + $0x1e0] sm:$0xff]
        %v530 = vld [vmem:[%s399 + $0x1e8] sm:$0xff]
        %v531 = vld [vmem:[%s399 + $0x1f0] sm:$0xff]
        %v532 = vld [vmem:[%s399 + $0x1f8] sm:$0xff]
        %v533 = vld [vmem:[%s399 + $0x200] sm:$0xff]
        %v534 = vld [vmem:[%s399 + $0x208] sm:$0xff]
        %v535 = vld [vmem:[%s399 + $0x210] sm:$0xff]
        %v536 = vld [vmem:[%s399 + $0x218] sm:$0xff]
        %v537 = vld [vmem:[%s399 + $0x220] sm:$0xff]
        %v538 = vld [vmem:[%s399 + $0x228] sm:$0xff]
        %v539 = vld [vmem:[%s399 + $0x230] sm:$0xff]
        %v540 = vld [vmem:[%s399 + $0x238] sm:$0xff]
        %v541 = vld [vmem:[%s399 + $0x240] sm:$0xff]
        %v542 = vld [vmem:[%s399 + $0x248] sm:$0xff]
        %v543 = vld [vmem:[%s399 + $0x250] sm:$0xff]
        %v544 = vld [vmem:[%s399 + $0x258] sm:$0xff]
        %v545 = vld [vmem:[%s399 + $0x260] sm:$0xff]
        %v546 = vld [vmem:[%s399 + $0x268] sm:$0xff]
        %v547 = vld [vmem:[%s399 + $0x270] sm:$0xff]
        %v548 = vld [vmem:[%s399 + $0x278] sm:$0xff]
        %v549 = vld [vmem:[%s399 + $0x280] sm:$0xff]
        %v550 = vld [vmem:[%s399 + $0x288] sm:$0xff]
        %v551 = vld [vmem:[%s399 + $0x290] sm:$0xff]
        %v552 = vld [vmem:[%s399 + $0x298] sm:$0xff]
        %v553 = vld [vmem:[%s399 + $0x2a0] sm:$0xff]
        %v554 = vld [vmem:[%s399 + $0x2a8] sm:$0xff]
        %v555 = vld [vmem:[%s399 + $0x2b0] sm:$0xff]
        %v556 = vld [vmem:[%s399 + $0x2b8] sm:$0xff]
        %v557 = vld [vmem:[%s399 + $0x2c0] sm:$0xff]
        %v558 = vld [vmem:[%s399 + $0x2c8] sm:$0xff]
        %v559 = vld [vmem:[%s399 + $0x2d0] sm:$0xff]
        %v560 = vld [vmem:[%s399 + $0x2d8] sm:$0xff]
        %v561 = vld [vmem:[%s399 + $0x2e0] sm:$0xff]
        %v562 = vld [vmem:[%s399 + $0x2e8] sm:$0xff]
        %v563 = vld [vmem:[%s399 + $0x2f0] sm:$0xff]
        %v564 = vld [vmem:[%s399 + $0x2f8] sm:$0xff]
        %v565 = vld [vmem:[%s399 + $0x300] sm:$0xff]
        %v566 = vld [vmem:[%s399 + $0x308] sm:$0xff]
        %v567 = vld [vmem:[%s399 + $0x310] sm:$0xff]
        %v568 = vld [vmem:[%s399 + $0x318] sm:$0xff]
        %v569 = vld [vmem:[%s399 + $0x320] sm:$0xff]
        %v570 = vld [vmem:[%s399 + $0x328] sm:$0xff]
        %v571 = vld [vmem:[%s399 + $0x330] sm:$0xff]
        %v572 = vld [vmem:[%s399 + $0x338] sm:$0xff]
        %v573 = vld [vmem:[%s399 + $0x340] sm:$0xff]
        %v574 = vld [vmem:[%s399 + $0x348] sm:$0xff]
        %v575 = vld [vmem:[%s399 + $0x350] sm:$0xff]
        %v576 = vld [vmem:[%s399 + $0x358] sm:$0xff]
        %v577 = vld [vmem:[%s399 + $0x360] sm:$0xff]
        %v578 = vld [vmem:[%s399 + $0x368] sm:$0xff]
        %v579 = vld [vmem:[%s399 + $0x370] sm:$0xff]
        %v580 = vld [vmem:[%s399 + $0x378] sm:$0xff]
        %v581 = vld [vmem:[%s399 + $0x380] sm:$0xff]
        %v582 = vld [vmem:[%s399 + $0x388] sm:$0xff]
        %v583 = vld [vmem:[%s399 + $0x390] sm:$0xff]
        %v584 = vld [vmem:[%s399 + $0x398] sm:$0xff]
        %v585 = vld [vmem:[%s399 + $0x3a0] sm:$0xff]
        %v586 = vld [vmem:[%s399 + $0x3a8] sm:$0xff]
        %v587 = vld [vmem:[%s399 + $0x3b0] sm:$0xff]
        %v588 = vld [vmem:[%s399 + $0x3b8] sm:$0xff]
        %v589 = vld [vmem:[%s399 + $0x3c0] sm:$0xff]
        %v590 = vld [vmem:[%s399 + $0x3c8] sm:$0xff]
        %v591 = vld [vmem:[%s399 + $0x3d0] sm:$0xff]
        %v592 = vld [vmem:[%s399 + $0x3d8] sm:$0xff]
        %v593 = vld [vmem:[%s399 + $0x3e0] sm:$0xff]
        %v594 = vld [vmem:[%s399 + $0x3e8] sm:$0xff]
        %v595 = vld [vmem:[%s399 + $0x3f0] sm:$0xff]
        %v596 = vld [vmem:[%s399 + $0x3f8] sm:$0xff]
        %v597 = vld [vmem:[%s399 + $0x400] sm:$0xff]
        %v598 = vld [vmem:[%s399 + $0x408] sm:$0xff]
        %v599 = vld [vmem:[%s399 + $0x410] sm:$0xff]
        %v600 = vld [vmem:[%s399 + $0x418] sm:$0xff]
        %v601 = vld [vmem:[%s399 + $0x420] sm:$0xff]
        %v602 = vld [vmem:[%s399 + $0x428] sm:$0xff]
        %v603 = vld [vmem:[%s399 + $0x430] sm:$0xff]
        %v604 = vld [vmem:[%s399 + $0x438] sm:$0xff]
        %v605 = vld [vmem:[%s399 + $0x440] sm:$0xff]
        %v606 = vld [vmem:[%s399 + $0x448] sm:$0xff]
        %v607 = vld [vmem:[%s399 + $0x450] sm:$0xff]
        %v608 = vld [vmem:[%s399 + $0x458] sm:$0xff]
        %v609 = vld [vmem:[%s399 + $0x460] sm:$0xff]
        %v610 = vld [vmem:[%s399 + $0x468] sm:$0xff]
        %v611 = vld [vmem:[%s399 + $0x470] sm:$0xff]
        %v612 = vld [vmem:[%s399 + $0x478] sm:$0xff]
        %v613 = vld [vmem:[%s399 + $0x480] sm:$0xff]
        %v614 = vld [vmem:[%s399 + $0x488] sm:$0xff]
        %v615 = vld [vmem:[%s399 + $0x490] sm:$0xff]
        %v616 = vld [vmem:[%s399 + $0x498] sm:$0xff]
        %v617 = vld [vmem:[%s399 + $0x4a0] sm:$0xff]
        %v618 = vld [vmem:[%s399 + $0x4a8] sm:$0xff]
        %v619 = vld [vmem:[%s399 + $0x4b0] sm:$0xff]
        %v620 = vld [vmem:[%s399 + $0x4b8] sm:$0xff]
        %v621 = vld [vmem:[%s399 + $0x4c0] sm:$0xff]
        %v622 = vld [vmem:[%s399 + $0x4c8] sm:$0xff]
        %v623 = vld [vmem:[%s399 + $0x4d0] sm:$0xff]
        %v624 = vld [vmem:[%s399 + $0x4d8] sm:$0xff]
        %v625 = vld [vmem:[%s399 + $0x4e0] sm:$0xff]
        %v626 = vld [vmem:[%s399 + $0x4e8] sm:$0xff]
        %v627 = vld [vmem:[%s399 + $0x4f0] sm:$0xff]
        %v628 = vld [vmem:[%s399 + $0x4f8] sm:$0xff]
        %v629 = vld [vmem:[%s399 + $0x500] sm:$0xff]
        %v630 = vld [vmem:[%s399 + $0x508] sm:$0xff]
        %v631 = vld [vmem:[%s399 + $0x510] sm:$0xff]
        %v632 = vld [vmem:[%s399 + $0x518] sm:$0xff]
        %v633 = vld [vmem:[%s399 + $0x520] sm:$0xff]
        %v634 = vld [vmem:[%s399 + $0x528] sm:$0xff]
        %v635 = vld [vmem:[%s399 + $0x530] sm:$0xff]
        %v636 = vld [vmem:[%s399 + $0x538] sm:$0xff]
        %v637 = vld [vmem:[%s399 + $0x540] sm:$0xff]
        %v638 = vld [vmem:[%s399 + $0x548] sm:$0xff]
        %v639 = vld [vmem:[%s399 + $0x550] sm:$0xff]
        %v640 = vld [vmem:[%s399 + $0x558] sm:$0xff]
        %v641 = vld [vmem:[%s399 + $0x560] sm:$0xff]
        %v642 = vld [vmem:[%s399 + $0x568] sm:$0xff]
        %v643 = vld [vmem:[%s399 + $0x570] sm:$0xff]
        %v644 = vld [vmem:[%s399 + $0x578] sm:$0xff]
        %v645 = vld [vmem:[%s399 + $0x580] sm:$0xff]
        %v646 = vld [vmem:[%s399 + $0x588] sm:$0xff]
        %v647 = vld [vmem:[%s399 + $0x590] sm:$0xff]
        %v648 = vld [vmem:[%s399 + $0x598] sm:$0xff]
        %v649 = vld [vmem:[%s399 + $0x5a0] sm:$0xff]
        %v650 = vld [vmem:[%s399 + $0x5a8] sm:$0xff]
        %v651 = vld [vmem:[%s399 + $0x5b0] sm:$0xff]
        %v652 = vld [vmem:[%s399 + $0x5b8] sm:$0xff]
        %v653 = vld [vmem:[%s399 + $0x5c0] sm:$0xff]
        %v654 = vld [vmem:[%s399 + $0x5c8] sm:$0xff]
        %v655 = vld [vmem:[%s399 + $0x5d0] sm:$0xff]
        %v656 = vld [vmem:[%s399 + $0x5d8] sm:$0xff]
        %v657 = vld [vmem:[%s399 + $0x5e0] sm:$0xff]
        %v658 = vld [vmem:[%s399 + $0x5e8] sm:$0xff]
        %v659 = vld [vmem:[%s399 + $0x5f0] sm:$0xff]
        %v660 = vld [vmem:[%s399 + $0x5f8] sm:$0xff]
        %v661 = vld [vmem:[%s399 + $0x600] sm:$0xff]
        %v662 = vld [vmem:[%s399 + $0x608] sm:$0xff]
        %v663 = vld [vmem:[%s399 + $0x610] sm:$0xff]
        %v664 = vld [vmem:[%s399 + $0x618] sm:$0xff]
        %v665 = vld [vmem:[%s399 + $0x620] sm:$0xff]
        %v666 = vld [vmem:[%s399 + $0x628] sm:$0xff]
        %v667 = vld [vmem:[%s399 + $0x630] sm:$0xff]
        %v668 = vld [vmem:[%s399 + $0x638] sm:$0xff]
        %v669 = vld [vmem:[%s399 + $0x640] sm:$0xff]
        %v670 = vld [vmem:[%s399 + $0x648] sm:$0xff]
        %v671 = vld [vmem:[%s399 + $0x650] sm:$0xff]
        %v672 = vld [vmem:[%s399 + $0x658] sm:$0xff]
        %v673 = vld [vmem:[%s399 + $0x660] sm:$0xff]
        %v674 = vld [vmem:[%s399 + $0x668] sm:$0xff]
        %v675 = vld [vmem:[%s399 + $0x670] sm:$0xff]
        %v676 = vld [vmem:[%s399 + $0x678] sm:$0xff]
        %v677 = vld [vmem:[%s399 + $0x680] sm:$0xff]
        %v678 = vld [vmem:[%s399 + $0x688] sm:$0xff]
        %v679 = vld [vmem:[%s399 + $0x690] sm:$0xff]
        %v680 = vld [vmem:[%s399 + $0x698] sm:$0xff]
        %v681 = vld [vmem:[%s399 + $0x6a0] sm:$0xff]
        %v682 = vld [vmem:[%s399 + $0x6a8] sm:$0xff]
        %v683 = vld [vmem:[%s399 + $0x6b0] sm:$0xff]
        %v684 = vld [vmem:[%s399 + $0x6b8] sm:$0xff]
        %v685 = vld [vmem:[%s399 + $0x6c0] sm:$0xff]
        %v686 = vld [vmem:[%s399 + $0x6c8] sm:$0xff]
        %v687 = vld [vmem:[%s399 + $0x6d0] sm:$0xff]
        %v688 = vld [vmem:[%s399 + $0x6d8] sm:$0xff]
        %v689 = vld [vmem:[%s399 + $0x6e0] sm:$0xff]
        %v690 = vld [vmem:[%s399 + $0x6e8] sm:$0xff]
        %v691 = vld [vmem:[%s399 + $0x6f0] sm:$0xff]
        %v692 = vld [vmem:[%s399 + $0x6f8] sm:$0xff]
        %v693 = vld [vmem:[%s399 + $0x700] sm:$0xff]
        %v694 = vld [vmem:[%s399 + $0x708] sm:$0xff]
        %v695 = vld [vmem:[%s399 + $0x710] sm:$0xff]
        %v696 = vld [vmem:[%s399 + $0x718] sm:$0xff]
        %v697 = vld [vmem:[%s399 + $0x720] sm:$0xff]
        %v698 = vld [vmem:[%s399 + $0x728] sm:$0xff]
        %v699 = vld [vmem:[%s399 + $0x730] sm:$0xff]
        %v700 = vld [vmem:[%s399 + $0x738] sm:$0xff]
        %v701 = vld [vmem:[%s399 + $0x740] sm:$0xff]
        %v702 = vld [vmem:[%s399 + $0x748] sm:$0xff]
        %v703 = vld [vmem:[%s399 + $0x750] sm:$0xff]
        %v704 = vld [vmem:[%s399 + $0x758] sm:$0xff]
        %v705 = vld [vmem:[%s399 + $0x760] sm:$0xff]
        %v706 = vld [vmem:[%s399 + $0x768] sm:$0xff]
        %v707 = vld [vmem:[%s399 + $0x770] sm:$0xff]
        %v708 = vld [vmem:[%s399 + $0x778] sm:$0xff]
        %v709 = vld [vmem:[%s399 + $0x780] sm:$0xff]
        %v710 = vld [vmem:[%s399 + $0x788] sm:$0xff]
        %v711 = vld [vmem:[%s399 + $0x790] sm:$0xff]
        %v712 = vld [vmem:[%s399 + $0x798] sm:$0xff]
        %v713 = vld [vmem:[%s399 + $0x7a0] sm:$0xff]
        %v714 = vld [vmem:[%s399 + $0x7a8] sm:$0xff]
        %v715 = vld [vmem:[%s399 + $0x7b0] sm:$0xff]
        %v716 = vld [vmem:[%s399 + $0x7b8] sm:$0xff]
        %v717 = vld [vmem:[%s399 + $0x7c0] sm:$0xff]
        %v718 = vld [vmem:[%s399 + $0x7c8] sm:$0xff]
        %v719 = vld [vmem:[%s399 + $0x7d0] sm:$0xff]
        %v720 = vld [vmem:[%s399 + $0x7d8] sm:$0xff]
        %v721 = vld [vmem:[%s399 + $0x7e0] sm:$0xff]
        %v722 = vld [vmem:[%s399 + $0x7e8] sm:$0xff]
        %v723 = vld [vmem:[%s399 + $0x7f0] sm:$0xff]
        %v724 = vld [vmem:[%s399 + $0x7f8] sm:$0xff]
        %v725 = vld [vmem:[%s399 + $0x800] sm:$0xff]
        %v726 = vld [vmem:[%s399 + $0x808] sm:$0xff]
        %v727 = vld [vmem:[%s399 + $0x810] sm:$0xff]
        %v728 = vld [vmem:[%s399 + $0x818] sm:$0xff]
        %v729 = vld [vmem:[%s399 + $0x820] sm:$0xff]
        %v730 = vld [vmem:[%s399 + $0x828] sm:$0xff]
        %v731 = vld [vmem:[%s399 + $0x830] sm:$0xff]
        %v732 = vld [vmem:[%s399 + $0x838] sm:$0xff]
        %v733 = vld [vmem:[%s399 + $0x840] sm:$0xff]
        %v734 = vld [vmem:[%s399 + $0x848] sm:$0xff]
        %v735 = vld [vmem:[%s399 + $0x850] sm:$0xff]
        %v736 = vld [vmem:[%s399 + $0x858] sm:$0xff]
        %v737 = vld [vmem:[%s399 + $0x860] sm:$0xff]
        %v738 = vld [vmem:[%s399 + $0x868] sm:$0xff]
        %v739 = vld [vmem:[%s399 + $0x870] sm:$0xff]
        %v740 = vld [vmem:[%s399 + $0x878] sm:$0xff]
        %v741 = vld [vmem:[%s399 + $0x880] sm:$0xff]
        %v742 = vld [vmem:[%s399 + $0x888] sm:$0xff]
        %v743 = vld [vmem:[%s399 + $0x890] sm:$0xff]
        %v744 = vld [vmem:[%s399 + $0x898] sm:$0xff]
        %v745 = vld [vmem:[%s399 + $0x8a0] sm:$0xff]
        %v746 = vld [vmem:[%s399 + $0x8a8] sm:$0xff]
        %v747 = vld [vmem:[%s399 + $0x8b0] sm:$0xff]
        %v748 = vld [vmem:[%s399 + $0x8b8] sm:$0xff]
        %v749 = vld [vmem:[%s399 + $0x8c0] sm:$0xff]
        %v750 = vld [vmem:[%s399 + $0x8c8] sm:$0xff]
        %v751 = vld [vmem:[%s399 + $0x8d0] sm:$0xff]
        %v752 = vld [vmem:[%s399 + $0x8d8] sm:$0xff]
        %v753 = vld [vmem:[%s399 + $0x8e0] sm:$0xff]
        %v754 = vld [vmem:[%s399 + $0x8e8] sm:$0xff]
        %v755 = vld [vmem:[%s399 + $0x8f0] sm:$0xff]
        %v756 = vld [vmem:[%s399 + $0x8f8] sm:$0xff]
        %v757 = vld [vmem:[%s399 + $0x900] sm:$0xff]
        %v758 = vld [vmem:[%s399 + $0x908] sm:$0xff]
        %v759 = vld [vmem:[%s399 + $0x910] sm:$0xff]
        %v760 = vld [vmem:[%s399 + $0x918] sm:$0xff]
        %v761 = vld [vmem:[%s399 + $0x920] sm:$0xff]
        %v762 = vld [vmem:[%s399 + $0x928] sm:$0xff]
        %v763 = vld [vmem:[%s399 + $0x930] sm:$0xff]
        %v764 = vld [vmem:[%s399 + $0x938] sm:$0xff]
        %v765 = vld [vmem:[%s399 + $0x940] sm:$0xff]
        %v766 = vld [vmem:[%s399 + $0x948] sm:$0xff]
        %v767 = vld [vmem:[%s399 + $0x950] sm:$0xff]
        %v768 = vld [vmem:[%s399 + $0x958] sm:$0xff]
        %v769 = vld [vmem:[%s399 + $0x960] sm:$0xff]
        %v770 = vld [vmem:[%s399 + $0x968] sm:$0xff]
        %v771 = vld [vmem:[%s399 + $0x970] sm:$0xff]
        %v772 = vld [vmem:[%s399 + $0x978] sm:$0xff]
        %v773 = vld [vmem:[%s399 + $0x980] sm:$0xff]
        %v774 = vld [vmem:[%s399 + $0x988] sm:$0xff]
        %v775 = vld [vmem:[%s399 + $0x990] sm:$0xff]
        %v776 = vld [vmem:[%s399 + $0x998] sm:$0xff]
        %v777 = vld [vmem:[%s399 + $0x9a0] sm:$0xff]
        %v778 = vld [vmem:[%s399 + $0x9a8] sm:$0xff]
        %v779 = vld [vmem:[%s399 + $0x9b0] sm:$0xff]
        %v780 = vld [vmem:[%s399 + $0x9b8] sm:$0xff]
        %v781 = vld [vmem:[%s399 + $0x9c0] sm:$0xff]
        %v782 = vld [vmem:[%s399 + $0x9c8] sm:$0xff]
        %v783 = vld [vmem:[%s399 + $0x9d0] sm:$0xff]
        %v784 = vld [vmem:[%s399 + $0x9d8] sm:$0xff]
        %v785 = vld [vmem:[%s399 + $0x9e0] sm:$0xff]
        %v786 = vld [vmem:[%s399 + $0x9e8] sm:$0xff]
        %v787 = vld [vmem:[%s399 + $0x9f0] sm:$0xff]
        %v788 = vld [vmem:[%s399 + $0x9f8] sm:$0xff]
        %v789 = vld [vmem:[%s399 + $0xa00] sm:$0xff]
        %v790 = vld [vmem:[%s399 + $0xa08] sm:$0xff]
        %v791 = vld [vmem:[%s399 + $0xa10] sm:$0xff]
        %v792 = vld [vmem:[%s399 + $0xa18] sm:$0xff]
        %v793 = vld [vmem:[%s399 + $0xa20] sm:$0xff]
        %v794 = vld [vmem:[%s399 + $0xa28] sm:$0xff]
        %v795 = vld [vmem:[%s399 + $0xa30] sm:$0xff]
        %v796 = vld [vmem:[%s399 + $0xa38] sm:$0xff]
        %v797 = vld [vmem:[%s399 + $0xa40] sm:$0xff]
        %v798 = vld [vmem:[%s399 + $0xa48] sm:$0xff]
        %v799 = vld [vmem:[%s399 + $0xa50] sm:$0xff]
        %v800 = vld [vmem:[%s399 + $0xa58] sm:$0xff]
        %v801 = vld [vmem:[%s399 + $0xa60] sm:$0xff]
        %v802 = vld [vmem:[%s399 + $0xa68] sm:$0xff]
        %v803 = vld [vmem:[%s399 + $0xa70] sm:$0xff]
        %v804 = vld [vmem:[%s399 + $0xa78] sm:$0xff]
        %v805 = vld [vmem:[%s399 + $0xa80] sm:$0xff]
        %v806 = vld [vmem:[%s399 + $0xa88] sm:$0xff]
        %v807 = vld [vmem:[%s399 + $0xa90] sm:$0xff]
        %v808 = vld [vmem:[%s399 + $0xa98] sm:$0xff]
        %v809 = vld [vmem:[%s399 + $0xaa0] sm:$0xff]
        %v810 = vld [vmem:[%s399 + $0xaa8] sm:$0xff]
        %v811 = vld [vmem:[%s399 + $0xab0] sm:$0xff]
        %v812 = vld [vmem:[%s399 + $0xab8] sm:$0xff]
        %v813 = vld [vmem:[%s399 + $0xac0] sm:$0xff]
        %v814 = vld [vmem:[%s399 + $0xac8] sm:$0xff]
        %v815 = vld [vmem:[%s399 + $0xad0] sm:$0xff]
        %v816 = vld [vmem:[%s399 + $0xad8] sm:$0xff]
        %v817 = vld [vmem:[%s399 + $0xae0] sm:$0xff]
        %v818 = vld [vmem:[%s399 + $0xae8] sm:$0xff]
        %v819 = vld [vmem:[%s399 + $0xaf0] sm:$0xff]
        %v820 = vld [vmem:[%s399 + $0xaf8] sm:$0xff]
        %v821 = vld [vmem:[%s399 + $0xb00] sm:$0xff]
        %v822 = vld [vmem:[%s399 + $0xb08] sm:$0xff]
        %v823 = vld [vmem:[%s399 + $0xb10] sm:$0xff]
        %v824 = vld [vmem:[%s399 + $0xb18] sm:$0xff]
        %v825 = vld [vmem:[%s399 + $0xb20] sm:$0xff]
        %v826 = vld [vmem:[%s399 + $0xb28] sm:$0xff]
        %v827 = vld [vmem:[%s399 + $0xb30] sm:$0xff]
        %v828 = vld [vmem:[%s399 + $0xb38] sm:$0xff]
        %v829 = vld [vmem:[%s399 + $0xb40] sm:$0xff]
        %v830 = vld [vmem:[%s399 + $0xb48] sm:$0xff]
        %v831 = vld [vmem:[%s399 + $0xb50] sm:$0xff]
        %v832 = vld [vmem:[%s399 + $0xb58] sm:$0xff]
        %v833 = vld [vmem:[%s399 + $0xb60] sm:$0xff]
        %v834 = vld [vmem:[%s399 + $0xb68] sm:$0xff]
        %v835 = vld [vmem:[%s399 + $0xb70] sm:$0xff]
        %v836 = vld [vmem:[%s399 + $0xb78] sm:$0xff]
        %v837 = vld [vmem:[%s399 + $0xb80] sm:$0xff]
        %v838 = vld [vmem:[%s399 + $0xb88] sm:$0xff]
        %v839 = vld [vmem:[%s399 + $0xb90] sm:$0xff]
        %v840 = vld [vmem:[%s399 + $0xb98] sm:$0xff]
        %v841 = vld [vmem:[%s399 + $0xba0] sm:$0xff]
        %v842 = vld [vmem:[%s399 + $0xba8] sm:$0xff]
        %v843 = vld [vmem:[%s399 + $0xbb0] sm:$0xff]
        %v844 = vld [vmem:[%s399 + $0xbb8] sm:$0xff]
        %v845 = vld [vmem:[%s399 + $0xbc0] sm:$0xff]
        %v846 = vld [vmem:[%s399 + $0xbc8] sm:$0xff]
        %v847 = vld [vmem:[%s399 + $0xbd0] sm:$0xff]
        %v848 = vld [vmem:[%s399 + $0xbd8] sm:$0xff]
        %v849 = vld [vmem:[%s399 + $0xbe0] sm:$0xff]
        %v850 = vld [vmem:[%s399 + $0xbe8] sm:$0xff]
        %v851 = vld [vmem:[%s399 + $0xbf0] sm:$0xff]
        %v852 = vld [vmem:[%s399 + $0xbf8] sm:$0xff]
        %v853 = vld [vmem:[%s399 + $0xc00] sm:$0xff]
        %v854 = vld [vmem:[%s399 + $0xc08] sm:$0xff]
        %v855 = vld [vmem:[%s399 + $0xc10] sm:$0xff]
        %v856 = vld [vmem:[%s399 + $0xc18] sm:$0xff]
        %v857 = vld [vmem:[%s399 + $0xc20] sm:$0xff]
        %v858 = vld [vmem:[%s399 + $0xc28] sm:$0xff]
        %v859 = vld [vmem:[%s399 + $0xc30] sm:$0xff]
        %v860 = vld [vmem:[%s399 + $0xc38] sm:$0xff]
        %v861 = vld [vmem:[%s399 + $0xc40] sm:$0xff]
        %v862 = vld [vmem:[%s399 + $0xc48] sm:$0xff]
        %v863 = vld [vmem:[%s399 + $0xc50] sm:$0xff]
        %v864 = vld [vmem:[%s399 + $0xc58] sm:$0xff]
        %v865 = vld [vmem:[%s399 + $0xc60] sm:$0xff]
        %v866 = vld [vmem:[%s399 + $0xc68] sm:$0xff]
        %v867 = vld [vmem:[%s399 + $0xc70] sm:$0xff]
        %v868 = vld [vmem:[%s399 + $0xc78] sm:$0xff]
        %v869 = vld [vmem:[%s399 + $0xc80] sm:$0xff]
        %v870 = vld [vmem:[%s399 + $0xc88] sm:$0xff]
        %v871 = vld [vmem:[%s399 + $0xc90] sm:$0xff]
        %v872 = vld [vmem:[%s399 + $0xc98] sm:$0xff]
        %v873 = vld [vmem:[%s399 + $0xca0] sm:$0xff]
        %v874 = vld [vmem:[%s399 + $0xca8] sm:$0xff]
        %v875 = vld [vmem:[%s399 + $0xcb0] sm:$0xff]
        %v876 = vld [vmem:[%s399 + $0xcb8] sm:$0xff]
        %v877 = vld [vmem:[%s399 + $0xcc0] sm:$0xff]
        %v878 = vld [vmem:[%s399 + $0xcc8] sm:$0xff]
        %v879 = vld [vmem:[%s399 + $0xcd0] sm:$0xff]
        %v880 = vld [vmem:[%s399 + $0xcd8] sm:$0xff]
        %v881 = vld [vmem:[%s399 + $0xce0] sm:$0xff]
        %v882 = vld [vmem:[%s399 + $0xce8] sm:$0xff]
        %v883 = vld [vmem:[%s399 + $0xcf0] sm:$0xff]
        %v884 = vld [vmem:[%s399 + $0xcf8] sm:$0xff]
        %v885 = vld [vmem:[%s399 + $0xd00] sm:$0xff]
        %v886 = vld [vmem:[%s399 + $0xd08] sm:$0xff]
        %v887 = vld [vmem:[%s399 + $0xd10] sm:$0xff]
        %v888 = vld [vmem:[%s399 + $0xd18] sm:$0xff]
        %v889 = vld [vmem:[%s399 + $0xd20] sm:$0xff]
        %v890 = vld [vmem:[%s399 + $0xd28] sm:$0xff]
        %v891 = vld [vmem:[%s399 + $0xd30] sm:$0xff]
        %v892 = vld [vmem:[%s399 + $0xd38] sm:$0xff]
        %v893 = vld [vmem:[%s399 + $0xd40] sm:$0xff]
        %v894 = vld [vmem:[%s399 + $0xd48] sm:$0xff]
        %v895 = vld [vmem:[%s399 + $0xd50] sm:$0xff]
        %v896 = vld [vmem:[%s399 + $0xd58] sm:$0xff]
        %v897 = vld [vmem:[%s399 + $0xd60] sm:$0xff]
        %v898 = vld [vmem:[%s399 + $0xd68] sm:$0xff]
        %v899 = vld [vmem:[%s399 + $0xd70] sm:$0xff]
        %v900 = vld [vmem:[%s399 + $0xd78] sm:$0xff]
        %v901 = vld [vmem:[%s399 + $0xd80] sm:$0xff]
        %v902 = vld [vmem:[%s399 + $0xd88] sm:$0xff]
        %v903 = vld [vmem:[%s399 + $0xd90] sm:$0xff]
        %v904 = vld [vmem:[%s399 + $0xd98] sm:$0xff]
        %v905 = vld [vmem:[%s399 + $0xda0] sm:$0xff]
        %v906 = vld [vmem:[%s399 + $0xda8] sm:$0xff]
        %v907 = vld [vmem:[%s399 + $0xdb0] sm:$0xff]
        %v908 = vld [vmem:[%s399 + $0xdb8] sm:$0xff]
        %v909 = vld [vmem:[%s399 + $0xdc0] sm:$0xff]
        %v910 = vld [vmem:[%s399 + $0xdc8] sm:$0xff]
        %v911 = vld [vmem:[%s399 + $0xdd0] sm:$0xff]
        %v912 = vld [vmem:[%s399 + $0xdd8] sm:$0xff]
        %v913 = vld [vmem:[%s399 + $0xde0] sm:$0xff]
        %v914 = vld [vmem:[%s399 + $0xde8] sm:$0xff]
        %v915 = vld [vmem:[%s399 + $0xdf0] sm:$0xff]
        %v916 = vld [vmem:[%s399 + $0xdf8] sm:$0xff]
        %v917 = vld [vmem:[%s399 + $0xe00] sm:$0xff]
        %v918 = vld [vmem:[%s399 + $0xe08] sm:$0xff]
        %v919 = vld [vmem:[%s399 + $0xe10] sm:$0xff]
        %v920 = vld [vmem:[%s399 + $0xe18] sm:$0xff]
        %v921 = vld [vmem:[%s399 + $0xe20] sm:$0xff]
        %v922 = vld [vmem:[%s399 + $0xe28] sm:$0xff]
        %v923 = vld [vmem:[%s399 + $0xe30] sm:$0xff]
        %v924 = vld [vmem:[%s399 + $0xe38] sm:$0xff]
        %v925 = vld [vmem:[%s399 + $0xe40] sm:$0xff]
        %v926 = vld [vmem:[%s399 + $0xe48] sm:$0xff]
        %v927 = vld [vmem:[%s399 + $0xe50] sm:$0xff]
        %v928 = vld [vmem:[%s399 + $0xe58] sm:$0xff]
        %v929 = vld [vmem:[%s399 + $0xe60] sm:$0xff]
        %v930 = vld [vmem:[%s399 + $0xe68] sm:$0xff]
        %v931 = vld [vmem:[%s399 + $0xe70] sm:$0xff]
        %v932 = vld [vmem:[%s399 + $0xe78] sm:$0xff]
        %v933 = vld [vmem:[%s399 + $0xe80] sm:$0xff]
        %v934 = vld [vmem:[%s399 + $0xe88] sm:$0xff]
        %v935 = vld [vmem:[%s399 + $0xe90] sm:$0xff]
        %v936 = vld [vmem:[%s399 + $0xe98] sm:$0xff]
        %v937 = vld [vmem:[%s399 + $0xea0] sm:$0xff]
        %v938 = vld [vmem:[%s399 + $0xea8] sm:$0xff]
        %v939 = vld [vmem:[%s399 + $0xeb0] sm:$0xff]
        %v940 = vld [vmem:[%s399 + $0xeb8] sm:$0xff]
        %v941 = vld [vmem:[%s399 + $0xec0] sm:$0xff]
        %v942 = vld [vmem:[%s399 + $0xec8] sm:$0xff]
        %v943 = vld [vmem:[%s399 + $0xed0] sm:$0xff]
        %v944 = vld [vmem:[%s399 + $0xed8] sm:$0xff]
        %v945 = vld [vmem:[%s399 + $0xee0] sm:$0xff]
        %v946 = vld [vmem:[%s399 + $0xee8] sm:$0xff]
        %v947 = vld [vmem:[%s399 + $0xef0] sm:$0xff]
        %v948 = vld [vmem:[%s399 + $0xef8] sm:$0xff]
        %v949 = vld [vmem:[%s399 + $0xf00] sm:$0xff]
        %v950 = vld [vmem:[%s399 + $0xf08] sm:$0xff]
        %v951 = vld [vmem:[%s399 + $0xf10] sm:$0xff]
        %v952 = vld [vmem:[%s399 + $0xf18] sm:$0xff]
        %v953 = vld [vmem:[%s399 + $0xf20] sm:$0xff]
        %v954 = vld [vmem:[%s399 + $0xf28] sm:$0xff]
        %v955 = vld [vmem:[%s399 + $0xf30] sm:$0xff]
        %v956 = vld [vmem:[%s399 + $0xf38] sm:$0xff]
        %v957 = vld [vmem:[%s399 + $0xf40] sm:$0xff]
        %v958 = vld [vmem:[%s399 + $0xf48] sm:$0xff]
        %v959 = vld [vmem:[%s399 + $0xf50] sm:$0xff]
        %v960 = vld [vmem:[%s399 + $0xf58] sm:$0xff]
        %v961 = vld [vmem:[%s399 + $0xf60] sm:$0xff]
        %v962 = vld [vmem:[%s399 + $0xf68] sm:$0xff]
        %v963 = vld [vmem:[%s399 + $0xf70] sm:$0xff]
        %v964 = vld [vmem:[%s399 + $0xf78] sm:$0xff]
        %v965 = vld [vmem:[%s399 + $0xf80] sm:$0xff]
        %v966 = vld [vmem:[%s399 + $0xf88] sm:$0xff]
        %v967 = vld [vmem:[%s399 + $0xf90] sm:$0xff]
        %v968 = vld [vmem:[%s399 + $0xf98] sm:$0xff]
        %v969 = vld [vmem:[%s399 + $0xfa0] sm:$0xff]
        %v970 = vld [vmem:[%s399 + $0xfa8] sm:$0xff]
        %v971 = vld [vmem:[%s399 + $0xfb0] sm:$0xff]
        %v972 = vld [vmem:[%s399 + $0xfb8] sm:$0xff]
        %v973 = vld [vmem:[%s399 + $0xfc0] sm:$0xff]
        %v974 = vld [vmem:[%s399 + $0xfc8] sm:$0xff]
        %v975 = vld [vmem:[%s399 + $0xfd0] sm:$0xff]
        %v976 = vld [vmem:[%s399 + $0xfd8] sm:$0xff]
        %v977 = vld [vmem:[%s399 + $0xfe0] sm:$0xff]
        %v978 = vld [vmem:[%s399 + $0xfe8] sm:$0xff]
        %v979 = vld [vmem:[%s399 + $0xff0] sm:$0xff]
        %v980 = vld [vmem:[%s399 + $0xff8] sm:$0xff]
        %v1013 = vunpack.c.l.b16 %v437
        %v1014 = vunpack.c.h.b16 %v437
        %v1015 = vunpack.c.l.b16 %v438
        %v1016 = vunpack.c.h.b16 %v438
        %v1017 = vunpack.c.l.b16 %v439
        %v1018 = vunpack.c.h.b16 %v439
        %v1019 = vunpack.c.l.b16 %v440
        %v1020 = vunpack.c.h.b16 %v440
        %v1021 = vunpack.c.l.b16 %v441
        %v1022 = vunpack.c.h.b16 %v441
        %v1023 = vunpack.c.l.b16 %v442
        %v1024 = vunpack.c.h.b16 %v442
        %v1025 = vunpack.c.l.b16 %v443
        %v1026 = vunpack.c.h.b16 %v443
        %v1027 = vunpack.c.l.b16 %v444
        %v1028 = vunpack.c.h.b16 %v444
        %v1029 = vunpack.c.l.b16 %v445
        %v1030 = vunpack.c.h.b16 %v445
        %v1031 = vunpack.c.l.b16 %v446
        %v1032 = vunpack.c.h.b16 %v446
        %v1033 = vunpack.c.l.b16 %v447
        %v1034 = vunpack.c.h.b16 %v447
        %v1035 = vunpack.c.l.b16 %v448
        %v1036 = vunpack.c.h.b16 %v448
        %v1037 = vunpack.c.l.b16 %v449
        %v1038 = vunpack.c.h.b16 %v449
        %v1039 = vunpack.c.l.b16 %v450
        %v1040 = vunpack.c.h.b16 %v450
        %v1041 = vunpack.c.l.b16 %v451
        %v1042 = vunpack.c.h.b16 %v451
        %v1043 = vunpack.c.l.b16 %v452
        %v1044 = vunpack.c.h.b16 %v452
        %v1045 = vunpack.c.l.b16 %v453
        %v1046 = vunpack.c.h.b16 %v453
        %v1047 = vunpack.c.l.b16 %v454
        %v1048 = vunpack.c.h.b16 %v454
        %v1049 = vunpack.c.l.b16 %v455
        %v1050 = vunpack.c.h.b16 %v455
        %v1051 = vunpack.c.l.b16 %v456
        %v1052 = vunpack.c.h.b16 %v456
        %v1053 = vunpack.c.l.b16 %v457
        %v1054 = vunpack.c.h.b16 %v457
        %v1055 = vunpack.c.l.b16 %v458
        %v1056 = vunpack.c.h.b16 %v458
        %v1057 = vunpack.c.l.b16 %v459
        %v1058 = vunpack.c.h.b16 %v459
        %v1059 = vunpack.c.l.b16 %v460
        %v1060 = vunpack.c.h.b16 %v460
        %v1061 = vunpack.c.l.b16 %v461
        %v1062 = vunpack.c.h.b16 %v461
        %v1063 = vunpack.c.l.b16 %v462
        %v1064 = vunpack.c.h.b16 %v462
        %v1065 = vunpack.c.l.b16 %v463
        %v1066 = vunpack.c.h.b16 %v463
        %v1067 = vunpack.c.l.b16 %v464
        %v1068 = vunpack.c.h.b16 %v464
        %v1069 = vunpack.c.l.b16 %v465
        %v1070 = vunpack.c.h.b16 %v465
        %v1071 = vunpack.c.l.b16 %v466
        %v1072 = vunpack.c.h.b16 %v466
        %v1073 = vunpack.c.l.b16 %v467
        %v1074 = vunpack.c.h.b16 %v467
        %v1075 = vunpack.c.l.b16 %v468
        %v1076 = vunpack.c.h.b16 %v468
        %v1077 = vpack.c.b16 %v1029, %v1013
        %v1078 = vpack.c.b16 %v1030, %v1014
        %v1079 = vpack.c.b16 %v1031, %v1015
        %v1080 = vpack.c.b16 %v1032, %v1016
        %v1081 = vpack.c.b16 %v1033, %v1017
        %v1082 = vpack.c.b16 %v1034, %v1018
        %v1083 = vpack.c.b16 %v1035, %v1019
        %v1084 = vpack.c.b16 %v1036, %v1020
        %v1085 = vpack.c.b16 %v1037, %v1021
        %v1086 = vpack.c.b16 %v1038, %v1022
        %v1087 = vpack.c.b16 %v1039, %v1023
        %v1088 = vpack.c.b16 %v1040, %v1024
        %v1089 = vpack.c.b16 %v1041, %v1025
        %v1090 = vpack.c.b16 %v1042, %v1026
        %v1091 = vpack.c.b16 %v1043, %v1027
        %v1092 = vpack.c.b16 %v1044, %v1028
        %v1093 = vpack.c.b16 %v1061, %v1045
        %v1094 = vpack.c.b16 %v1062, %v1046
        %v1095 = vpack.c.b16 %v1063, %v1047
        %v1096 = vpack.c.b16 %v1064, %v1048
        %v1097 = vpack.c.b16 %v1065, %v1049
        %v1098 = vpack.c.b16 %v1066, %v1050
        %v1099 = vpack.c.b16 %v1067, %v1051
        %v1100 = vpack.c.b16 %v1068, %v1052
        %v1101 = vpack.c.b16 %v1069, %v1053
        %v1102 = vpack.c.b16 %v1070, %v1054
        %v1103 = vpack.c.b16 %v1071, %v1055
        %v1104 = vpack.c.b16 %v1072, %v1056
        %v1105 = vpack.c.b16 %v1073, %v1057
        %v1106 = vpack.c.b16 %v1074, %v1058
        %v1107 = vpack.c.b16 %v1075, %v1059
        %v1108 = vpack.c.b16 %v1076, %v1060
        %v1653 = vunpack.c.l.b16 %v469
        %v1654 = vunpack.c.h.b16 %v469
        %v1655 = vunpack.c.l.b16 %v470
        %v1656 = vunpack.c.h.b16 %v470
        %v1657 = vunpack.c.l.b16 %v471
        %v1658 = vunpack.c.h.b16 %v471
        %v1659 = vunpack.c.l.b16 %v472
        %v1660 = vunpack.c.h.b16 %v472
        %v1661 = vunpack.c.l.b16 %v473
        %v1662 = vunpack.c.h.b16 %v473
        %v1663 = vunpack.c.l.b16 %v474
        %v1664 = vunpack.c.h.b16 %v474
        %v1665 = vunpack.c.l.b16 %v475
        %v1666 = vunpack.c.h.b16 %v475
        %v1667 = vunpack.c.l.b16 %v476
        %v1668 = vunpack.c.h.b16 %v476
        %v1669 = vunpack.c.l.b16 %v477
        %v1670 = vunpack.c.h.b16 %v477
        %v1671 = vunpack.c.l.b16 %v478
        %v1672 = vunpack.c.h.b16 %v478
        %v1673 = vunpack.c.l.b16 %v479
        %v1674 = vunpack.c.h.b16 %v479
        %v1675 = vunpack.c.l.b16 %v480
        %v1676 = vunpack.c.h.b16 %v480
        %v1677 = vunpack.c.l.b16 %v481
        %v1678 = vunpack.c.h.b16 %v481
        %v1679 = vunpack.c.l.b16 %v482
        %v1680 = vunpack.c.h.b16 %v482
        %v1681 = vunpack.c.l.b16 %v483
        %v1682 = vunpack.c.h.b16 %v483
        %v1683 = vunpack.c.l.b16 %v484
        %v1684 = vunpack.c.h.b16 %v484
        %v1685 = vunpack.c.l.b16 %v485
        %v1686 = vunpack.c.h.b16 %v485
        %v1687 = vunpack.c.l.b16 %v486
        %v1688 = vunpack.c.h.b16 %v486
        %v1689 = vunpack.c.l.b16 %v487
        %v1690 = vunpack.c.h.b16 %v487
        %v1691 = vunpack.c.l.b16 %v488
        %v1692 = vunpack.c.h.b16 %v488
        %v1693 = vunpack.c.l.b16 %v489
        %v1694 = vunpack.c.h.b16 %v489
        %v1695 = vunpack.c.l.b16 %v490
        %v1696 = vunpack.c.h.b16 %v490
        %v1697 = vunpack.c.l.b16 %v491
        %v1698 = vunpack.c.h.b16 %v491
        %v1699 = vunpack.c.l.b16 %v492
        %v1700 = vunpack.c.h.b16 %v492
        %v1701 = vunpack.c.l.b16 %v493
        %v1702 = vunpack.c.h.b16 %v493
        %v1703 = vunpack.c.l.b16 %v494
        %v1704 = vunpack.c.h.b16 %v494
        %v1705 = vunpack.c.l.b16 %v495
        %v1706 = vunpack.c.h.b16 %v495
        %v1707 = vunpack.c.l.b16 %v496
        %v1708 = vunpack.c.h.b16 %v496
        %v1709 = vunpack.c.l.b16 %v497
        %v1710 = vunpack.c.h.b16 %v497
        %v1711 = vunpack.c.l.b16 %v498
        %v1712 = vunpack.c.h.b16 %v498
        %v1713 = vunpack.c.l.b16 %v499
        %v1714 = vunpack.c.h.b16 %v499
        %v1715 = vunpack.c.l.b16 %v500
        %v1716 = vunpack.c.h.b16 %v500
        %v1717 = vunpack.c.l.b16 %v501
        %v1718 = vunpack.c.h.b16 %v501
        %v1719 = vunpack.c.l.b16 %v502
        %v1720 = vunpack.c.h.b16 %v502
        %v1721 = vunpack.c.l.b16 %v503
        %v1722 = vunpack.c.h.b16 %v503
        %v1723 = vunpack.c.l.b16 %v504
        %v1724 = vunpack.c.h.b16 %v504
        %v1725 = vunpack.c.l.b16 %v505
        %v1726 = vunpack.c.h.b16 %v505
        %v1727 = vunpack.c.l.b16 %v506
        %v1728 = vunpack.c.h.b16 %v506
        %v1729 = vunpack.c.l.b16 %v507
        %v1730 = vunpack.c.h.b16 %v507
        %v1731 = vunpack.c.l.b16 %v508
        %v1732 = vunpack.c.h.b16 %v508
        %v1733 = vunpack.c.l.b16 %v509
        %v1734 = vunpack.c.h.b16 %v509
        %v1735 = vunpack.c.l.b16 %v510
        %v1736 = vunpack.c.h.b16 %v510
        %v1737 = vunpack.c.l.b16 %v511
        %v1738 = vunpack.c.h.b16 %v511
        %v1739 = vunpack.c.l.b16 %v512
        %v1740 = vunpack.c.h.b16 %v512
        %v1741 = vunpack.c.l.b16 %v513
        %v1742 = vunpack.c.h.b16 %v513
        %v1743 = vunpack.c.l.b16 %v514
        %v1744 = vunpack.c.h.b16 %v514
        %v1745 = vunpack.c.l.b16 %v515
        %v1746 = vunpack.c.h.b16 %v515
        %v1747 = vunpack.c.l.b16 %v516
        %v1748 = vunpack.c.h.b16 %v516
        %v1749 = vunpack.c.l.b16 %v517
        %v1750 = vunpack.c.h.b16 %v517
        %v1751 = vunpack.c.l.b16 %v518
        %v1752 = vunpack.c.h.b16 %v518
        %v1753 = vunpack.c.l.b16 %v519
        %v1754 = vunpack.c.h.b16 %v519
        %v1755 = vunpack.c.l.b16 %v520
        %v1756 = vunpack.c.h.b16 %v520
        %v1757 = vunpack.c.l.b16 %v521
        %v1758 = vunpack.c.h.b16 %v521
        %v1759 = vunpack.c.l.b16 %v522
        %v1760 = vunpack.c.h.b16 %v522
        %v1761 = vunpack.c.l.b16 %v523
        %v1762 = vunpack.c.h.b16 %v523
        %v1763 = vunpack.c.l.b16 %v524
        %v1764 = vunpack.c.h.b16 %v524
        %v1765 = vunpack.c.l.b16 %v525
        %v1766 = vunpack.c.h.b16 %v525
        %v1767 = vunpack.c.l.b16 %v526
        %v1768 = vunpack.c.h.b16 %v526
        %v1769 = vunpack.c.l.b16 %v527
        %v1770 = vunpack.c.h.b16 %v527
        %v1771 = vunpack.c.l.b16 %v528
        %v1772 = vunpack.c.h.b16 %v528
        %v1773 = vunpack.c.l.b16 %v529
        %v1774 = vunpack.c.h.b16 %v529
        %v1775 = vunpack.c.l.b16 %v530
        %v1776 = vunpack.c.h.b16 %v530
        %v1777 = vunpack.c.l.b16 %v531
        %v1778 = vunpack.c.h.b16 %v531
        %v1779 = vunpack.c.l.b16 %v532
        %v1780 = vunpack.c.h.b16 %v532
        %v1781 = vunpack.c.l.b16 %v533
        %v1782 = vunpack.c.h.b16 %v533
        %v1783 = vunpack.c.l.b16 %v534
        %v1784 = vunpack.c.h.b16 %v534
        %v1785 = vunpack.c.l.b16 %v535
        %v1786 = vunpack.c.h.b16 %v535
        %v1787 = vunpack.c.l.b16 %v536
        %v1788 = vunpack.c.h.b16 %v536
        %v1789 = vunpack.c.l.b16 %v537
        %v1790 = vunpack.c.h.b16 %v537
        %v1791 = vunpack.c.l.b16 %v538
        %v1792 = vunpack.c.h.b16 %v538
        %v1793 = vunpack.c.l.b16 %v539
        %v1794 = vunpack.c.h.b16 %v539
        %v1795 = vunpack.c.l.b16 %v540
        %v1796 = vunpack.c.h.b16 %v540
        %v1797 = vunpack.c.l.b16 %v541
        %v1798 = vunpack.c.h.b16 %v541
        %v1799 = vunpack.c.l.b16 %v542
        %v1800 = vunpack.c.h.b16 %v542
        %v1801 = vunpack.c.l.b16 %v543
        %v1802 = vunpack.c.h.b16 %v543
        %v1803 = vunpack.c.l.b16 %v544
        %v1804 = vunpack.c.h.b16 %v544
        %v1805 = vunpack.c.l.b16 %v545
        %v1806 = vunpack.c.h.b16 %v545
        %v1807 = vunpack.c.l.b16 %v546
        %v1808 = vunpack.c.h.b16 %v546
        %v1809 = vunpack.c.l.b16 %v547
        %v1810 = vunpack.c.h.b16 %v547
        %v1811 = vunpack.c.l.b16 %v548
        %v1812 = vunpack.c.h.b16 %v548
        %v1813 = vunpack.c.l.b16 %v549
        %v1814 = vunpack.c.h.b16 %v549
        %v1815 = vunpack.c.l.b16 %v550
        %v1816 = vunpack.c.h.b16 %v550
        %v1817 = vunpack.c.l.b16 %v551
        %v1818 = vunpack.c.h.b16 %v551
        %v1819 = vunpack.c.l.b16 %v552
        %v1820 = vunpack.c.h.b16 %v552
        %v1821 = vunpack.c.l.b16 %v553
        %v1822 = vunpack.c.h.b16 %v553
        %v1823 = vunpack.c.l.b16 %v554
        %v1824 = vunpack.c.h.b16 %v554
        %v1825 = vunpack.c.l.b16 %v555
        %v1826 = vunpack.c.h.b16 %v555
        %v1827 = vunpack.c.l.b16 %v556
        %v1828 = vunpack.c.h.b16 %v556
        %v1829 = vunpack.c.l.b16 %v557
        %v1830 = vunpack.c.h.b16 %v557
        %v1831 = vunpack.c.l.b16 %v558
        %v1832 = vunpack.c.h.b16 %v558
        %v1833 = vunpack.c.l.b16 %v559
        %v1834 = vunpack.c.h.b16 %v559
        %v1835 = vunpack.c.l.b16 %v560
        %v1836 = vunpack.c.h.b16 %v560
        %v1837 = vunpack.c.l.b16 %v561
        %v1838 = vunpack.c.h.b16 %v561
        %v1839 = vunpack.c.l.b16 %v562
        %v1840 = vunpack.c.h.b16 %v562
        %v1841 = vunpack.c.l.b16 %v563
        %v1842 = vunpack.c.h.b16 %v563
        %v1843 = vunpack.c.l.b16 %v564
        %v1844 = vunpack.c.h.b16 %v564
        %v1845 = vunpack.c.l.b16 %v565
        %v1846 = vunpack.c.h.b16 %v565
        %v1847 = vunpack.c.l.b16 %v566
        %v1848 = vunpack.c.h.b16 %v566
        %v1849 = vunpack.c.l.b16 %v567
        %v1850 = vunpack.c.h.b16 %v567
        %v1851 = vunpack.c.l.b16 %v568
        %v1852 = vunpack.c.h.b16 %v568
        %v1853 = vunpack.c.l.b16 %v569
        %v1854 = vunpack.c.h.b16 %v569
        %v1855 = vunpack.c.l.b16 %v570
        %v1856 = vunpack.c.h.b16 %v570
        %v1857 = vunpack.c.l.b16 %v571
        %v1858 = vunpack.c.h.b16 %v571
        %v1859 = vunpack.c.l.b16 %v572
        %v1860 = vunpack.c.h.b16 %v572
        %v1861 = vunpack.c.l.b16 %v573
        %v1862 = vunpack.c.h.b16 %v573
        %v1863 = vunpack.c.l.b16 %v574
        %v1864 = vunpack.c.h.b16 %v574
        %v1865 = vunpack.c.l.b16 %v575
        %v1866 = vunpack.c.h.b16 %v575
        %v1867 = vunpack.c.l.b16 %v576
        %v1868 = vunpack.c.h.b16 %v576
        %v1869 = vunpack.c.l.b16 %v577
        %v1870 = vunpack.c.h.b16 %v577
        %v1871 = vunpack.c.l.b16 %v578
        %v1872 = vunpack.c.h.b16 %v578
        %v1873 = vunpack.c.l.b16 %v579
        %v1874 = vunpack.c.h.b16 %v579
        %v1875 = vunpack.c.l.b16 %v580
        %v1876 = vunpack.c.h.b16 %v580
        %v1877 = vunpack.c.l.b16 %v581
        %v1878 = vunpack.c.h.b16 %v581
        %v1879 = vunpack.c.l.b16 %v582
        %v1880 = vunpack.c.h.b16 %v582
        %v1881 = vunpack.c.l.b16 %v583
        %v1882 = vunpack.c.h.b16 %v583
        %v1883 = vunpack.c.l.b16 %v584
        %v1884 = vunpack.c.h.b16 %v584
        %v1885 = vunpack.c.l.b16 %v585
        %v1886 = vunpack.c.h.b16 %v585
        %v1887 = vunpack.c.l.b16 %v586
        %v1888 = vunpack.c.h.b16 %v586
        %v1889 = vunpack.c.l.b16 %v587
        %v1890 = vunpack.c.h.b16 %v587
        %v1891 = vunpack.c.l.b16 %v588
        %v1892 = vunpack.c.h.b16 %v588
        %v1893 = vunpack.c.l.b16 %v589
        %v1894 = vunpack.c.h.b16 %v589
        %v1895 = vunpack.c.l.b16 %v590
        %v1896 = vunpack.c.h.b16 %v590
        %v1897 = vunpack.c.l.b16 %v591
        %v1898 = vunpack.c.h.b16 %v591
        %v1899 = vunpack.c.l.b16 %v592
        %v1900 = vunpack.c.h.b16 %v592
        %v1901 = vunpack.c.l.b16 %v593
        %v1902 = vunpack.c.h.b16 %v593
        %v1903 = vunpack.c.l.b16 %v594
        %v1904 = vunpack.c.h.b16 %v594
        %v1905 = vunpack.c.l.b16 %v595
        %v1906 = vunpack.c.h.b16 %v595
        %v1907 = vunpack.c.l.b16 %v596
        %v1908 = vunpack.c.h.b16 %v596
        %v1909 = vunpack.c.l.b16 %v597
        %v1910 = vunpack.c.h.b16 %v597
        %v1911 = vunpack.c.l.b16 %v598
        %v1912 = vunpack.c.h.b16 %v598
        %v1913 = vunpack.c.l.b16 %v599
        %v1914 = vunpack.c.h.b16 %v599
        %v1915 = vunpack.c.l.b16 %v600
        %v1916 = vunpack.c.h.b16 %v600
        %v1917 = vunpack.c.l.b16 %v601
        %v1918 = vunpack.c.h.b16 %v601
        %v1919 = vunpack.c.l.b16 %v602
        %v1920 = vunpack.c.h.b16 %v602
        %v1921 = vunpack.c.l.b16 %v603
        %v1922 = vunpack.c.h.b16 %v603
        %v1923 = vunpack.c.l.b16 %v604
        %v1924 = vunpack.c.h.b16 %v604
        %v1925 = vunpack.c.l.b16 %v605
        %v1926 = vunpack.c.h.b16 %v605
        %v1927 = vunpack.c.l.b16 %v606
        %v1928 = vunpack.c.h.b16 %v606
        %v1929 = vunpack.c.l.b16 %v607
        %v1930 = vunpack.c.h.b16 %v607
        %v1931 = vunpack.c.l.b16 %v608
        %v1932 = vunpack.c.h.b16 %v608
        %v1933 = vunpack.c.l.b16 %v609
        %v1934 = vunpack.c.h.b16 %v609
        %v1935 = vunpack.c.l.b16 %v610
        %v1936 = vunpack.c.h.b16 %v610
        %v1937 = vunpack.c.l.b16 %v611
        %v1938 = vunpack.c.h.b16 %v611
        %v1939 = vunpack.c.l.b16 %v612
        %v1940 = vunpack.c.h.b16 %v612
        %v1941 = vunpack.c.l.b16 %v613
        %v1942 = vunpack.c.h.b16 %v613
        %v1943 = vunpack.c.l.b16 %v614
        %v1944 = vunpack.c.h.b16 %v614
        %v1945 = vunpack.c.l.b16 %v615
        %v1946 = vunpack.c.h.b16 %v615
        %v1947 = vunpack.c.l.b16 %v616
        %v1948 = vunpack.c.h.b16 %v616
        %v1949 = vunpack.c.l.b16 %v617
        %v1950 = vunpack.c.h.b16 %v617
        %v1951 = vunpack.c.l.b16 %v618
        %v1952 = vunpack.c.h.b16 %v618
        %v1953 = vunpack.c.l.b16 %v619
        %v1954 = vunpack.c.h.b16 %v619
        %v1955 = vunpack.c.l.b16 %v620
        %v1956 = vunpack.c.h.b16 %v620
        %v1957 = vunpack.c.l.b16 %v621
        %v1958 = vunpack.c.h.b16 %v621
        %v1959 = vunpack.c.l.b16 %v622
        %v1960 = vunpack.c.h.b16 %v622
        %v1961 = vunpack.c.l.b16 %v623
        %v1962 = vunpack.c.h.b16 %v623
        %v1963 = vunpack.c.l.b16 %v624
        %v1964 = vunpack.c.h.b16 %v624
        %v1965 = vunpack.c.l.b16 %v625
        %v1966 = vunpack.c.h.b16 %v625
        %v1967 = vunpack.c.l.b16 %v626
        %v1968 = vunpack.c.h.b16 %v626
        %v1969 = vunpack.c.l.b16 %v627
        %v1970 = vunpack.c.h.b16 %v627
        %v1971 = vunpack.c.l.b16 %v628
        %v1972 = vunpack.c.h.b16 %v628
        %v1973 = vunpack.c.l.b16 %v629
        %v1974 = vunpack.c.h.b16 %v629
        %v1975 = vunpack.c.l.b16 %v630
        %v1976 = vunpack.c.h.b16 %v630
        %v1977 = vunpack.c.l.b16 %v631
        %v1978 = vunpack.c.h.b16 %v631
        %v1979 = vunpack.c.l.b16 %v632
        %v1980 = vunpack.c.h.b16 %v632
        %v1981 = vunpack.c.l.b16 %v633
        %v1982 = vunpack.c.h.b16 %v633
        %v1983 = vunpack.c.l.b16 %v634
        %v1984 = vunpack.c.h.b16 %v634
        %v1985 = vunpack.c.l.b16 %v635
        %v1986 = vunpack.c.h.b16 %v635
        %v1987 = vunpack.c.l.b16 %v636
        %v1988 = vunpack.c.h.b16 %v636
        %v1989 = vunpack.c.l.b16 %v637
        %v1990 = vunpack.c.h.b16 %v637
        %v1991 = vunpack.c.l.b16 %v638
        %v1992 = vunpack.c.h.b16 %v638
        %v1993 = vunpack.c.l.b16 %v639
        %v1994 = vunpack.c.h.b16 %v639
        %v1995 = vunpack.c.l.b16 %v640
        %v1996 = vunpack.c.h.b16 %v640
        %v1997 = vunpack.c.l.b16 %v641
        %v1998 = vunpack.c.h.b16 %v641
        %v1999 = vunpack.c.l.b16 %v642
        %v2000 = vunpack.c.h.b16 %v642
        %v2001 = vunpack.c.l.b16 %v643
        %v2002 = vunpack.c.h.b16 %v643
        %v2003 = vunpack.c.l.b16 %v644
        %v2004 = vunpack.c.h.b16 %v644
        %v2005 = vunpack.c.l.b16 %v645
        %v2006 = vunpack.c.h.b16 %v645
        %v2007 = vunpack.c.l.b16 %v646
        %v2008 = vunpack.c.h.b16 %v646
        %v2009 = vunpack.c.l.b16 %v647
        %v2010 = vunpack.c.h.b16 %v647
        %v2011 = vunpack.c.l.b16 %v648
        %v2012 = vunpack.c.h.b16 %v648
        %v2013 = vunpack.c.l.b16 %v649
        %v2014 = vunpack.c.h.b16 %v649
        %v2015 = vunpack.c.l.b16 %v650
        %v2016 = vunpack.c.h.b16 %v650
        %v2017 = vunpack.c.l.b16 %v651
        %v2018 = vunpack.c.h.b16 %v651
        %v2019 = vunpack.c.l.b16 %v652
        %v2020 = vunpack.c.h.b16 %v652
        %v2021 = vunpack.c.l.b16 %v653
        %v2022 = vunpack.c.h.b16 %v653
        %v2023 = vunpack.c.l.b16 %v654
        %v2024 = vunpack.c.h.b16 %v654
        %v2025 = vunpack.c.l.b16 %v655
        %v2026 = vunpack.c.h.b16 %v655
        %v2027 = vunpack.c.l.b16 %v656
        %v2028 = vunpack.c.h.b16 %v656
        %v2029 = vunpack.c.l.b16 %v657
        %v2030 = vunpack.c.h.b16 %v657
        %v2031 = vunpack.c.l.b16 %v658
        %v2032 = vunpack.c.h.b16 %v658
        %v2033 = vunpack.c.l.b16 %v659
        %v2034 = vunpack.c.h.b16 %v659
        %v2035 = vunpack.c.l.b16 %v660
        %v2036 = vunpack.c.h.b16 %v660
        %v2037 = vunpack.c.l.b16 %v661
        %v2038 = vunpack.c.h.b16 %v661
        %v2039 = vunpack.c.l.b16 %v662
        %v2040 = vunpack.c.h.b16 %v662
        %v2041 = vunpack.c.l.b16 %v663
        %v2042 = vunpack.c.h.b16 %v663
        %v2043 = vunpack.c.l.b16 %v664
        %v2044 = vunpack.c.h.b16 %v664
        %v2045 = vunpack.c.l.b16 %v665
        %v2046 = vunpack.c.h.b16 %v665
        %v2047 = vunpack.c.l.b16 %v666
        %v2048 = vunpack.c.h.b16 %v666
        %v2049 = vunpack.c.l.b16 %v667
        %v2050 = vunpack.c.h.b16 %v667
        %v2051 = vunpack.c.l.b16 %v668
        %v2052 = vunpack.c.h.b16 %v668
        %v2053 = vunpack.c.l.b16 %v669
        %v2054 = vunpack.c.h.b16 %v669
        %v2055 = vunpack.c.l.b16 %v670
        %v2056 = vunpack.c.h.b16 %v670
        %v2057 = vunpack.c.l.b16 %v671
        %v2058 = vunpack.c.h.b16 %v671
        %v2059 = vunpack.c.l.b16 %v672
        %v2060 = vunpack.c.h.b16 %v672
        %v2061 = vunpack.c.l.b16 %v673
        %v2062 = vunpack.c.h.b16 %v673
        %v2063 = vunpack.c.l.b16 %v674
        %v2064 = vunpack.c.h.b16 %v674
        %v2065 = vunpack.c.l.b16 %v675
        %v2066 = vunpack.c.h.b16 %v675
        %v2067 = vunpack.c.l.b16 %v676
        %v2068 = vunpack.c.h.b16 %v676
        %v2069 = vunpack.c.l.b16 %v677
        %v2070 = vunpack.c.h.b16 %v677
        %v2071 = vunpack.c.l.b16 %v678
        %v2072 = vunpack.c.h.b16 %v678
        %v2073 = vunpack.c.l.b16 %v679
        %v2074 = vunpack.c.h.b16 %v679
        %v2075 = vunpack.c.l.b16 %v680
        %v2076 = vunpack.c.h.b16 %v680
        %v2077 = vunpack.c.l.b16 %v681
        %v2078 = vunpack.c.h.b16 %v681
        %v2079 = vunpack.c.l.b16 %v682
        %v2080 = vunpack.c.h.b16 %v682
        %v2081 = vunpack.c.l.b16 %v683
        %v2082 = vunpack.c.h.b16 %v683
        %v2083 = vunpack.c.l.b16 %v684
        %v2084 = vunpack.c.h.b16 %v684
        %v2085 = vunpack.c.l.b16 %v685
        %v2086 = vunpack.c.h.b16 %v685
        %v2087 = vunpack.c.l.b16 %v686
        %v2088 = vunpack.c.h.b16 %v686
        %v2089 = vunpack.c.l.b16 %v687
        %v2090 = vunpack.c.h.b16 %v687
        %v2091 = vunpack.c.l.b16 %v688
        %v2092 = vunpack.c.h.b16 %v688
        %v2093 = vunpack.c.l.b16 %v689
        %v2094 = vunpack.c.h.b16 %v689
        %v2095 = vunpack.c.l.b16 %v690
        %v2096 = vunpack.c.h.b16 %v690
        %v2097 = vunpack.c.l.b16 %v691
        %v2098 = vunpack.c.h.b16 %v691
        %v2099 = vunpack.c.l.b16 %v692
        %v2100 = vunpack.c.h.b16 %v692
        %v2101 = vunpack.c.l.b16 %v693
        %v2102 = vunpack.c.h.b16 %v693
        %v2103 = vunpack.c.l.b16 %v694
        %v2104 = vunpack.c.h.b16 %v694
        %v2105 = vunpack.c.l.b16 %v695
        %v2106 = vunpack.c.h.b16 %v695
        %v2107 = vunpack.c.l.b16 %v696
        %v2108 = vunpack.c.h.b16 %v696
        %v2109 = vunpack.c.l.b16 %v697
        %v2110 = vunpack.c.h.b16 %v697
        %v2111 = vunpack.c.l.b16 %v698
        %v2112 = vunpack.c.h.b16 %v698
        %v2113 = vunpack.c.l.b16 %v699
        %v2114 = vunpack.c.h.b16 %v699
        %v2115 = vunpack.c.l.b16 %v700
        %v2116 = vunpack.c.h.b16 %v700
        %v2117 = vunpack.c.l.b16 %v701
        %v2118 = vunpack.c.h.b16 %v701
        %v2119 = vunpack.c.l.b16 %v702
        %v2120 = vunpack.c.h.b16 %v702
        %v2121 = vunpack.c.l.b16 %v703
        %v2122 = vunpack.c.h.b16 %v703
        %v2123 = vunpack.c.l.b16 %v704
        %v2124 = vunpack.c.h.b16 %v704
        %v2125 = vunpack.c.l.b16 %v705
        %v2126 = vunpack.c.h.b16 %v705
        %v2127 = vunpack.c.l.b16 %v706
        %v2128 = vunpack.c.h.b16 %v706
        %v2129 = vunpack.c.l.b16 %v707
        %v2130 = vunpack.c.h.b16 %v707
        %v2131 = vunpack.c.l.b16 %v708
        %v2132 = vunpack.c.h.b16 %v708
        %v2133 = vunpack.c.l.b16 %v709
        %v2134 = vunpack.c.h.b16 %v709
        %v2135 = vunpack.c.l.b16 %v710
        %v2136 = vunpack.c.h.b16 %v710
        %v2137 = vunpack.c.l.b16 %v711
        %v2138 = vunpack.c.h.b16 %v711
        %v2139 = vunpack.c.l.b16 %v712
        %v2140 = vunpack.c.h.b16 %v712
        %v2141 = vunpack.c.l.b16 %v713
        %v2142 = vunpack.c.h.b16 %v713
        %v2143 = vunpack.c.l.b16 %v714
        %v2144 = vunpack.c.h.b16 %v714
        %v2145 = vunpack.c.l.b16 %v715
        %v2146 = vunpack.c.h.b16 %v715
        %v2147 = vunpack.c.l.b16 %v716
        %v2148 = vunpack.c.h.b16 %v716
        %v2149 = vunpack.c.l.b16 %v717
        %v2150 = vunpack.c.h.b16 %v717
        %v2151 = vunpack.c.l.b16 %v718
        %v2152 = vunpack.c.h.b16 %v718
        %v2153 = vunpack.c.l.b16 %v719
        %v2154 = vunpack.c.h.b16 %v719
        %v2155 = vunpack.c.l.b16 %v720
        %v2156 = vunpack.c.h.b16 %v720
        %v2157 = vunpack.c.l.b16 %v721
        %v2158 = vunpack.c.h.b16 %v721
        %v2159 = vunpack.c.l.b16 %v722
        %v2160 = vunpack.c.h.b16 %v722
        %v2161 = vunpack.c.l.b16 %v723
        %v2162 = vunpack.c.h.b16 %v723
        %v2163 = vunpack.c.l.b16 %v724
        %v2164 = vunpack.c.h.b16 %v724
        %v2165 = vunpack.c.l.b16 %v725
        %v2166 = vunpack.c.h.b16 %v725
        %v2167 = vunpack.c.l.b16 %v726
        %v2168 = vunpack.c.h.b16 %v726
        %v2169 = vunpack.c.l.b16 %v727
        %v2170 = vunpack.c.h.b16 %v727
        %v2171 = vunpack.c.l.b16 %v728
        %v2172 = vunpack.c.h.b16 %v728
        %v2173 = vunpack.c.l.b16 %v729
        %v2174 = vunpack.c.h.b16 %v729
        %v2175 = vunpack.c.l.b16 %v730
        %v2176 = vunpack.c.h.b16 %v730
        %v2177 = vunpack.c.l.b16 %v731
        %v2178 = vunpack.c.h.b16 %v731
        %v2179 = vunpack.c.l.b16 %v732
        %v2180 = vunpack.c.h.b16 %v732
        %v2181 = vunpack.c.l.b16 %v733
        %v2182 = vunpack.c.h.b16 %v733
        %v2183 = vunpack.c.l.b16 %v734
        %v2184 = vunpack.c.h.b16 %v734
        %v2185 = vunpack.c.l.b16 %v735
        %v2186 = vunpack.c.h.b16 %v735
        %v2187 = vunpack.c.l.b16 %v736
        %v2188 = vunpack.c.h.b16 %v736
        %v2189 = vunpack.c.l.b16 %v737
        %v2190 = vunpack.c.h.b16 %v737
        %v2191 = vunpack.c.l.b16 %v738
        %v2192 = vunpack.c.h.b16 %v738
        %v2193 = vunpack.c.l.b16 %v739
        %v2194 = vunpack.c.h.b16 %v739
        %v2195 = vunpack.c.l.b16 %v740
        %v2196 = vunpack.c.h.b16 %v740
        %v2197 = vunpack.c.l.b16 %v741
        %v2198 = vunpack.c.h.b16 %v741
        %v2199 = vunpack.c.l.b16 %v742
        %v2200 = vunpack.c.h.b16 %v742
        %v2201 = vunpack.c.l.b16 %v743
        %v2202 = vunpack.c.h.b16 %v743
        %v2203 = vunpack.c.l.b16 %v744
        %v2204 = vunpack.c.h.b16 %v744
        %v2205 = vunpack.c.l.b16 %v745
        %v2206 = vunpack.c.h.b16 %v745
        %v2207 = vunpack.c.l.b16 %v746
        %v2208 = vunpack.c.h.b16 %v746
        %v2209 = vunpack.c.l.b16 %v747
        %v2210 = vunpack.c.h.b16 %v747
        %v2211 = vunpack.c.l.b16 %v748
        %v2212 = vunpack.c.h.b16 %v748
        %v2213 = vunpack.c.l.b16 %v749
        %v2214 = vunpack.c.h.b16 %v749
        %v2215 = vunpack.c.l.b16 %v750
        %v2216 = vunpack.c.h.b16 %v750
        %v2217 = vunpack.c.l.b16 %v751
        %v2218 = vunpack.c.h.b16 %v751
        %v2219 = vunpack.c.l.b16 %v752
        %v2220 = vunpack.c.h.b16 %v752
        %v2221 = vunpack.c.l.b16 %v753
        %v2222 = vunpack.c.h.b16 %v753
        %v2223 = vunpack.c.l.b16 %v754
        %v2224 = vunpack.c.h.b16 %v754
        %v2225 = vunpack.c.l.b16 %v755
        %v2226 = vunpack.c.h.b16 %v755
        %v2227 = vunpack.c.l.b16 %v756
        %v2228 = vunpack.c.h.b16 %v756
        %v2229 = vunpack.c.l.b16 %v757
        %v2230 = vunpack.c.h.b16 %v757
        %v2231 = vunpack.c.l.b16 %v758
        %v2232 = vunpack.c.h.b16 %v758
        %v2233 = vunpack.c.l.b16 %v759
        %v2234 = vunpack.c.h.b16 %v759
        %v2235 = vunpack.c.l.b16 %v760
        %v2236 = vunpack.c.h.b16 %v760
        %v2237 = vunpack.c.l.b16 %v761
        %v2238 = vunpack.c.h.b16 %v761
        %v2239 = vunpack.c.l.b16 %v762
        %v2240 = vunpack.c.h.b16 %v762
        %v2241 = vunpack.c.l.b16 %v763
        %v2242 = vunpack.c.h.b16 %v763
        %v2243 = vunpack.c.l.b16 %v764
        %v2244 = vunpack.c.h.b16 %v764
        %v2245 = vunpack.c.l.b16 %v765
        %v2246 = vunpack.c.h.b16 %v765
        %v2247 = vunpack.c.l.b16 %v766
        %v2248 = vunpack.c.h.b16 %v766
        %v2249 = vunpack.c.l.b16 %v767
        %v2250 = vunpack.c.h.b16 %v767
        %v2251 = vunpack.c.l.b16 %v768
        %v2252 = vunpack.c.h.b16 %v768
        %v2253 = vunpack.c.l.b16 %v769
        %v2254 = vunpack.c.h.b16 %v769
        %v2255 = vunpack.c.l.b16 %v770
        %v2256 = vunpack.c.h.b16 %v770
        %v2257 = vunpack.c.l.b16 %v771
        %v2258 = vunpack.c.h.b16 %v771
        %v2259 = vunpack.c.l.b16 %v772
        %v2260 = vunpack.c.h.b16 %v772
        %v2261 = vunpack.c.l.b16 %v773
        %v2262 = vunpack.c.h.b16 %v773
        %v2263 = vunpack.c.l.b16 %v774
        %v2264 = vunpack.c.h.b16 %v774
        %v2265 = vunpack.c.l.b16 %v775
        %v2266 = vunpack.c.h.b16 %v775
        %v2267 = vunpack.c.l.b16 %v776
        %v2268 = vunpack.c.h.b16 %v776
        %v2269 = vunpack.c.l.b16 %v777
        %v2270 = vunpack.c.h.b16 %v777
        %v2271 = vunpack.c.l.b16 %v778
        %v2272 = vunpack.c.h.b16 %v778
        %v2273 = vunpack.c.l.b16 %v779
        %v2274 = vunpack.c.h.b16 %v779
        %v2275 = vunpack.c.l.b16 %v780
        %v2276 = vunpack.c.h.b16 %v780
        %v2277 = vunpack.c.l.b16 %v781
        %v2278 = vunpack.c.h.b16 %v781
        %v2279 = vunpack.c.l.b16 %v782
        %v2280 = vunpack.c.h.b16 %v782
        %v2281 = vunpack.c.l.b16 %v783
        %v2282 = vunpack.c.h.b16 %v783
        %v2283 = vunpack.c.l.b16 %v784
        %v2284 = vunpack.c.h.b16 %v784
        %v2285 = vunpack.c.l.b16 %v785
        %v2286 = vunpack.c.h.b16 %v785
        %v2287 = vunpack.c.l.b16 %v786
        %v2288 = vunpack.c.h.b16 %v786
        %v2289 = vunpack.c.l.b16 %v787
        %v2290 = vunpack.c.h.b16 %v787
        %v2291 = vunpack.c.l.b16 %v788
        %v2292 = vunpack.c.h.b16 %v788
        %v2293 = vunpack.c.l.b16 %v789
        %v2294 = vunpack.c.h.b16 %v789
        %v2295 = vunpack.c.l.b16 %v790
        %v2296 = vunpack.c.h.b16 %v790
        %v2297 = vunpack.c.l.b16 %v791
        %v2298 = vunpack.c.h.b16 %v791
        %v2299 = vunpack.c.l.b16 %v792
        %v2300 = vunpack.c.h.b16 %v792
        %v2301 = vunpack.c.l.b16 %v793
        %v2302 = vunpack.c.h.b16 %v793
        %v2303 = vunpack.c.l.b16 %v794
        %v2304 = vunpack.c.h.b16 %v794
        %v2305 = vunpack.c.l.b16 %v795
        %v2306 = vunpack.c.h.b16 %v795
        %v2307 = vunpack.c.l.b16 %v796
        %v2308 = vunpack.c.h.b16 %v796
        %v2309 = vunpack.c.l.b16 %v797
        %v2310 = vunpack.c.h.b16 %v797
        %v2311 = vunpack.c.l.b16 %v798
        %v2312 = vunpack.c.h.b16 %v798
        %v2313 = vunpack.c.l.b16 %v799
        %v2314 = vunpack.c.h.b16 %v799
        %v2315 = vunpack.c.l.b16 %v800
        %v2316 = vunpack.c.h.b16 %v800
        %v2317 = vunpack.c.l.b16 %v801
        %v2318 = vunpack.c.h.b16 %v801
        %v2319 = vunpack.c.l.b16 %v802
        %v2320 = vunpack.c.h.b16 %v802
        %v2321 = vunpack.c.l.b16 %v803
        %v2322 = vunpack.c.h.b16 %v803
        %v2323 = vunpack.c.l.b16 %v804
        %v2324 = vunpack.c.h.b16 %v804
        %v2325 = vunpack.c.l.b16 %v805
        %v2326 = vunpack.c.h.b16 %v805
        %v2327 = vunpack.c.l.b16 %v806
        %v2328 = vunpack.c.h.b16 %v806
        %v2329 = vunpack.c.l.b16 %v807
        %v2330 = vunpack.c.h.b16 %v807
        %v2331 = vunpack.c.l.b16 %v808
        %v2332 = vunpack.c.h.b16 %v808
        %v2333 = vunpack.c.l.b16 %v809
        %v2334 = vunpack.c.h.b16 %v809
        %v2335 = vunpack.c.l.b16 %v810
        %v2336 = vunpack.c.h.b16 %v810
        %v2337 = vunpack.c.l.b16 %v811
        %v2338 = vunpack.c.h.b16 %v811
        %v2339 = vunpack.c.l.b16 %v812
        %v2340 = vunpack.c.h.b16 %v812
        %v2341 = vunpack.c.l.b16 %v813
        %v2342 = vunpack.c.h.b16 %v813
        %v2343 = vunpack.c.l.b16 %v814
        %v2344 = vunpack.c.h.b16 %v814
        %v2345 = vunpack.c.l.b16 %v815
        %v2346 = vunpack.c.h.b16 %v815
        %v2347 = vunpack.c.l.b16 %v816
        %v2348 = vunpack.c.h.b16 %v816
        %v2349 = vunpack.c.l.b16 %v817
        %v2350 = vunpack.c.h.b16 %v817
        %v2351 = vunpack.c.l.b16 %v818
        %v2352 = vunpack.c.h.b16 %v818
        %v2353 = vunpack.c.l.b16 %v819
        %v2354 = vunpack.c.h.b16 %v819
        %v2355 = vunpack.c.l.b16 %v820
        %v2356 = vunpack.c.h.b16 %v820
        %v2357 = vunpack.c.l.b16 %v821
        %v2358 = vunpack.c.h.b16 %v821
        %v2359 = vunpack.c.l.b16 %v822
        %v2360 = vunpack.c.h.b16 %v822
        %v2361 = vunpack.c.l.b16 %v823
        %v2362 = vunpack.c.h.b16 %v823
        %v2363 = vunpack.c.l.b16 %v824
        %v2364 = vunpack.c.h.b16 %v824
        %v2365 = vunpack.c.l.b16 %v825
        %v2366 = vunpack.c.h.b16 %v825
        %v2367 = vunpack.c.l.b16 %v826
        %v2368 = vunpack.c.h.b16 %v826
        %v2369 = vunpack.c.l.b16 %v827
        %v2370 = vunpack.c.h.b16 %v827
        %v2371 = vunpack.c.l.b16 %v828
        %v2372 = vunpack.c.h.b16 %v828
        %v2373 = vunpack.c.l.b16 %v829
        %v2374 = vunpack.c.h.b16 %v829
        %v2375 = vunpack.c.l.b16 %v830
        %v2376 = vunpack.c.h.b16 %v830
        %v2377 = vunpack.c.l.b16 %v831
        %v2378 = vunpack.c.h.b16 %v831
        %v2379 = vunpack.c.l.b16 %v832
        %v2380 = vunpack.c.h.b16 %v832
        %v2381 = vunpack.c.l.b16 %v833
        %v2382 = vunpack.c.h.b16 %v833
        %v2383 = vunpack.c.l.b16 %v834
        %v2384 = vunpack.c.h.b16 %v834
        %v2385 = vunpack.c.l.b16 %v835
        %v2386 = vunpack.c.h.b16 %v835
        %v2387 = vunpack.c.l.b16 %v836
        %v2388 = vunpack.c.h.b16 %v836
        %v2389 = vunpack.c.l.b16 %v837
        %v2390 = vunpack.c.h.b16 %v837
        %v2391 = vunpack.c.l.b16 %v838
        %v2392 = vunpack.c.h.b16 %v838
        %v2393 = vunpack.c.l.b16 %v839
        %v2394 = vunpack.c.h.b16 %v839
        %v2395 = vunpack.c.l.b16 %v840
        %v2396 = vunpack.c.h.b16 %v840
        %v2397 = vunpack.c.l.b16 %v841
        %v2398 = vunpack.c.h.b16 %v841
        %v2399 = vunpack.c.l.b16 %v842
        %v2400 = vunpack.c.h.b16 %v842
        %v2401 = vunpack.c.l.b16 %v843
        %v2402 = vunpack.c.h.b16 %v843
        %v2403 = vunpack.c.l.b16 %v844
        %v2404 = vunpack.c.h.b16 %v844
        %v2405 = vunpack.c.l.b16 %v845
        %v2406 = vunpack.c.h.b16 %v845
        %v2407 = vunpack.c.l.b16 %v846
        %v2408 = vunpack.c.h.b16 %v846
        %v2409 = vunpack.c.l.b16 %v847
        %v2410 = vunpack.c.h.b16 %v847
        %v2411 = vunpack.c.l.b16 %v848
        %v2412 = vunpack.c.h.b16 %v848
        %v2413 = vunpack.c.l.b16 %v849
        %v2414 = vunpack.c.h.b16 %v849
        %v2415 = vunpack.c.l.b16 %v850
        %v2416 = vunpack.c.h.b16 %v850
        %v2417 = vunpack.c.l.b16 %v851
        %v2418 = vunpack.c.h.b16 %v851
        %v2419 = vunpack.c.l.b16 %v852
        %v2420 = vunpack.c.h.b16 %v852
        %v2421 = vunpack.c.l.b16 %v853
        %v2422 = vunpack.c.h.b16 %v853
        %v2423 = vunpack.c.l.b16 %v854
        %v2424 = vunpack.c.h.b16 %v854
        %v2425 = vunpack.c.l.b16 %v855
        %v2426 = vunpack.c.h.b16 %v855
        %v2427 = vunpack.c.l.b16 %v856
        %v2428 = vunpack.c.h.b16 %v856
        %v2429 = vunpack.c.l.b16 %v857
        %v2430 = vunpack.c.h.b16 %v857
        %v2431 = vunpack.c.l.b16 %v858
        %v2432 = vunpack.c.h.b16 %v858
        %v2433 = vunpack.c.l.b16 %v859
        %v2434 = vunpack.c.h.b16 %v859
        %v2435 = vunpack.c.l.b16 %v860
        %v2436 = vunpack.c.h.b16 %v860
        %v2437 = vunpack.c.l.b16 %v861
        %v2438 = vunpack.c.h.b16 %v861
        %v2439 = vunpack.c.l.b16 %v862
        %v2440 = vunpack.c.h.b16 %v862
        %v2441 = vunpack.c.l.b16 %v863
        %v2442 = vunpack.c.h.b16 %v863
        %v2443 = vunpack.c.l.b16 %v864
        %v2444 = vunpack.c.h.b16 %v864
        %v2445 = vunpack.c.l.b16 %v865
        %v2446 = vunpack.c.h.b16 %v865
        %v2447 = vunpack.c.l.b16 %v866
        %v2448 = vunpack.c.h.b16 %v866
        %v2449 = vunpack.c.l.b16 %v867
        %v2450 = vunpack.c.h.b16 %v867
        %v2451 = vunpack.c.l.b16 %v868
        %v2452 = vunpack.c.h.b16 %v868
        %v2453 = vunpack.c.l.b16 %v869
        %v2454 = vunpack.c.h.b16 %v869
        %v2455 = vunpack.c.l.b16 %v870
        %v2456 = vunpack.c.h.b16 %v870
        %v2457 = vunpack.c.l.b16 %v871
        %v2458 = vunpack.c.h.b16 %v871
        %v2459 = vunpack.c.l.b16 %v872
        %v2460 = vunpack.c.h.b16 %v872
        %v2461 = vunpack.c.l.b16 %v873
        %v2462 = vunpack.c.h.b16 %v873
        %v2463 = vunpack.c.l.b16 %v874
        %v2464 = vunpack.c.h.b16 %v874
        %v2465 = vunpack.c.l.b16 %v875
        %v2466 = vunpack.c.h.b16 %v875
        %v2467 = vunpack.c.l.b16 %v876
        %v2468 = vunpack.c.h.b16 %v876
        %v2469 = vunpack.c.l.b16 %v877
        %v2470 = vunpack.c.h.b16 %v877
        %v2471 = vunpack.c.l.b16 %v878
        %v2472 = vunpack.c.h.b16 %v878
        %v2473 = vunpack.c.l.b16 %v879
        %v2474 = vunpack.c.h.b16 %v879
        %v2475 = vunpack.c.l.b16 %v880
        %v2476 = vunpack.c.h.b16 %v880
        %v2477 = vunpack.c.l.b16 %v881
        %v2478 = vunpack.c.h.b16 %v881
        %v2479 = vunpack.c.l.b16 %v882
        %v2480 = vunpack.c.h.b16 %v882
        %v2481 = vunpack.c.l.b16 %v883
        %v2482 = vunpack.c.h.b16 %v883
        %v2483 = vunpack.c.l.b16 %v884
        %v2484 = vunpack.c.h.b16 %v884
        %v2485 = vunpack.c.l.b16 %v885
        %v2486 = vunpack.c.h.b16 %v885
        %v2487 = vunpack.c.l.b16 %v886
        %v2488 = vunpack.c.h.b16 %v886
        %v2489 = vunpack.c.l.b16 %v887
        %v2490 = vunpack.c.h.b16 %v887
        %v2491 = vunpack.c.l.b16 %v888
        %v2492 = vunpack.c.h.b16 %v888
        %v2493 = vunpack.c.l.b16 %v889
        %v2494 = vunpack.c.h.b16 %v889
        %v2495 = vunpack.c.l.b16 %v890
        %v2496 = vunpack.c.h.b16 %v890
        %v2497 = vunpack.c.l.b16 %v891
        %v2498 = vunpack.c.h.b16 %v891
        %v2499 = vunpack.c.l.b16 %v892
        %v2500 = vunpack.c.h.b16 %v892
        %v2501 = vunpack.c.l.b16 %v893
        %v2502 = vunpack.c.h.b16 %v893
        %v2503 = vunpack.c.l.b16 %v894
        %v2504 = vunpack.c.h.b16 %v894
        %v2505 = vunpack.c.l.b16 %v895
        %v2506 = vunpack.c.h.b16 %v895
        %v2507 = vunpack.c.l.b16 %v896
        %v2508 = vunpack.c.h.b16 %v896
        %v2509 = vunpack.c.l.b16 %v897
        %v2510 = vunpack.c.h.b16 %v897
        %v2511 = vunpack.c.l.b16 %v898
        %v2512 = vunpack.c.h.b16 %v898
        %v2513 = vunpack.c.l.b16 %v899
        %v2514 = vunpack.c.h.b16 %v899
        %v2515 = vunpack.c.l.b16 %v900
        %v2516 = vunpack.c.h.b16 %v900
        %v2517 = vunpack.c.l.b16 %v901
        %v2518 = vunpack.c.h.b16 %v901
        %v2519 = vunpack.c.l.b16 %v902
        %v2520 = vunpack.c.h.b16 %v902
        %v2521 = vunpack.c.l.b16 %v903
        %v2522 = vunpack.c.h.b16 %v903
        %v2523 = vunpack.c.l.b16 %v904
        %v2524 = vunpack.c.h.b16 %v904
        %v2525 = vunpack.c.l.b16 %v905
        %v2526 = vunpack.c.h.b16 %v905
        %v2527 = vunpack.c.l.b16 %v906
        %v2528 = vunpack.c.h.b16 %v906
        %v2529 = vunpack.c.l.b16 %v907
        %v2530 = vunpack.c.h.b16 %v907
        %v2531 = vunpack.c.l.b16 %v908
        %v2532 = vunpack.c.h.b16 %v908
        %v2533 = vunpack.c.l.b16 %v909
        %v2534 = vunpack.c.h.b16 %v909
        %v2535 = vunpack.c.l.b16 %v910
        %v2536 = vunpack.c.h.b16 %v910
        %v2537 = vunpack.c.l.b16 %v911
        %v2538 = vunpack.c.h.b16 %v911
        %v2539 = vunpack.c.l.b16 %v912
        %v2540 = vunpack.c.h.b16 %v912
        %v2541 = vunpack.c.l.b16 %v913
        %v2542 = vunpack.c.h.b16 %v913
        %v2543 = vunpack.c.l.b16 %v914
        %v2544 = vunpack.c.h.b16 %v914
        %v2545 = vunpack.c.l.b16 %v915
        %v2546 = vunpack.c.h.b16 %v915
        %v2547 = vunpack.c.l.b16 %v916
        %v2548 = vunpack.c.h.b16 %v916
        %v2549 = vunpack.c.l.b16 %v917
        %v2550 = vunpack.c.h.b16 %v917
        %v2551 = vunpack.c.l.b16 %v918
        %v2552 = vunpack.c.h.b16 %v918
        %v2553 = vunpack.c.l.b16 %v919
        %v2554 = vunpack.c.h.b16 %v919
        %v2555 = vunpack.c.l.b16 %v920
        %v2556 = vunpack.c.h.b16 %v920
        %v2557 = vunpack.c.l.b16 %v921
        %v2558 = vunpack.c.h.b16 %v921
        %v2559 = vunpack.c.l.b16 %v922
        %v2560 = vunpack.c.h.b16 %v922
        %v2561 = vunpack.c.l.b16 %v923
        %v2562 = vunpack.c.h.b16 %v923
        %v2563 = vunpack.c.l.b16 %v924
        %v2564 = vunpack.c.h.b16 %v924
        %v2565 = vunpack.c.l.b16 %v925
        %v2566 = vunpack.c.h.b16 %v925
        %v2567 = vunpack.c.l.b16 %v926
        %v2568 = vunpack.c.h.b16 %v926
        %v2569 = vunpack.c.l.b16 %v927
        %v2570 = vunpack.c.h.b16 %v927
        %v2571 = vunpack.c.l.b16 %v928
        %v2572 = vunpack.c.h.b16 %v928
        %v2573 = vunpack.c.l.b16 %v929
        %v2574 = vunpack.c.h.b16 %v929
        %v2575 = vunpack.c.l.b16 %v930
        %v2576 = vunpack.c.h.b16 %v930
        %v2577 = vunpack.c.l.b16 %v931
        %v2578 = vunpack.c.h.b16 %v931
        %v2579 = vunpack.c.l.b16 %v932
        %v2580 = vunpack.c.h.b16 %v932
        %v2581 = vunpack.c.l.b16 %v933
        %v2582 = vunpack.c.h.b16 %v933
        %v2583 = vunpack.c.l.b16 %v934
        %v2584 = vunpack.c.h.b16 %v934
        %v2585 = vunpack.c.l.b16 %v935
        %v2586 = vunpack.c.h.b16 %v935
        %v2587 = vunpack.c.l.b16 %v936
        %v2588 = vunpack.c.h.b16 %v936
        %v2589 = vunpack.c.l.b16 %v937
        %v2590 = vunpack.c.h.b16 %v937
        %v2591 = vunpack.c.l.b16 %v938
        %v2592 = vunpack.c.h.b16 %v938
        %v2593 = vunpack.c.l.b16 %v939
        %v2594 = vunpack.c.h.b16 %v939
        %v2595 = vunpack.c.l.b16 %v940
        %v2596 = vunpack.c.h.b16 %v940
        %v2597 = vunpack.c.l.b16 %v941
        %v2598 = vunpack.c.h.b16 %v941
        %v2599 = vunpack.c.l.b16 %v942
        %v2600 = vunpack.c.h.b16 %v942
        %v2601 = vunpack.c.l.b16 %v943
        %v2602 = vunpack.c.h.b16 %v943
        %v2603 = vunpack.c.l.b16 %v944
        %v2604 = vunpack.c.h.b16 %v944
        %v2605 = vunpack.c.l.b16 %v945
        %v2606 = vunpack.c.h.b16 %v945
        %v2607 = vunpack.c.l.b16 %v946
        %v2608 = vunpack.c.h.b16 %v946
        %v2609 = vunpack.c.l.b16 %v947
        %v2610 = vunpack.c.h.b16 %v947
        %v2611 = vunpack.c.l.b16 %v948
        %v2612 = vunpack.c.h.b16 %v948
        %v2613 = vunpack.c.l.b16 %v949
        %v2614 = vunpack.c.h.b16 %v949
        %v2615 = vunpack.c.l.b16 %v950
        %v2616 = vunpack.c.h.b16 %v950
        %v2617 = vunpack.c.l.b16 %v951
        %v2618 = vunpack.c.h.b16 %v951
        %v2619 = vunpack.c.l.b16 %v952
        %v2620 = vunpack.c.h.b16 %v952
        %v2621 = vunpack.c.l.b16 %v953
        %v2622 = vunpack.c.h.b16 %v953
        %v2623 = vunpack.c.l.b16 %v954
        %v2624 = vunpack.c.h.b16 %v954
        %v2625 = vunpack.c.l.b16 %v955
        %v2626 = vunpack.c.h.b16 %v955
        %v2627 = vunpack.c.l.b16 %v956
        %v2628 = vunpack.c.h.b16 %v956
        %v2629 = vunpack.c.l.b16 %v957
        %v2630 = vunpack.c.h.b16 %v957
        %v2631 = vunpack.c.l.b16 %v958
        %v2632 = vunpack.c.h.b16 %v958
        %v2633 = vunpack.c.l.b16 %v959
        %v2634 = vunpack.c.h.b16 %v959
        %v2635 = vunpack.c.l.b16 %v960
        %v2636 = vunpack.c.h.b16 %v960
        %v2637 = vunpack.c.l.b16 %v961
        %v2638 = vunpack.c.h.b16 %v961
        %v2639 = vunpack.c.l.b16 %v962
        %v2640 = vunpack.c.h.b16 %v962
        %v2641 = vunpack.c.l.b16 %v963
        %v2642 = vunpack.c.h.b16 %v963
        %v2643 = vunpack.c.l.b16 %v964
        %v2644 = vunpack.c.h.b16 %v964
        %v2645 = vunpack.c.l.b16 %v965
        %v2646 = vunpack.c.h.b16 %v965
        %v2647 = vunpack.c.l.b16 %v966
        %v2648 = vunpack.c.h.b16 %v966
        %v2649 = vunpack.c.l.b16 %v967
        %v2650 = vunpack.c.h.b16 %v967
        %v2651 = vunpack.c.l.b16 %v968
        %v2652 = vunpack.c.h.b16 %v968
        %v2653 = vunpack.c.l.b16 %v969
        %v2654 = vunpack.c.h.b16 %v969
        %v2655 = vunpack.c.l.b16 %v970
        %v2656 = vunpack.c.h.b16 %v970
        %v2657 = vunpack.c.l.b16 %v971
        %v2658 = vunpack.c.h.b16 %v971
        %v2659 = vunpack.c.l.b16 %v972
        %v2660 = vunpack.c.h.b16 %v972
        %v2661 = vunpack.c.l.b16 %v973
        %v2662 = vunpack.c.h.b16 %v973
        %v2663 = vunpack.c.l.b16 %v974
        %v2664 = vunpack.c.h.b16 %v974
        %v2665 = vunpack.c.l.b16 %v975
        %v2666 = vunpack.c.h.b16 %v975
        %v2667 = vunpack.c.l.b16 %v976
        %v2668 = vunpack.c.h.b16 %v976
        %v2669 = vunpack.c.l.b16 %v977
        %v2670 = vunpack.c.h.b16 %v977
        %v2671 = vunpack.c.l.b16 %v978
        %v2672 = vunpack.c.h.b16 %v978
        %v2673 = vunpack.c.l.b16 %v979
        %v2674 = vunpack.c.h.b16 %v979
        %v2675 = vunpack.c.l.b16 %v980
        %v2676 = vunpack.c.h.b16 %v980
        %v2677 = vpack.c.b16 %v1657, %v1653
        %v2678 = vpack.c.b16 %v1658, %v1654
        %v2679 = vpack.c.b16 %v1659, %v1655
        %v2680 = vpack.c.b16 %v1660, %v1656
        %v2681 = vpack.c.b16 %v1665, %v1661
        %v2682 = vpack.c.b16 %v1666, %v1662
        %v2683 = vpack.c.b16 %v1667, %v1663
        %v2684 = vpack.c.b16 %v1668, %v1664
        %v2685 = vpack.c.b16 %v1673, %v1669
        %v2686 = vpack.c.b16 %v1674, %v1670
        %v2687 = vpack.c.b16 %v1675, %v1671
        %v2688 = vpack.c.b16 %v1676, %v1672
        %v2689 = vpack.c.b16 %v1681, %v1677
        %v2690 = vpack.c.b16 %v1682, %v1678
        %v2691 = vpack.c.b16 %v1683, %v1679
        %v2692 = vpack.c.b16 %v1684, %v1680
        %v2693 = vpack.c.b16 %v1689, %v1685
        %v2694 = vpack.c.b16 %v1690, %v1686
        %v2695 = vpack.c.b16 %v1691, %v1687
        %v2696 = vpack.c.b16 %v1692, %v1688
        %v2697 = vpack.c.b16 %v1697, %v1693
        %v2698 = vpack.c.b16 %v1698, %v1694
        %v2699 = vpack.c.b16 %v1699, %v1695
        %v2700 = vpack.c.b16 %v1700, %v1696
        %v2701 = vpack.c.b16 %v1705, %v1701
        %v2702 = vpack.c.b16 %v1706, %v1702
        %v2703 = vpack.c.b16 %v1707, %v1703
        %v2704 = vpack.c.b16 %v1708, %v1704
        %v2705 = vpack.c.b16 %v1713, %v1709
        %v2706 = vpack.c.b16 %v1714, %v1710
        %v2707 = vpack.c.b16 %v1715, %v1711
        %v2708 = vpack.c.b16 %v1716, %v1712
        %v2709 = vpack.c.b16 %v1721, %v1717
        %v2710 = vpack.c.b16 %v1722, %v1718
        %v2711 = vpack.c.b16 %v1723, %v1719
        %v2712 = vpack.c.b16 %v1724, %v1720
        %v2713 = vpack.c.b16 %v1729, %v1725
        %v2714 = vpack.c.b16 %v1730, %v1726
        %v2715 = vpack.c.b16 %v1731, %v1727
        %v2716 = vpack.c.b16 %v1732, %v1728
        %v2717 = vpack.c.b16 %v1737, %v1733
        %v2718 = vpack.c.b16 %v1738, %v1734
        %v2719 = vpack.c.b16 %v1739, %v1735
        %v2720 = vpack.c.b16 %v1740, %v1736
        %v2721 = vpack.c.b16 %v1745, %v1741
        %v2722 = vpack.c.b16 %v1746, %v1742
        %v2723 = vpack.c.b16 %v1747, %v1743
        %v2724 = vpack.c.b16 %v1748, %v1744
        %v2725 = vpack.c.b16 %v1753, %v1749
        %v2726 = vpack.c.b16 %v1754, %v1750
        %v2727 = vpack.c.b16 %v1755, %v1751
        %v2728 = vpack.c.b16 %v1756, %v1752
        %v2729 = vpack.c.b16 %v1761, %v1757
        %v2730 = vpack.c.b16 %v1762, %v1758
        %v2731 = vpack.c.b16 %v1763, %v1759
        %v2732 = vpack.c.b16 %v1764, %v1760
        %v2733 = vpack.c.b16 %v1769, %v1765
        %v2734 = vpack.c.b16 %v1770, %v1766
        %v2735 = vpack.c.b16 %v1771, %v1767
        %v2736 = vpack.c.b16 %v1772, %v1768
        %v2737 = vpack.c.b16 %v1777, %v1773
        %v2738 = vpack.c.b16 %v1778, %v1774
        %v2739 = vpack.c.b16 %v1779, %v1775
        %v2740 = vpack.c.b16 %v1780, %v1776
        %v2741 = vpack.c.b16 %v1785, %v1781
        %v2742 = vpack.c.b16 %v1786, %v1782
        %v2743 = vpack.c.b16 %v1787, %v1783
        %v2744 = vpack.c.b16 %v1788, %v1784
        %v2745 = vpack.c.b16 %v1793, %v1789
        %v2746 = vpack.c.b16 %v1794, %v1790
        %v2747 = vpack.c.b16 %v1795, %v1791
        %v2748 = vpack.c.b16 %v1796, %v1792
        %v2749 = vpack.c.b16 %v1801, %v1797
        %v2750 = vpack.c.b16 %v1802, %v1798
        %v2751 = vpack.c.b16 %v1803, %v1799
        %v2752 = vpack.c.b16 %v1804, %v1800
        %v2753 = vpack.c.b16 %v1809, %v1805
        %v2754 = vpack.c.b16 %v1810, %v1806
        %v2755 = vpack.c.b16 %v1811, %v1807
        %v2756 = vpack.c.b16 %v1812, %v1808
        %v2757 = vpack.c.b16 %v1817, %v1813
        %v2758 = vpack.c.b16 %v1818, %v1814
        %v2759 = vpack.c.b16 %v1819, %v1815
        %v2760 = vpack.c.b16 %v1820, %v1816
        %v2761 = vpack.c.b16 %v1825, %v1821
        %v2762 = vpack.c.b16 %v1826, %v1822
        %v2763 = vpack.c.b16 %v1827, %v1823
        %v2764 = vpack.c.b16 %v1828, %v1824
        %v2765 = vpack.c.b16 %v1833, %v1829
        %v2766 = vpack.c.b16 %v1834, %v1830
        %v2767 = vpack.c.b16 %v1835, %v1831
        %v2768 = vpack.c.b16 %v1836, %v1832
        %v2769 = vpack.c.b16 %v1841, %v1837
        %v2770 = vpack.c.b16 %v1842, %v1838
        %v2771 = vpack.c.b16 %v1843, %v1839
        %v2772 = vpack.c.b16 %v1844, %v1840
        %v2773 = vpack.c.b16 %v1849, %v1845
        %v2774 = vpack.c.b16 %v1850, %v1846
        %v2775 = vpack.c.b16 %v1851, %v1847
        %v2776 = vpack.c.b16 %v1852, %v1848
        %v2777 = vpack.c.b16 %v1857, %v1853
        %v2778 = vpack.c.b16 %v1858, %v1854
        %v2779 = vpack.c.b16 %v1859, %v1855
        %v2780 = vpack.c.b16 %v1860, %v1856
        %v2781 = vpack.c.b16 %v1865, %v1861
        %v2782 = vpack.c.b16 %v1866, %v1862
        %v2783 = vpack.c.b16 %v1867, %v1863
        %v2784 = vpack.c.b16 %v1868, %v1864
        %v2785 = vpack.c.b16 %v1873, %v1869
        %v2786 = vpack.c.b16 %v1874, %v1870
        %v2787 = vpack.c.b16 %v1875, %v1871
        %v2788 = vpack.c.b16 %v1876, %v1872
        %v2789 = vpack.c.b16 %v1881, %v1877
        %v2790 = vpack.c.b16 %v1882, %v1878
        %v2791 = vpack.c.b16 %v1883, %v1879
        %v2792 = vpack.c.b16 %v1884, %v1880
        %v2793 = vpack.c.b16 %v1889, %v1885
        %v2794 = vpack.c.b16 %v1890, %v1886
        %v2795 = vpack.c.b16 %v1891, %v1887
        %v2796 = vpack.c.b16 %v1892, %v1888
        %v2797 = vpack.c.b16 %v1897, %v1893
        %v2798 = vpack.c.b16 %v1898, %v1894
        %v2799 = vpack.c.b16 %v1899, %v1895
        %v2800 = vpack.c.b16 %v1900, %v1896
        %v2801 = vpack.c.b16 %v1905, %v1901
        %v2802 = vpack.c.b16 %v1906, %v1902
        %v2803 = vpack.c.b16 %v1907, %v1903
        %v2804 = vpack.c.b16 %v1908, %v1904
        %v2805 = vpack.c.b16 %v1913, %v1909
        %v2806 = vpack.c.b16 %v1914, %v1910
        %v2807 = vpack.c.b16 %v1915, %v1911
        %v2808 = vpack.c.b16 %v1916, %v1912
        %v2809 = vpack.c.b16 %v1921, %v1917
        %v2810 = vpack.c.b16 %v1922, %v1918
        %v2811 = vpack.c.b16 %v1923, %v1919
        %v2812 = vpack.c.b16 %v1924, %v1920
        %v2813 = vpack.c.b16 %v1929, %v1925
        %v2814 = vpack.c.b16 %v1930, %v1926
        %v2815 = vpack.c.b16 %v1931, %v1927
        %v2816 = vpack.c.b16 %v1932, %v1928
        %v2817 = vpack.c.b16 %v1937, %v1933
        %v2818 = vpack.c.b16 %v1938, %v1934
        %v2819 = vpack.c.b16 %v1939, %v1935
        %v2820 = vpack.c.b16 %v1940, %v1936
        %v2821 = vpack.c.b16 %v1945, %v1941
        %v2822 = vpack.c.b16 %v1946, %v1942
        %v2823 = vpack.c.b16 %v1947, %v1943
        %v2824 = vpack.c.b16 %v1948, %v1944
        %v2825 = vpack.c.b16 %v1953, %v1949
        %v2826 = vpack.c.b16 %v1954, %v1950
        %v2827 = vpack.c.b16 %v1955, %v1951
        %v2828 = vpack.c.b16 %v1956, %v1952
        %v2829 = vpack.c.b16 %v1961, %v1957
        %v2830 = vpack.c.b16 %v1962, %v1958
        %v2831 = vpack.c.b16 %v1963, %v1959
        %v2832 = vpack.c.b16 %v1964, %v1960
        %v2833 = vpack.c.b16 %v1969, %v1965
        %v2834 = vpack.c.b16 %v1970, %v1966
        %v2835 = vpack.c.b16 %v1971, %v1967
        %v2836 = vpack.c.b16 %v1972, %v1968
        %v2837 = vpack.c.b16 %v1977, %v1973
        %v2838 = vpack.c.b16 %v1978, %v1974
        %v2839 = vpack.c.b16 %v1979, %v1975
        %v2840 = vpack.c.b16 %v1980, %v1976
        %v2841 = vpack.c.b16 %v1985, %v1981
        %v2842 = vpack.c.b16 %v1986, %v1982
        %v2843 = vpack.c.b16 %v1987, %v1983
        %v2844 = vpack.c.b16 %v1988, %v1984
        %v2845 = vpack.c.b16 %v1993, %v1989
        %v2846 = vpack.c.b16 %v1994, %v1990
        %v2847 = vpack.c.b16 %v1995, %v1991
        %v2848 = vpack.c.b16 %v1996, %v1992
        %v2849 = vpack.c.b16 %v2001, %v1997
        %v2850 = vpack.c.b16 %v2002, %v1998
        %v2851 = vpack.c.b16 %v2003, %v1999
        %v2852 = vpack.c.b16 %v2004, %v2000
        %v2853 = vpack.c.b16 %v2009, %v2005
        %v2854 = vpack.c.b16 %v2010, %v2006
        %v2855 = vpack.c.b16 %v2011, %v2007
        %v2856 = vpack.c.b16 %v2012, %v2008
        %v2857 = vpack.c.b16 %v2017, %v2013
        %v2858 = vpack.c.b16 %v2018, %v2014
        %v2859 = vpack.c.b16 %v2019, %v2015
        %v2860 = vpack.c.b16 %v2020, %v2016
        %v2861 = vpack.c.b16 %v2025, %v2021
        %v2862 = vpack.c.b16 %v2026, %v2022
        %v2863 = vpack.c.b16 %v2027, %v2023
        %v2864 = vpack.c.b16 %v2028, %v2024
        %v2865 = vpack.c.b16 %v2033, %v2029
        %v2866 = vpack.c.b16 %v2034, %v2030
        %v2867 = vpack.c.b16 %v2035, %v2031
        %v2868 = vpack.c.b16 %v2036, %v2032
        %v2869 = vpack.c.b16 %v2041, %v2037
        %v2870 = vpack.c.b16 %v2042, %v2038
        %v2871 = vpack.c.b16 %v2043, %v2039
        %v2872 = vpack.c.b16 %v2044, %v2040
        %v2873 = vpack.c.b16 %v2049, %v2045
        %v2874 = vpack.c.b16 %v2050, %v2046
        %v2875 = vpack.c.b16 %v2051, %v2047
        %v2876 = vpack.c.b16 %v2052, %v2048
        %v2877 = vpack.c.b16 %v2057, %v2053
        %v2878 = vpack.c.b16 %v2058, %v2054
        %v2879 = vpack.c.b16 %v2059, %v2055
        %v2880 = vpack.c.b16 %v2060, %v2056
        %v2881 = vpack.c.b16 %v2065, %v2061
        %v2882 = vpack.c.b16 %v2066, %v2062
        %v2883 = vpack.c.b16 %v2067, %v2063
        %v2884 = vpack.c.b16 %v2068, %v2064
        %v2885 = vpack.c.b16 %v2073, %v2069
        %v2886 = vpack.c.b16 %v2074, %v2070
        %v2887 = vpack.c.b16 %v2075, %v2071
        %v2888 = vpack.c.b16 %v2076, %v2072
        %v2889 = vpack.c.b16 %v2081, %v2077
        %v2890 = vpack.c.b16 %v2082, %v2078
        %v2891 = vpack.c.b16 %v2083, %v2079
        %v2892 = vpack.c.b16 %v2084, %v2080
        %v2893 = vpack.c.b16 %v2089, %v2085
        %v2894 = vpack.c.b16 %v2090, %v2086
        %v2895 = vpack.c.b16 %v2091, %v2087
        %v2896 = vpack.c.b16 %v2092, %v2088
        %v2897 = vpack.c.b16 %v2097, %v2093
        %v2898 = vpack.c.b16 %v2098, %v2094
        %v2899 = vpack.c.b16 %v2099, %v2095
        %v2900 = vpack.c.b16 %v2100, %v2096
        %v2901 = vpack.c.b16 %v2105, %v2101
        %v2902 = vpack.c.b16 %v2106, %v2102
        %v2903 = vpack.c.b16 %v2107, %v2103
        %v2904 = vpack.c.b16 %v2108, %v2104
        %v2905 = vpack.c.b16 %v2113, %v2109
        %v2906 = vpack.c.b16 %v2114, %v2110
        %v2907 = vpack.c.b16 %v2115, %v2111
        %v2908 = vpack.c.b16 %v2116, %v2112
        %v2909 = vpack.c.b16 %v2121, %v2117
        %v2910 = vpack.c.b16 %v2122, %v2118
        %v2911 = vpack.c.b16 %v2123, %v2119
        %v2912 = vpack.c.b16 %v2124, %v2120
        %v2913 = vpack.c.b16 %v2129, %v2125
        %v2914 = vpack.c.b16 %v2130, %v2126
        %v2915 = vpack.c.b16 %v2131, %v2127
        %v2916 = vpack.c.b16 %v2132, %v2128
        %v2917 = vpack.c.b16 %v2137, %v2133
        %v2918 = vpack.c.b16 %v2138, %v2134
        %v2919 = vpack.c.b16 %v2139, %v2135
        %v2920 = vpack.c.b16 %v2140, %v2136
        %v2921 = vpack.c.b16 %v2145, %v2141
        %v2922 = vpack.c.b16 %v2146, %v2142
        %v2923 = vpack.c.b16 %v2147, %v2143
        %v2924 = vpack.c.b16 %v2148, %v2144
        %v2925 = vpack.c.b16 %v2153, %v2149
        %v2926 = vpack.c.b16 %v2154, %v2150
        %v2927 = vpack.c.b16 %v2155, %v2151
        %v2928 = vpack.c.b16 %v2156, %v2152
        %v2929 = vpack.c.b16 %v2161, %v2157
        %v2930 = vpack.c.b16 %v2162, %v2158
        %v2931 = vpack.c.b16 %v2163, %v2159
        %v2932 = vpack.c.b16 %v2164, %v2160
        %v2933 = vpack.c.b16 %v2169, %v2165
        %v2934 = vpack.c.b16 %v2170, %v2166
        %v2935 = vpack.c.b16 %v2171, %v2167
        %v2936 = vpack.c.b16 %v2172, %v2168
        %v2937 = vpack.c.b16 %v2177, %v2173
        %v2938 = vpack.c.b16 %v2178, %v2174
        %v2939 = vpack.c.b16 %v2179, %v2175
        %v2940 = vpack.c.b16 %v2180, %v2176
        %v2941 = vpack.c.b16 %v2185, %v2181
        %v2942 = vpack.c.b16 %v2186, %v2182
        %v2943 = vpack.c.b16 %v2187, %v2183
        %v2944 = vpack.c.b16 %v2188, %v2184
        %v2945 = vpack.c.b16 %v2193, %v2189
        %v2946 = vpack.c.b16 %v2194, %v2190
        %v2947 = vpack.c.b16 %v2195, %v2191
        %v2948 = vpack.c.b16 %v2196, %v2192
        %v2949 = vpack.c.b16 %v2201, %v2197
        %v2950 = vpack.c.b16 %v2202, %v2198
        %v2951 = vpack.c.b16 %v2203, %v2199
        %v2952 = vpack.c.b16 %v2204, %v2200
        %v2953 = vpack.c.b16 %v2209, %v2205
        %v2954 = vpack.c.b16 %v2210, %v2206
        %v2955 = vpack.c.b16 %v2211, %v2207
        %v2956 = vpack.c.b16 %v2212, %v2208
        %v2957 = vpack.c.b16 %v2217, %v2213
        %v2958 = vpack.c.b16 %v2218, %v2214
        %v2959 = vpack.c.b16 %v2219, %v2215
        %v2960 = vpack.c.b16 %v2220, %v2216
        %v2961 = vpack.c.b16 %v2225, %v2221
        %v2962 = vpack.c.b16 %v2226, %v2222
        %v2963 = vpack.c.b16 %v2227, %v2223
        %v2964 = vpack.c.b16 %v2228, %v2224
        %v2965 = vpack.c.b16 %v2233, %v2229
        %v2966 = vpack.c.b16 %v2234, %v2230
        %v2967 = vpack.c.b16 %v2235, %v2231
        %v2968 = vpack.c.b16 %v2236, %v2232
        %v2969 = vpack.c.b16 %v2241, %v2237
        %v2970 = vpack.c.b16 %v2242, %v2238
        %v2971 = vpack.c.b16 %v2243, %v2239
        %v2972 = vpack.c.b16 %v2244, %v2240
        %v2973 = vpack.c.b16 %v2249, %v2245
        %v2974 = vpack.c.b16 %v2250, %v2246
        %v2975 = vpack.c.b16 %v2251, %v2247
        %v2976 = vpack.c.b16 %v2252, %v2248
        %v2977 = vpack.c.b16 %v2257, %v2253
        %v2978 = vpack.c.b16 %v2258, %v2254
        %v2979 = vpack.c.b16 %v2259, %v2255
        %v2980 = vpack.c.b16 %v2260, %v2256
        %v2981 = vpack.c.b16 %v2265, %v2261
        %v2982 = vpack.c.b16 %v2266, %v2262
        %v2983 = vpack.c.b16 %v2267, %v2263
        %v2984 = vpack.c.b16 %v2268, %v2264
        %v2985 = vpack.c.b16 %v2273, %v2269
        %v2986 = vpack.c.b16 %v2274, %v2270
        %v2987 = vpack.c.b16 %v2275, %v2271
        %v2988 = vpack.c.b16 %v2276, %v2272
        %v2989 = vpack.c.b16 %v2281, %v2277
        %v2990 = vpack.c.b16 %v2282, %v2278
        %v2991 = vpack.c.b16 %v2283, %v2279
        %v2992 = vpack.c.b16 %v2284, %v2280
        %v2993 = vpack.c.b16 %v2289, %v2285
        %v2994 = vpack.c.b16 %v2290, %v2286
        %v2995 = vpack.c.b16 %v2291, %v2287
        %v2996 = vpack.c.b16 %v2292, %v2288
        %v2997 = vpack.c.b16 %v2297, %v2293
        %v2998 = vpack.c.b16 %v2298, %v2294
        %v2999 = vpack.c.b16 %v2299, %v2295
        %v3000 = vpack.c.b16 %v2300, %v2296
        %v3001 = vpack.c.b16 %v2305, %v2301
        %v3002 = vpack.c.b16 %v2306, %v2302
        %v3003 = vpack.c.b16 %v2307, %v2303
        %v3004 = vpack.c.b16 %v2308, %v2304
        %v3005 = vpack.c.b16 %v2313, %v2309
        %v3006 = vpack.c.b16 %v2314, %v2310
        %v3007 = vpack.c.b16 %v2315, %v2311
        %v3008 = vpack.c.b16 %v2316, %v2312
        %v3009 = vpack.c.b16 %v2321, %v2317
        %v3010 = vpack.c.b16 %v2322, %v2318
        %v3011 = vpack.c.b16 %v2323, %v2319
        %v3012 = vpack.c.b16 %v2324, %v2320
        %v3013 = vpack.c.b16 %v2329, %v2325
        %v3014 = vpack.c.b16 %v2330, %v2326
        %v3015 = vpack.c.b16 %v2331, %v2327
        %v3016 = vpack.c.b16 %v2332, %v2328
        %v3017 = vpack.c.b16 %v2337, %v2333
        %v3018 = vpack.c.b16 %v2338, %v2334
        %v3019 = vpack.c.b16 %v2339, %v2335
        %v3020 = vpack.c.b16 %v2340, %v2336
        %v3021 = vpack.c.b16 %v2345, %v2341
        %v3022 = vpack.c.b16 %v2346, %v2342
        %v3023 = vpack.c.b16 %v2347, %v2343
        %v3024 = vpack.c.b16 %v2348, %v2344
        %v3025 = vpack.c.b16 %v2353, %v2349
        %v3026 = vpack.c.b16 %v2354, %v2350
        %v3027 = vpack.c.b16 %v2355, %v2351
        %v3028 = vpack.c.b16 %v2356, %v2352
        %v3029 = vpack.c.b16 %v2361, %v2357
        %v3030 = vpack.c.b16 %v2362, %v2358
        %v3031 = vpack.c.b16 %v2363, %v2359
        %v3032 = vpack.c.b16 %v2364, %v2360
        %v3033 = vpack.c.b16 %v2369, %v2365
        %v3034 = vpack.c.b16 %v2370, %v2366
        %v3035 = vpack.c.b16 %v2371, %v2367
        %v3036 = vpack.c.b16 %v2372, %v2368
        %v3037 = vpack.c.b16 %v2377, %v2373
        %v3038 = vpack.c.b16 %v2378, %v2374
        %v3039 = vpack.c.b16 %v2379, %v2375
        %v3040 = vpack.c.b16 %v2380, %v2376
        %v3041 = vpack.c.b16 %v2385, %v2381
        %v3042 = vpack.c.b16 %v2386, %v2382
        %v3043 = vpack.c.b16 %v2387, %v2383
        %v3044 = vpack.c.b16 %v2388, %v2384
        %v3045 = vpack.c.b16 %v2393, %v2389
        %v3046 = vpack.c.b16 %v2394, %v2390
        %v3047 = vpack.c.b16 %v2395, %v2391
        %v3048 = vpack.c.b16 %v2396, %v2392
        %v3049 = vpack.c.b16 %v2401, %v2397
        %v3050 = vpack.c.b16 %v2402, %v2398
        %v3051 = vpack.c.b16 %v2403, %v2399
        %v3052 = vpack.c.b16 %v2404, %v2400
        %v3053 = vpack.c.b16 %v2409, %v2405
        %v3054 = vpack.c.b16 %v2410, %v2406
        %v3055 = vpack.c.b16 %v2411, %v2407
        %v3056 = vpack.c.b16 %v2412, %v2408
        %v3057 = vpack.c.b16 %v2417, %v2413
        %v3058 = vpack.c.b16 %v2418, %v2414
        %v3059 = vpack.c.b16 %v2419, %v2415
        %v3060 = vpack.c.b16 %v2420, %v2416
        %v3061 = vpack.c.b16 %v2425, %v2421
        %v3062 = vpack.c.b16 %v2426, %v2422
        %v3063 = vpack.c.b16 %v2427, %v2423
        %v3064 = vpack.c.b16 %v2428, %v2424
        %v3065 = vpack.c.b16 %v2433, %v2429
        %v3066 = vpack.c.b16 %v2434, %v2430
        %v3067 = vpack.c.b16 %v2435, %v2431
        %v3068 = vpack.c.b16 %v2436, %v2432
        %v3069 = vpack.c.b16 %v2441, %v2437
        %v3070 = vpack.c.b16 %v2442, %v2438
        %v3071 = vpack.c.b16 %v2443, %v2439
        %v3072 = vpack.c.b16 %v2444, %v2440
        %v3073 = vpack.c.b16 %v2449, %v2445
        %v3074 = vpack.c.b16 %v2450, %v2446
        %v3075 = vpack.c.b16 %v2451, %v2447
        %v3076 = vpack.c.b16 %v2452, %v2448
        %v3077 = vpack.c.b16 %v2457, %v2453
        %v3078 = vpack.c.b16 %v2458, %v2454
        %v3079 = vpack.c.b16 %v2459, %v2455
        %v3080 = vpack.c.b16 %v2460, %v2456
        %v3081 = vpack.c.b16 %v2465, %v2461
        %v3082 = vpack.c.b16 %v2466, %v2462
        %v3083 = vpack.c.b16 %v2467, %v2463
        %v3084 = vpack.c.b16 %v2468, %v2464
        %v3085 = vpack.c.b16 %v2473, %v2469
        %v3086 = vpack.c.b16 %v2474, %v2470
        %v3087 = vpack.c.b16 %v2475, %v2471
        %v3088 = vpack.c.b16 %v2476, %v2472
        %v3089 = vpack.c.b16 %v2481, %v2477
        %v3090 = vpack.c.b16 %v2482, %v2478
        %v3091 = vpack.c.b16 %v2483, %v2479
        %v3092 = vpack.c.b16 %v2484, %v2480
        %v3093 = vpack.c.b16 %v2489, %v2485
        %v3094 = vpack.c.b16 %v2490, %v2486
        %v3095 = vpack.c.b16 %v2491, %v2487
        %v3096 = vpack.c.b16 %v2492, %v2488
        %v3097 = vpack.c.b16 %v2497, %v2493
        %v3098 = vpack.c.b16 %v2498, %v2494
        %v3099 = vpack.c.b16 %v2499, %v2495
        %v3100 = vpack.c.b16 %v2500, %v2496
        %v3101 = vpack.c.b16 %v2505, %v2501
        %v3102 = vpack.c.b16 %v2506, %v2502
        %v3103 = vpack.c.b16 %v2507, %v2503
        %v3104 = vpack.c.b16 %v2508, %v2504
        %v3105 = vpack.c.b16 %v2513, %v2509
        %v3106 = vpack.c.b16 %v2514, %v2510
        %v3107 = vpack.c.b16 %v2515, %v2511
        %v3108 = vpack.c.b16 %v2516, %v2512
        %v3109 = vpack.c.b16 %v2521, %v2517
        %v3110 = vpack.c.b16 %v2522, %v2518
        %v3111 = vpack.c.b16 %v2523, %v2519
        %v3112 = vpack.c.b16 %v2524, %v2520
        %v3113 = vpack.c.b16 %v2529, %v2525
        %v3114 = vpack.c.b16 %v2530, %v2526
        %v3115 = vpack.c.b16 %v2531, %v2527
        %v3116 = vpack.c.b16 %v2532, %v2528
        %v3117 = vpack.c.b16 %v2537, %v2533
        %v3118 = vpack.c.b16 %v2538, %v2534
        %v3119 = vpack.c.b16 %v2539, %v2535
        %v3120 = vpack.c.b16 %v2540, %v2536
        %v3121 = vpack.c.b16 %v2545, %v2541
        %v3122 = vpack.c.b16 %v2546, %v2542
        %v3123 = vpack.c.b16 %v2547, %v2543
        %v3124 = vpack.c.b16 %v2548, %v2544
        %v3125 = vpack.c.b16 %v2553, %v2549
        %v3126 = vpack.c.b16 %v2554, %v2550
        %v3127 = vpack.c.b16 %v2555, %v2551
        %v3128 = vpack.c.b16 %v2556, %v2552
        %v3129 = vpack.c.b16 %v2561, %v2557
        %v3130 = vpack.c.b16 %v2562, %v2558
        %v3131 = vpack.c.b16 %v2563, %v2559
        %v3132 = vpack.c.b16 %v2564, %v2560
        %v3133 = vpack.c.b16 %v2569, %v2565
        %v3134 = vpack.c.b16 %v2570, %v2566
        %v3135 = vpack.c.b16 %v2571, %v2567
        %v3136 = vpack.c.b16 %v2572, %v2568
        %v3137 = vpack.c.b16 %v2577, %v2573
        %v3138 = vpack.c.b16 %v2578, %v2574
        %v3139 = vpack.c.b16 %v2579, %v2575
        %v3140 = vpack.c.b16 %v2580, %v2576
        %v3141 = vpack.c.b16 %v2585, %v2581
        %v3142 = vpack.c.b16 %v2586, %v2582
        %v3143 = vpack.c.b16 %v2587, %v2583
        %v3144 = vpack.c.b16 %v2588, %v2584
        %v3145 = vpack.c.b16 %v2593, %v2589
        %v3146 = vpack.c.b16 %v2594, %v2590
        %v3147 = vpack.c.b16 %v2595, %v2591
        %v3148 = vpack.c.b16 %v2596, %v2592
        %v3149 = vpack.c.b16 %v2601, %v2597
        %v3150 = vpack.c.b16 %v2602, %v2598
        %v3151 = vpack.c.b16 %v2603, %v2599
        %v3152 = vpack.c.b16 %v2604, %v2600
        %v3153 = vpack.c.b16 %v2609, %v2605
        %v3154 = vpack.c.b16 %v2610, %v2606
        %v3155 = vpack.c.b16 %v2611, %v2607
        %v3156 = vpack.c.b16 %v2612, %v2608
        %v3157 = vpack.c.b16 %v2617, %v2613
        %v3158 = vpack.c.b16 %v2618, %v2614
        %v3159 = vpack.c.b16 %v2619, %v2615
        %v3160 = vpack.c.b16 %v2620, %v2616
        %v3161 = vpack.c.b16 %v2625, %v2621
        %v3162 = vpack.c.b16 %v2626, %v2622
        %v3163 = vpack.c.b16 %v2627, %v2623
        %v3164 = vpack.c.b16 %v2628, %v2624
        %v3165 = vpack.c.b16 %v2633, %v2629
        %v3166 = vpack.c.b16 %v2634, %v2630
        %v3167 = vpack.c.b16 %v2635, %v2631
        %v3168 = vpack.c.b16 %v2636, %v2632
        %v3169 = vpack.c.b16 %v2641, %v2637
        %v3170 = vpack.c.b16 %v2642, %v2638
        %v3171 = vpack.c.b16 %v2643, %v2639
        %v3172 = vpack.c.b16 %v2644, %v2640
        %v3173 = vpack.c.b16 %v2649, %v2645
        %v3174 = vpack.c.b16 %v2650, %v2646
        %v3175 = vpack.c.b16 %v2651, %v2647
        %v3176 = vpack.c.b16 %v2652, %v2648
        %v3177 = vpack.c.b16 %v2657, %v2653
        %v3178 = vpack.c.b16 %v2658, %v2654
        %v3179 = vpack.c.b16 %v2659, %v2655
        %v3180 = vpack.c.b16 %v2660, %v2656
        %v3181 = vpack.c.b16 %v2665, %v2661
        %v3182 = vpack.c.b16 %v2666, %v2662
        %v3183 = vpack.c.b16 %v2667, %v2663
        %v3184 = vpack.c.b16 %v2668, %v2664
        %v3185 = vpack.c.b16 %v2673, %v2669
        %v3186 = vpack.c.b16 %v2674, %v2670
        %v3187 = vpack.c.b16 %v2675, %v2671
        %v3188 = vpack.c.b16 %v2676, %v2672
        %3701 = vmatpush.bf16.msra.mxu0 %v2705
        %3702 = vmatpush.bf16.msra.mxu0 %v2701
        %3703 = vmatpush.bf16.msra.mxu0 %v2697
        %3704 = vmatpush.bf16.msra.mxu0 %v2693
        %3705 = vmatpush.bf16.msra.mxu0 %v2689
        %3706 = vmatpush.bf16.msra.mxu0 %v2685
        %3707 = vmatpush.bf16.msra.mxu0 %v2681
        %3708 = vmatpush.bf16.msra.mxu0 %v2677
        %3709 = vmatmul.bf16.gmra.mxu0 %v1077
        %v3710 = vpop.f32.mrf.mxu0
        %v3711 = vadd.f32 0.0, %v3710
        %v3712 = vpop.f32.mrf.mxu0
        %v3713 = vadd.f32 0.0, %v3712
        %3714 = vmatmul.bf16.gmra.mxu0 %v1093
        %v3715 = vpop.f32.mrf.mxu0
        %v3716 = vadd.f32 0.0, %v3715
        %v3717 = vpop.f32.mrf.mxu0
        %v3718 = vadd.f32 0.0, %v3717
        %3719 = vdwg.mxu0
        %3720 = vmatpush.bf16.msra.mxu0 %v2737
        %3721 = vmatpush.bf16.msra.mxu0 %v2733
        %3722 = vmatpush.bf16.msra.mxu0 %v2729
        %3723 = vmatpush.bf16.msra.mxu0 %v2725
        %3724 = vmatpush.bf16.msra.mxu0 %v2721
        %3725 = vmatpush.bf16.msra.mxu0 %v2717
        %3726 = vmatpush.bf16.msra.mxu0 %v2713
        %3727 = vmatpush.bf16.msra.mxu0 %v2709
        %3728 = vmatmul.bf16.gmra.mxu0 %v1078
        %v3729 = vpop.f32.mrf.mxu0
        %v3730 = vadd.f32 %v3711, %v3729
        %v3731 = vpop.f32.mrf.mxu0
        %v3732 = vadd.f32 %v3713, %v3731
        %3733 = vmatmul.bf16.gmra.mxu0 %v1094
        %v3734 = vpop.f32.mrf.mxu0
        %v3735 = vadd.f32 %v3716, %v3734
        %v3736 = vpop.f32.mrf.mxu0
        %v3737 = vadd.f32 %v3718, %v3736
        %3738 = vdwg.mxu0
        %3739 = vmatpush.bf16.msra.mxu0 %v2769
        %3740 = vmatpush.bf16.msra.mxu0 %v2765
        %3741 = vmatpush.bf16.msra.mxu0 %v2761
        %3742 = vmatpush.bf16.msra.mxu0 %v2757
        %3743 = vmatpush.bf16.msra.mxu0 %v2753
        %3744 = vmatpush.bf16.msra.mxu0 %v2749
        %3745 = vmatpush.bf16.msra.mxu0 %v2745
        %3746 = vmatpush.bf16.msra.mxu0 %v2741
        %3747 = vmatmul.bf16.gmra.mxu0 %v1079
        %v3748 = vpop.f32.mrf.mxu0
        %v3749 = vadd.f32 %v3730, %v3748
        %v3750 = vpop.f32.mrf.mxu0
        %v3751 = vadd.f32 %v3732, %v3750
        %3752 = vmatmul.bf16.gmra.mxu0 %v1095
        %v3753 = vpop.f32.mrf.mxu0
        %v3754 = vadd.f32 %v3735, %v3753
        %v3755 = vpop.f32.mrf.mxu0
        %v3756 = vadd.f32 %v3737, %v3755
        %3757 = vdwg.mxu0
        %3758 = vmatpush.bf16.msra.mxu0 %v2801
        %3759 = vmatpush.bf16.msra.mxu0 %v2797
        %3760 = vmatpush.bf16.msra.mxu0 %v2793
        %3761 = vmatpush.bf16.msra.mxu0 %v2789
        %3762 = vmatpush.bf16.msra.mxu0 %v2785
        %3763 = vmatpush.bf16.msra.mxu0 %v2781
        %3764 = vmatpush.bf16.msra.mxu0 %v2777
        %3765 = vmatpush.bf16.msra.mxu0 %v2773
        %3766 = vmatmul.bf16.gmra.mxu0 %v1080
        %v3767 = vpop.f32.mrf.mxu0
        %v3768 = vadd.f32 %v3749, %v3767
        %v3769 = vpop.f32.mrf.mxu0
        %v3770 = vadd.f32 %v3751, %v3769
        %3771 = vmatmul.bf16.gmra.mxu0 %v1096
        %v3772 = vpop.f32.mrf.mxu0
        %v3773 = vadd.f32 %v3754, %v3772
        %v3774 = vpop.f32.mrf.mxu0
        %v3775 = vadd.f32 %v3756, %v3774
        %3776 = vdwg.mxu0
        %3777 = vmatpush.bf16.msra.mxu0 %v2833
        %3778 = vmatpush.bf16.msra.mxu0 %v2829
        %3779 = vmatpush.bf16.msra.mxu0 %v2825
        %3780 = vmatpush.bf16.msra.mxu0 %v2821
        %3781 = vmatpush.bf16.msra.mxu0 %v2817
        %3782 = vmatpush.bf16.msra.mxu0 %v2813
        %3783 = vmatpush.bf16.msra.mxu0 %v2809
        %3784 = vmatpush.bf16.msra.mxu0 %v2805
        %3785 = vmatmul.bf16.gmra.mxu0 %v1081
        %v3786 = vpop.f32.mrf.mxu0
        %v3787 = vadd.f32 %v3768, %v3786
        %v3788 = vpop.f32.mrf.mxu0
        %v3789 = vadd.f32 %v3770, %v3788
        %3790 = vmatmul.bf16.gmra.mxu0 %v1097
        %v3791 = vpop.f32.mrf.mxu0
        %v3792 = vadd.f32 %v3773, %v3791
        %v3793 = vpop.f32.mrf.mxu0
        %v3794 = vadd.f32 %v3775, %v3793
        %3795 = vdwg.mxu0
        %3796 = vmatpush.bf16.msra.mxu0 %v2865
        %3797 = vmatpush.bf16.msra.mxu0 %v2861
        %3798 = vmatpush.bf16.msra.mxu0 %v2857
        %3799 = vmatpush.bf16.msra.mxu0 %v2853
        %3800 = vmatpush.bf16.msra.mxu0 %v2849
        %3801 = vmatpush.bf16.msra.mxu0 %v2845
        %3802 = vmatpush.bf16.msra.mxu0 %v2841
        %3803 = vmatpush.bf16.msra.mxu0 %v2837
        %3804 = vmatmul.bf16.gmra.mxu0 %v1082
        %v3805 = vpop.f32.mrf.mxu0
        %v3806 = vadd.f32 %v3787, %v3805
        %v3807 = vpop.f32.mrf.mxu0
        %v3808 = vadd.f32 %v3789, %v3807
        %3809 = vmatmul.bf16.gmra.mxu0 %v1098
        %v3810 = vpop.f32.mrf.mxu0
        %v3811 = vadd.f32 %v3792, %v3810
        %v3812 = vpop.f32.mrf.mxu0
        %v3813 = vadd.f32 %v3794, %v3812
        %3814 = vdwg.mxu0
        %3815 = vmatpush.bf16.msra.mxu0 %v2897
        %3816 = vmatpush.bf16.msra.mxu0 %v2893
        %3817 = vmatpush.bf16.msra.mxu0 %v2889
        %3818 = vmatpush.bf16.msra.mxu0 %v2885
        %3819 = vmatpush.bf16.msra.mxu0 %v2881
        %3820 = vmatpush.bf16.msra.mxu0 %v2877
        %3821 = vmatpush.bf16.msra.mxu0 %v2873
        %3822 = vmatpush.bf16.msra.mxu0 %v2869
        %3823 = vmatmul.bf16.gmra.mxu0 %v1083
        %v3824 = vpop.f32.mrf.mxu0
        %v3825 = vadd.f32 %v3806, %v3824
        %v3826 = vpop.f32.mrf.mxu0
        %v3827 = vadd.f32 %v3808, %v3826
        %3828 = vmatmul.bf16.gmra.mxu0 %v1099
        %v3829 = vpop.f32.mrf.mxu0
        %v3830 = vadd.f32 %v3811, %v3829
        %v3831 = vpop.f32.mrf.mxu0
        %v3832 = vadd.f32 %v3813, %v3831
        %3833 = vdwg.mxu0
        %3834 = vmatpush.bf16.msra.mxu0 %v2929
        %3835 = vmatpush.bf16.msra.mxu0 %v2925
        %3836 = vmatpush.bf16.msra.mxu0 %v2921
        %3837 = vmatpush.bf16.msra.mxu0 %v2917
        %3838 = vmatpush.bf16.msra.mxu0 %v2913
        %3839 = vmatpush.bf16.msra.mxu0 %v2909
        %3840 = vmatpush.bf16.msra.mxu0 %v2905
        %3841 = vmatpush.bf16.msra.mxu0 %v2901
        %3842 = vmatmul.bf16.gmra.mxu0 %v1084
        %v3843 = vpop.f32.mrf.mxu0
        %v3844 = vadd.f32 %v3825, %v3843
        %v3845 = vpop.f32.mrf.mxu0
        %v3846 = vadd.f32 %v3827, %v3845
        %3847 = vmatmul.bf16.gmra.mxu0 %v1100
        %v3848 = vpop.f32.mrf.mxu0
        %v3849 = vadd.f32 %v3830, %v3848
        %v3850 = vpop.f32.mrf.mxu0
        %v3851 = vadd.f32 %v3832, %v3850
        %3852 = vdwg.mxu0
        %3853 = vmatpush.bf16.msra.mxu0 %v2961
        %3854 = vmatpush.bf16.msra.mxu0 %v2957
        %3855 = vmatpush.bf16.msra.mxu0 %v2953
        %3856 = vmatpush.bf16.msra.mxu0 %v2949
        %3857 = vmatpush.bf16.msra.mxu0 %v2945
        %3858 = vmatpush.bf16.msra.mxu0 %v2941
        %3859 = vmatpush.bf16.msra.mxu0 %v2937
        %3860 = vmatpush.bf16.msra.mxu0 %v2933
        %3861 = vmatmul.bf16.gmra.mxu0 %v1085
        %v3862 = vpop.f32.mrf.mxu0
        %v3863 = vadd.f32 %v3844, %v3862
        %v3864 = vpop.f32.mrf.mxu0
        %v3865 = vadd.f32 %v3846, %v3864
        %3866 = vmatmul.bf16.gmra.mxu0 %v1101
        %v3867 = vpop.f32.mrf.mxu0
        %v3868 = vadd.f32 %v3849, %v3867
        %v3869 = vpop.f32.mrf.mxu0
        %v3870 = vadd.f32 %v3851, %v3869
        %3871 = vdwg.mxu0
        %3872 = vmatpush.bf16.msra.mxu0 %v2993
        %3873 = vmatpush.bf16.msra.mxu0 %v2989
        %3874 = vmatpush.bf16.msra.mxu0 %v2985
        %3875 = vmatpush.bf16.msra.mxu0 %v2981
        %3876 = vmatpush.bf16.msra.mxu0 %v2977
        %3877 = vmatpush.bf16.msra.mxu0 %v2973
        %3878 = vmatpush.bf16.msra.mxu0 %v2969
        %3879 = vmatpush.bf16.msra.mxu0 %v2965
        %3880 = vmatmul.bf16.gmra.mxu0 %v1086
        %v3881 = vpop.f32.mrf.mxu0
        %v3882 = vadd.f32 %v3863, %v3881
        %v3883 = vpop.f32.mrf.mxu0
        %v3884 = vadd.f32 %v3865, %v3883
        %3885 = vmatmul.bf16.gmra.mxu0 %v1102
        %v3886 = vpop.f32.mrf.mxu0
        %v3887 = vadd.f32 %v3868, %v3886
        %v3888 = vpop.f32.mrf.mxu0
        %v3889 = vadd.f32 %v3870, %v3888
        %3890 = vdwg.mxu0
        %3891 = vmatpush.bf16.msra.mxu0 %v3025
        %3892 = vmatpush.bf16.msra.mxu0 %v3021
        %3893 = vmatpush.bf16.msra.mxu0 %v3017
        %3894 = vmatpush.bf16.msra.mxu0 %v3013
        %3895 = vmatpush.bf16.msra.mxu0 %v3009
        %3896 = vmatpush.bf16.msra.mxu0 %v3005
        %3897 = vmatpush.bf16.msra.mxu0 %v3001
        %3898 = vmatpush.bf16.msra.mxu0 %v2997
        %3899 = vmatmul.bf16.gmra.mxu0 %v1087
        %v3900 = vpop.f32.mrf.mxu0
        %v3901 = vadd.f32 %v3882, %v3900
        %v3902 = vpop.f32.mrf.mxu0
        %v3903 = vadd.f32 %v3884, %v3902
        %3904 = vmatmul.bf16.gmra.mxu0 %v1103
        %v3905 = vpop.f32.mrf.mxu0
        %v3906 = vadd.f32 %v3887, %v3905
        %v3907 = vpop.f32.mrf.mxu0
        %v3908 = vadd.f32 %v3889, %v3907
        %3909 = vdwg.mxu0
        %3910 = vmatpush.bf16.msra.mxu0 %v3057
        %3911 = vmatpush.bf16.msra.mxu0 %v3053
        %3912 = vmatpush.bf16.msra.mxu0 %v3049
        %3913 = vmatpush.bf16.msra.mxu0 %v3045
        %3914 = vmatpush.bf16.msra.mxu0 %v3041
        %3915 = vmatpush.bf16.msra.mxu0 %v3037
        %3916 = vmatpush.bf16.msra.mxu0 %v3033
        %3917 = vmatpush.bf16.msra.mxu0 %v3029
        %3918 = vmatmul.bf16.gmra.mxu0 %v1088
        %v3919 = vpop.f32.mrf.mxu0
        %v3920 = vadd.f32 %v3901, %v3919
        %v3921 = vpop.f32.mrf.mxu0
        %v3922 = vadd.f32 %v3903, %v3921
        %3923 = vmatmul.bf16.gmra.mxu0 %v1104
        %v3924 = vpop.f32.mrf.mxu0
        %v3925 = vadd.f32 %v3906, %v3924
        %v3926 = vpop.f32.mrf.mxu0
        %v3927 = vadd.f32 %v3908, %v3926
        %3928 = vdwg.mxu0
        %3929 = vmatpush.bf16.msra.mxu0 %v3089
        %3930 = vmatpush.bf16.msra.mxu0 %v3085
        %3931 = vmatpush.bf16.msra.mxu0 %v3081
        %3932 = vmatpush.bf16.msra.mxu0 %v3077
        %3933 = vmatpush.bf16.msra.mxu0 %v3073
        %3934 = vmatpush.bf16.msra.mxu0 %v3069
        %3935 = vmatpush.bf16.msra.mxu0 %v3065
        %3936 = vmatpush.bf16.msra.mxu0 %v3061
        %3937 = vmatmul.bf16.gmra.mxu0 %v1089
        %v3938 = vpop.f32.mrf.mxu0
        %v3939 = vadd.f32 %v3920, %v3938
        %v3940 = vpop.f32.mrf.mxu0
        %v3941 = vadd.f32 %v3922, %v3940
        %3942 = vmatmul.bf16.gmra.mxu0 %v1105
        %v3943 = vpop.f32.mrf.mxu0
        %v3944 = vadd.f32 %v3925, %v3943
        %v3945 = vpop.f32.mrf.mxu0
        %v3946 = vadd.f32 %v3927, %v3945
        %3947 = vdwg.mxu0
        %3948 = vmatpush.bf16.msra.mxu0 %v3121
        %3949 = vmatpush.bf16.msra.mxu0 %v3117
        %3950 = vmatpush.bf16.msra.mxu0 %v3113
        %3951 = vmatpush.bf16.msra.mxu0 %v3109
        %3952 = vmatpush.bf16.msra.mxu0 %v3105
        %3953 = vmatpush.bf16.msra.mxu0 %v3101
        %3954 = vmatpush.bf16.msra.mxu0 %v3097
        %3955 = vmatpush.bf16.msra.mxu0 %v3093
        %3956 = vmatmul.bf16.gmra.mxu0 %v1090
        %v3957 = vpop.f32.mrf.mxu0
        %v3958 = vadd.f32 %v3939, %v3957
        %v3959 = vpop.f32.mrf.mxu0
        %v3960 = vadd.f32 %v3941, %v3959
        %3961 = vmatmul.bf16.gmra.mxu0 %v1106
        %v3962 = vpop.f32.mrf.mxu0
        %v3963 = vadd.f32 %v3944, %v3962
        %v3964 = vpop.f32.mrf.mxu0
        %v3965 = vadd.f32 %v3946, %v3964
        %3966 = vdwg.mxu0
        %3967 = vmatpush.bf16.msra.mxu0 %v3153
        %3968 = vmatpush.bf16.msra.mxu0 %v3149
        %3969 = vmatpush.bf16.msra.mxu0 %v3145
        %3970 = vmatpush.bf16.msra.mxu0 %v3141
        %3971 = vmatpush.bf16.msra.mxu0 %v3137
        %3972 = vmatpush.bf16.msra.mxu0 %v3133
        %3973 = vmatpush.bf16.msra.mxu0 %v3129
        %3974 = vmatpush.bf16.msra.mxu0 %v3125
        %3975 = vmatmul.bf16.gmra.mxu0 %v1091
        %v3976 = vpop.f32.mrf.mxu0
        %v3977 = vadd.f32 %v3958, %v3976
        %v3978 = vpop.f32.mrf.mxu0
        %v3979 = vadd.f32 %v3960, %v3978
        %3980 = vmatmul.bf16.gmra.mxu0 %v1107
        %v3981 = vpop.f32.mrf.mxu0
        %v3982 = vadd.f32 %v3963, %v3981
        %v3983 = vpop.f32.mrf.mxu0
        %v3984 = vadd.f32 %v3965, %v3983
        %3985 = vdwg.mxu0
        %3986 = vmatpush.bf16.msra.mxu0 %v3185
        %3987 = vmatpush.bf16.msra.mxu0 %v3181
        %3988 = vmatpush.bf16.msra.mxu0 %v3177
        %3989 = vmatpush.bf16.msra.mxu0 %v3173
        %3990 = vmatpush.bf16.msra.mxu0 %v3169
        %3991 = vmatpush.bf16.msra.mxu0 %v3165
        %3992 = vmatpush.bf16.msra.mxu0 %v3161
        %3993 = vmatpush.bf16.msra.mxu0 %v3157
        %3994 = vmatmul.bf16.gmra.mxu0 %v1092
        %v3995 = vpop.f32.mrf.mxu0
        %v3996 = vadd.f32 %v3977, %v3995
        %v3997 = vpop.f32.mrf.mxu0
        %v3998 = vadd.f32 %v3979, %v3997
        %3999 = vmatmul.bf16.gmra.mxu0 %v1108
        %v4000 = vpop.f32.mrf.mxu0
        %v4001 = vadd.f32 %v3982, %v4000
        %v4002 = vpop.f32.mrf.mxu0
        %v4003 = vadd.f32 %v3984, %v4002
        %4004 = vdwg.mxu0
        %4005 = vmatpush.bf16.msra.mxu0 %v2706
        %4006 = vmatpush.bf16.msra.mxu0 %v2702
        %4007 = vmatpush.bf16.msra.mxu0 %v2698
        %4008 = vmatpush.bf16.msra.mxu0 %v2694
        %4009 = vmatpush.bf16.msra.mxu0 %v2690
        %4010 = vmatpush.bf16.msra.mxu0 %v2686
        %4011 = vmatpush.bf16.msra.mxu0 %v2682
        %4012 = vmatpush.bf16.msra.mxu0 %v2678
        %4013 = vmatmul.bf16.gmra.mxu0 %v1077
        %v4014 = vpop.f32.mrf.mxu0
        %v4015 = vadd.f32 0.0, %v4014
        %v4016 = vpop.f32.mrf.mxu0
        %v4017 = vadd.f32 0.0, %v4016
        %4018 = vmatmul.bf16.gmra.mxu0 %v1093
        %v4019 = vpop.f32.mrf.mxu0
        %v4020 = vadd.f32 0.0, %v4019
        %v4021 = vpop.f32.mrf.mxu0
        %v4022 = vadd.f32 0.0, %v4021
        %4023 = vdwg.mxu0
        %4024 = vmatpush.bf16.msra.mxu0 %v2738
        %4025 = vmatpush.bf16.msra.mxu0 %v2734
        %4026 = vmatpush.bf16.msra.mxu0 %v2730
        %4027 = vmatpush.bf16.msra.mxu0 %v2726
        %4028 = vmatpush.bf16.msra.mxu0 %v2722
        %4029 = vmatpush.bf16.msra.mxu0 %v2718
        %4030 = vmatpush.bf16.msra.mxu0 %v2714
        %4031 = vmatpush.bf16.msra.mxu0 %v2710
        %4032 = vmatmul.bf16.gmra.mxu0 %v1078
        %v4033 = vpop.f32.mrf.mxu0
        %v4034 = vadd.f32 %v4015, %v4033
        %v4035 = vpop.f32.mrf.mxu0
        %v4036 = vadd.f32 %v4017, %v4035
        %4037 = vmatmul.bf16.gmra.mxu0 %v1094
        %v4038 = vpop.f32.mrf.mxu0
        %v4039 = vadd.f32 %v4020, %v4038
        %v4040 = vpop.f32.mrf.mxu0
        %v4041 = vadd.f32 %v4022, %v4040
        %4042 = vdwg.mxu0
        %4043 = vmatpush.bf16.msra.mxu0 %v2770
        %4044 = vmatpush.bf16.msra.mxu0 %v2766
        %4045 = vmatpush.bf16.msra.mxu0 %v2762
        %4046 = vmatpush.bf16.msra.mxu0 %v2758
        %4047 = vmatpush.bf16.msra.mxu0 %v2754
        %4048 = vmatpush.bf16.msra.mxu0 %v2750
        %4049 = vmatpush.bf16.msra.mxu0 %v2746
        %4050 = vmatpush.bf16.msra.mxu0 %v2742
        %4051 = vmatmul.bf16.gmra.mxu0 %v1079
        %v4052 = vpop.f32.mrf.mxu0
        %v4053 = vadd.f32 %v4034, %v4052
        %v4054 = vpop.f32.mrf.mxu0
        %v4055 = vadd.f32 %v4036, %v4054
        %4056 = vmatmul.bf16.gmra.mxu0 %v1095
        %v4057 = vpop.f32.mrf.mxu0
        %v4058 = vadd.f32 %v4039, %v4057
        %v4059 = vpop.f32.mrf.mxu0
        %v4060 = vadd.f32 %v4041, %v4059
        %4061 = vdwg.mxu0
        %4062 = vmatpush.bf16.msra.mxu0 %v2802
        %4063 = vmatpush.bf16.msra.mxu0 %v2798
        %4064 = vmatpush.bf16.msra.mxu0 %v2794
        %4065 = vmatpush.bf16.msra.mxu0 %v2790
        %4066 = vmatpush.bf16.msra.mxu0 %v2786
        %4067 = vmatpush.bf16.msra.mxu0 %v2782
        %4068 = vmatpush.bf16.msra.mxu0 %v2778
        %4069 = vmatpush.bf16.msra.mxu0 %v2774
        %4070 = vmatmul.bf16.gmra.mxu0 %v1080
        %v4071 = vpop.f32.mrf.mxu0
        %v4072 = vadd.f32 %v4053, %v4071
        %v4073 = vpop.f32.mrf.mxu0
        %v4074 = vadd.f32 %v4055, %v4073
        %4075 = vmatmul.bf16.gmra.mxu0 %v1096
        %v4076 = vpop.f32.mrf.mxu0
        %v4077 = vadd.f32 %v4058, %v4076
        %v4078 = vpop.f32.mrf.mxu0
        %v4079 = vadd.f32 %v4060, %v4078
        %4080 = vdwg.mxu0
        %4081 = vmatpush.bf16.msra.mxu0 %v2834
        %4082 = vmatpush.bf16.msra.mxu0 %v2830
        %4083 = vmatpush.bf16.msra.mxu0 %v2826
        %4084 = vmatpush.bf16.msra.mxu0 %v2822
        %4085 = vmatpush.bf16.msra.mxu0 %v2818
        %4086 = vmatpush.bf16.msra.mxu0 %v2814
        %4087 = vmatpush.bf16.msra.mxu0 %v2810
        %4088 = vmatpush.bf16.msra.mxu0 %v2806
        %4089 = vmatmul.bf16.gmra.mxu0 %v1081
        %v4090 = vpop.f32.mrf.mxu0
        %v4091 = vadd.f32 %v4072, %v4090
        %v4092 = vpop.f32.mrf.mxu0
        %v4093 = vadd.f32 %v4074, %v4092
        %4094 = vmatmul.bf16.gmra.mxu0 %v1097
        %v4095 = vpop.f32.mrf.mxu0
        %v4096 = vadd.f32 %v4077, %v4095
        %v4097 = vpop.f32.mrf.mxu0
        %v4098 = vadd.f32 %v4079, %v4097
        %4099 = vdwg.mxu0
        %4100 = vmatpush.bf16.msra.mxu0 %v2866
        %4101 = vmatpush.bf16.msra.mxu0 %v2862
        %4102 = vmatpush.bf16.msra.mxu0 %v2858
        %4103 = vmatpush.bf16.msra.mxu0 %v2854
        %4104 = vmatpush.bf16.msra.mxu0 %v2850
        %4105 = vmatpush.bf16.msra.mxu0 %v2846
        %4106 = vmatpush.bf16.msra.mxu0 %v2842
        %4107 = vmatpush.bf16.msra.mxu0 %v2838
        %4108 = vmatmul.bf16.gmra.mxu0 %v1082
        %v4109 = vpop.f32.mrf.mxu0
        %v4110 = vadd.f32 %v4091, %v4109
        %v4111 = vpop.f32.mrf.mxu0
        %v4112 = vadd.f32 %v4093, %v4111
        %4113 = vmatmul.bf16.gmra.mxu0 %v1098
        %v4114 = vpop.f32.mrf.mxu0
        %v4115 = vadd.f32 %v4096, %v4114
        %v4116 = vpop.f32.mrf.mxu0
        %v4117 = vadd.f32 %v4098, %v4116
        %4118 = vdwg.mxu0
        %4119 = vmatpush.bf16.msra.mxu0 %v2898
        %4120 = vmatpush.bf16.msra.mxu0 %v2894
        %4121 = vmatpush.bf16.msra.mxu0 %v2890
        %4122 = vmatpush.bf16.msra.mxu0 %v2886
        %4123 = vmatpush.bf16.msra.mxu0 %v2882
        %4124 = vmatpush.bf16.msra.mxu0 %v2878
        %4125 = vmatpush.bf16.msra.mxu0 %v2874
        %4126 = vmatpush.bf16.msra.mxu0 %v2870
        %4127 = vmatmul.bf16.gmra.mxu0 %v1083
        %v4128 = vpop.f32.mrf.mxu0
        %v4129 = vadd.f32 %v4110, %v4128
        %v4130 = vpop.f32.mrf.mxu0
        %v4131 = vadd.f32 %v4112, %v4130
        %4132 = vmatmul.bf16.gmra.mxu0 %v1099
        %v4133 = vpop.f32.mrf.mxu0
        %v4134 = vadd.f32 %v4115, %v4133
        %v4135 = vpop.f32.mrf.mxu0
        %v4136 = vadd.f32 %v4117, %v4135
        %4137 = vdwg.mxu0
        %4138 = vmatpush.bf16.msra.mxu0 %v2930
        %4139 = vmatpush.bf16.msra.mxu0 %v2926
        %4140 = vmatpush.bf16.msra.mxu0 %v2922
        %4141 = vmatpush.bf16.msra.mxu0 %v2918
        %4142 = vmatpush.bf16.msra.mxu0 %v2914
        %4143 = vmatpush.bf16.msra.mxu0 %v2910
        %4144 = vmatpush.bf16.msra.mxu0 %v2906
        %4145 = vmatpush.bf16.msra.mxu0 %v2902
        %4146 = vmatmul.bf16.gmra.mxu0 %v1084
        %v4147 = vpop.f32.mrf.mxu0
        %v4148 = vadd.f32 %v4129, %v4147
        %v4149 = vpop.f32.mrf.mxu0
        %v4150 = vadd.f32 %v4131, %v4149
        %4151 = vmatmul.bf16.gmra.mxu0 %v1100
        %v4152 = vpop.f32.mrf.mxu0
        %v4153 = vadd.f32 %v4134, %v4152
        %v4154 = vpop.f32.mrf.mxu0
        %v4155 = vadd.f32 %v4136, %v4154
        %4156 = vdwg.mxu0
        %4157 = vmatpush.bf16.msra.mxu0 %v2962
        %4158 = vmatpush.bf16.msra.mxu0 %v2958
        %4159 = vmatpush.bf16.msra.mxu0 %v2954
        %4160 = vmatpush.bf16.msra.mxu0 %v2950
        %4161 = vmatpush.bf16.msra.mxu0 %v2946
        %4162 = vmatpush.bf16.msra.mxu0 %v2942
        %4163 = vmatpush.bf16.msra.mxu0 %v2938
        %4164 = vmatpush.bf16.msra.mxu0 %v2934
        %4165 = vmatmul.bf16.gmra.mxu0 %v1085
        %v4166 = vpop.f32.mrf.mxu0
        %v4167 = vadd.f32 %v4148, %v4166
        %v4168 = vpop.f32.mrf.mxu0
        %v4169 = vadd.f32 %v4150, %v4168
        %4170 = vmatmul.bf16.gmra.mxu0 %v1101
        %v4171 = vpop.f32.mrf.mxu0
        %v4172 = vadd.f32 %v4153, %v4171
        %v4173 = vpop.f32.mrf.mxu0
        %v4174 = vadd.f32 %v4155, %v4173
        %4175 = vdwg.mxu0
        %4176 = vmatpush.bf16.msra.mxu0 %v2994
        %4177 = vmatpush.bf16.msra.mxu0 %v2990
        %4178 = vmatpush.bf16.msra.mxu0 %v2986
        %4179 = vmatpush.bf16.msra.mxu0 %v2982
        %4180 = vmatpush.bf16.msra.mxu0 %v2978
        %4181 = vmatpush.bf16.msra.mxu0 %v2974
        %4182 = vmatpush.bf16.msra.mxu0 %v2970
        %4183 = vmatpush.bf16.msra.mxu0 %v2966
        %4184 = vmatmul.bf16.gmra.mxu0 %v1086
        %v4185 = vpop.f32.mrf.mxu0
        %v4186 = vadd.f32 %v4167, %v4185
        %v4187 = vpop.f32.mrf.mxu0
        %v4188 = vadd.f32 %v4169, %v4187
        %4189 = vmatmul.bf16.gmra.mxu0 %v1102
        %v4190 = vpop.f32.mrf.mxu0
        %v4191 = vadd.f32 %v4172, %v4190
        %v4192 = vpop.f32.mrf.mxu0
        %v4193 = vadd.f32 %v4174, %v4192
        %4194 = vdwg.mxu0
        %4195 = vmatpush.bf16.msra.mxu0 %v3026
        %4196 = vmatpush.bf16.msra.mxu0 %v3022
        %4197 = vmatpush.bf16.msra.mxu0 %v3018
        %4198 = vmatpush.bf16.msra.mxu0 %v3014
        %4199 = vmatpush.bf16.msra.mxu0 %v3010
        %4200 = vmatpush.bf16.msra.mxu0 %v3006
        %4201 = vmatpush.bf16.msra.mxu0 %v3002
        %4202 = vmatpush.bf16.msra.mxu0 %v2998
        %4203 = vmatmul.bf16.gmra.mxu0 %v1087
        %v4204 = vpop.f32.mrf.mxu0
        %v4205 = vadd.f32 %v4186, %v4204
        %v4206 = vpop.f32.mrf.mxu0
        %v4207 = vadd.f32 %v4188, %v4206
        %4208 = vmatmul.bf16.gmra.mxu0 %v1103
        %v4209 = vpop.f32.mrf.mxu0
        %v4210 = vadd.f32 %v4191, %v4209
        %v4211 = vpop.f32.mrf.mxu0
        %v4212 = vadd.f32 %v4193, %v4211
        %4213 = vdwg.mxu0
        %4214 = vmatpush.bf16.msra.mxu0 %v3058
        %4215 = vmatpush.bf16.msra.mxu0 %v3054
        %4216 = vmatpush.bf16.msra.mxu0 %v3050
        %4217 = vmatpush.bf16.msra.mxu0 %v3046
        %4218 = vmatpush.bf16.msra.mxu0 %v3042
        %4219 = vmatpush.bf16.msra.mxu0 %v3038
        %4220 = vmatpush.bf16.msra.mxu0 %v3034
        %4221 = vmatpush.bf16.msra.mxu0 %v3030
        %4222 = vmatmul.bf16.gmra.mxu0 %v1088
        %v4223 = vpop.f32.mrf.mxu0
        %v4224 = vadd.f32 %v4205, %v4223
        %v4225 = vpop.f32.mrf.mxu0
        %v4226 = vadd.f32 %v4207, %v4225
        %4227 = vmatmul.bf16.gmra.mxu0 %v1104
        %v4228 = vpop.f32.mrf.mxu0
        %v4229 = vadd.f32 %v4210, %v4228
        %v4230 = vpop.f32.mrf.mxu0
        %v4231 = vadd.f32 %v4212, %v4230
        %4232 = vdwg.mxu0
        %4233 = vmatpush.bf16.msra.mxu0 %v3090
        %4234 = vmatpush.bf16.msra.mxu0 %v3086
        %4235 = vmatpush.bf16.msra.mxu0 %v3082
        %4236 = vmatpush.bf16.msra.mxu0 %v3078
        %4237 = vmatpush.bf16.msra.mxu0 %v3074
        %4238 = vmatpush.bf16.msra.mxu0 %v3070
        %4239 = vmatpush.bf16.msra.mxu0 %v3066
        %4240 = vmatpush.bf16.msra.mxu0 %v3062
        %4241 = vmatmul.bf16.gmra.mxu0 %v1089
        %v4242 = vpop.f32.mrf.mxu0
        %v4243 = vadd.f32 %v4224, %v4242
        %v4244 = vpop.f32.mrf.mxu0
        %v4245 = vadd.f32 %v4226, %v4244
        %4246 = vmatmul.bf16.gmra.mxu0 %v1105
        %v4247 = vpop.f32.mrf.mxu0
        %v4248 = vadd.f32 %v4229, %v4247
        %v4249 = vpop.f32.mrf.mxu0
        %v4250 = vadd.f32 %v4231, %v4249
        %4251 = vdwg.mxu0
        %4252 = vmatpush.bf16.msra.mxu0 %v3122
        %4253 = vmatpush.bf16.msra.mxu0 %v3118
        %4254 = vmatpush.bf16.msra.mxu0 %v3114
        %4255 = vmatpush.bf16.msra.mxu0 %v3110
        %4256 = vmatpush.bf16.msra.mxu0 %v3106
        %4257 = vmatpush.bf16.msra.mxu0 %v3102
        %4258 = vmatpush.bf16.msra.mxu0 %v3098
        %4259 = vmatpush.bf16.msra.mxu0 %v3094
        %4260 = vmatmul.bf16.gmra.mxu0 %v1090
        %v4261 = vpop.f32.mrf.mxu0
        %v4262 = vadd.f32 %v4243, %v4261
        %v4263 = vpop.f32.mrf.mxu0
        %v4264 = vadd.f32 %v4245, %v4263
        %4265 = vmatmul.bf16.gmra.mxu0 %v1106
        %v4266 = vpop.f32.mrf.mxu0
        %v4267 = vadd.f32 %v4248, %v4266
        %v4268 = vpop.f32.mrf.mxu0
        %v4269 = vadd.f32 %v4250, %v4268
        %4270 = vdwg.mxu0
        %4271 = vmatpush.bf16.msra.mxu0 %v3154
        %4272 = vmatpush.bf16.msra.mxu0 %v3150
        %4273 = vmatpush.bf16.msra.mxu0 %v3146
        %4274 = vmatpush.bf16.msra.mxu0 %v3142
        %4275 = vmatpush.bf16.msra.mxu0 %v3138
        %4276 = vmatpush.bf16.msra.mxu0 %v3134
        %4277 = vmatpush.bf16.msra.mxu0 %v3130
        %4278 = vmatpush.bf16.msra.mxu0 %v3126
        %4279 = vmatmul.bf16.gmra.mxu0 %v1091
        %v4280 = vpop.f32.mrf.mxu0
        %v4281 = vadd.f32 %v4262, %v4280
        %v4282 = vpop.f32.mrf.mxu0
        %v4283 = vadd.f32 %v4264, %v4282
        %4284 = vmatmul.bf16.gmra.mxu0 %v1107
        %v4285 = vpop.f32.mrf.mxu0
        %v4286 = vadd.f32 %v4267, %v4285
        %v4287 = vpop.f32.mrf.mxu0
        %v4288 = vadd.f32 %v4269, %v4287
        %4289 = vdwg.mxu0
        %4290 = vmatpush.bf16.msra.mxu0 %v3186
        %4291 = vmatpush.bf16.msra.mxu0 %v3182
        %4292 = vmatpush.bf16.msra.mxu0 %v3178
        %4293 = vmatpush.bf16.msra.mxu0 %v3174
        %4294 = vmatpush.bf16.msra.mxu0 %v3170
        %4295 = vmatpush.bf16.msra.mxu0 %v3166
        %4296 = vmatpush.bf16.msra.mxu0 %v3162
        %4297 = vmatpush.bf16.msra.mxu0 %v3158
        %4298 = vmatmul.bf16.gmra.mxu0 %v1092
        %v4299 = vpop.f32.mrf.mxu0
        %v4300 = vadd.f32 %v4281, %v4299
        %v4301 = vpop.f32.mrf.mxu0
        %v4302 = vadd.f32 %v4283, %v4301
        %4303 = vmatmul.bf16.gmra.mxu0 %v1108
        %v4304 = vpop.f32.mrf.mxu0
        %v4305 = vadd.f32 %v4286, %v4304
        %v4306 = vpop.f32.mrf.mxu0
        %v4307 = vadd.f32 %v4288, %v4306
        %4308 = vdwg.mxu0
        %4309 = vmatpush.bf16.msra.mxu0 %v2707
        %4310 = vmatpush.bf16.msra.mxu0 %v2703
        %4311 = vmatpush.bf16.msra.mxu0 %v2699
        %4312 = vmatpush.bf16.msra.mxu0 %v2695
        %4313 = vmatpush.bf16.msra.mxu0 %v2691
        %4314 = vmatpush.bf16.msra.mxu0 %v2687
        %4315 = vmatpush.bf16.msra.mxu0 %v2683
        %4316 = vmatpush.bf16.msra.mxu0 %v2679
        %4317 = vmatmul.bf16.gmra.mxu0 %v1077
        %v4318 = vpop.f32.mrf.mxu0
        %v4319 = vadd.f32 0.0, %v4318
        %v4320 = vpop.f32.mrf.mxu0
        %v4321 = vadd.f32 0.0, %v4320
        %4322 = vmatmul.bf16.gmra.mxu0 %v1093
        %v4323 = vpop.f32.mrf.mxu0
        %v4324 = vadd.f32 0.0, %v4323
        %v4325 = vpop.f32.mrf.mxu0
        %v4326 = vadd.f32 0.0, %v4325
        %4327 = vdwg.mxu0
        %4328 = vmatpush.bf16.msra.mxu0 %v2739
        %4329 = vmatpush.bf16.msra.mxu0 %v2735
        %4330 = vmatpush.bf16.msra.mxu0 %v2731
        %4331 = vmatpush.bf16.msra.mxu0 %v2727
        %4332 = vmatpush.bf16.msra.mxu0 %v2723
        %4333 = vmatpush.bf16.msra.mxu0 %v2719
        %4334 = vmatpush.bf16.msra.mxu0 %v2715
        %4335 = vmatpush.bf16.msra.mxu0 %v2711
        %4336 = vmatmul.bf16.gmra.mxu0 %v1078
        %v4337 = vpop.f32.mrf.mxu0
        %v4338 = vadd.f32 %v4319, %v4337
        %v4339 = vpop.f32.mrf.mxu0
        %v4340 = vadd.f32 %v4321, %v4339
        %4341 = vmatmul.bf16.gmra.mxu0 %v1094
        %v4342 = vpop.f32.mrf.mxu0
        %v4343 = vadd.f32 %v4324, %v4342
        %v4344 = vpop.f32.mrf.mxu0
        %v4345 = vadd.f32 %v4326, %v4344
        %4346 = vdwg.mxu0
        %4347 = vmatpush.bf16.msra.mxu0 %v2771
        %4348 = vmatpush.bf16.msra.mxu0 %v2767
        %4349 = vmatpush.bf16.msra.mxu0 %v2763
        %4350 = vmatpush.bf16.msra.mxu0 %v2759
        %4351 = vmatpush.bf16.msra.mxu0 %v2755
        %4352 = vmatpush.bf16.msra.mxu0 %v2751
        %4353 = vmatpush.bf16.msra.mxu0 %v2747
        %4354 = vmatpush.bf16.msra.mxu0 %v2743
        %4355 = vmatmul.bf16.gmra.mxu0 %v1079
        %v4356 = vpop.f32.mrf.mxu0
        %v4357 = vadd.f32 %v4338, %v4356
        %v4358 = vpop.f32.mrf.mxu0
        %v4359 = vadd.f32 %v4340, %v4358
        %4360 = vmatmul.bf16.gmra.mxu0 %v1095
        %v4361 = vpop.f32.mrf.mxu0
        %v4362 = vadd.f32 %v4343, %v4361
        %v4363 = vpop.f32.mrf.mxu0
        %v4364 = vadd.f32 %v4345, %v4363
        %4365 = vdwg.mxu0
        %4366 = vmatpush.bf16.msra.mxu0 %v2803
        %4367 = vmatpush.bf16.msra.mxu0 %v2799
        %4368 = vmatpush.bf16.msra.mxu0 %v2795
        %4369 = vmatpush.bf16.msra.mxu0 %v2791
        %4370 = vmatpush.bf16.msra.mxu0 %v2787
        %4371 = vmatpush.bf16.msra.mxu0 %v2783
        %4372 = vmatpush.bf16.msra.mxu0 %v2779
        %4373 = vmatpush.bf16.msra.mxu0 %v2775
        %4374 = vmatmul.bf16.gmra.mxu0 %v1080
        %v4375 = vpop.f32.mrf.mxu0
        %v4376 = vadd.f32 %v4357, %v4375
        %v4377 = vpop.f32.mrf.mxu0
        %v4378 = vadd.f32 %v4359, %v4377
        %4379 = vmatmul.bf16.gmra.mxu0 %v1096
        %v4380 = vpop.f32.mrf.mxu0
        %v4381 = vadd.f32 %v4362, %v4380
        %v4382 = vpop.f32.mrf.mxu0
        %v4383 = vadd.f32 %v4364, %v4382
        %4384 = vdwg.mxu0
        %4385 = vmatpush.bf16.msra.mxu0 %v2835
        %4386 = vmatpush.bf16.msra.mxu0 %v2831
        %4387 = vmatpush.bf16.msra.mxu0 %v2827
        %4388 = vmatpush.bf16.msra.mxu0 %v2823
        %4389 = vmatpush.bf16.msra.mxu0 %v2819
        %4390 = vmatpush.bf16.msra.mxu0 %v2815
        %4391 = vmatpush.bf16.msra.mxu0 %v2811
        %4392 = vmatpush.bf16.msra.mxu0 %v2807
        %4393 = vmatmul.bf16.gmra.mxu0 %v1081
        %v4394 = vpop.f32.mrf.mxu0
        %v4395 = vadd.f32 %v4376, %v4394
        %v4396 = vpop.f32.mrf.mxu0
        %v4397 = vadd.f32 %v4378, %v4396
        %4398 = vmatmul.bf16.gmra.mxu0 %v1097
        %v4399 = vpop.f32.mrf.mxu0
        %v4400 = vadd.f32 %v4381, %v4399
        %v4401 = vpop.f32.mrf.mxu0
        %v4402 = vadd.f32 %v4383, %v4401
        %4403 = vdwg.mxu0
        %4404 = vmatpush.bf16.msra.mxu0 %v2867
        %4405 = vmatpush.bf16.msra.mxu0 %v2863
        %4406 = vmatpush.bf16.msra.mxu0 %v2859
        %4407 = vmatpush.bf16.msra.mxu0 %v2855
        %4408 = vmatpush.bf16.msra.mxu0 %v2851
        %4409 = vmatpush.bf16.msra.mxu0 %v2847
        %4410 = vmatpush.bf16.msra.mxu0 %v2843
        %4411 = vmatpush.bf16.msra.mxu0 %v2839
        %4412 = vmatmul.bf16.gmra.mxu0 %v1082
        %v4413 = vpop.f32.mrf.mxu0
        %v4414 = vadd.f32 %v4395, %v4413
        %v4415 = vpop.f32.mrf.mxu0
        %v4416 = vadd.f32 %v4397, %v4415
        %4417 = vmatmul.bf16.gmra.mxu0 %v1098
        %v4418 = vpop.f32.mrf.mxu0
        %v4419 = vadd.f32 %v4400, %v4418
        %v4420 = vpop.f32.mrf.mxu0
        %v4421 = vadd.f32 %v4402, %v4420
        %4422 = vdwg.mxu0
        %4423 = vmatpush.bf16.msra.mxu0 %v2899
        %4424 = vmatpush.bf16.msra.mxu0 %v2895
        %4425 = vmatpush.bf16.msra.mxu0 %v2891
        %4426 = vmatpush.bf16.msra.mxu0 %v2887
        %4427 = vmatpush.bf16.msra.mxu0 %v2883
        %4428 = vmatpush.bf16.msra.mxu0 %v2879
        %4429 = vmatpush.bf16.msra.mxu0 %v2875
        %4430 = vmatpush.bf16.msra.mxu0 %v2871
        %4431 = vmatmul.bf16.gmra.mxu0 %v1083
        %v4432 = vpop.f32.mrf.mxu0
        %v4433 = vadd.f32 %v4414, %v4432
        %v4434 = vpop.f32.mrf.mxu0
        %v4435 = vadd.f32 %v4416, %v4434
        %4436 = vmatmul.bf16.gmra.mxu0 %v1099
        %v4437 = vpop.f32.mrf.mxu0
        %v4438 = vadd.f32 %v4419, %v4437
        %v4439 = vpop.f32.mrf.mxu0
        %v4440 = vadd.f32 %v4421, %v4439
        %4441 = vdwg.mxu0
        %4442 = vmatpush.bf16.msra.mxu0 %v2931
        %4443 = vmatpush.bf16.msra.mxu0 %v2927
        %4444 = vmatpush.bf16.msra.mxu0 %v2923
        %4445 = vmatpush.bf16.msra.mxu0 %v2919
        %4446 = vmatpush.bf16.msra.mxu0 %v2915
        %4447 = vmatpush.bf16.msra.mxu0 %v2911
        %4448 = vmatpush.bf16.msra.mxu0 %v2907
        %4449 = vmatpush.bf16.msra.mxu0 %v2903
        %4450 = vmatmul.bf16.gmra.mxu0 %v1084
        %v4451 = vpop.f32.mrf.mxu0
        %v4452 = vadd.f32 %v4433, %v4451
        %v4453 = vpop.f32.mrf.mxu0
        %v4454 = vadd.f32 %v4435, %v4453
        %4455 = vmatmul.bf16.gmra.mxu0 %v1100
        %v4456 = vpop.f32.mrf.mxu0
        %v4457 = vadd.f32 %v4438, %v4456
        %v4458 = vpop.f32.mrf.mxu0
        %v4459 = vadd.f32 %v4440, %v4458
        %4460 = vdwg.mxu0
        %4461 = vmatpush.bf16.msra.mxu0 %v2963
        %4462 = vmatpush.bf16.msra.mxu0 %v2959
        %4463 = vmatpush.bf16.msra.mxu0 %v2955
        %4464 = vmatpush.bf16.msra.mxu0 %v2951
        %4465 = vmatpush.bf16.msra.mxu0 %v2947
        %4466 = vmatpush.bf16.msra.mxu0 %v2943
        %4467 = vmatpush.bf16.msra.mxu0 %v2939
        %4468 = vmatpush.bf16.msra.mxu0 %v2935
        %4469 = vmatmul.bf16.gmra.mxu0 %v1085
        %v4470 = vpop.f32.mrf.mxu0
        %v4471 = vadd.f32 %v4452, %v4470
        %v4472 = vpop.f32.mrf.mxu0
        %v4473 = vadd.f32 %v4454, %v4472
        %4474 = vmatmul.bf16.gmra.mxu0 %v1101
        %v4475 = vpop.f32.mrf.mxu0
        %v4476 = vadd.f32 %v4457, %v4475
        %v4477 = vpop.f32.mrf.mxu0
        %v4478 = vadd.f32 %v4459, %v4477
        %4479 = vdwg.mxu0
        %4480 = vmatpush.bf16.msra.mxu0 %v2995
        %4481 = vmatpush.bf16.msra.mxu0 %v2991
        %4482 = vmatpush.bf16.msra.mxu0 %v2987
        %4483 = vmatpush.bf16.msra.mxu0 %v2983
        %4484 = vmatpush.bf16.msra.mxu0 %v2979
        %4485 = vmatpush.bf16.msra.mxu0 %v2975
        %4486 = vmatpush.bf16.msra.mxu0 %v2971
        %4487 = vmatpush.bf16.msra.mxu0 %v2967
        %4488 = vmatmul.bf16.gmra.mxu0 %v1086
        %v4489 = vpop.f32.mrf.mxu0
        %v4490 = vadd.f32 %v4471, %v4489
        %v4491 = vpop.f32.mrf.mxu0
        %v4492 = vadd.f32 %v4473, %v4491
        %4493 = vmatmul.bf16.gmra.mxu0 %v1102
        %v4494 = vpop.f32.mrf.mxu0
        %v4495 = vadd.f32 %v4476, %v4494
        %v4496 = vpop.f32.mrf.mxu0
        %v4497 = vadd.f32 %v4478, %v4496
        %4498 = vdwg.mxu0
        %4499 = vmatpush.bf16.msra.mxu0 %v3027
        %4500 = vmatpush.bf16.msra.mxu0 %v3023
        %4501 = vmatpush.bf16.msra.mxu0 %v3019
        %4502 = vmatpush.bf16.msra.mxu0 %v3015
        %4503 = vmatpush.bf16.msra.mxu0 %v3011
        %4504 = vmatpush.bf16.msra.mxu0 %v3007
        %4505 = vmatpush.bf16.msra.mxu0 %v3003
        %4506 = vmatpush.bf16.msra.mxu0 %v2999
        %4507 = vmatmul.bf16.gmra.mxu0 %v1087
        %v4508 = vpop.f32.mrf.mxu0
        %v4509 = vadd.f32 %v4490, %v4508
        %v4510 = vpop.f32.mrf.mxu0
        %v4511 = vadd.f32 %v4492, %v4510
        %4512 = vmatmul.bf16.gmra.mxu0 %v1103
        %v4513 = vpop.f32.mrf.mxu0
        %v4514 = vadd.f32 %v4495, %v4513
        %v4515 = vpop.f32.mrf.mxu0
        %v4516 = vadd.f32 %v4497, %v4515
        %4517 = vdwg.mxu0
        %4518 = vmatpush.bf16.msra.mxu0 %v3059
        %4519 = vmatpush.bf16.msra.mxu0 %v3055
        %4520 = vmatpush.bf16.msra.mxu0 %v3051
        %4521 = vmatpush.bf16.msra.mxu0 %v3047
        %4522 = vmatpush.bf16.msra.mxu0 %v3043
        %4523 = vmatpush.bf16.msra.mxu0 %v3039
        %4524 = vmatpush.bf16.msra.mxu0 %v3035
        %4525 = vmatpush.bf16.msra.mxu0 %v3031
        %4526 = vmatmul.bf16.gmra.mxu0 %v1088
        %v4527 = vpop.f32.mrf.mxu0
        %v4528 = vadd.f32 %v4509, %v4527
        %v4529 = vpop.f32.mrf.mxu0
        %v4530 = vadd.f32 %v4511, %v4529
        %4531 = vmatmul.bf16.gmra.mxu0 %v1104
        %v4532 = vpop.f32.mrf.mxu0
        %v4533 = vadd.f32 %v4514, %v4532
        %v4534 = vpop.f32.mrf.mxu0
        %v4535 = vadd.f32 %v4516, %v4534
        %4536 = vdwg.mxu0
        %4537 = vmatpush.bf16.msra.mxu0 %v3091
        %4538 = vmatpush.bf16.msra.mxu0 %v3087
        %4539 = vmatpush.bf16.msra.mxu0 %v3083
        %4540 = vmatpush.bf16.msra.mxu0 %v3079
        %4541 = vmatpush.bf16.msra.mxu0 %v3075
        %4542 = vmatpush.bf16.msra.mxu0 %v3071
        %4543 = vmatpush.bf16.msra.mxu0 %v3067
        %4544 = vmatpush.bf16.msra.mxu0 %v3063
        %4545 = vmatmul.bf16.gmra.mxu0 %v1089
        %v4546 = vpop.f32.mrf.mxu0
        %v4547 = vadd.f32 %v4528, %v4546
        %v4548 = vpop.f32.mrf.mxu0
        %v4549 = vadd.f32 %v4530, %v4548
        %4550 = vmatmul.bf16.gmra.mxu0 %v1105
        %v4551 = vpop.f32.mrf.mxu0
        %v4552 = vadd.f32 %v4533, %v4551
        %v4553 = vpop.f32.mrf.mxu0
        %v4554 = vadd.f32 %v4535, %v4553
        %4555 = vdwg.mxu0
        %4556 = vmatpush.bf16.msra.mxu0 %v3123
        %4557 = vmatpush.bf16.msra.mxu0 %v3119
        %4558 = vmatpush.bf16.msra.mxu0 %v3115
        %4559 = vmatpush.bf16.msra.mxu0 %v3111
        %4560 = vmatpush.bf16.msra.mxu0 %v3107
        %4561 = vmatpush.bf16.msra.mxu0 %v3103
        %4562 = vmatpush.bf16.msra.mxu0 %v3099
        %4563 = vmatpush.bf16.msra.mxu0 %v3095
        %4564 = vmatmul.bf16.gmra.mxu0 %v1090
        %v4565 = vpop.f32.mrf.mxu0
        %v4566 = vadd.f32 %v4547, %v4565
        %v4567 = vpop.f32.mrf.mxu0
        %v4568 = vadd.f32 %v4549, %v4567
        %4569 = vmatmul.bf16.gmra.mxu0 %v1106
        %v4570 = vpop.f32.mrf.mxu0
        %v4571 = vadd.f32 %v4552, %v4570
        %v4572 = vpop.f32.mrf.mxu0
        %v4573 = vadd.f32 %v4554, %v4572
        %4574 = vdwg.mxu0
        %4575 = vmatpush.bf16.msra.mxu0 %v3155
        %4576 = vmatpush.bf16.msra.mxu0 %v3151
        %4577 = vmatpush.bf16.msra.mxu0 %v3147
        %4578 = vmatpush.bf16.msra.mxu0 %v3143
        %4579 = vmatpush.bf16.msra.mxu0 %v3139
        %4580 = vmatpush.bf16.msra.mxu0 %v3135
        %4581 = vmatpush.bf16.msra.mxu0 %v3131
        %4582 = vmatpush.bf16.msra.mxu0 %v3127
        %4583 = vmatmul.bf16.gmra.mxu0 %v1091
        %v4584 = vpop.f32.mrf.mxu0
        %v4585 = vadd.f32 %v4566, %v4584
        %v4586 = vpop.f32.mrf.mxu0
        %v4587 = vadd.f32 %v4568, %v4586
        %4588 = vmatmul.bf16.gmra.mxu0 %v1107
        %v4589 = vpop.f32.mrf.mxu0
        %v4590 = vadd.f32 %v4571, %v4589
        %v4591 = vpop.f32.mrf.mxu0
        %v4592 = vadd.f32 %v4573, %v4591
        %4593 = vdwg.mxu0
        %4594 = vmatpush.bf16.msra.mxu0 %v3187
        %4595 = vmatpush.bf16.msra.mxu0 %v3183
        %4596 = vmatpush.bf16.msra.mxu0 %v3179
        %4597 = vmatpush.bf16.msra.mxu0 %v3175
        %4598 = vmatpush.bf16.msra.mxu0 %v3171
        %4599 = vmatpush.bf16.msra.mxu0 %v3167
        %4600 = vmatpush.bf16.msra.mxu0 %v3163
        %4601 = vmatpush.bf16.msra.mxu0 %v3159
        %4602 = vmatmul.bf16.gmra.mxu0 %v1092
        %v4603 = vpop.f32.mrf.mxu0
        %v4604 = vadd.f32 %v4585, %v4603
        %v4605 = vpop.f32.mrf.mxu0
        %v4606 = vadd.f32 %v4587, %v4605
        %4607 = vmatmul.bf16.gmra.mxu0 %v1108
        %v4608 = vpop.f32.mrf.mxu0
        %v4609 = vadd.f32 %v4590, %v4608
        %v4610 = vpop.f32.mrf.mxu0
        %v4611 = vadd.f32 %v4592, %v4610
        %4612 = vdwg.mxu0
        %4613 = vmatpush.bf16.msra.mxu0 %v2708
        %4614 = vmatpush.bf16.msra.mxu0 %v2704
        %4615 = vmatpush.bf16.msra.mxu0 %v2700
        %4616 = vmatpush.bf16.msra.mxu0 %v2696
        %4617 = vmatpush.bf16.msra.mxu0 %v2692
        %4618 = vmatpush.bf16.msra.mxu0 %v2688
        %4619 = vmatpush.bf16.msra.mxu0 %v2684
        %4620 = vmatpush.bf16.msra.mxu0 %v2680
        %4621 = vmatmul.bf16.gmra.mxu0 %v1077
        %v4622 = vpop.f32.mrf.mxu0
        %v4623 = vadd.f32 0.0, %v4622
        %v4624 = vpop.f32.mrf.mxu0
        %v4625 = vadd.f32 0.0, %v4624
        %4626 = vmatmul.bf16.gmra.mxu0 %v1093
        %v4627 = vpop.f32.mrf.mxu0
        %v4628 = vadd.f32 0.0, %v4627
        %v4629 = vpop.f32.mrf.mxu0
        %v4630 = vadd.f32 0.0, %v4629
        %4631 = vdwg.mxu0
        %4632 = vmatpush.bf16.msra.mxu0 %v2740
        %4633 = vmatpush.bf16.msra.mxu0 %v2736
        %4634 = vmatpush.bf16.msra.mxu0 %v2732
        %4635 = vmatpush.bf16.msra.mxu0 %v2728
        %4636 = vmatpush.bf16.msra.mxu0 %v2724
        %4637 = vmatpush.bf16.msra.mxu0 %v2720
        %4638 = vmatpush.bf16.msra.mxu0 %v2716
        %4639 = vmatpush.bf16.msra.mxu0 %v2712
        %4640 = vmatmul.bf16.gmra.mxu0 %v1078
        %v4641 = vpop.f32.mrf.mxu0
        %v4642 = vadd.f32 %v4623, %v4641
        %v4643 = vpop.f32.mrf.mxu0
        %v4644 = vadd.f32 %v4625, %v4643
        %4645 = vmatmul.bf16.gmra.mxu0 %v1094
        %v4646 = vpop.f32.mrf.mxu0
        %v4647 = vadd.f32 %v4628, %v4646
        %v4648 = vpop.f32.mrf.mxu0
        %v4649 = vadd.f32 %v4630, %v4648
        %4650 = vdwg.mxu0
        %4651 = vmatpush.bf16.msra.mxu0 %v2772
        %4652 = vmatpush.bf16.msra.mxu0 %v2768
        %4653 = vmatpush.bf16.msra.mxu0 %v2764
        %4654 = vmatpush.bf16.msra.mxu0 %v2760
        %4655 = vmatpush.bf16.msra.mxu0 %v2756
        %4656 = vmatpush.bf16.msra.mxu0 %v2752
        %4657 = vmatpush.bf16.msra.mxu0 %v2748
        %4658 = vmatpush.bf16.msra.mxu0 %v2744
        %4659 = vmatmul.bf16.gmra.mxu0 %v1079
        %v4660 = vpop.f32.mrf.mxu0
        %v4661 = vadd.f32 %v4642, %v4660
        %v4662 = vpop.f32.mrf.mxu0
        %v4663 = vadd.f32 %v4644, %v4662
        %4664 = vmatmul.bf16.gmra.mxu0 %v1095
        %v4665 = vpop.f32.mrf.mxu0
        %v4666 = vadd.f32 %v4647, %v4665
        %v4667 = vpop.f32.mrf.mxu0
        %v4668 = vadd.f32 %v4649, %v4667
        %4669 = vdwg.mxu0
        %4670 = vmatpush.bf16.msra.mxu0 %v2804
        %4671 = vmatpush.bf16.msra.mxu0 %v2800
        %4672 = vmatpush.bf16.msra.mxu0 %v2796
        %4673 = vmatpush.bf16.msra.mxu0 %v2792
        %4674 = vmatpush.bf16.msra.mxu0 %v2788
        %4675 = vmatpush.bf16.msra.mxu0 %v2784
        %4676 = vmatpush.bf16.msra.mxu0 %v2780
        %4677 = vmatpush.bf16.msra.mxu0 %v2776
        %4678 = vmatmul.bf16.gmra.mxu0 %v1080
        %v4679 = vpop.f32.mrf.mxu0
        %v4680 = vadd.f32 %v4661, %v4679
        %v4681 = vpop.f32.mrf.mxu0
        %v4682 = vadd.f32 %v4663, %v4681
        %4683 = vmatmul.bf16.gmra.mxu0 %v1096
        %v4684 = vpop.f32.mrf.mxu0
        %v4685 = vadd.f32 %v4666, %v4684
        %v4686 = vpop.f32.mrf.mxu0
        %v4687 = vadd.f32 %v4668, %v4686
        %4688 = vdwg.mxu0
        %4689 = vmatpush.bf16.msra.mxu0 %v2836
        %4690 = vmatpush.bf16.msra.mxu0 %v2832
        %4691 = vmatpush.bf16.msra.mxu0 %v2828
        %4692 = vmatpush.bf16.msra.mxu0 %v2824
        %4693 = vmatpush.bf16.msra.mxu0 %v2820
        %4694 = vmatpush.bf16.msra.mxu0 %v2816
        %4695 = vmatpush.bf16.msra.mxu0 %v2812
        %4696 = vmatpush.bf16.msra.mxu0 %v2808
        %4697 = vmatmul.bf16.gmra.mxu0 %v1081
        %v4698 = vpop.f32.mrf.mxu0
        %v4699 = vadd.f32 %v4680, %v4698
        %v4700 = vpop.f32.mrf.mxu0
        %v4701 = vadd.f32 %v4682, %v4700
        %4702 = vmatmul.bf16.gmra.mxu0 %v1097
        %v4703 = vpop.f32.mrf.mxu0
        %v4704 = vadd.f32 %v4685, %v4703
        %v4705 = vpop.f32.mrf.mxu0
        %v4706 = vadd.f32 %v4687, %v4705
        %4707 = vdwg.mxu0
        %4708 = vmatpush.bf16.msra.mxu0 %v2868
        %4709 = vmatpush.bf16.msra.mxu0 %v2864
        %4710 = vmatpush.bf16.msra.mxu0 %v2860
        %4711 = vmatpush.bf16.msra.mxu0 %v2856
        %4712 = vmatpush.bf16.msra.mxu0 %v2852
        %4713 = vmatpush.bf16.msra.mxu0 %v2848
        %4714 = vmatpush.bf16.msra.mxu0 %v2844
        %4715 = vmatpush.bf16.msra.mxu0 %v2840
        %4716 = vmatmul.bf16.gmra.mxu0 %v1082
        %v4717 = vpop.f32.mrf.mxu0
        %v4718 = vadd.f32 %v4699, %v4717
        %v4719 = vpop.f32.mrf.mxu0
        %v4720 = vadd.f32 %v4701, %v4719
        %4721 = vmatmul.bf16.gmra.mxu0 %v1098
        %v4722 = vpop.f32.mrf.mxu0
        %v4723 = vadd.f32 %v4704, %v4722
        %v4724 = vpop.f32.mrf.mxu0
        %v4725 = vadd.f32 %v4706, %v4724
        %4726 = vdwg.mxu0
        %4727 = vmatpush.bf16.msra.mxu0 %v2900
        %4728 = vmatpush.bf16.msra.mxu0 %v2896
        %4729 = vmatpush.bf16.msra.mxu0 %v2892
        %4730 = vmatpush.bf16.msra.mxu0 %v2888
        %4731 = vmatpush.bf16.msra.mxu0 %v2884
        %4732 = vmatpush.bf16.msra.mxu0 %v2880
        %4733 = vmatpush.bf16.msra.mxu0 %v2876
        %4734 = vmatpush.bf16.msra.mxu0 %v2872
        %4735 = vmatmul.bf16.gmra.mxu0 %v1083
        %v4736 = vpop.f32.mrf.mxu0
        %v4737 = vadd.f32 %v4718, %v4736
        %v4738 = vpop.f32.mrf.mxu0
        %v4739 = vadd.f32 %v4720, %v4738
        %4740 = vmatmul.bf16.gmra.mxu0 %v1099
        %v4741 = vpop.f32.mrf.mxu0
        %v4742 = vadd.f32 %v4723, %v4741
        %v4743 = vpop.f32.mrf.mxu0
        %v4744 = vadd.f32 %v4725, %v4743
        %4745 = vdwg.mxu0
        %4746 = vmatpush.bf16.msra.mxu0 %v2932
        %4747 = vmatpush.bf16.msra.mxu0 %v2928
        %4748 = vmatpush.bf16.msra.mxu0 %v2924
        %4749 = vmatpush.bf16.msra.mxu0 %v2920
        %4750 = vmatpush.bf16.msra.mxu0 %v2916
        %4751 = vmatpush.bf16.msra.mxu0 %v2912
        %4752 = vmatpush.bf16.msra.mxu0 %v2908
        %4753 = vmatpush.bf16.msra.mxu0 %v2904
        %4754 = vmatmul.bf16.gmra.mxu0 %v1084
        %v4755 = vpop.f32.mrf.mxu0
        %v4756 = vadd.f32 %v4737, %v4755
        %v4757 = vpop.f32.mrf.mxu0
        %v4758 = vadd.f32 %v4739, %v4757
        %4759 = vmatmul.bf16.gmra.mxu0 %v1100
        %v4760 = vpop.f32.mrf.mxu0
        %v4761 = vadd.f32 %v4742, %v4760
        %v4762 = vpop.f32.mrf.mxu0
        %v4763 = vadd.f32 %v4744, %v4762
        %4764 = vdwg.mxu0
        %4765 = vmatpush.bf16.msra.mxu0 %v2964
        %4766 = vmatpush.bf16.msra.mxu0 %v2960
        %4767 = vmatpush.bf16.msra.mxu0 %v2956
        %4768 = vmatpush.bf16.msra.mxu0 %v2952
        %4769 = vmatpush.bf16.msra.mxu0 %v2948
        %4770 = vmatpush.bf16.msra.mxu0 %v2944
        %4771 = vmatpush.bf16.msra.mxu0 %v2940
        %4772 = vmatpush.bf16.msra.mxu0 %v2936
        %4773 = vmatmul.bf16.gmra.mxu0 %v1085
        %v4774 = vpop.f32.mrf.mxu0
        %v4775 = vadd.f32 %v4756, %v4774
        %v4776 = vpop.f32.mrf.mxu0
        %v4777 = vadd.f32 %v4758, %v4776
        %4778 = vmatmul.bf16.gmra.mxu0 %v1101
        %v4779 = vpop.f32.mrf.mxu0
        %v4780 = vadd.f32 %v4761, %v4779
        %v4781 = vpop.f32.mrf.mxu0
        %v4782 = vadd.f32 %v4763, %v4781
        %4783 = vdwg.mxu0
        %4784 = vmatpush.bf16.msra.mxu0 %v2996
        %4785 = vmatpush.bf16.msra.mxu0 %v2992
        %4786 = vmatpush.bf16.msra.mxu0 %v2988
        %4787 = vmatpush.bf16.msra.mxu0 %v2984
        %4788 = vmatpush.bf16.msra.mxu0 %v2980
        %4789 = vmatpush.bf16.msra.mxu0 %v2976
        %4790 = vmatpush.bf16.msra.mxu0 %v2972
        %4791 = vmatpush.bf16.msra.mxu0 %v2968
        %4792 = vmatmul.bf16.gmra.mxu0 %v1086
        %v4793 = vpop.f32.mrf.mxu0
        %v4794 = vadd.f32 %v4775, %v4793
        %v4795 = vpop.f32.mrf.mxu0
        %v4796 = vadd.f32 %v4777, %v4795
        %4797 = vmatmul.bf16.gmra.mxu0 %v1102
        %v4798 = vpop.f32.mrf.mxu0
        %v4799 = vadd.f32 %v4780, %v4798
        %v4800 = vpop.f32.mrf.mxu0
        %v4801 = vadd.f32 %v4782, %v4800
        %4802 = vdwg.mxu0
        %4803 = vmatpush.bf16.msra.mxu0 %v3028
        %4804 = vmatpush.bf16.msra.mxu0 %v3024
        %4805 = vmatpush.bf16.msra.mxu0 %v3020
        %4806 = vmatpush.bf16.msra.mxu0 %v3016
        %4807 = vmatpush.bf16.msra.mxu0 %v3012
        %4808 = vmatpush.bf16.msra.mxu0 %v3008
        %4809 = vmatpush.bf16.msra.mxu0 %v3004
        %4810 = vmatpush.bf16.msra.mxu0 %v3000
        %4811 = vmatmul.bf16.gmra.mxu0 %v1087
        %v4812 = vpop.f32.mrf.mxu0
        %v4813 = vadd.f32 %v4794, %v4812
        %v4814 = vpop.f32.mrf.mxu0
        %v4815 = vadd.f32 %v4796, %v4814
        %4816 = vmatmul.bf16.gmra.mxu0 %v1103
        %v4817 = vpop.f32.mrf.mxu0
        %v4818 = vadd.f32 %v4799, %v4817
        %v4819 = vpop.f32.mrf.mxu0
        %v4820 = vadd.f32 %v4801, %v4819
        %4821 = vdwg.mxu0
        %4822 = vmatpush.bf16.msra.mxu0 %v3060
        %4823 = vmatpush.bf16.msra.mxu0 %v3056
        %4824 = vmatpush.bf16.msra.mxu0 %v3052
        %4825 = vmatpush.bf16.msra.mxu0 %v3048
        %4826 = vmatpush.bf16.msra.mxu0 %v3044
        %4827 = vmatpush.bf16.msra.mxu0 %v3040
        %4828 = vmatpush.bf16.msra.mxu0 %v3036
        %4829 = vmatpush.bf16.msra.mxu0 %v3032
        %4830 = vmatmul.bf16.gmra.mxu0 %v1088
        %v4831 = vpop.f32.mrf.mxu0
        %v4832 = vadd.f32 %v4813, %v4831
        %v4833 = vpop.f32.mrf.mxu0
        %v4834 = vadd.f32 %v4815, %v4833
        %4835 = vmatmul.bf16.gmra.mxu0 %v1104
        %v4836 = vpop.f32.mrf.mxu0
        %v4837 = vadd.f32 %v4818, %v4836
        %v4838 = vpop.f32.mrf.mxu0
        %v4839 = vadd.f32 %v4820, %v4838
        %4840 = vdwg.mxu0
        %4841 = vmatpush.bf16.msra.mxu0 %v3092
        %4842 = vmatpush.bf16.msra.mxu0 %v3088
        %4843 = vmatpush.bf16.msra.mxu0 %v3084
        %4844 = vmatpush.bf16.msra.mxu0 %v3080
        %4845 = vmatpush.bf16.msra.mxu0 %v3076
        %4846 = vmatpush.bf16.msra.mxu0 %v3072
        %4847 = vmatpush.bf16.msra.mxu0 %v3068
        %4848 = vmatpush.bf16.msra.mxu0 %v3064
        %4849 = vmatmul.bf16.gmra.mxu0 %v1089
        %v4850 = vpop.f32.mrf.mxu0
        %v4851 = vadd.f32 %v4832, %v4850
        %v4852 = vpop.f32.mrf.mxu0
        %v4853 = vadd.f32 %v4834, %v4852
        %4854 = vmatmul.bf16.gmra.mxu0 %v1105
        %v4855 = vpop.f32.mrf.mxu0
        %v4856 = vadd.f32 %v4837, %v4855
        %v4857 = vpop.f32.mrf.mxu0
        %v4858 = vadd.f32 %v4839, %v4857
        %4859 = vdwg.mxu0
        %4860 = vmatpush.bf16.msra.mxu0 %v3124
        %4861 = vmatpush.bf16.msra.mxu0 %v3120
        %4862 = vmatpush.bf16.msra.mxu0 %v3116
        %4863 = vmatpush.bf16.msra.mxu0 %v3112
        %4864 = vmatpush.bf16.msra.mxu0 %v3108
        %4865 = vmatpush.bf16.msra.mxu0 %v3104
        %4866 = vmatpush.bf16.msra.mxu0 %v3100
        %4867 = vmatpush.bf16.msra.mxu0 %v3096
        %4868 = vmatmul.bf16.gmra.mxu0 %v1090
        %v4869 = vpop.f32.mrf.mxu0
        %v4870 = vadd.f32 %v4851, %v4869
        %v4871 = vpop.f32.mrf.mxu0
        %v4872 = vadd.f32 %v4853, %v4871
        %4873 = vmatmul.bf16.gmra.mxu0 %v1106
        %v4874 = vpop.f32.mrf.mxu0
        %v4875 = vadd.f32 %v4856, %v4874
        %v4876 = vpop.f32.mrf.mxu0
        %v4877 = vadd.f32 %v4858, %v4876
        %4878 = vdwg.mxu0
        %4879 = vmatpush.bf16.msra.mxu0 %v3156
        %4880 = vmatpush.bf16.msra.mxu0 %v3152
        %4881 = vmatpush.bf16.msra.mxu0 %v3148
        %4882 = vmatpush.bf16.msra.mxu0 %v3144
        %4883 = vmatpush.bf16.msra.mxu0 %v3140
        %4884 = vmatpush.bf16.msra.mxu0 %v3136
        %4885 = vmatpush.bf16.msra.mxu0 %v3132
        %4886 = vmatpush.bf16.msra.mxu0 %v3128
        %4887 = vmatmul.bf16.gmra.mxu0 %v1091
        %v4888 = vpop.f32.mrf.mxu0
        %v4889 = vadd.f32 %v4870, %v4888
        %v4890 = vpop.f32.mrf.mxu0
        %v4891 = vadd.f32 %v4872, %v4890
        %4892 = vmatmul.bf16.gmra.mxu0 %v1107
        %v4893 = vpop.f32.mrf.mxu0
        %v4894 = vadd.f32 %v4875, %v4893
        %v4895 = vpop.f32.mrf.mxu0
        %v4896 = vadd.f32 %v4877, %v4895
        %4897 = vdwg.mxu0
        %4898 = vmatpush.bf16.msra.mxu0 %v3188
        %4899 = vmatpush.bf16.msra.mxu0 %v3184
        %4900 = vmatpush.bf16.msra.mxu0 %v3180
        %4901 = vmatpush.bf16.msra.mxu0 %v3176
        %4902 = vmatpush.bf16.msra.mxu0 %v3172
        %4903 = vmatpush.bf16.msra.mxu0 %v3168
        %4904 = vmatpush.bf16.msra.mxu0 %v3164
        %4905 = vmatpush.bf16.msra.mxu0 %v3160
        %4906 = vmatmul.bf16.gmra.mxu0 %v1092
        %v4907 = vpop.f32.mrf.mxu0
        %v4908 = vadd.f32 %v4889, %v4907
        %v4909 = vpop.f32.mrf.mxu0
        %v4910 = vadd.f32 %v4891, %v4909
        %4911 = vmatmul.bf16.gmra.mxu0 %v1108
        %v4912 = vpop.f32.mrf.mxu0
        %v4913 = vadd.f32 %v4894, %v4912
        %v4914 = vpop.f32.mrf.mxu0
        %v4915 = vadd.f32 %v4896, %v4914
        %4916 = vdwg.mxu0
        %v4917 = vadd.f32 %v421, %v3996
        %v4918 = vadd.f32 %v422, %v4300
        %v4919 = vadd.f32 %v423, %v4604
        %v4920 = vadd.f32 %v424, %v4908
        %v4921 = vadd.f32 %v425, %v3998
        %v4922 = vadd.f32 %v426, %v4302
        %v4923 = vadd.f32 %v427, %v4606
        %v4924 = vadd.f32 %v428, %v4910
        %v4925 = vadd.f32 %v429, %v4001
        %v4926 = vadd.f32 %v430, %v4305
        %v4927 = vadd.f32 %v431, %v4609
        %v4928 = vadd.f32 %v432, %v4913
        %v4929 = vadd.f32 %v433, %v4003
        %v4930 = vadd.f32 %v434, %v4307
        %v4931 = vadd.f32 %v435, %v4611
        %v4932 = vadd.f32 %v436, %v4915
        %4933 = vst [vmem:[#allocation2] sm:$0xff] %v4917
        %4934 = vst [vmem:[#allocation2 + $0x8] sm:$0xff] %v4918
        %4935 = vst [vmem:[#allocation2 + $0x10] sm:$0xff] %v4919
        %4936 = vst [vmem:[#allocation2 + $0x18] sm:$0xff] %v4920
        %4937 = vst [vmem:[#allocation2 + $0x20] sm:$0xff] %v4921
        %4938 = vst [vmem:[#allocation2 + $0x28] sm:$0xff] %v4922
        %4939 = vst [vmem:[#allocation2 + $0x30] sm:$0xff] %v4923
        %4940 = vst [vmem:[#allocation2 + $0x38] sm:$0xff] %v4924
        %4941 = vst [vmem:[#allocation2 + $0x40] sm:$0xff] %v4925
        %4942 = vst [vmem:[#allocation2 + $0x48] sm:$0xff] %v4926
        %4943 = vst [vmem:[#allocation2 + $0x50] sm:$0xff] %v4927
        %4944 = vst [vmem:[#allocation2 + $0x58] sm:$0xff] %v4928
        %4945 = vst [vmem:[#allocation2 + $0x60] sm:$0xff] %v4929
        %4946 = vst [vmem:[#allocation2 + $0x68] sm:$0xff] %v4930
        %4947 = vst [vmem:[#allocation2 + $0x70] sm:$0xff] %v4931
        %4948 = vst [vmem:[#allocation2 + $0x78] sm:$0xff] %v4932
        %p4949 = scmp.eq.s32.totalorder %s21, 1
        // Predicated region
        $region80: #{discriminator_forward.5} parent=70 // pred_check
          %p4950 = pneg %p4949
        $region81: #{discriminator_forward.5} parent=70 // pred_check_branch
          %4952 = sbr.rel (%p4950) target = $region83
        $region82: #{discriminator_forward.5} parent=70 // pred_region
          %v4953 = vld [vmem:[#allocation2] sm:$0xff]
          %v4954 = vld [vmem:[#allocation2 + $0x8] sm:$0xff]
          %v4955 = vld [vmem:[#allocation2 + $0x10] sm:$0xff]
          %v4956 = vld [vmem:[#allocation2 + $0x18] sm:$0xff]
          %v4957 = vld [vmem:[#allocation2 + $0x20] sm:$0xff]
          %v4958 = vld [vmem:[#allocation2 + $0x28] sm:$0xff]
          %v4959 = vld [vmem:[#allocation2 + $0x30] sm:$0xff]
          %v4960 = vld [vmem:[#allocation2 + $0x38] sm:$0xff]
          %v4961 = vld [vmem:[#allocation2 + $0x40] sm:$0xff]
          %v4962 = vld [vmem:[#allocation2 + $0x48] sm:$0xff]
          %v4963 = vld [vmem:[#allocation2 + $0x50] sm:$0xff]
          %v4964 = vld [vmem:[#allocation2 + $0x58] sm:$0xff]
          %v4965 = vld [vmem:[#allocation2 + $0x60] sm:$0xff]
          %v4966 = vld [vmem:[#allocation2 + $0x68] sm:$0xff]
          %v4967 = vld [vmem:[#allocation2 + $0x70] sm:$0xff]
          %v4968 = vld [vmem:[#allocation2 + $0x78] sm:$0xff]
          %v4969 = vld [vmem:[%s2] sm:$0xf]
          %v4971 = vperm.slane %v4969, 0
          %v4972 = vperm.slane %v4969, 1
          %v4973 = vperm.slane %v4969, 2
          %v4974 = vperm.slane %v4969, 3
          %v4979 = vadd.f32 %v4953, %v4971
          %v4980 = vadd.f32 %v4954, %v4972
          %v4981 = vadd.f32 %v4955, %v4973
          %v4982 = vadd.f32 %v4956, %v4974
          %v4983 = vadd.f32 %v4957, %v4971
          %v4984 = vadd.f32 %v4958, %v4972
          %v4985 = vadd.f32 %v4959, %v4973
          %v4986 = vadd.f32 %v4960, %v4974
          %v4987 = vadd.f32 %v4961, %v4971
          %v4988 = vadd.f32 %v4962, %v4972
          %v4989 = vadd.f32 %v4963, %v4973
          %v4990 = vadd.f32 %v4964, %v4974
          %v4991 = vadd.f32 %v4965, %v4971
          %v4992 = vadd.f32 %v4966, %v4972
          %v4993 = vadd.f32 %v4967, %v4973
          %v4994 = vadd.f32 %v4968, %v4974
          %vm4995 = vcmp.ge.f32.partialorder %v4979, 0.0
          %vm4996 = vcmp.ge.f32.partialorder %v4980, 0.0
          %vm4997 = vcmp.ge.f32.partialorder %v4981, 0.0
          %vm4998 = vcmp.ge.f32.partialorder %v4982, 0.0
          %vm4999 = vcmp.ge.f32.partialorder %v4983, 0.0
          %vm5000 = vcmp.ge.f32.partialorder %v4984, 0.0
          %vm5001 = vcmp.ge.f32.partialorder %v4985, 0.0
          %vm5002 = vcmp.ge.f32.partialorder %v4986, 0.0
          %vm5003 = vcmp.ge.f32.partialorder %v4987, 0.0
          %vm5004 = vcmp.ge.f32.partialorder %v4988, 0.0
          %vm5005 = vcmp.ge.f32.partialorder %v4989, 0.0
          %vm5006 = vcmp.ge.f32.partialorder %v4990, 0.0
          %vm5007 = vcmp.ge.f32.partialorder %v4991, 0.0
          %vm5008 = vcmp.ge.f32.partialorder %v4992, 0.0
          %vm5009 = vcmp.ge.f32.partialorder %v4993, 0.0
          %vm5010 = vcmp.ge.f32.partialorder %v4994, 0.0
          %v5011 = vmul.f32 %v4979, 0.2
          %v5012 = vmul.f32 %v4980, 0.2
          %v5013 = vmul.f32 %v4981, 0.2
          %v5014 = vmul.f32 %v4982, 0.2
          %v5015 = vmul.f32 %v4983, 0.2
          %v5016 = vmul.f32 %v4984, 0.2
          %v5017 = vmul.f32 %v4985, 0.2
          %v5018 = vmul.f32 %v4986, 0.2
          %v5019 = vmul.f32 %v4987, 0.2
          %v5020 = vmul.f32 %v4988, 0.2
          %v5021 = vmul.f32 %v4989, 0.2
          %v5022 = vmul.f32 %v4990, 0.2
          %v5023 = vmul.f32 %v4991, 0.2
          %v5024 = vmul.f32 %v4992, 0.2
          %v5025 = vmul.f32 %v4993, 0.2
          %v5026 = vmul.f32 %v4994, 0.2
          %v5027 = vsel %vm4995, %v4979, %v5011
          %v5028 = vsel %vm4996, %v4980, %v5012
          %v5029 = vsel %vm4997, %v4981, %v5013
          %v5030 = vsel %vm4998, %v4982, %v5014
          %v5031 = vsel %vm4999, %v4983, %v5015
          %v5032 = vsel %vm5000, %v4984, %v5016
          %v5033 = vsel %vm5001, %v4985, %v5017
          %v5034 = vsel %vm5002, %v4986, %v5018
          %v5035 = vsel %vm5003, %v4987, %v5019
          %v5036 = vsel %vm5004, %v4988, %v5020
          %v5037 = vsel %vm5005, %v4989, %v5021
          %v5038 = vsel %vm5006, %v4990, %v5022
          %v5039 = vsel %vm5007, %v4991, %v5023
          %v5040 = vsel %vm5008, %v4992, %v5024
          %v5041 = vsel %vm5009, %v4993, %v5025
          %v5042 = vsel %vm5010, %v4994, %v5026
          %v5043 = vadd.f32 %v5027, %v5031
          %v5044 = vadd.f32 %v5043, %v5035
          %v5045 = vadd.f32 %v5044, %v5039
          %v5046 = vrot.slane %v5045, 4
          %v5047 = vadd.f32 %v5045, %v5046
          %v5048 = vrot.slane %v5047, 2
          %v5049 = vadd.f32 %v5047, %v5048
          %v5050 = vrot.slane %v5049, 1
          %v5051 = vadd.f32 %v5049, %v5050
          %v5052 = vadd.f32 %v5028, %v5032
          %v5053 = vadd.f32 %v5052, %v5036
          %v5054 = vadd.f32 %v5053, %v5040
          %v5055 = vrot.slane %v5054, 4
          %v5056 = vadd.f32 %v5054, %v5055
          %v5057 = vrot.slane %v5056, 2
          %v5058 = vadd.f32 %v5056, %v5057
          %v5059 = vrot.slane %v5058, 1
          %v5060 = vadd.f32 %v5058, %v5059
          %v5061 = vadd.f32 %v5029, %v5033
          %v5062 = vadd.f32 %v5061, %v5037
          %v5063 = vadd.f32 %v5062, %v5041
          %v5064 = vrot.slane %v5063, 4
          %v5065 = vadd.f32 %v5063, %v5064
          %v5066 = vrot.slane %v5065, 2
          %v5067 = vadd.f32 %v5065, %v5066
          %v5068 = vrot.slane %v5067, 1
          %v5069 = vadd.f32 %v5067, %v5068
          %v5070 = vadd.f32 %v5030, %v5034
          %v5071 = vadd.f32 %v5070, %v5038
          %v5072 = vadd.f32 %v5071, %v5042
          %v5073 = vrot.slane %v5072, 4
          %v5074 = vadd.f32 %v5072, %v5073
          %v5075 = vrot.slane %v5074, 2
          %v5076 = vadd.f32 %v5074, %v5075
          %v5077 = vrot.slane %v5076, 1
          %v5078 = vadd.f32 %v5076, %v5077
          %v5079 = vrcp.pop 32.0
          %v5080 = vmul.f32 32.0, %v5079
          %v5081 = vsub.f32 1.0, %v5080
          %v5082 = vmul.f32 %v5079, %v5081
          %v5083 = vadd.f32 %v5079, %v5082
          %vm5084 = vweird.f32 %v5079
          %v5085 = vsel %vm5084, %v5079, %v5083
          %v5086 = vmul.f32 %v5051, %v5085
          %v5087 = vmul.f32 %v5060, %v5085
          %v5088 = vmul.f32 %v5069, %v5085
          %v5089 = vmul.f32 %v5078, %v5085
          %v5090 = vmul.f32 %v5027, %v5027
          %v5091 = vmul.f32 %v5028, %v5028
          %v5092 = vmul.f32 %v5029, %v5029
          %v5093 = vmul.f32 %v5030, %v5030
          %v5094 = vmul.f32 %v5031, %v5031
          %v5095 = vmul.f32 %v5032, %v5032
          %v5096 = vmul.f32 %v5033, %v5033
          %v5097 = vmul.f32 %v5034, %v5034
          %v5098 = vmul.f32 %v5035, %v5035
          %v5099 = vmul.f32 %v5036, %v5036
          %v5100 = vmul.f32 %v5037, %v5037
          %v5101 = vmul.f32 %v5038, %v5038
          %v5102 = vmul.f32 %v5039, %v5039
          %v5103 = vmul.f32 %v5040, %v5040
          %v5104 = vmul.f32 %v5041, %v5041
          %v5105 = vmul.f32 %v5042, %v5042
          %v5106 = vadd.f32 %v5090, %v5094
          %v5107 = vadd.f32 %v5106, %v5098
          %v5108 = vadd.f32 %v5107, %v5102
          %v5109 = vrot.slane %v5108, 4
          %v5110 = vadd.f32 %v5108, %v5109
          %v5111 = vrot.slane %v5110, 2
          %v5112 = vadd.f32 %v5110, %v5111
          %v5113 = vrot.slane %v5112, 1
          %v5114 = vadd.f32 %v5112, %v5113
          %v5115 = vadd.f32 %v5091, %v5095
          %v5116 = vadd.f32 %v5115, %v5099
          %v5117 = vadd.f32 %v5116, %v5103
          %v5118 = vrot.slane %v5117, 4
          %v5119 = vadd.f32 %v5117, %v5118
          %v5120 = vrot.slane %v5119, 2
          %v5121 = vadd.f32 %v5119, %v5120
          %v5122 = vrot.slane %v5121, 1
          %v5123 = vadd.f32 %v5121, %v5122
          %v5124 = vadd.f32 %v5092, %v5096
          %v5125 = vadd.f32 %v5124, %v5100
          %v5126 = vadd.f32 %v5125, %v5104
          %v5127 = vrot.slane %v5126, 4
          %v5128 = vadd.f32 %v5126, %v5127
          %v5129 = vrot.slane %v5128, 2
          %v5130 = vadd.f32 %v5128, %v5129
          %v5131 = vrot.slane %v5130, 1
          %v5132 = vadd.f32 %v5130, %v5131
          %v5133 = vadd.f32 %v5093, %v5097
          %v5134 = vadd.f32 %v5133, %v5101
          %v5135 = vadd.f32 %v5134, %v5105
          %v5136 = vrot.slane %v5135, 4
          %v5137 = vadd.f32 %v5135, %v5136
          %v5138 = vrot.slane %v5137, 2
          %v5139 = vadd.f32 %v5137, %v5138
          %v5140 = vrot.slane %v5139, 1
          %v5141 = vadd.f32 %v5139, %v5140
          %v5142 = vmul.f32 %v5114, %v5085
          %v5143 = vmul.f32 %v5123, %v5085
          %v5144 = vmul.f32 %v5132, %v5085
          %v5145 = vmul.f32 %v5141, %v5085
          %v5146 = vmul.f32 %v5086, %v5086
          %v5147 = vmul.f32 %v5087, %v5087
          %v5148 = vmul.f32 %v5088, %v5088
          %v5149 = vmul.f32 %v5089, %v5089
          %v5150 = vsub.f32 %v5142, %v5146
          %v5151 = vsub.f32 %v5143, %v5147
          %v5152 = vsub.f32 %v5144, %v5148
          %v5153 = vsub.f32 %v5145, %v5149
          %v5154 = vsub.f32 %v5027, %v5086
          %v5155 = vsub.f32 %v5028, %v5087
          %v5156 = vsub.f32 %v5029, %v5088
          %v5157 = vsub.f32 %v5030, %v5089
          %v5158 = vsub.f32 %v5031, %v5086
          %v5159 = vsub.f32 %v5032, %v5087
          %v5160 = vsub.f32 %v5033, %v5088
          %v5161 = vsub.f32 %v5034, %v5089
          %v5162 = vsub.f32 %v5035, %v5086
          %v5163 = vsub.f32 %v5036, %v5087
          %v5164 = vsub.f32 %v5037, %v5088
          %v5165 = vsub.f32 %v5038, %v5089
          %v5166 = vsub.f32 %v5039, %v5086
          %v5167 = vsub.f32 %v5040, %v5087
          %v5168 = vsub.f32 %v5041, %v5088
          %v5169 = vsub.f32 %v5042, %v5089
          %v5170 = vadd.f32 %v5150, 1e-05
          %v5171 = vadd.f32 %v5151, 1e-05
          %v5172 = vadd.f32 %v5152, 1e-05
          %v5173 = vadd.f32 %v5153, 1e-05
          %v5174 = vrsqrt.pop %v5170
          %v5175 = vmul.f32 %v5174, %v5170
          %v5176 = vmul.f32 %v5175, %v5174
          %v5177 = vmul.f32 0.5, %v5176
          %v5178 = vsub.f32 1.5, %v5177
          %v5179 = vmul.f32 %v5174, %v5178
          %vm5180 = vweird.f32 %v5170
          %vm5181 = vweird.f32 %v5174
          %vm5182 = vmor %vm5180, %vm5181
          %v5183 = vsel %vm5182, %v5174, %v5179
          %v5184 = vrsqrt.pop %v5171
          %v5185 = vmul.f32 %v5184, %v5171
          %v5186 = vmul.f32 %v5185, %v5184
          %v5187 = vmul.f32 0.5, %v5186
          %v5188 = vsub.f32 1.5, %v5187
          %v5189 = vmul.f32 %v5184, %v5188
          %vm5190 = vweird.f32 %v5171
          %vm5191 = vweird.f32 %v5184
          %vm5192 = vmor %vm5190, %vm5191
          %v5193 = vsel %vm5192, %v5184, %v5189
          %v5194 = vrsqrt.pop %v5172
          %v5195 = vmul.f32 %v5194, %v5172
          %v5196 = vmul.f32 %v5195, %v5194
          %v5197 = vmul.f32 0.5, %v5196
          %v5198 = vsub.f32 1.5, %v5197
          %v5199 = vmul.f32 %v5194, %v5198
          %vm5200 = vweird.f32 %v5172
          %vm5201 = vweird.f32 %v5194
          %vm5202 = vmor %vm5200, %vm5201
          %v5203 = vsel %vm5202, %v5194, %v5199
          %v5204 = vrsqrt.pop %v5173
          %v5205 = vmul.f32 %v5204, %v5173
          %v5206 = vmul.f32 %v5205, %v5204
          %v5207 = vmul.f32 0.5, %v5206
          %v5208 = vsub.f32 1.5, %v5207
          %v5209 = vmul.f32 %v5204, %v5208
          %vm5210 = vweird.f32 %v5173
          %vm5211 = vweird.f32 %v5204
          %vm5212 = vmor %vm5210, %vm5211
          %v5213 = vsel %vm5212, %v5204, %v5209
          %v5214 = vmul.f32 %v5154, %v5183
          %v5215 = vmul.f32 %v5155, %v5193
          %v5216 = vmul.f32 %v5156, %v5203
          %v5217 = vmul.f32 %v5157, %v5213
          %v5218 = vmul.f32 %v5158, %v5183
          %v5219 = vmul.f32 %v5159, %v5193
          %v5220 = vmul.f32 %v5160, %v5203
          %v5221 = vmul.f32 %v5161, %v5213
          %v5222 = vmul.f32 %v5162, %v5183
          %v5223 = vmul.f32 %v5163, %v5193
          %v5224 = vmul.f32 %v5164, %v5203
          %v5225 = vmul.f32 %v5165, %v5213
          %v5226 = vmul.f32 %v5166, %v5183
          %v5227 = vmul.f32 %v5167, %v5193
          %v5228 = vmul.f32 %v5168, %v5203
          %v5229 = vmul.f32 %v5169, %v5213
          %v5230 = vld [vmem:[%s3] sm:$0xf]
          %v5232 = vperm.slane %v5230, 0
          %v5233 = vperm.slane %v5230, 1
          %v5234 = vperm.slane %v5230, 2
          %v5235 = vperm.slane %v5230, 3
          %v5240 = vmul.f32 %v5214, %v5232
          %v5241 = vmul.f32 %v5215, %v5233
          %v5242 = vmul.f32 %v5216, %v5234
          %v5243 = vmul.f32 %v5217, %v5235
          %v5244 = vmul.f32 %v5218, %v5232
          %v5245 = vmul.f32 %v5219, %v5233
          %v5246 = vmul.f32 %v5220, %v5234
          %v5247 = vmul.f32 %v5221, %v5235
          %v5248 = vmul.f32 %v5222, %v5232
          %v5249 = vmul.f32 %v5223, %v5233
          %v5250 = vmul.f32 %v5224, %v5234
          %v5251 = vmul.f32 %v5225, %v5235
          %v5252 = vmul.f32 %v5226, %v5232
          %v5253 = vmul.f32 %v5227, %v5233
          %v5254 = vmul.f32 %v5228, %v5234
          %v5255 = vmul.f32 %v5229, %v5235
          %v5256 = vld [vmem:[%s4] sm:$0xf]
          %v5258 = vperm.slane %v5256, 0
          %v5259 = vperm.slane %v5256, 1
          %v5260 = vperm.slane %v5256, 2
          %v5261 = vperm.slane %v5256, 3
          %v5266 = vadd.f32 %v5240, %v5258
          %v5267 = vadd.f32 %v5241, %v5259
          %v5268 = vadd.f32 %v5242, %v5260
          %v5269 = vadd.f32 %v5243, %v5261
          %v5270 = vadd.f32 %v5244, %v5258
          %v5271 = vadd.f32 %v5245, %v5259
          %v5272 = vadd.f32 %v5246, %v5260
          %v5273 = vadd.f32 %v5247, %v5261
          %v5274 = vadd.f32 %v5248, %v5258
          %v5275 = vadd.f32 %v5249, %v5259
          %v5276 = vadd.f32 %v5250, %v5260
          %v5277 = vadd.f32 %v5251, %v5261
          %v5278 = vadd.f32 %v5252, %v5258
          %v5279 = vadd.f32 %v5253, %v5259
          %v5280 = vadd.f32 %v5254, %v5260
          %v5281 = vadd.f32 %v5255, %v5261
          %v5282 = vld [vmem:[%s5] sm:$0xff]
          %v5283 = vld [vmem:[%s5 + $0x8] sm:$0xff]
          %v5284 = vld [vmem:[%s5 + $0x10] sm:$0xff]
          %v5285 = vld [vmem:[%s5 + $0x18] sm:$0xff]
          %v5286 = vld [vmem:[%s5 + $0x20] sm:$0xff]
          %v5287 = vld [vmem:[%s5 + $0x28] sm:$0xff]
          %v5288 = vld [vmem:[%s5 + $0x30] sm:$0xff]
          %v5289 = vld [vmem:[%s5 + $0x38] sm:$0xff]
          %v5290 = vld [vmem:[%s5 + $0x40] sm:$0xff]
          %v5291 = vld [vmem:[%s5 + $0x48] sm:$0xff]
          %v5292 = vld [vmem:[%s5 + $0x50] sm:$0xff]
          %v5293 = vld [vmem:[%s5 + $0x58] sm:$0xff]
          %v5294 = vld [vmem:[%s5 + $0x60] sm:$0xff]
          %v5295 = vld [vmem:[%s5 + $0x68] sm:$0xff]
          %v5296 = vld [vmem:[%s5 + $0x70] sm:$0xff]
          %v5297 = vld [vmem:[%s5 + $0x78] sm:$0xff]
          %v5298 = vmul.f32 %v5266, %v5282
          %v5299 = vmul.f32 %v5267, %v5283
          %v5300 = vmul.f32 %v5268, %v5284
          %v5301 = vmul.f32 %v5269, %v5285
          %v5302 = vmul.f32 %v5270, %v5286
          %v5303 = vmul.f32 %v5271, %v5287
          %v5304 = vmul.f32 %v5272, %v5288
          %v5305 = vmul.f32 %v5273, %v5289
          %v5306 = vmul.f32 %v5274, %v5290
          %v5307 = vmul.f32 %v5275, %v5291
          %v5308 = vmul.f32 %v5276, %v5292
          %v5309 = vmul.f32 %v5277, %v5293
          %v5310 = vmul.f32 %v5278, %v5294
          %v5311 = vmul.f32 %v5279, %v5295
          %v5312 = vmul.f32 %v5280, %v5296
          %v5313 = vmul.f32 %v5281, %v5297
          %v5314 = vld [vmem:[%s6] sm:$0x3]
          %vm5315 = vcmask 261120
          %v5317 = vsel %vm5315, %v5314, 0
          %5319 = vmatpush.msra.mxu0 0.0
          %5320 = vmatpush.msra.mxu0 0.0
          %5321 = vmatpush.msra.mxu0 0.0
          %5322 = vmatpush.msra.mxu0 0.0
          %5323 = vmatpush.msra.mxu0 0.0
          %5324 = vmatpush.msra.mxu0 0.0
          %5325 = vmatpush.msra.mxu0 0.0
          %5326 = vmatpush.msra.mxu0 0.0
          %5327 = vmatpush.msra.mxu0 0.0
          %5328 = vmatpush.msra.mxu0 0.0
          %5329 = vmatpush.msra.mxu0 0.0
          %5330 = vmatpush.msra.mxu0 0.0
          %5331 = vmatpush.msra.mxu0 %v5310
          %5332 = vmatpush.msra.mxu0 %v5306
          %5333 = vmatpush.msra.mxu0 %v5302
          %5334 = vmatpush.msra.mxu0 %v5298
          %5335 = vmatmul.f32.gmra.mxu0 %v5317
          %v5336 = vpop.f32.mrf.mxu0
          %v5337 = vadd.f32 0.0, %v5336
          %5338 = vdwg.mxu0
          %5339 = vmatpush.msra.mxu0 0.0
          %5340 = vmatpush.msra.mxu0 0.0
          %5341 = vmatpush.msra.mxu0 0.0
          %5342 = vmatpush.msra.mxu0 0.0
          %5343 = vmatpush.msra.mxu0 0.0
          %5344 = vmatpush.msra.mxu0 0.0
          %5345 = vmatpush.msra.mxu0 0.0
          %5346 = vmatpush.msra.mxu0 0.0
          %5347 = vmatpush.msra.mxu0 0.0
          %5348 = vmatpush.msra.mxu0 0.0
          %5349 = vmatpush.msra.mxu0 0.0
          %5350 = vmatpush.msra.mxu0 0.0
          %5351 = vmatpush.msra.mxu0 %v5311
          %5352 = vmatpush.msra.mxu0 %v5307
          %5353 = vmatpush.msra.mxu0 %v5303
          %5354 = vmatpush.msra.mxu0 %v5299
          %5355 = vmatmul.f32.gmra.mxu0 %v5317
          %v5356 = vpop.f32.mrf.mxu0
          %v5357 = vadd.f32 0.0, %v5356
          %5358 = vdwg.mxu0
          %5359 = vmatpush.msra.mxu0 0.0
          %5360 = vmatpush.msra.mxu0 0.0
          %5361 = vmatpush.msra.mxu0 0.0
          %5362 = vmatpush.msra.mxu0 0.0
          %5363 = vmatpush.msra.mxu0 0.0
          %5364 = vmatpush.msra.mxu0 0.0
          %5365 = vmatpush.msra.mxu0 0.0
          %5366 = vmatpush.msra.mxu0 0.0
          %5367 = vmatpush.msra.mxu0 0.0
          %5368 = vmatpush.msra.mxu0 0.0
          %5369 = vmatpush.msra.mxu0 0.0
          %5370 = vmatpush.msra.mxu0 0.0
          %5371 = vmatpush.msra.mxu0 %v5312
          %5372 = vmatpush.msra.mxu0 %v5308
          %5373 = vmatpush.msra.mxu0 %v5304
          %5374 = vmatpush.msra.mxu0 %v5300
          %5375 = vmatmul.f32.gmra.mxu0 %v5317
          %v5376 = vpop.f32.mrf.mxu0
          %v5377 = vadd.f32 0.0, %v5376
          %5378 = vdwg.mxu0
          %5379 = vmatpush.msra.mxu0 0.0
          %5380 = vmatpush.msra.mxu0 0.0
          %5381 = vmatpush.msra.mxu0 0.0
          %5382 = vmatpush.msra.mxu0 0.0
          %5383 = vmatpush.msra.mxu0 0.0
          %5384 = vmatpush.msra.mxu0 0.0
          %5385 = vmatpush.msra.mxu0 0.0
          %5386 = vmatpush.msra.mxu0 0.0
          %5387 = vmatpush.msra.mxu0 0.0
          %5388 = vmatpush.msra.mxu0 0.0
          %5389 = vmatpush.msra.mxu0 0.0
          %5390 = vmatpush.msra.mxu0 0.0
          %5391 = vmatpush.msra.mxu0 %v5313
          %5392 = vmatpush.msra.mxu0 %v5309
          %5393 = vmatpush.msra.mxu0 %v5305
          %5394 = vmatpush.msra.mxu0 %v5301
          %5395 = vmatmul.f32.gmra.mxu0 %v5317
          %v5396 = vpop.f32.mrf.mxu0
          %v5397 = vadd.f32 0.0, %v5396
          %5398 = vdwg.mxu0
          %vm5399 = vcmask 1041408
          %v5400 = vsel %vm5399, %v5337, 0.0
          %v5401 = vsel %vm5399, %v5357, 0.0
          %v5402 = vadd.f32 %v5400, %v5401
          %v5403 = vsel %vm5399, %v5377, 0.0
          %v5404 = vadd.f32 %v5402, %v5403
          %v5405 = vsel %vm5399, %v5397, 0.0
          %v5406 = vadd.f32 %v5404, %v5405
          %5407 = vadd.xlane.f32.xlu0 %v5406
          %v5408 = vpop.xlane.xlu0 %5407
          %v5409 = vld [vmem:[#allocation3] sm:$0x1]
          %v5411 = vperm.slane %v5409, 0
          %v5413 = vadd.f32 %v5408, %v5411
          %v5414 = vxor.u32 %v5413, 2147483648
          %v5415 = vmul.f32 %v5414, 1.442695
          %v5416 = vpow.pop %v5415
          %v5417 = vadd.f32 %v5416, 1.0
          %v5418 = vrcp.pop %v5417
          %v5419 = vmul.f32 %v5417, %v5418
          %v5420 = vsub.f32 1.0, %v5419
          %v5421 = vmul.f32 %v5418, %v5420
          %v5422 = vadd.f32 %v5418, %v5421
          %vm5423 = vweird.f32 %v5417
          %vm5424 = vweird.f32 %v5418
          %vm5425 = vmor %vm5423, %vm5424
          %v5426 = vsel %vm5425, %v5418, %v5422
          %v5427 = vand.u32 2147483647, %v5417
          %vm5428 = vcmp.eq.f32.partialorder %v5427, 8.507059e+37
          %v5429 = vand.u32 %v5417, 2147483648
          %v5430 = vor.u32 1.1754944e-38, %v5429
          %v5431 = vsel %vm5428, %v5430, %v5426
          %v5432 = vmul.f32 1.0, %v5431
          %vm5433 = vcmask 1024
          %5434 = vst.msk [vmem:[%s8] sm:$0x3] %vm5433, %v5432
        $region83: #{discriminator_forward.5} parent=70 // pred_fallthru
          _
        // Predicated region
        $region84: #{discriminator_forward.5} parent=70 // pred_check
          %p5435 = pneg %p212
        $region85: #{discriminator_forward.5} parent=70 // pred_check_branch
          %5437 = sbr.rel (%p5435) target = $region87
        $region86: #{discriminator_forward.5} parent=70 // pred_region
          _
        $region87: #{discriminator_forward.5} parent=70 // pred_fallthru
          _
        // Predicated region
        $region88: #{discriminator_forward.5} parent=70 // pred_check
          %p5438 = pneg %p212
        $region89: #{discriminator_forward.5} parent=70 // pred_check_branch
          %5440 = sbr.rel (%p5438) target = $region91
        $region90: #{discriminator_forward.5} parent=70 // pred_region
          _
        $region91: #{discriminator_forward.5} parent=70 // pred_fallthru
          _
      $region71: #{discriminator_forward.5} parent=5 // pred_fallthru
        _
      %p5441 = scmp.le.s32.totalorder 2, %s16
      // Predicated region
      $region92: #{discriminator_forward.5} parent=5 // pred_check
        %p5442 = pneg %p5441
      $region93: #{discriminator_forward.5} parent=5 // pred_check_branch
        %5444 = sbr.rel (%p5442) target = $region95
      $region94: #{discriminator_forward.5} parent=5 // pred_region
        %s5445 = ssub.s32 %s16, 2
      $region95: #{discriminator_forward.5} parent=5 // pred_fallthru
        _
    $region6: #{discriminator_forward.5} parent=1 // loop_footer
      %s20 = sadd.s32 1, %s16
    $region7: #{discriminator_forward.5} parent=1 // loop_footer_branch
      %15 = sbr.rel target = $region3
    $region8: #{discriminator_forward.5} parent=1 // loop_exit
      _

</llo_original>
